<compile_context>
chip_gen: v7x
topology: tpu7x:2x2x1
jax: 0.10.0
libtpu: 0.0.40
codegen_flags: <defaults>
</compile_context>

<pallas_src>
import functools
import math

import jax
import jax.numpy as jnp
from jax.experimental import pallas as pl
from jax.experimental.pallas import tpu as pltpu


# ---------------------------------------------------------------------------
# Kernels
# ---------------------------------------------------------------------------

def _attention_core(Q, K, V, wo_ref, bo_ref, out_ref, attn_ref, *,
                    bblk, seq, num_heads, head_dim, compute_dtype):
    """Shared attention body. Q/K/V: (bblk*seq, E) in compute_dtype."""
    E = num_heads * head_dim

    def to_heads(x):
        # (bblk*seq, E) -> (bblk*H, seq, head_dim): merged (batch, head) batch
        # dim so the score / PV contractions are single batched einsums.
        return (x.reshape(bblk, seq, num_heads, head_dim)
                 .transpose(0, 2, 1, 3)
                 .reshape(bblk * num_heads, seq, head_dim))

    Qh, Kh, Vh = to_heads(Q), to_heads(K), to_heads(V)

    # Scores in f32 (1/sqrt(head_dim) already folded into Wq/bq in the wrapper).
    scores = jnp.einsum("bqd,bkd->bqk", Qh, Kh,
                        preferred_element_type=jnp.float32)      # (bblk*H, S, S)

    # Numerically-stable softmax, f32.
    m = jnp.max(scores, axis=-1, keepdims=True)
    p = jnp.exp(scores - m)
    denom = jnp.sum(p, axis=-1, keepdims=True)

    if attn_ref is not None:
        # Exact reciprocal on the materialized weights so rows sum to ~1.
        w = p * pl.reciprocal(denom)
        attn_ref[...] = w.reshape(bblk, num_heads, seq, seq).astype(attn_ref.dtype)
        attended = jnp.einsum("bqk,bkd->bqd", w.astype(compute_dtype), Vh,
                              preferred_element_type=jnp.float32)
    else:
        # Normalize after the PV matmul: H*S*hd multiplies instead of H*S*S,
        # approximate reciprocal runs on the EUP slot.
        attended = jnp.einsum("bqk,bkd->bqd", p.astype(compute_dtype), Vh,
                              preferred_element_type=jnp.float32)
        attended = attended * pl.reciprocal(denom, approx=True)

    # Merge heads back to (bblk*S, E) and run one output-projection dot.
    attended = (attended.reshape(bblk, num_heads, seq, head_dim)
                        .transpose(0, 2, 1, 3)
                        .reshape(bblk * seq, E))
    out = jnp.dot(attended.astype(compute_dtype), wo_ref[...],
                  preferred_element_type=jnp.float32) + bo_ref[0]
    out_ref[...] = out.reshape(bblk, seq, E).astype(out_ref.dtype)


def _mha_kernel_sep(q_ref, k_ref, v_ref,
                    wq_ref, bq_ref, wk_ref, bk_ref, wv_ref, bv_ref,
                    wo_ref, bo_ref, out_ref, *attn_refs,
                    bblk, seq, num_heads, head_dim, compute_dtype):
    """General (cross-attention) path: separate Q/K/V inputs and projections."""
    E = num_heads * head_dim
    n = bblk * seq
    xq = q_ref[...].reshape(n, E)
    xk = k_ref[...].reshape(n, E)
    xv = v_ref[...].reshape(n, E)
    Q = (jnp.dot(xq, wq_ref[...], preferred_element_type=jnp.float32)
         + bq_ref[0]).astype(compute_dtype)
    K = (jnp.dot(xk, wk_ref[...], preferred_element_type=jnp.float32)
         + bk_ref[0]).astype(compute_dtype)
    V = (jnp.dot(xv, wv_ref[...], preferred_element_type=jnp.float32)
         + bv_ref[0]).astype(compute_dtype)
    _attention_core(Q, K, V, wo_ref, bo_ref, out_ref,
                    attn_refs[0] if attn_refs else None,
                    bblk=bblk, seq=seq, num_heads=num_heads,
                    head_dim=head_dim, compute_dtype=compute_dtype)


def _mha_kernel_fused(x_ref, wqkv_ref, bqkv_ref, wo_ref, bo_ref,
                      out_ref, *attn_refs,
                      bblk, seq, num_heads, head_dim, compute_dtype):
    """Self-attention path: one fused (E, 3E) QKV projection dot."""
    E = num_heads * head_dim
    n = bblk * seq
    x = x_ref[...].reshape(n, E)
    qkv = jnp.dot(x, wqkv_ref[...], preferred_element_type=jnp.float32) + bqkv_ref[0]
    Q = qkv[:, 0 * E:1 * E].astype(compute_dtype)
    K = qkv[:, 1 * E:2 * E].astype(compute_dtype)
    V = qkv[:, 2 * E:3 * E].astype(compute_dtype)
    _attention_core(Q, K, V, wo_ref, bo_ref, out_ref,
                    attn_refs[0] if attn_refs else None,
                    bblk=bblk, seq=seq, num_heads=num_heads,
                    head_dim=head_dim, compute_dtype=compute_dtype)


# ---------------------------------------------------------------------------
# Wrapper
# ---------------------------------------------------------------------------

def _pick_batch_block(B, S, E, H, cdt_size, attn_size, return_attn, n_inputs,
                      target_rows=256, vmem_budget=20 * 1024 * 1024):
    """Largest bblk s.t. bblk*S ~ target MXU rows and blocks fit the budget."""
    bblk = max(1, min(B, -(-target_rows // S)))

    def step_bytes(b):
        io = n_inputs * b * S * E * cdt_size + b * S * E * 4
        attn_out = b * H * S * S * attn_size if return_attn else 0
        # f32 scores + probs live ranges + attended intermediate.
        scratch = 2 * b * H * S * S * 4 + b * S * E * 4
        return 2 * (io + attn_out) + scratch

    while bblk > 1 and step_bytes(bblk) > vmem_budget:
        bblk = max(1, bblk // 2)
    return bblk


def multi_head_attention(query, key, value, params, *, num_heads: int,
                         compute_dtype=jnp.bfloat16,
                         attn_weights_dtype=jnp.float32,
                         return_attn_weights: bool = True,
                         batch_block: int | None = None):
    """query/key/value: (B, S, E). params: PyTorch-layout weights (out, in)."""
    B, S, E = query.shape
    assert E % num_heads == 0, "embed_dim must be divisible by num_heads"
    head_dim = E // num_heads
    inv_scale = 1.0 / math.sqrt(head_dim)
    cdt = jnp.dtype(compute_dtype)
    adt = jnp.dtype(attn_weights_dtype)

    # Self-attention fast path (fused QKV projection) when q/k/v are identical.
    fused_qkv = (key is query) and (value is query)
    n_inputs = 1 if fused_qkv else 3

    # PyTorch Linear weight is (out, in) -> transpose to (in, out).  Fold the
    # 1/sqrt(head_dim) score scale into the Q projection (weights AND bias).
    wq_t = (params["wq"].T * inv_scale).astype(cdt)
    wk_t = params["wk"].T.astype(cdt)
    wv_t = params["wv"].T.astype(cdt)
    wo_t = params["wo"].T.astype(cdt)
    bq = (params["bq"] * inv_scale).reshape(1, E).astype(jnp.float32)
    bk = params["bk"].reshape(1, E).astype(jnp.float32)
    bv = params["bv"].reshape(1, E).astype(jnp.float32)
    bo = params["bo"].reshape(1, E).astype(jnp.float32)

    if batch_block is None:
        batch_block = _pick_batch_block(B, S, E, num_heads, cdt.itemsize,
                                        adt.itemsize, return_attn_weights,
                                        n_inputs)
    bblk = max(1, min(batch_block, B))
    padded_B = -(-B // bblk) * bblk
    grid = (padded_B // bblk,)
    # TODO(synk): on v7x (2 TCs) prefer an even grid length >= 2 when B allows.

    def pad_b(x):
        x = x.astype(cdt)
        if padded_B == B:
            return x
        return jnp.pad(x, ((0, padded_B - B), (0, 0), (0, 0)))

    q_p = pad_b(query)
    if fused_qkv:
        wqkv = jnp.concatenate([wq_t, wk_t, wv_t], axis=1)      # (E, 3E)
        bqkv = jnp.concatenate([bq, bk, bv], axis=1)            # (1, 3E)
        kernel = functools.partial(_mha_kernel_fused, bblk=bblk, seq=S,
                                   num_heads=num_heads, head_dim=head_dim,
                                   compute_dtype=cdt)
        args = (q_p, wqkv, bqkv, wo_t, bo)
    else:
        k_p, v_p = pad_b(key), pad_b(value)
        kernel = functools.partial(_mha_kernel_sep, bblk=bblk, seq=S,
                                   num_heads=num_heads, head_dim=head_dim,
                                   compute_dtype=cdt)
        args = (q_p, k_p, v_p, wq_t, bq, wk_t, bk, wv_t, bv, wo_t, bo)

    attn_bytes = padded_B * num_heads * S * S * adt.itemsize if return_attn_weights else 0
    cost = pl.CostEstimate(
        flops=int(8 * padded_B * S * E * E + 4 * padded_B * S * S * E),
        transcendentals=int(padded_B * num_heads * S * S),
        bytes_accessed=int(n_inputs * padded_B * S * E * cdt.itemsize
                           + 4 * E * E * cdt.itemsize + 4 * E * 4
                           + padded_B * S * E * 4 + attn_bytes),
    )

    def _run(use_single_buffer):
        # Buffered(1): weights/biases have constant index maps (no pipelining
        # needed) and the big attention-weights block shouldn't be doubled.
        pm = dict(pipeline_mode=pl.Buffered(1)) if use_single_buffer else {}

        x_spec = pl.BlockSpec((bblk, S, E), lambda b: (b, 0, 0))
        out_specs = [pl.BlockSpec((bblk, S, E), lambda b: (b, 0, 0))]
        out_shapes = [jax.ShapeDtypeStruct((padded_B, S, E), jnp.float32)]
        if return_attn_weights:
            out_specs.append(pl.BlockSpec((bblk, num_heads, S, S),
                                          lambda b: (b, 0, 0, 0), **pm))
            out_shapes.append(jax.ShapeDtypeStruct(
                (padded_B, num_heads, S, S), adt))

        if fused_qkv:
            in_specs = [x_spec,
                        pl.BlockSpec((E, 3 * E), lambda b: (0, 0), **pm),
                        pl.BlockSpec((1, 3 * E), lambda b: (0, 0), **pm),
                        pl.BlockSpec((E, E), lambda b: (0, 0), **pm),
                        pl.BlockSpec((1, E), lambda b: (0, 0), **pm)]
        else:
            w_specs = []
            for _ in range(4):
                w_specs.append(pl.BlockSpec((E, E), lambda b: (0, 0), **pm))
                w_specs.append(pl.BlockSpec((1, E), lambda b: (0, 0), **pm))
            in_specs = [x_spec, x_spec, x_spec] + w_specs

        return pl.pallas_call(
            kernel,
            grid=grid,
            in_specs=in_specs,
            out_specs=out_specs,
            out_shape=out_shapes,
            compiler_params=pltpu.CompilerParams(
                dimension_semantics=("parallel",),
                vmem_limit_bytes=32 * 1024 * 1024),
            cost_estimate=cost,
        )(*args)

    try:
        results = _run(True)
    except Exception:
        # Fallback if this JAX build rejects pipeline_mode=pl.Buffered(1).
        results = _run(False)

    out = results[0][:B]
    if return_attn_weights:
        return out, results[1][:B]
    return out, None


# ---------------------------------------------------------------------------
# Pure-JAX reference (mirrors the PyTorch forward, eval mode, mask=None)
# ---------------------------------------------------------------------------

def _reference_mha(query, key, value, params, *, num_heads: int):
    B, S, E = query.shape
    hd = E // num_heads
    scale = float(hd) ** 0.5

    def lin(x, w, b):
        return x @ w.T + b

    Q = lin(query, params["wq"], params["bq"]).reshape(B, S, num_heads, hd).transpose(0, 2, 1, 3)
    K = lin(key, params["wk"], params["bk"]).reshape(B, S, num_heads, hd).transpose(0, 2, 1, 3)
    V = lin(value, params["wv"], params["bv"]).reshape(B, S, num_heads, hd).transpose(0, 2, 1, 3)
    scores = jnp.einsum("bhqd,bhkd->bhqk", Q, K) / scale
    w = jax.nn.softmax(scores, axis=-1)
    attended = jnp.einsum("bhqk,bhkd->bhqd", w, V)
    attended = attended.transpose(0, 2, 1, 3).reshape(B, S, E)
    out = lin(attended, params["wo"], params["bo"])
    return out, w


if __name__ == "__main__":
    B, S, E = 2, 8, 32
    num_heads = 8

    key0 = jax.random.PRNGKey(0)
    keys = jax.random.split(key0, 12)

    bound = 1.0 / (E ** 0.5)
    params = {
        "wq": jax.random.uniform(keys[0], (E, E), jnp.float32, -bound, bound),
        "bq": jax.random.uniform(keys[1], (E,), jnp.float32, -bound, bound),
        "wk": jax.random.uniform(keys[2], (E, E), jnp.float32, -bound, bound),
        "bk": jax.random.uniform(keys[3], (E,), jnp.float32, -bound, bound),
        "wv": jax.random.uniform(keys[4], (E, E), jnp.float32, -bound, bound),
        "bv": jax.random.uniform(keys[5], (E,), jnp.float32, -bound, bound),
        "wo": jax.random.uniform(keys[6], (E, E), jnp.float32, -bound, bound),
        "bo": jax.random.uniform(keys[7], (E,), jnp.float32, -bound, bound),
    }

    query = jax.random.normal(keys[8], (B, S, E), jnp.float32)
    key_in = jax.random.normal(keys[9], (B, S, E), jnp.float32)
    value = jax.random.normal(keys[10], (B, S, E), jnp.float32)

    ref_out, ref_attn = _reference_mha(query, key_in, value, params,
                                       num_heads=num_heads)

    # 1) Cross-attention, f32 compute, batch-blocked grid (default bblk).
    out, attn = multi_head_attention(query, key_in, value, params,
                                     num_heads=num_heads,
                                     compute_dtype=jnp.float32)
    out = jax.block_until_ready(out)
    attn = jax.block_until_ready(attn)
    assert jnp.allclose(out, ref_out, atol=1e-4, rtol=1e-4), "f32 output mismatch"
    assert jnp.allclose(attn, ref_attn, atol=1e-4, rtol=1e-4), "f32 attn mismatch"

    # 2) Same, but force batch_block=1 so the grid has 2 steps (exercises the
    #    multi-step pipeline with single-buffered weights / attn output).
    out1, attn1 = multi_head_attention(query, key_in, value, params,
                                       num_heads=num_heads,
                                       compute_dtype=jnp.float32,
                                       batch_block=1)
    out1 = jax.block_until_ready(out1)
    assert jnp.allclose(out1, ref_out, atol=1e-4, rtol=1e-4), "grid>1 output mismatch"
    assert jnp.allclose(attn1, ref_attn, atol=1e-4, rtol=1e-4), "grid>1 attn mismatch"

    # 3) Self-attention fused-QKV fast path (query is key is value), f32.
    ref_out_sa, ref_attn_sa = _reference_mha(query, query, query, params,
                                             num_heads=num_heads)
    out_sa, attn_sa = multi_head_attention(query, query, query, params,
                                           num_heads=num_heads,
                                           compute_dtype=jnp.float32)
    out_sa = jax.block_until_ready(out_sa)
    assert jnp.allclose(out_sa, ref_out_sa, atol=1e-4, rtol=1e-4), "fused output mismatch"
    assert jnp.allclose(attn_sa, ref_attn_sa, atol=1e-4, rtol=1e-4), "fused attn mismatch"

    # 4) Default bf16 MXU compute (production default) — loose smoke check.
    out_bf, attn_bf = multi_head_attention(query, key_in, value, params,
                                           num_heads=num_heads)
    out_bf = jax.block_until_ready(out_bf)
    assert jnp.allclose(out_bf, ref_out, atol=2e-1, rtol=2e-1), "bf16 output mismatch"
    assert jnp.allclose(attn_bf, ref_attn, atol=1e-1, rtol=1e-1), "bf16 attn mismatch"

    print("KERNEL_OK")
</pallas_src>

<mosaic_0001>
module attributes {stable_mosaic.version = 11 : i64} {
  func.func @_mha_kernel_sep(%arg0: i32, %arg1: memref<2x8x32xf32, #tpu.memory_space<vmem>>, %arg2: memref<2x8x32xf32, #tpu.memory_space<vmem>>, %arg3: memref<2x8x32xf32, #tpu.memory_space<vmem>>, %arg4: memref<32x32xf32, #tpu.memory_space<vmem>>, %arg5: memref<1x32xf32, #tpu.memory_space<vmem>>, %arg6: memref<32x32xf32, #tpu.memory_space<vmem>>, %arg7: memref<1x32xf32, #tpu.memory_space<vmem>>, %arg8: memref<32x32xf32, #tpu.memory_space<vmem>>, %arg9: memref<1x32xf32, #tpu.memory_space<vmem>>, %arg10: memref<32x32xf32, #tpu.memory_space<vmem>>, %arg11: memref<1x32xf32, #tpu.memory_space<vmem>>, %arg12: memref<2x8x32xf32, #tpu.memory_space<vmem>>, %arg13: memref<2x8x8x8xf32, #tpu.memory_space<vmem>>) attributes {dimension_semantics = [#tpu.dimension_semantics<parallel>], iteration_bounds = array<i64: 1>, scalar_prefetch = 0 : i64, scratch_operands = 0 : i64, tpu.core_type = #tpu.core_type<tc>, window_params = [{transform_indices = @transform_0, window_bounds = array<i64: 2, 8, 32>}, {transform_indices = @transform_1, window_bounds = array<i64: 2, 8, 32>}, {transform_indices = @transform_2, window_bounds = array<i64: 2, 8, 32>}, {pipeline_mode = #tpu.pipeline_mode<synchronous>, transform_indices = @transform_3, window_bounds = array<i64: 32, 32>}, {pipeline_mode = #tpu.pipeline_mode<synchronous>, transform_indices = @transform_4, window_bounds = array<i64: 1, 32>}, {pipeline_mode = #tpu.pipeline_mode<synchronous>, transform_indices = @transform_5, window_bounds = array<i64: 32, 32>}, {pipeline_mode = #tpu.pipeline_mode<synchronous>, transform_indices = @transform_6, window_bounds = array<i64: 1, 32>}, {pipeline_mode = #tpu.pipeline_mode<synchronous>, transform_indices = @transform_7, window_bounds = array<i64: 32, 32>}, {pipeline_mode = #tpu.pipeline_mode<synchronous>, transform_indices = @transform_8, window_bounds = array<i64: 1, 32>}, {pipeline_mode = #tpu.pipeline_mode<synchronous>, transform_indices = @transform_9, window_bounds = array<i64: 32, 32>}, {pipeline_mode = #tpu.pipeline_mode<synchronous>, transform_indices = @transform_10, window_bounds = array<i64: 1, 32>}, {transform_indices = @transform_11, window_bounds = array<i64: 2, 8, 32>}, {pipeline_mode = #tpu.pipeline_mode<synchronous>, transform_indices = @transform_12, window_bounds = array<i64: 2, 8, 8, 8>}]} {
    %c0 = arith.constant 0 : index
    %c0_0 = arith.constant 0 : index
    %c0_1 = arith.constant 0 : index
    %0 = vector.load %arg1[%c0, %c0_0, %c0_1] : memref<2x8x32xf32, #tpu.memory_space<vmem>>, vector<2x8x32xf32>
    %1 = vector.shape_cast %0 : vector<2x8x32xf32> to vector<16x32xf32>
    %c0_2 = arith.constant 0 : index
    %c0_3 = arith.constant 0 : index
    %c0_4 = arith.constant 0 : index
    %2 = vector.load %arg2[%c0_2, %c0_3, %c0_4] : memref<2x8x32xf32, #tpu.memory_space<vmem>>, vector<2x8x32xf32>
    %3 = vector.shape_cast %2 : vector<2x8x32xf32> to vector<16x32xf32>
    %c0_5 = arith.constant 0 : index
    %c0_6 = arith.constant 0 : index
    %c0_7 = arith.constant 0 : index
    %4 = vector.load %arg3[%c0_5, %c0_6, %c0_7] : memref<2x8x32xf32, #tpu.memory_space<vmem>>, vector<2x8x32xf32>
    %5 = vector.shape_cast %4 : vector<2x8x32xf32> to vector<16x32xf32>
    %c0_8 = arith.constant 0 : index
    %c0_9 = arith.constant 0 : index
    %6 = vector.load %arg4[%c0_8, %c0_9] : memref<32x32xf32, #tpu.memory_space<vmem>>, vector<32x32xf32>
    %cst = arith.constant dense<0.000000e+00> : vector<16x32xf32>
    %7 = tpu.matmul %1, %6, %cst {dimension_numbers = #tpu.dot_dimension_numbers<[1], [0], [0], [1], [0, 0, 1, 1], [], []>} : vector<16x32xf32>, vector<32x32xf32>, vector<16x32xf32> -> vector<16x32xf32>
    %c0_10 = arith.constant 0 : index
    %c0_11 = arith.constant 0 : index
    %8 = vector.load %arg5[%c0_10, %c0_11] : memref<1x32xf32, #tpu.memory_space<vmem>>, vector<1x32xf32>
    %9 = vector.shape_cast %8 : vector<1x32xf32> to vector<32xf32>
    %10 = vector.shape_cast %9 : vector<32xf32> to vector<1x32xf32>
    %11 = vector.broadcast %10 : vector<1x32xf32> to vector<16x32xf32>
    %12 = arith.addf %7, %11 : vector<16x32xf32>
    %c0_12 = arith.constant 0 : index
    %c0_13 = arith.constant 0 : index
    %13 = vector.load %arg6[%c0_12, %c0_13] : memref<32x32xf32, #tpu.memory_space<vmem>>, vector<32x32xf32>
    %cst_14 = arith.constant dense<0.000000e+00> : vector<16x32xf32>
    %14 = tpu.matmul %3, %13, %cst_14 {dimension_numbers = #tpu.dot_dimension_numbers<[1], [0], [0], [1], [0, 0, 1, 1], [], []>} : vector<16x32xf32>, vector<32x32xf32>, vector<16x32xf32> -> vector<16x32xf32>
    %c0_15 = arith.constant 0 : index
    %c0_16 = arith.constant 0 : index
    %15 = vector.load %arg7[%c0_15, %c0_16] : memref<1x32xf32, #tpu.memory_space<vmem>>, vector<1x32xf32>
    %16 = vector.shape_cast %15 : vector<1x32xf32> to vector<32xf32>
    %17 = vector.shape_cast %16 : vector<32xf32> to vector<1x32xf32>
    %18 = vector.broadcast %17 : vector<1x32xf32> to vector<16x32xf32>
    %19 = arith.addf %14, %18 : vector<16x32xf32>
    %c0_17 = arith.constant 0 : index
    %c0_18 = arith.constant 0 : index
    %20 = vector.load %arg8[%c0_17, %c0_18] : memref<32x32xf32, #tpu.memory_space<vmem>>, vector<32x32xf32>
    %cst_19 = arith.constant dense<0.000000e+00> : vector<16x32xf32>
    %21 = tpu.matmul %5, %20, %cst_19 {dimension_numbers = #tpu.dot_dimension_numbers<[1], [0], [0], [1], [0, 0, 1, 1], [], []>} : vector<16x32xf32>, vector<32x32xf32>, vector<16x32xf32> -> vector<16x32xf32>
    %c0_20 = arith.constant 0 : index
    %c0_21 = arith.constant 0 : index
    %22 = vector.load %arg9[%c0_20, %c0_21] : memref<1x32xf32, #tpu.memory_space<vmem>>, vector<1x32xf32>
    %23 = vector.shape_cast %22 : vector<1x32xf32> to vector<32xf32>
    %24 = vector.shape_cast %23 : vector<32xf32> to vector<1x32xf32>
    %25 = vector.broadcast %24 : vector<1x32xf32> to vector<16x32xf32>
    %26 = arith.addf %21, %25 : vector<16x32xf32>
    %27 = vector.shape_cast %12 : vector<16x32xf32> to vector<2x8x8x4xf32>
    %28 = tpu.transpose %27, [0, 2, 1, 3] : vector<2x8x8x4xf32> -> vector<2x8x8x4xf32>
    %29 = vector.shape_cast %28 : vector<2x8x8x4xf32> to vector<16x8x4xf32>
    %30 = vector.shape_cast %19 : vector<16x32xf32> to vector<2x8x8x4xf32>
    %31 = tpu.transpose %30, [0, 2, 1, 3] : vector<2x8x8x4xf32> -> vector<2x8x8x4xf32>
    %32 = vector.shape_cast %31 : vector<2x8x8x4xf32> to vector<16x8x4xf32>
    %33 = vector.shape_cast %26 : vector<16x32xf32> to vector<2x8x8x4xf32>
    %34 = tpu.transpose %33, [0, 2, 1, 3] : vector<2x8x8x4xf32> -> vector<2x8x8x4xf32>
    %35 = vector.shape_cast %34 : vector<2x8x8x4xf32> to vector<16x8x4xf32>
    "tpu.trace_start"() <{level = 10 : i32, message = "bqd,bkd->bqk"}> : () -> ()
    %cst_22 = arith.constant dense<0.000000e+00> : vector<16x8x8xf32>
    %36 = tpu.matmul %29, %32, %cst_22 {dimension_numbers = #tpu.dot_dimension_numbers<[2], [2], [1], [1], [0, 0, 0, 1, 1, 1], [0], [0]>} : vector<16x8x4xf32>, vector<16x8x4xf32>, vector<16x8x8xf32> -> vector<16x8x8xf32>
    "tpu.trace_stop"() : () -> ()
    %cst_23 = arith.constant dense<0xFF800000> : vector<16x8xf32>
    %37 = vector.multi_reduction <maximumf>, %36, %cst_23 [2] : vector<16x8x8xf32> to vector<16x8xf32>
    %38 = vector.shape_cast %37 : vector<16x8xf32> to vector<16x8x1xf32>
    %39 = vector.broadcast %38 : vector<16x8x1xf32> to vector<16x8x8xf32>
    %40 = arith.subf %36, %39 : vector<16x8x8xf32>
    %41 = math.exp %40 : vector<16x8x8xf32>
    %cst_24 = arith.constant dense<0.000000e+00> : vector<16x8xf32>
    %42 = vector.multi_reduction <add>, %41, %cst_24 [2] : vector<16x8x8xf32> to vector<16x8xf32>
    %43 = vector.shape_cast %42 : vector<16x8xf32> to vector<16x8x1xf32>
    %44 = tpu.reciprocal %43 : vector<16x8x1xf32> -> vector<16x8x1xf32>
    %45 = vector.broadcast %44 : vector<16x8x1xf32> to vector<16x8x8xf32>
    %46 = arith.mulf %41, %45 : vector<16x8x8xf32>
    %47 = vector.shape_cast %46 : vector<16x8x8xf32> to vector<2x8x8x8xf32>
    %c0_25 = arith.constant 0 : index
    %c0_26 = arith.constant 0 : index
    %c0_27 = arith.constant 0 : index
    %c0_28 = arith.constant 0 : index
    %48 = vector.load %arg13[%c0_25, %c0_26, %c0_27, %c0_28] : memref<2x8x8x8xf32, #tpu.memory_space<vmem>>, vector<2x8x8x8xf32>
    tpu.vector_store %arg13[%c0_25, %c0_26, %c0_27, %c0_28], %47 {strides = array<i32>} : memref<2x8x8x8xf32, #tpu.memory_space<vmem>>, vector<2x8x8x8xf32>,
    "tpu.trace_start"() <{level = 10 : i32, message = "bqk,bkd->bqd"}> : () -> ()
    %cst_29 = arith.constant dense<0.000000e+00> : vector<16x8x4xf32>
    %49 = tpu.matmul %46, %35, %cst_29 {dimension_numbers = #tpu.dot_dimension_numbers<[2], [1], [1], [2], [0, 0, 0, 1, 1, 2], [0], [0]>} : vector<16x8x8xf32>, vector<16x8x4xf32>, vector<16x8x4xf32> -> vector<16x8x4xf32>
    "tpu.trace_stop"() : () -> ()
    %50 = vector.shape_cast %49 : vector<16x8x4xf32> to vector<2x8x8x4xf32>
    %51 = tpu.transpose %50, [0, 2, 1, 3] : vector<2x8x8x4xf32> -> vector<2x8x8x4xf32>
    %52 = vector.shape_cast %51 : vector<2x8x8x4xf32> to vector<16x32xf32>
    %c0_30 = arith.constant 0 : index
    %c0_31 = arith.constant 0 : index
    %53 = vector.load %arg10[%c0_30, %c0_31] : memref<32x32xf32, #tpu.memory_space<vmem>>, vector<32x32xf32>
    %cst_32 = arith.constant dense<0.000000e+00> : vector<16x32xf32>
    %54 = tpu.matmul %52, %53, %cst_32 {dimension_numbers = #tpu.dot_dimension_numbers<[1], [0], [0], [1], [0, 0, 1, 1], [], []>} : vector<16x32xf32>, vector<32x32xf32>, vector<16x32xf32> -> vector<16x32xf32>
    %c0_33 = arith.constant 0 : index
    %c0_34 = arith.constant 0 : index
    %55 = vector.load %arg11[%c0_33, %c0_34] : memref<1x32xf32, #tpu.memory_space<vmem>>, vector<1x32xf32>
    %56 = vector.shape_cast %55 : vector<1x32xf32> to vector<32xf32>
    %57 = vector.shape_cast %56 : vector<32xf32> to vector<1x32xf32>
    %58 = vector.broadcast %57 : vector<1x32xf32> to vector<16x32xf32>
    %59 = arith.addf %54, %58 : vector<16x32xf32>
    %60 = vector.shape_cast %59 : vector<16x32xf32> to vector<2x8x32xf32>
    %c0_35 = arith.constant 0 : index
    %c0_36 = arith.constant 0 : index
    %c0_37 = arith.constant 0 : index
    %61 = vector.load %arg12[%c0_35, %c0_36, %c0_37] : memref<2x8x32xf32, #tpu.memory_space<vmem>>, vector<2x8x32xf32>
    tpu.vector_store %arg12[%c0_35, %c0_36, %c0_37], %60 {strides = array<i32>} : memref<2x8x32xf32, #tpu.memory_space<vmem>>, vector<2x8x32xf32>,
    return
  }
  func.func @transform_0(%arg0: i32) -> (i32, i32, i32) {
    %c0_i32 = arith.constant 0 : i32
    %c0_i32_0 = arith.constant 0 : i32
    %c0_i32_1 = arith.constant 0 : i32
    return %arg0, %c0_i32, %c0_i32_0 : i32, i32, i32
  }
  func.func @transform_1(%arg0: i32) -> (i32, i32, i32) {
    %c0_i32 = arith.constant 0 : i32
    %c0_i32_0 = arith.constant 0 : i32
    %c0_i32_1 = arith.constant 0 : i32
    return %arg0, %c0_i32, %c0_i32_0 : i32, i32, i32
  }
  func.func @transform_2(%arg0: i32) -> (i32, i32, i32) {
    %c0_i32 = arith.constant 0 : i32
    %c0_i32_0 = arith.constant 0 : i32
    %c0_i32_1 = arith.constant 0 : i32
    return %arg0, %c0_i32, %c0_i32_0 : i32, i32, i32
  }
  func.func @transform_3(%arg0: i32) -> (i32, i32) {
    %c0_i32 = arith.constant 0 : i32
    %c0_i32_0 = arith.constant 0 : i32
    %c0_i32_1 = arith.constant 0 : i32
    return %c0_i32, %c0_i32_0 : i32, i32
  }
  func.func @transform_4(%arg0: i32) -> (i32, i32) {
    %c0_i32 = arith.constant 0 : i32
    %c0_i32_0 = arith.constant 0 : i32
    %c0_i32_1 = arith.constant 0 : i32
    return %c0_i32, %c0_i32_0 : i32, i32
  }
  func.func @transform_5(%arg0: i32) -> (i32, i32) {
    %c0_i32 = arith.constant 0 : i32
    %c0_i32_0 = arith.constant 0 : i32
    %c0_i32_1 = arith.constant 0 : i32
    return %c0_i32, %c0_i32_0 : i32, i32
  }
  func.func @transform_6(%arg0: i32) -> (i32, i32) {
    %c0_i32 = arith.constant 0 : i32
    %c0_i32_0 = arith.constant 0 : i32
    %c0_i32_1 = arith.constant 0 : i32
    return %c0_i32, %c0_i32_0 : i32, i32
  }
  func.func @transform_7(%arg0: i32) -> (i32, i32) {
    %c0_i32 = arith.constant 0 : i32
    %c0_i32_0 = arith.constant 0 : i32
    %c0_i32_1 = arith.constant 0 : i32
    return %c0_i32, %c0_i32_0 : i32, i32
  }
  func.func @transform_8(%arg0: i32) -> (i32, i32) {
    %c0_i32 = arith.constant 0 : i32
    %c0_i32_0 = arith.constant 0 : i32
    %c0_i32_1 = arith.constant 0 : i32
    return %c0_i32, %c0_i32_0 : i32, i32
  }
  func.func @transform_9(%arg0: i32) -> (i32, i32) {
    %c0_i32 = arith.constant 0 : i32
    %c0_i32_0 = arith.constant 0 : i32
    %c0_i32_1 = arith.constant 0 : i32
    return %c0_i32, %c0_i32_0 : i32, i32
  }
  func.func @transform_10(%arg0: i32) -> (i32, i32) {
    %c0_i32 = arith.constant 0 : i32
    %c0_i32_0 = arith.constant 0 : i32
    %c0_i32_1 = arith.constant 0 : i32
    return %c0_i32, %c0_i32_0 : i32, i32
  }
  func.func @transform_11(%arg0: i32) -> (i32, i32, i32) {
    %c0_i32 = arith.constant 0 : i32
    %c0_i32_0 = arith.constant 0 : i32
    %c0_i32_1 = arith.constant 0 : i32
    return %arg0, %c0_i32, %c0_i32_0 : i32, i32, i32
  }
  func.func @transform_12(%arg0: i32) -> (i32, i32, i32, i32) {
    %c0_i32 = arith.constant 0 : i32
    %c0_i32_0 = arith.constant 0 : i32
    %c0_i32_1 = arith.constant 0 : i32
    %c0_i32_2 = arith.constant 0 : i32
    return %arg0, %c0_i32, %c0_i32_0, %c0_i32_1 : i32, i32, i32, i32
  }
}

module attributes {stable_mosaic.version = 11 : i64} {
  func.func @_mha_kernel_sep(%arg0: i32, %arg1: memref<2x8x32xf32, #tpu.memory_space<vmem>>, %arg2: memref<2x8x32xf32, #tpu.memory_space<vmem>>, %arg3: memref<2x8x32xf32, #tpu.memory_space<vmem>>, %arg4: memref<32x32xf32, #tpu.memory_space<vmem>>, %arg5: memref<1x32xf32, #tpu.memory_space<vmem>>, %arg6: memref<32x32xf32, #tpu.memory_space<vmem>>, %arg7: memref<1x32xf32, #tpu.memory_space<vmem>>, %arg8: memref<32x32xf32, #tpu.memory_space<vmem>>, %arg9: memref<1x32xf32, #tpu.memory_space<vmem>>, %arg10: memref<32x32xf32, #tpu.memory_space<vmem>>, %arg11: memref<1x32xf32, #tpu.memory_space<vmem>>, %arg12: memref<2x8x32xf32, #tpu.memory_space<vmem>>, %arg13: memref<2x8x8x8xf32, #tpu.memory_space<vmem>>) attributes {dimension_semantics = [#tpu.dimension_semantics<parallel>], iteration_bounds = array<i64: 1>, scalar_prefetch = 0 : i64, scratch_operands = 0 : i64, tpu.core_type = #tpu.core_type<tc>, window_params = [{transform_indices = @transform_0, window_bounds = array<i64: 2, 8, 32>}, {transform_indices = @transform_1, window_bounds = array<i64: 2, 8, 32>}, {transform_indices = @transform_2, window_bounds = array<i64: 2, 8, 32>}, {pipeline_mode = #tpu.pipeline_mode<synchronous>, transform_indices = @transform_3, window_bounds = array<i64: 32, 32>}, {pipeline_mode = #tpu.pipeline_mode<synchronous>, transform_indices = @transform_4, window_bounds = array<i64: 1, 32>}, {pipeline_mode = #tpu.pipeline_mode<synchronous>, transform_indices = @transform_5, window_bounds = array<i64: 32, 32>}, {pipeline_mode = #tpu.pipeline_mode<synchronous>, transform_indices = @transform_6, window_bounds = array<i64: 1, 32>}, {pipeline_mode = #tpu.pipeline_mode<synchronous>, transform_indices = @transform_7, window_bounds = array<i64: 32, 32>}, {pipeline_mode = #tpu.pipeline_mode<synchronous>, transform_indices = @transform_8, window_bounds = array<i64: 1, 32>}, {pipeline_mode = #tpu.pipeline_mode<synchronous>, transform_indices = @transform_9, window_bounds = array<i64: 32, 32>}, {pipeline_mode = #tpu.pipeline_mode<synchronous>, transform_indices = @transform_10, window_bounds = array<i64: 1, 32>}, {transform_indices = @transform_11, window_bounds = array<i64: 2, 8, 32>}, {transform_indices = @transform_12, window_bounds = array<i64: 2, 8, 8, 8>}]} {
    %c0 = arith.constant 0 : index
    %c0_0 = arith.constant 0 : index
    %c0_1 = arith.constant 0 : index
    %0 = vector.load %arg1[%c0, %c0_0, %c0_1] : memref<2x8x32xf32, #tpu.memory_space<vmem>>, vector<2x8x32xf32>
    %1 = vector.shape_cast %0 : vector<2x8x32xf32> to vector<16x32xf32>
    %c0_2 = arith.constant 0 : index
    %c0_3 = arith.constant 0 : index
    %c0_4 = arith.constant 0 : index
    %2 = vector.load %arg2[%c0_2, %c0_3, %c0_4] : memref<2x8x32xf32, #tpu.memory_space<vmem>>, vector<2x8x32xf32>
    %3 = vector.shape_cast %2 : vector<2x8x32xf32> to vector<16x32xf32>
    %c0_5 = arith.constant 0 : index
    %c0_6 = arith.constant 0 : index
    %c0_7 = arith.constant 0 : index
    %4 = vector.load %arg3[%c0_5, %c0_6, %c0_7] : memref<2x8x32xf32, #tpu.memory_space<vmem>>, vector<2x8x32xf32>
    %5 = vector.shape_cast %4 : vector<2x8x32xf32> to vector<16x32xf32>
    %c0_8 = arith.constant 0 : index
    %c0_9 = arith.constant 0 : index
    %6 = vector.load %arg4[%c0_8, %c0_9] : memref<32x32xf32, #tpu.memory_space<vmem>>, vector<32x32xf32>
    %cst = arith.constant dense<0.000000e+00> : vector<16x32xf32>
    %7 = tpu.matmul %1, %6, %cst {dimension_numbers = #tpu.dot_dimension_numbers<[1], [0], [0], [1], [0, 0, 1, 1], [], []>} : vector<16x32xf32>, vector<32x32xf32>, vector<16x32xf32> -> vector<16x32xf32>
    %c0_10 = arith.constant 0 : index
    %c0_11 = arith.constant 0 : index
    %8 = vector.load %arg5[%c0_10, %c0_11] : memref<1x32xf32, #tpu.memory_space<vmem>>, vector<1x32xf32>
    %9 = vector.shape_cast %8 : vector<1x32xf32> to vector<32xf32>
    %10 = vector.shape_cast %9 : vector<32xf32> to vector<1x32xf32>
    %11 = vector.broadcast %10 : vector<1x32xf32> to vector<16x32xf32>
    %12 = arith.addf %7, %11 : vector<16x32xf32>
    %c0_12 = arith.constant 0 : index
    %c0_13 = arith.constant 0 : index
    %13 = vector.load %arg6[%c0_12, %c0_13] : memref<32x32xf32, #tpu.memory_space<vmem>>, vector<32x32xf32>
    %cst_14 = arith.constant dense<0.000000e+00> : vector<16x32xf32>
    %14 = tpu.matmul %3, %13, %cst_14 {dimension_numbers = #tpu.dot_dimension_numbers<[1], [0], [0], [1], [0, 0, 1, 1], [], []>} : vector<16x32xf32>, vector<32x32xf32>, vector<16x32xf32> -> vector<16x32xf32>
    %c0_15 = arith.constant 0 : index
    %c0_16 = arith.constant 0 : index
    %15 = vector.load %arg7[%c0_15, %c0_16] : memref<1x32xf32, #tpu.memory_space<vmem>>, vector<1x32xf32>
    %16 = vector.shape_cast %15 : vector<1x32xf32> to vector<32xf32>
    %17 = vector.shape_cast %16 : vector<32xf32> to vector<1x32xf32>
    %18 = vector.broadcast %17 : vector<1x32xf32> to vector<16x32xf32>
    %19 = arith.addf %14, %18 : vector<16x32xf32>
    %c0_17 = arith.constant 0 : index
    %c0_18 = arith.constant 0 : index
    %20 = vector.load %arg8[%c0_17, %c0_18] : memref<32x32xf32, #tpu.memory_space<vmem>>, vector<32x32xf32>
    %cst_19 = arith.constant dense<0.000000e+00> : vector<16x32xf32>
    %21 = tpu.matmul %5, %20, %cst_19 {dimension_numbers = #tpu.dot_dimension_numbers<[1], [0], [0], [1], [0, 0, 1, 1], [], []>} : vector<16x32xf32>, vector<32x32xf32>, vector<16x32xf32> -> vector<16x32xf32>
    %c0_20 = arith.constant 0 : index
    %c0_21 = arith.constant 0 : index
    %22 = vector.load %arg9[%c0_20, %c0_21] : memref<1x32xf32, #tpu.memory_space<vmem>>, vector<1x32xf32>
    %23 = vector.shape_cast %22 : vector<1x32xf32> to vector<32xf32>
    %24 = vector.shape_cast %23 : vector<32xf32> to vector<1x32xf32>
    %25 = vector.broadcast %24 : vector<1x32xf32> to vector<16x32xf32>
    %26 = arith.addf %21, %25 : vector<16x32xf32>
    %27 = vector.shape_cast %12 : vector<16x32xf32> to vector<2x8x8x4xf32>
    %28 = tpu.transpose %27, [0, 2, 1, 3] : vector<2x8x8x4xf32> -> vector<2x8x8x4xf32>
    %29 = vector.shape_cast %28 : vector<2x8x8x4xf32> to vector<16x8x4xf32>
    %30 = vector.shape_cast %19 : vector<16x32xf32> to vector<2x8x8x4xf32>
    %31 = tpu.transpose %30, [0, 2, 1, 3] : vector<2x8x8x4xf32> -> vector<2x8x8x4xf32>
    %32 = vector.shape_cast %31 : vector<2x8x8x4xf32> to vector<16x8x4xf32>
    %33 = vector.shape_cast %26 : vector<16x32xf32> to vector<2x8x8x4xf32>
    %34 = tpu.transpose %33, [0, 2, 1, 3] : vector<2x8x8x4xf32> -> vector<2x8x8x4xf32>
    %35 = vector.shape_cast %34 : vector<2x8x8x4xf32> to vector<16x8x4xf32>
    "tpu.trace_start"() <{level = 10 : i32, message = "bqd,bkd->bqk"}> : () -> ()
    %cst_22 = arith.constant dense<0.000000e+00> : vector<16x8x8xf32>
    %36 = tpu.matmul %29, %32, %cst_22 {dimension_numbers = #tpu.dot_dimension_numbers<[2], [2], [1], [1], [0, 0, 0, 1, 1, 1], [0], [0]>} : vector<16x8x4xf32>, vector<16x8x4xf32>, vector<16x8x8xf32> -> vector<16x8x8xf32>
    "tpu.trace_stop"() : () -> ()
    %cst_23 = arith.constant dense<0xFF800000> : vector<16x8xf32>
    %37 = vector.multi_reduction <maximumf>, %36, %cst_23 [2] : vector<16x8x8xf32> to vector<16x8xf32>
    %38 = vector.shape_cast %37 : vector<16x8xf32> to vector<16x8x1xf32>
    %39 = vector.broadcast %38 : vector<16x8x1xf32> to vector<16x8x8xf32>
    %40 = arith.subf %36, %39 : vector<16x8x8xf32>
    %41 = math.exp %40 : vector<16x8x8xf32>
    %cst_24 = arith.constant dense<0.000000e+00> : vector<16x8xf32>
    %42 = vector.multi_reduction <add>, %41, %cst_24 [2] : vector<16x8x8xf32> to vector<16x8xf32>
    %43 = vector.shape_cast %42 : vector<16x8xf32> to vector<16x8x1xf32>
    %44 = tpu.reciprocal %43 : vector<16x8x1xf32> -> vector<16x8x1xf32>
    %45 = vector.broadcast %44 : vector<16x8x1xf32> to vector<16x8x8xf32>
    %46 = arith.mulf %41, %45 : vector<16x8x8xf32>
    %47 = vector.shape_cast %46 : vector<16x8x8xf32> to vector<2x8x8x8xf32>
    %c0_25 = arith.constant 0 : index
    %c0_26 = arith.constant 0 : index
    %c0_27 = arith.constant 0 : index
    %c0_28 = arith.constant 0 : index
    %48 = vector.load %arg13[%c0_25, %c0_26, %c0_27, %c0_28] : memref<2x8x8x8xf32, #tpu.memory_space<vmem>>, vector<2x8x8x8xf32>
    tpu.vector_store %arg13[%c0_25, %c0_26, %c0_27, %c0_28], %47 {strides = array<i32>} : memref<2x8x8x8xf32, #tpu.memory_space<vmem>>, vector<2x8x8x8xf32>,
    "tpu.trace_start"() <{level = 10 : i32, message = "bqk,bkd->bqd"}> : () -> ()
    %cst_29 = arith.constant dense<0.000000e+00> : vector<16x8x4xf32>
    %49 = tpu.matmul %46, %35, %cst_29 {dimension_numbers = #tpu.dot_dimension_numbers<[2], [1], [1], [2], [0, 0, 0, 1, 1, 2], [0], [0]>} : vector<16x8x8xf32>, vector<16x8x4xf32>, vector<16x8x4xf32> -> vector<16x8x4xf32>
    "tpu.trace_stop"() : () -> ()
    %50 = vector.shape_cast %49 : vector<16x8x4xf32> to vector<2x8x8x4xf32>
    %51 = tpu.transpose %50, [0, 2, 1, 3] : vector<2x8x8x4xf32> -> vector<2x8x8x4xf32>
    %52 = vector.shape_cast %51 : vector<2x8x8x4xf32> to vector<16x32xf32>
    %c0_30 = arith.constant 0 : index
    %c0_31 = arith.constant 0 : index
    %53 = vector.load %arg10[%c0_30, %c0_31] : memref<32x32xf32, #tpu.memory_space<vmem>>, vector<32x32xf32>
    %cst_32 = arith.constant dense<0.000000e+00> : vector<16x32xf32>
    %54 = tpu.matmul %52, %53, %cst_32 {dimension_numbers = #tpu.dot_dimension_numbers<[1], [0], [0], [1], [0, 0, 1, 1], [], []>} : vector<16x32xf32>, vector<32x32xf32>, vector<16x32xf32> -> vector<16x32xf32>
    %c0_33 = arith.constant 0 : index
    %c0_34 = arith.constant 0 : index
    %55 = vector.load %arg11[%c0_33, %c0_34] : memref<1x32xf32, #tpu.memory_space<vmem>>, vector<1x32xf32>
    %56 = vector.shape_cast %55 : vector<1x32xf32> to vector<32xf32>
    %57 = vector.shape_cast %56 : vector<32xf32> to vector<1x32xf32>
    %58 = vector.broadcast %57 : vector<1x32xf32> to vector<16x32xf32>
    %59 = arith.addf %54, %58 : vector<16x32xf32>
    %60 = vector.shape_cast %59 : vector<16x32xf32> to vector<2x8x32xf32>
    %c0_35 = arith.constant 0 : index
    %c0_36 = arith.constant 0 : index
    %c0_37 = arith.constant 0 : index
    %61 = vector.load %arg12[%c0_35, %c0_36, %c0_37] : memref<2x8x32xf32, #tpu.memory_space<vmem>>, vector<2x8x32xf32>
    tpu.vector_store %arg12[%c0_35, %c0_36, %c0_37], %60 {strides = array<i32>} : memref<2x8x32xf32, #tpu.memory_space<vmem>>, vector<2x8x32xf32>,
    return
  }
  func.func @transform_0(%arg0: i32) -> (i32, i32, i32) {
    %c0_i32 = arith.constant 0 : i32
    %c0_i32_0 = arith.constant 0 : i32
    %c0_i32_1 = arith.constant 0 : i32
    return %arg0, %c0_i32, %c0_i32_0 : i32, i32, i32
  }
  func.func @transform_1(%arg0: i32) -> (i32, i32, i32) {
    %c0_i32 = arith.constant 0 : i32
    %c0_i32_0 = arith.constant 0 : i32
    %c0_i32_1 = arith.constant 0 : i32
    return %arg0, %c0_i32, %c0_i32_0 : i32, i32, i32
  }
  func.func @transform_2(%arg0: i32) -> (i32, i32, i32) {
    %c0_i32 = arith.constant 0 : i32
    %c0_i32_0 = arith.constant 0 : i32
    %c0_i32_1 = arith.constant 0 : i32
    return %arg0, %c0_i32, %c0_i32_0 : i32, i32, i32
  }
  func.func @transform_3(%arg0: i32) -> (i32, i32) {
    %c0_i32 = arith.constant 0 : i32
    %c0_i32_0 = arith.constant 0 : i32
    %c0_i32_1 = arith.constant 0 : i32
    return %c0_i32, %c0_i32_0 : i32, i32
  }
  func.func @transform_4(%arg0: i32) -> (i32, i32) {
    %c0_i32 = arith.constant 0 : i32
    %c0_i32_0 = arith.constant 0 : i32
    %c0_i32_1 = arith.constant 0 : i32
    return %c0_i32, %c0_i32_0 : i32, i32
  }
  func.func @transform_5(%arg0: i32) -> (i32, i32) {
    %c0_i32 = arith.constant 0 : i32
    %c0_i32_0 = arith.constant 0 : i32
    %c0_i32_1 = arith.constant 0 : i32
    return %c0_i32, %c0_i32_0 : i32, i32
  }
  func.func @transform_6(%arg0: i32) -> (i32, i32) {
    %c0_i32 = arith.constant 0 : i32
    %c0_i32_0 = arith.constant 0 : i32
    %c0_i32_1 = arith.constant 0 : i32
    return %c0_i32, %c0_i32_0 : i32, i32
  }
  func.func @transform_7(%arg0: i32) -> (i32, i32) {
    %c0_i32 = arith.constant 0 : i32
    %c0_i32_0 = arith.constant 0 : i32
    %c0_i32_1 = arith.constant 0 : i32
    return %c0_i32, %c0_i32_0 : i32, i32
  }
  func.func @transform_8(%arg0: i32) -> (i32, i32) {
    %c0_i32 = arith.constant 0 : i32
    %c0_i32_0 = arith.constant 0 : i32
    %c0_i32_1 = arith.constant 0 : i32
    return %c0_i32, %c0_i32_0 : i32, i32
  }
  func.func @transform_9(%arg0: i32) -> (i32, i32) {
    %c0_i32 = arith.constant 0 : i32
    %c0_i32_0 = arith.constant 0 : i32
    %c0_i32_1 = arith.constant 0 : i32
    return %c0_i32, %c0_i32_0 : i32, i32
  }
  func.func @transform_10(%arg0: i32) -> (i32, i32) {
    %c0_i32 = arith.constant 0 : i32
    %c0_i32_0 = arith.constant 0 : i32
    %c0_i32_1 = arith.constant 0 : i32
    return %c0_i32, %c0_i32_0 : i32, i32
  }
  func.func @transform_11(%arg0: i32) -> (i32, i32, i32) {
    %c0_i32 = arith.constant 0 : i32
    %c0_i32_0 = arith.constant 0 : i32
    %c0_i32_1 = arith.constant 0 : i32
    return %arg0, %c0_i32, %c0_i32_0 : i32, i32, i32
  }
  func.func @transform_12(%arg0: i32) -> (i32, i32, i32, i32) {
    %c0_i32 = arith.constant 0 : i32
    %c0_i32_0 = arith.constant 0 : i32
    %c0_i32_1 = arith.constant 0 : i32
    %c0_i32_2 = arith.constant 0 : i32
    return %arg0, %c0_i32, %c0_i32_0, %c0_i32_1 : i32, i32, i32, i32
  }
}

</mosaic_0001>

<llo_original>
// kernel: tpu_custom_call.1
$region0: #{tpu_custom_call.1}
  #allocation0 [shape = 'u32[]', space=smem, size = 0x4, offset = 0x4, fixed_abs, tag = 'smem constant byte address 0x4 - core index']
  #allocation1 [shape = 'u32[144,128]{1,0:T(1,128)}', space=vmem, size = 0x12000, scoped, tag = 'internal scratch']
  %s0 = inlined_call_operand.hbm [shape: f32[2,8,32], index: 0, kind: input, shape index: {}]
  %s1 = inlined_call_operand.hbm [shape: f32[2,8,32], index: 1, kind: input, shape index: {}]
  %s2 = inlined_call_operand.hbm [shape: f32[2,8,32], index: 2, kind: input, shape index: {}]
  %s3 = inlined_call_operand.hbm [shape: f32[32,32], index: 3, kind: input, shape index: {}]
  %s4 = inlined_call_operand.vmem [shape: f32[1,32], index: 4, kind: input, shape index: {}]
  %s5 = inlined_call_operand.hbm [shape: f32[32,32], index: 5, kind: input, shape index: {}]
  %s6 = inlined_call_operand.vmem [shape: f32[1,32], index: 6, kind: input, shape index: {}]
  %s7 = inlined_call_operand.hbm [shape: f32[32,32], index: 7, kind: input, shape index: {}]
  %s8 = inlined_call_operand.hbm [shape: f32[1,32], index: 8, kind: input, shape index: {}]
  %s9 = inlined_call_operand.vmem [shape: f32[32,32], index: 9, kind: input, shape index: {}]
  %s10 = inlined_call_operand.vmem [shape: f32[1,32], index: 10, kind: input, shape index: {}]
  %s11 = inlined_call_operand.hbm [shape: f32[2,8,32], index: 11, kind: output, shape index: {0}]
  %s12 = inlined_call_operand.hbm [shape: f32[2,8,8,8], index: 12, kind: output, shape index: {1}]
  %13 = xla_tuple %s11, %s12
  %s14 = sld [smem:[#allocation0]]
  $region90: #{tpu_custom_call.1} parent=0
    _
  %s16 = ssub.s32 1, %s14
  %s17 = scalar_select 0, %s16, %s14
  $region1: #{tpu_custom_call.1} parent=0
    #allocation2 [shape = 'u8[8192]{0}', space=vmem, size = 0x2000, scoped, tag = 'input window, operand 0, single buffered']
    #allocation3 [shape = 's32[1]{0}', space=sflag, size = 0x4, scoped, tag = 'scoped memory for tpu_custom_call.1']
    #allocation4 [shape = 's32[1]{0}', space=sflag, size = 0x4, scoped, tag = 'scoped memory for tpu_custom_call.1']
    #allocation5 [shape = 'u8[8192]{0}', space=vmem, size = 0x2000, scoped, tag = 'input window, operand 1, single buffered']
    #allocation6 [shape = 's32[1]{0}', space=sflag, size = 0x4, scoped, tag = 'scoped memory for tpu_custom_call.1']
    #allocation7 [shape = 'u8[8192]{0}', space=vmem, size = 0x2000, scoped, tag = 'input window, operand 2, single buffered']
    #allocation8 [shape = 'u8[16384]{0}', space=vmem, size = 0x4000, scoped, tag = 'input window, operand 3, single buffered']
    #allocation9 [shape = 's32[1]{0}', space=sflag, size = 0x4, scoped, tag = 'scoped memory for tpu_custom_call.1']
    #allocation10 [shape = 'u8[16384]{0}', space=vmem, size = 0x4000, scoped, tag = 'input window, operand 5, single buffered']
    #allocation11 [shape = 'u8[16384]{0}', space=vmem, size = 0x4000, scoped, tag = 'input window, operand 7, single buffered']
    #allocation12 [shape = 's32[1]{0}', space=sflag, size = 0x4, scoped, tag = 'scoped memory for tpu_custom_call.1']
    #allocation13 [shape = 'u8[512]{0}', space=vmem, size = 0x400, scoped, tag = 'input window, operand 8, single buffered']
    #allocation14 [shape = 'u8[8192]{0}', space=vmem, size = 0x2000, scoped, tag = 'output window, operand 0, single buffered']
    #allocation15 [shape = 'u8[65536]{0}', space=vmem, size = 0x10000, scoped, tag = 'output window, operand 1, single buffered']
    #allocation16 [shape = 's32[1]{0}', space=sflag, size = 0x4, scoped, tag = 'scoped memory for tpu_custom_call.1']
    %18 = vsyncpa [#allocation3], 0
    %19 = vsyncpa [#allocation6], 0
    %20 = vsyncpa [#allocation9], 0
    %21 = vsyncpa [#allocation12], 0
    %22 = vsyncpa [#allocation4], 0
    %23 = vsyncpa [#allocation16], 0
    // Predicated region
    $region2: #{tpu_custom_call.1} parent=1 // pred_check
      _
    $region3: #{tpu_custom_call.1} parent=1 // pred_check_branch
      %25 = sbr.rel (0) target = $region5
    $region4: #{tpu_custom_call.1} parent=1 // pred_region
      %s27 = ssub.s32 256, 256
      %28 = vsyncadd [#allocation3], %s27
      %s29 = sshll.u32 [#allocation2], 4
      %s30 = int_to_ptr.vmem [resolvable:$true] %s29
      %35 = dma.hbm_to_vmem [thread:$0]  %s0, 256, %s30, [#allocation3], 128, 128, 8
    $region5: #{tpu_custom_call.1} parent=1 // pred_fallthru
      _
    // Predicated region
    $region6: #{tpu_custom_call.1} parent=1 // pred_check
      _
    $region7: #{tpu_custom_call.1} parent=1 // pred_check_branch
      %37 = sbr.rel (0) target = $region9
    $region8: #{tpu_custom_call.1} parent=1 // pred_region
      %s39 = ssub.s32 256, 256
      %40 = vsyncadd [#allocation6], %s39
      %s41 = sshll.u32 [#allocation5], 4
      %s42 = int_to_ptr.vmem [resolvable:$true] %s41
      %47 = dma.hbm_to_vmem [thread:$0]  %s1, 256, %s42, [#allocation6], 128, 128, 8
    $region9: #{tpu_custom_call.1} parent=1 // pred_fallthru
      _
    // Predicated region
    $region10: #{tpu_custom_call.1} parent=1 // pred_check
      _
    $region11: #{tpu_custom_call.1} parent=1 // pred_check_branch
      %49 = sbr.rel (0) target = $region13
    $region12: #{tpu_custom_call.1} parent=1 // pred_region
      %s51 = ssub.s32 256, 256
      %52 = vsyncadd [#allocation6], %s51
      %s53 = sshll.u32 [#allocation7], 4
      %s54 = int_to_ptr.vmem [resolvable:$true] %s53
      %59 = dma.hbm_to_vmem [thread:$0]  %s2, 256, %s54, [#allocation6], 128, 128, 8
    $region13: #{tpu_custom_call.1} parent=1 // pred_fallthru
      _
    // Predicated region
    $region14: #{tpu_custom_call.1} parent=1 // pred_check
      _
    $region15: #{tpu_custom_call.1} parent=1 // pred_check_branch
      %61 = sbr.rel (0) target = $region17
    $region16: #{tpu_custom_call.1} parent=1 // pred_region
      %s63 = ssub.s32 512, 512
      %64 = vsyncadd [#allocation9], %s63
      %s65 = sshll.u32 [#allocation8], 4
      %s66 = int_to_ptr.vmem [resolvable:$true] %s65
      %71 = dma.hbm_to_vmem [thread:$0]  %s3, 512, %s66, [#allocation9], 128, 128, 8
    $region17: #{tpu_custom_call.1} parent=1 // pred_fallthru
      _
    // Predicated region
    $region18: #{tpu_custom_call.1} parent=1 // pred_check
      _
    $region19: #{tpu_custom_call.1} parent=1 // pred_check_branch
      %73 = sbr.rel (0) target = $region21
    $region20: #{tpu_custom_call.1} parent=1 // pred_region
      _
    $region21: #{tpu_custom_call.1} parent=1 // pred_fallthru
      _
    // Predicated region
    $region22: #{tpu_custom_call.1} parent=1 // pred_check
      _
    $region23: #{tpu_custom_call.1} parent=1 // pred_check_branch
      %75 = sbr.rel (0) target = $region25
    $region24: #{tpu_custom_call.1} parent=1 // pred_region
      %s77 = ssub.s32 512, 512
      %78 = vsyncadd [#allocation9], %s77
      %s79 = sshll.u32 [#allocation10], 4
      %s80 = int_to_ptr.vmem [resolvable:$true] %s79
      %85 = dma.hbm_to_vmem [thread:$0]  %s5, 512, %s80, [#allocation9], 128, 128, 8
    $region25: #{tpu_custom_call.1} parent=1 // pred_fallthru
      _
    // Predicated region
    $region26: #{tpu_custom_call.1} parent=1 // pred_check
      _
    $region27: #{tpu_custom_call.1} parent=1 // pred_check_branch
      %87 = sbr.rel (0) target = $region29
    $region28: #{tpu_custom_call.1} parent=1 // pred_region
      _
    $region29: #{tpu_custom_call.1} parent=1 // pred_fallthru
      _
    // Predicated region
    $region30: #{tpu_custom_call.1} parent=1 // pred_check
      _
    $region31: #{tpu_custom_call.1} parent=1 // pred_check_branch
      %89 = sbr.rel (0) target = $region33
    $region32: #{tpu_custom_call.1} parent=1 // pred_region
      %s91 = ssub.s32 512, 512
      %92 = vsyncadd [#allocation12], %s91
      %s93 = sshll.u32 [#allocation11], 4
      %s94 = int_to_ptr.vmem [resolvable:$true] %s93
      %99 = dma.hbm_to_vmem [thread:$0]  %s7, 512, %s94, [#allocation12], 128, 128, 8
    $region33: #{tpu_custom_call.1} parent=1 // pred_fallthru
      _
    // Predicated region
    $region34: #{tpu_custom_call.1} parent=1 // pred_check
      _
    $region35: #{tpu_custom_call.1} parent=1 // pred_check_branch
      %101 = sbr.rel (0) target = $region37
    $region36: #{tpu_custom_call.1} parent=1 // pred_region
      %s103 = ssub.s32 16, 16
      %104 = vsyncadd [#allocation12], %s103
      %s106 = sshll.u32 [#allocation13], 4
      %s107 = int_to_ptr.vmem [resolvable:$true] %s106
      %109 = dma.hbm_to_vmem [thread:$0]  %s8, 16, %s107, [#allocation12]
    $region37: #{tpu_custom_call.1} parent=1 // pred_fallthru
      _
    // Predicated region
    $region38: #{tpu_custom_call.1} parent=1 // pred_check
      _
    $region39: #{tpu_custom_call.1} parent=1 // pred_check_branch
      %111 = sbr.rel (0) target = $region41
    $region40: #{tpu_custom_call.1} parent=1 // pred_region
      _
    $region41: #{tpu_custom_call.1} parent=1 // pred_fallthru
      _
    // Predicated region
    $region42: #{tpu_custom_call.1} parent=1 // pred_check
      _
    $region43: #{tpu_custom_call.1} parent=1 // pred_check_branch
      %113 = sbr.rel (0) target = $region45
    $region44: #{tpu_custom_call.1} parent=1 // pred_region
      _
    $region45: #{tpu_custom_call.1} parent=1 // pred_fallthru
      _
    // Predicated region
    $region46: #{tpu_custom_call.1} parent=1 // pred_check
      _
    $region47: #{tpu_custom_call.1} parent=1 // pred_check_branch
      %115 = sbr.rel (0) target = $region49
    $region48: #{tpu_custom_call.1} parent=1 // pred_region
      %116 = dma.done [#allocation3], 256
    $region49: #{tpu_custom_call.1} parent=1 // pred_fallthru
      _
    // Predicated region
    $region50: #{tpu_custom_call.1} parent=1 // pred_check
      _
    $region51: #{tpu_custom_call.1} parent=1 // pred_check_branch
      %118 = sbr.rel (0) target = $region53
    $region52: #{tpu_custom_call.1} parent=1 // pred_region
      %119 = dma.done [#allocation6], 256
    $region53: #{tpu_custom_call.1} parent=1 // pred_fallthru
      _
    // Predicated region
    $region54: #{tpu_custom_call.1} parent=1 // pred_check
      _
    $region55: #{tpu_custom_call.1} parent=1 // pred_check_branch
      %121 = sbr.rel (0) target = $region57
    $region56: #{tpu_custom_call.1} parent=1 // pred_region
      %122 = dma.done [#allocation6], 256
    $region57: #{tpu_custom_call.1} parent=1 // pred_fallthru
      _
    // Predicated region
    $region58: #{tpu_custom_call.1} parent=1 // pred_check
      _
    $region59: #{tpu_custom_call.1} parent=1 // pred_check_branch
      %124 = sbr.rel (0) target = $region61
    $region60: #{tpu_custom_call.1} parent=1 // pred_region
      %125 = dma.done [#allocation9], 512
    $region61: #{tpu_custom_call.1} parent=1 // pred_fallthru
      _
    // Predicated region
    $region62: #{tpu_custom_call.1} parent=1 // pred_check
      _
    $region63: #{tpu_custom_call.1} parent=1 // pred_check_branch
      %127 = sbr.rel (0) target = $region65
    $region64: #{tpu_custom_call.1} parent=1 // pred_region
      %128 = dma.done [#allocation9], 512
    $region65: #{tpu_custom_call.1} parent=1 // pred_fallthru
      _
    // Predicated region
    $region66: #{tpu_custom_call.1} parent=1 // pred_check
      _
    $region67: #{tpu_custom_call.1} parent=1 // pred_check_branch
      %130 = sbr.rel (0) target = $region69
    $region68: #{tpu_custom_call.1} parent=1 // pred_region
      %131 = dma.done [#allocation12], 512
    $region69: #{tpu_custom_call.1} parent=1 // pred_fallthru
      _
    // Predicated region
    $region70: #{tpu_custom_call.1} parent=1 // pred_check
      _
    $region71: #{tpu_custom_call.1} parent=1 // pred_check_branch
      %133 = sbr.rel (0) target = $region73
    $region72: #{tpu_custom_call.1} parent=1 // pred_region
      %134 = dma.done [#allocation12], 16
    $region73: #{tpu_custom_call.1} parent=1 // pred_fallthru
      _
    %v135 = vld [vmem:[#allocation2] sm:$0xff]
    %v136 = vld [vmem:[#allocation2 + $0x8] sm:$0xff]
    %v137 = vld [vmem:[#allocation5] sm:$0xff]
    %v138 = vld [vmem:[#allocation5 + $0x8] sm:$0xff]
    %v139 = vld [vmem:[#allocation7] sm:$0xff]
    %v140 = vld [vmem:[#allocation7 + $0x8] sm:$0xff]
    %v141 = vld [vmem:[#allocation8] sm:$0xff]
    %v142 = vld [vmem:[#allocation8 + $0x8] sm:$0xff]
    %v143 = vld [vmem:[#allocation8 + $0x10] sm:$0xff]
    %v144 = vld [vmem:[#allocation8 + $0x18] sm:$0xff]
    %v145 = vld [vmem:[%s4] sm:$0x1]
    %v147 = vlaneseq
    %v148 = vshrl.u32 %v147, 7
    %v149 = vsub.s32 0, %v148
    %v150 = vrot.slane %v145, %v149
    %vm152 = vcmask 261120
    %v154 = vsel %vm152, %v135, 0
    %v157 = vsel %vm152, %v136, 0
    %159 = vmatprep.subr.mxu0 0.0
    %160 = vmatpush1.msra.mxu0 %v141
    %161 = vmatprep.subr.mxu0 0.0
    %162 = vmatpush1.msra.mxu0 %v142
    %163 = vmatprep.subr.mxu0 0.0
    %164 = vmatpush1.msra.mxu0 %v143
    %165 = vmatprep.subr.mxu0 0.0
    %166 = vmatpush1.msra.mxu0 %v144
    %167 = vmatprep.subr.mxu0 0.0
    %168 = vmatpush1.msra.mxu0 0.0
    %169 = vmatprep.subr.mxu0 0.0
    %170 = vmatpush1.msra.mxu0 0.0
    %171 = vmatprep.subr.mxu0 0.0
    %172 = vmatpush1.msra.mxu0 0.0
    %173 = vmatprep.subr.mxu0 0.0
    %174 = vmatpush1.msra.mxu0 0.0
    %175 = vmatprep.subr.mxu0 0.0
    %176 = vmatpush1.msra.mxu0 0.0
    %177 = vmatprep.subr.mxu0 0.0
    %178 = vmatpush1.msra.mxu0 0.0
    %179 = vmatprep.subr.mxu0 0.0
    %180 = vmatpush1.msra.mxu0 0.0
    %181 = vmatprep.subr.mxu0 0.0
    %182 = vmatpush1.msra.mxu0 0.0
    %183 = vmatprep.subr.mxu0 0.0
    %184 = vmatpush1.msra.mxu0 0.0
    %185 = vmatprep.subr.mxu0 0.0
    %186 = vmatpush1.msra.mxu0 0.0
    %187 = vmatprep.subr.mxu0 0.0
    %188 = vmatpush1.msra.mxu0 0.0
    %189 = vmatprep.subr.mxu0 0.0
    %190 = vmatpush1.msra.mxu0 0.0
    %191 = vmatprep.subr.mxu0 0.0
    %192 = vmatpush1.msra.mxu0 0.0
    %193 = vmatprep.subr.mxu0 0.0
    %194 = vmatpush1.msra.mxu0 0.0
    %195 = vmatprep.subr.mxu0 0.0
    %196 = vmatpush1.msra.mxu0 0.0
    %197 = vmatprep.subr.mxu0 0.0
    %198 = vmatpush1.msra.mxu0 0.0
    %199 = vmatprep.subr.mxu0 0.0
    %200 = vmatpush1.msra.mxu0 0.0
    %201 = vmatprep.subr.mxu0 0.0
    %202 = vmatpush1.msra.mxu0 0.0
    %203 = vmatprep.subr.mxu0 0.0
    %204 = vmatpush1.msra.mxu0 0.0
    %205 = vmatprep.subr.mxu0 0.0
    %206 = vmatpush1.msra.mxu0 0.0
    %207 = vmatprep.subr.mxu0 0.0
    %208 = vmatpush1.msra.mxu0 0.0
    %209 = vmatprep.subr.mxu0 0.0
    %210 = vmatpush1.msra.mxu0 0.0
    %211 = vmatprep.subr.mxu0 0.0
    %212 = vmatpush1.msra.mxu0 0.0
    %213 = vmatprep.subr.mxu0 0.0
    %214 = vmatpush1.msra.mxu0 0.0
    %215 = vmatprep.subr.mxu0 0.0
    %216 = vmatpush1.msra.mxu0 0.0
    %217 = vmatprep.subr.mxu0 0.0
    %218 = vmatpush1.msra.mxu0 0.0
    %219 = vmatprep.subr.mxu0 0.0
    %220 = vmatpush1.msra.mxu0 0.0
    %221 = vmatprep.subr.mxu0 0.0
    %222 = vmatpush1.msra.mxu0 0.0
    %223 = vmatprep.mubr.f32.mxu0 0.0
    %224 = vmatmul.mubr.f32.gmra.mrb[0].mxu0 %v154
    %v225 = vpop.f32.mrb[0].mxu0
    %v226 = vadd.f32 %v150, %v225
    %v227 = vpop.f32.mrb[0].mxu0
    %228 = vmatprep.mubr.f32.mxu0 0.0
    %229 = vmatmul.mubr.f32.gmra.mrb[0].mxu0 %v157
    %v230 = vpop.f32.mrb[0].mxu0
    %v231 = vadd.f32 %v150, %v230
    %v232 = vpop.f32.mrb[0].mxu0
    %233 = vdwg.mxu0
    %v234 = vld [vmem:[#allocation10] sm:$0xff]
    %v235 = vld [vmem:[#allocation10 + $0x8] sm:$0xff]
    %v236 = vld [vmem:[#allocation10 + $0x10] sm:$0xff]
    %v237 = vld [vmem:[#allocation10 + $0x18] sm:$0xff]
    %v238 = vld [vmem:[%s6] sm:$0x1]
    %v240 = vlaneseq
    %v241 = vshrl.u32 %v240, 7
    %v242 = vsub.s32 0, %v241
    %v243 = vrot.slane %v238, %v242
    %v246 = vsel %vm152, %v137, 0
    %v249 = vsel %vm152, %v138, 0
    %251 = vmatprep.subr.mxu0 0.0
    %252 = vmatpush1.msra.mxu0 %v234
    %253 = vmatprep.subr.mxu0 0.0
    %254 = vmatpush1.msra.mxu0 %v235
    %255 = vmatprep.subr.mxu0 0.0
    %256 = vmatpush1.msra.mxu0 %v236
    %257 = vmatprep.subr.mxu0 0.0
    %258 = vmatpush1.msra.mxu0 %v237
    %259 = vmatprep.subr.mxu0 0.0
    %260 = vmatpush1.msra.mxu0 0.0
    %261 = vmatprep.subr.mxu0 0.0
    %262 = vmatpush1.msra.mxu0 0.0
    %263 = vmatprep.subr.mxu0 0.0
    %264 = vmatpush1.msra.mxu0 0.0
    %265 = vmatprep.subr.mxu0 0.0
    %266 = vmatpush1.msra.mxu0 0.0
    %267 = vmatprep.subr.mxu0 0.0
    %268 = vmatpush1.msra.mxu0 0.0
    %269 = vmatprep.subr.mxu0 0.0
    %270 = vmatpush1.msra.mxu0 0.0
    %271 = vmatprep.subr.mxu0 0.0
    %272 = vmatpush1.msra.mxu0 0.0
    %273 = vmatprep.subr.mxu0 0.0
    %274 = vmatpush1.msra.mxu0 0.0
    %275 = vmatprep.subr.mxu0 0.0
    %276 = vmatpush1.msra.mxu0 0.0
    %277 = vmatprep.subr.mxu0 0.0
    %278 = vmatpush1.msra.mxu0 0.0
    %279 = vmatprep.subr.mxu0 0.0
    %280 = vmatpush1.msra.mxu0 0.0
    %281 = vmatprep.subr.mxu0 0.0
    %282 = vmatpush1.msra.mxu0 0.0
    %283 = vmatprep.subr.mxu0 0.0
    %284 = vmatpush1.msra.mxu0 0.0
    %285 = vmatprep.subr.mxu0 0.0
    %286 = vmatpush1.msra.mxu0 0.0
    %287 = vmatprep.subr.mxu0 0.0
    %288 = vmatpush1.msra.mxu0 0.0
    %289 = vmatprep.subr.mxu0 0.0
    %290 = vmatpush1.msra.mxu0 0.0
    %291 = vmatprep.subr.mxu0 0.0
    %292 = vmatpush1.msra.mxu0 0.0
    %293 = vmatprep.subr.mxu0 0.0
    %294 = vmatpush1.msra.mxu0 0.0
    %295 = vmatprep.subr.mxu0 0.0
    %296 = vmatpush1.msra.mxu0 0.0
    %297 = vmatprep.subr.mxu0 0.0
    %298 = vmatpush1.msra.mxu0 0.0
    %299 = vmatprep.subr.mxu0 0.0
    %300 = vmatpush1.msra.mxu0 0.0
    %301 = vmatprep.subr.mxu0 0.0
    %302 = vmatpush1.msra.mxu0 0.0
    %303 = vmatprep.subr.mxu0 0.0
    %304 = vmatpush1.msra.mxu0 0.0
    %305 = vmatprep.subr.mxu0 0.0
    %306 = vmatpush1.msra.mxu0 0.0
    %307 = vmatprep.subr.mxu0 0.0
    %308 = vmatpush1.msra.mxu0 0.0
    %309 = vmatprep.subr.mxu0 0.0
    %310 = vmatpush1.msra.mxu0 0.0
    %311 = vmatprep.subr.mxu0 0.0
    %312 = vmatpush1.msra.mxu0 0.0
    %313 = vmatprep.subr.mxu0 0.0
    %314 = vmatpush1.msra.mxu0 0.0
    %315 = vmatprep.mubr.f32.mxu0 0.0
    %316 = vmatmul.mubr.f32.gmra.mrb[0].mxu0 %v246
    %v317 = vpop.f32.mrb[0].mxu0
    %v318 = vadd.f32 %v243, %v317
    %v319 = vpop.f32.mrb[0].mxu0
    %320 = vmatprep.mubr.f32.mxu0 0.0
    %321 = vmatmul.mubr.f32.gmra.mrb[0].mxu0 %v249
    %v322 = vpop.f32.mrb[0].mxu0
    %v323 = vadd.f32 %v243, %v322
    %v324 = vpop.f32.mrb[0].mxu0
    %325 = vdwg.mxu0
    %v326 = vld [vmem:[#allocation11] sm:$0xff]
    %v327 = vld [vmem:[#allocation11 + $0x8] sm:$0xff]
    %v328 = vld [vmem:[#allocation11 + $0x10] sm:$0xff]
    %v329 = vld [vmem:[#allocation11 + $0x18] sm:$0xff]
    %v330 = vld [vmem:[#allocation13] sm:$0x1]
    %v332 = vlaneseq
    %v333 = vshrl.u32 %v332, 7
    %v334 = vsub.s32 0, %v333
    %v335 = vrot.slane %v330, %v334
    %v338 = vsel %vm152, %v139, 0
    %v341 = vsel %vm152, %v140, 0
    %343 = vmatprep.subr.mxu0 0.0
    %344 = vmatpush1.msra.mxu0 %v326
    %345 = vmatprep.subr.mxu0 0.0
    %346 = vmatpush1.msra.mxu0 %v327
    %347 = vmatprep.subr.mxu0 0.0
    %348 = vmatpush1.msra.mxu0 %v328
    %349 = vmatprep.subr.mxu0 0.0
    %350 = vmatpush1.msra.mxu0 %v329
    %351 = vmatprep.subr.mxu0 0.0
    %352 = vmatpush1.msra.mxu0 0.0
    %353 = vmatprep.subr.mxu0 0.0
    %354 = vmatpush1.msra.mxu0 0.0
    %355 = vmatprep.subr.mxu0 0.0
    %356 = vmatpush1.msra.mxu0 0.0
    %357 = vmatprep.subr.mxu0 0.0
    %358 = vmatpush1.msra.mxu0 0.0
    %359 = vmatprep.subr.mxu0 0.0
    %360 = vmatpush1.msra.mxu0 0.0
    %361 = vmatprep.subr.mxu0 0.0
    %362 = vmatpush1.msra.mxu0 0.0
    %363 = vmatprep.subr.mxu0 0.0
    %364 = vmatpush1.msra.mxu0 0.0
    %365 = vmatprep.subr.mxu0 0.0
    %366 = vmatpush1.msra.mxu0 0.0
    %367 = vmatprep.subr.mxu0 0.0
    %368 = vmatpush1.msra.mxu0 0.0
    %369 = vmatprep.subr.mxu0 0.0
    %370 = vmatpush1.msra.mxu0 0.0
    %371 = vmatprep.subr.mxu0 0.0
    %372 = vmatpush1.msra.mxu0 0.0
    %373 = vmatprep.subr.mxu0 0.0
    %374 = vmatpush1.msra.mxu0 0.0
    %375 = vmatprep.subr.mxu0 0.0
    %376 = vmatpush1.msra.mxu0 0.0
    %377 = vmatprep.subr.mxu0 0.0
    %378 = vmatpush1.msra.mxu0 0.0
    %379 = vmatprep.subr.mxu0 0.0
    %380 = vmatpush1.msra.mxu0 0.0
    %381 = vmatprep.subr.mxu0 0.0
    %382 = vmatpush1.msra.mxu0 0.0
    %383 = vmatprep.subr.mxu0 0.0
    %384 = vmatpush1.msra.mxu0 0.0
    %385 = vmatprep.subr.mxu0 0.0
    %386 = vmatpush1.msra.mxu0 0.0
    %387 = vmatprep.subr.mxu0 0.0
    %388 = vmatpush1.msra.mxu0 0.0
    %389 = vmatprep.subr.mxu0 0.0
    %390 = vmatpush1.msra.mxu0 0.0
    %391 = vmatprep.subr.mxu0 0.0
    %392 = vmatpush1.msra.mxu0 0.0
    %393 = vmatprep.subr.mxu0 0.0
    %394 = vmatpush1.msra.mxu0 0.0
    %395 = vmatprep.subr.mxu0 0.0
    %396 = vmatpush1.msra.mxu0 0.0
    %397 = vmatprep.subr.mxu0 0.0
    %398 = vmatpush1.msra.mxu0 0.0
    %399 = vmatprep.subr.mxu0 0.0
    %400 = vmatpush1.msra.mxu0 0.0
    %401 = vmatprep.subr.mxu0 0.0
    %402 = vmatpush1.msra.mxu0 0.0
    %403 = vmatprep.subr.mxu0 0.0
    %404 = vmatpush1.msra.mxu0 0.0
    %405 = vmatprep.subr.mxu0 0.0
    %406 = vmatpush1.msra.mxu0 0.0
    %407 = vmatprep.mubr.f32.mxu0 0.0
    %408 = vmatmul.mubr.f32.gmra.mrb[0].mxu0 %v338
    %v409 = vpop.f32.mrb[0].mxu0
    %v410 = vadd.f32 %v335, %v409
    %v411 = vpop.f32.mrb[0].mxu0
    %412 = vmatprep.mubr.f32.mxu0 0.0
    %413 = vmatmul.mubr.f32.gmra.mrb[0].mxu0 %v341
    %v414 = vpop.f32.mrb[0].mxu0
    %v415 = vadd.f32 %v335, %v414
    %v416 = vpop.f32.mrb[0].mxu0
    %417 = vdwg.mxu0
    %420 = vrot.lane.b32.xlu0 %v226, 124
    %v421 = vpop.permute.xlu0 %420
    %422 = vrot.lane.b32.xlu0 %v231, 124
    %v423 = vpop.permute.xlu0 %422
    %426 = vrot.lane.b32.xlu0 %v226, 120
    %v427 = vpop.permute.xlu0 %426
    %428 = vrot.lane.b32.xlu0 %v231, 120
    %v429 = vpop.permute.xlu0 %428
    %432 = vrot.lane.b32.xlu0 %v226, 116
    %v433 = vpop.permute.xlu0 %432
    %434 = vrot.lane.b32.xlu0 %v231, 116
    %v435 = vpop.permute.xlu0 %434
    %438 = vrot.lane.b32.xlu0 %v226, 112
    %v439 = vpop.permute.xlu0 %438
    %440 = vrot.lane.b32.xlu0 %v231, 112
    %v441 = vpop.permute.xlu0 %440
    %444 = vrot.lane.b32.xlu0 %v226, 108
    %v445 = vpop.permute.xlu0 %444
    %446 = vrot.lane.b32.xlu0 %v231, 108
    %v447 = vpop.permute.xlu0 %446
    %450 = vrot.lane.b32.xlu0 %v226, 104
    %v451 = vpop.permute.xlu0 %450
    %452 = vrot.lane.b32.xlu0 %v231, 104
    %v453 = vpop.permute.xlu0 %452
    %456 = vrot.lane.b32.xlu0 %v226, 100
    %v457 = vpop.permute.xlu0 %456
    %458 = vrot.lane.b32.xlu0 %v231, 100
    %v459 = vpop.permute.xlu0 %458
    %v462 = vcombine.low %v226, %v427
    %v463 = vcombine.high %v226, %v427
    %v465 = vunpack.c.l.s4 1983009808
    %v466 = vunpack.c.0.s8 %v465
    %v467 = vlaneseq
    %v468 = vshrl.u32 %v467, 7
    %v469 = vsub.s32 %v466, %v468
    %v470 = vrot.slane %v462, %v469
    %v472 = vunpack.c.l.s4 1983009808
    %v473 = vunpack.c.0.s8 %v472
    %v474 = vlaneseq
    %v475 = vshrl.u32 %v474, 7
    %v476 = vsub.s32 %v473, %v475
    %v477 = vrot.slane %v463, %v476
    %v478 = vcombine.low %v421, %v433
    %v479 = vcombine.high %v421, %v433
    %v481 = vunpack.c.l.s4 1983009808
    %v482 = vunpack.c.0.s8 %v481
    %v483 = vlaneseq
    %v484 = vshrl.u32 %v483, 7
    %v485 = vsub.s32 %v482, %v484
    %v486 = vrot.slane %v478, %v485
    %v488 = vunpack.c.l.s4 1983009808
    %v489 = vunpack.c.0.s8 %v488
    %v490 = vlaneseq
    %v491 = vshrl.u32 %v490, 7
    %v492 = vsub.s32 %v489, %v491
    %v493 = vrot.slane %v479, %v492
    %v494 = vcombine.low %v439, %v451
    %v495 = vcombine.high %v439, %v451
    %v497 = vunpack.c.l.s4 1983009808
    %v498 = vunpack.c.0.s8 %v497
    %v499 = vlaneseq
    %v500 = vshrl.u32 %v499, 7
    %v501 = vsub.s32 %v498, %v500
    %v502 = vrot.slane %v494, %v501
    %v504 = vunpack.c.l.s4 1983009808
    %v505 = vunpack.c.0.s8 %v504
    %v506 = vlaneseq
    %v507 = vshrl.u32 %v506, 7
    %v508 = vsub.s32 %v505, %v507
    %v509 = vrot.slane %v495, %v508
    %v510 = vcombine.low %v445, %v457
    %v511 = vcombine.high %v445, %v457
    %v513 = vunpack.c.l.s4 1983009808
    %v514 = vunpack.c.0.s8 %v513
    %v515 = vlaneseq
    %v516 = vshrl.u32 %v515, 7
    %v517 = vsub.s32 %v514, %v516
    %v518 = vrot.slane %v510, %v517
    %v520 = vunpack.c.l.s4 1983009808
    %v521 = vunpack.c.0.s8 %v520
    %v522 = vlaneseq
    %v523 = vshrl.u32 %v522, 7
    %v524 = vsub.s32 %v521, %v523
    %v525 = vrot.slane %v511, %v524
    %v526 = vcombine.low %v470, %v486
    %v527 = vcombine.high %v470, %v486
    %v529 = vunpack.c.l.s4 1934713408
    %v530 = vunpack.c.0.s8 %v529
    %v531 = vlaneseq
    %v532 = vshrl.u32 %v531, 7
    %v533 = vsub.s32 %v530, %v532
    %v534 = vrot.slane %v526, %v533
    %v536 = vunpack.c.l.s4 1934713408
    %v537 = vunpack.c.0.s8 %v536
    %v538 = vlaneseq
    %v539 = vshrl.u32 %v538, 7
    %v540 = vsub.s32 %v537, %v539
    %v541 = vrot.slane %v527, %v540
    %v542 = vcombine.low %v477, %v493
    %v543 = vcombine.high %v477, %v493
    %v545 = vunpack.c.l.s4 1934713408
    %v546 = vunpack.c.0.s8 %v545
    %v547 = vlaneseq
    %v548 = vshrl.u32 %v547, 7
    %v549 = vsub.s32 %v546, %v548
    %v550 = vrot.slane %v542, %v549
    %v552 = vunpack.c.l.s4 1934713408
    %v553 = vunpack.c.0.s8 %v552
    %v554 = vlaneseq
    %v555 = vshrl.u32 %v554, 7
    %v556 = vsub.s32 %v553, %v555
    %v557 = vrot.slane %v543, %v556
    %v558 = vcombine.low %v502, %v518
    %v559 = vcombine.high %v502, %v518
    %v561 = vunpack.c.l.s4 1934713408
    %v562 = vunpack.c.0.s8 %v561
    %v563 = vlaneseq
    %v564 = vshrl.u32 %v563, 7
    %v565 = vsub.s32 %v562, %v564
    %v566 = vrot.slane %v558, %v565
    %v568 = vunpack.c.l.s4 1934713408
    %v569 = vunpack.c.0.s8 %v568
    %v570 = vlaneseq
    %v571 = vshrl.u32 %v570, 7
    %v572 = vsub.s32 %v569, %v571
    %v573 = vrot.slane %v559, %v572
    %v574 = vcombine.low %v509, %v525
    %v575 = vcombine.high %v509, %v525
    %v577 = vunpack.c.l.s4 1934713408
    %v578 = vunpack.c.0.s8 %v577
    %v579 = vlaneseq
    %v580 = vshrl.u32 %v579, 7
    %v581 = vsub.s32 %v578, %v580
    %v582 = vrot.slane %v574, %v581
    %v584 = vunpack.c.l.s4 1934713408
    %v585 = vunpack.c.0.s8 %v584
    %v586 = vlaneseq
    %v587 = vshrl.u32 %v586, 7
    %v588 = vsub.s32 %v585, %v587
    %v589 = vrot.slane %v575, %v588
    %v590 = vcombine.low %v534, %v566
    %v591 = vcombine.high %v534, %v566
    %v592 = vcombine.low %v541, %v573
    %v593 = vcombine.high %v541, %v573
    %v594 = vcombine.low %v550, %v582
    %v595 = vcombine.high %v550, %v582
    %v596 = vcombine.low %v557, %v589
    %v597 = vcombine.high %v557, %v589
    %v598 = vcombine.low %v231, %v429
    %v599 = vcombine.high %v231, %v429
    %v601 = vunpack.c.l.s4 1983009808
    %v602 = vunpack.c.0.s8 %v601
    %v603 = vlaneseq
    %v604 = vshrl.u32 %v603, 7
    %v605 = vsub.s32 %v602, %v604
    %v606 = vrot.slane %v598, %v605
    %v608 = vunpack.c.l.s4 1983009808
    %v609 = vunpack.c.0.s8 %v608
    %v610 = vlaneseq
    %v611 = vshrl.u32 %v610, 7
    %v612 = vsub.s32 %v609, %v611
    %v613 = vrot.slane %v599, %v612
    %v614 = vcombine.low %v423, %v435
    %v615 = vcombine.high %v423, %v435
    %v617 = vunpack.c.l.s4 1983009808
    %v618 = vunpack.c.0.s8 %v617
    %v619 = vlaneseq
    %v620 = vshrl.u32 %v619, 7
    %v621 = vsub.s32 %v618, %v620
    %v622 = vrot.slane %v614, %v621
    %v624 = vunpack.c.l.s4 1983009808
    %v625 = vunpack.c.0.s8 %v624
    %v626 = vlaneseq
    %v627 = vshrl.u32 %v626, 7
    %v628 = vsub.s32 %v625, %v627
    %v629 = vrot.slane %v615, %v628
    %v630 = vcombine.low %v441, %v453
    %v631 = vcombine.high %v441, %v453
    %v633 = vunpack.c.l.s4 1983009808
    %v634 = vunpack.c.0.s8 %v633
    %v635 = vlaneseq
    %v636 = vshrl.u32 %v635, 7
    %v637 = vsub.s32 %v634, %v636
    %v638 = vrot.slane %v630, %v637
    %v640 = vunpack.c.l.s4 1983009808
    %v641 = vunpack.c.0.s8 %v640
    %v642 = vlaneseq
    %v643 = vshrl.u32 %v642, 7
    %v644 = vsub.s32 %v641, %v643
    %v645 = vrot.slane %v631, %v644
    %v646 = vcombine.low %v447, %v459
    %v647 = vcombine.high %v447, %v459
    %v649 = vunpack.c.l.s4 1983009808
    %v650 = vunpack.c.0.s8 %v649
    %v651 = vlaneseq
    %v652 = vshrl.u32 %v651, 7
    %v653 = vsub.s32 %v650, %v652
    %v654 = vrot.slane %v646, %v653
    %v656 = vunpack.c.l.s4 1983009808
    %v657 = vunpack.c.0.s8 %v656
    %v658 = vlaneseq
    %v659 = vshrl.u32 %v658, 7
    %v660 = vsub.s32 %v657, %v659
    %v661 = vrot.slane %v647, %v660
    %v662 = vcombine.low %v606, %v622
    %v663 = vcombine.high %v606, %v622
    %v665 = vunpack.c.l.s4 1934713408
    %v666 = vunpack.c.0.s8 %v665
    %v667 = vlaneseq
    %v668 = vshrl.u32 %v667, 7
    %v669 = vsub.s32 %v666, %v668
    %v670 = vrot.slane %v662, %v669
    %v672 = vunpack.c.l.s4 1934713408
    %v673 = vunpack.c.0.s8 %v672
    %v674 = vlaneseq
    %v675 = vshrl.u32 %v674, 7
    %v676 = vsub.s32 %v673, %v675
    %v677 = vrot.slane %v663, %v676
    %v678 = vcombine.low %v613, %v629
    %v679 = vcombine.high %v613, %v629
    %v681 = vunpack.c.l.s4 1934713408
    %v682 = vunpack.c.0.s8 %v681
    %v683 = vlaneseq
    %v684 = vshrl.u32 %v683, 7
    %v685 = vsub.s32 %v682, %v684
    %v686 = vrot.slane %v678, %v685
    %v688 = vunpack.c.l.s4 1934713408
    %v689 = vunpack.c.0.s8 %v688
    %v690 = vlaneseq
    %v691 = vshrl.u32 %v690, 7
    %v692 = vsub.s32 %v689, %v691
    %v693 = vrot.slane %v679, %v692
    %v694 = vcombine.low %v638, %v654
    %v695 = vcombine.high %v638, %v654
    %v697 = vunpack.c.l.s4 1934713408
    %v698 = vunpack.c.0.s8 %v697
    %v699 = vlaneseq
    %v700 = vshrl.u32 %v699, 7
    %v701 = vsub.s32 %v698, %v700
    %v702 = vrot.slane %v694, %v701
    %v704 = vunpack.c.l.s4 1934713408
    %v705 = vunpack.c.0.s8 %v704
    %v706 = vlaneseq
    %v707 = vshrl.u32 %v706, 7
    %v708 = vsub.s32 %v705, %v707
    %v709 = vrot.slane %v695, %v708
    %v710 = vcombine.low %v645, %v661
    %v711 = vcombine.high %v645, %v661
    %v713 = vunpack.c.l.s4 1934713408
    %v714 = vunpack.c.0.s8 %v713
    %v715 = vlaneseq
    %v716 = vshrl.u32 %v715, 7
    %v717 = vsub.s32 %v714, %v716
    %v718 = vrot.slane %v710, %v717
    %v720 = vunpack.c.l.s4 1934713408
    %v721 = vunpack.c.0.s8 %v720
    %v722 = vlaneseq
    %v723 = vshrl.u32 %v722, 7
    %v724 = vsub.s32 %v721, %v723
    %v725 = vrot.slane %v711, %v724
    %v726 = vcombine.low %v670, %v702
    %v727 = vcombine.high %v670, %v702
    %v728 = vcombine.low %v677, %v709
    %v729 = vcombine.high %v677, %v709
    %v730 = vcombine.low %v686, %v718
    %v731 = vcombine.high %v686, %v718
    %v732 = vcombine.low %v693, %v725
    %v733 = vcombine.high %v693, %v725
    %v734 = vcombine.low %v590, %v592
    %v735 = vcombine.high %v590, %v592
    %v737 = vunpack.c.l.s4 1983009808
    %v738 = vunpack.c.0.s8 %v737
    %v739 = vlaneseq
    %v740 = vshrl.u32 %v739, 7
    %v741 = vsub.s32 %v738, %v740
    %v742 = vrot.slane %v734, %v741
    %v744 = vunpack.c.l.s4 1983009808
    %v745 = vunpack.c.0.s8 %v744
    %v746 = vlaneseq
    %v747 = vshrl.u32 %v746, 7
    %v748 = vsub.s32 %v745, %v747
    %v749 = vrot.slane %v735, %v748
    %v750 = vcombine.low %v591, %v593
    %v751 = vcombine.high %v591, %v593
    %v753 = vunpack.c.l.s4 1983009808
    %v754 = vunpack.c.0.s8 %v753
    %v755 = vlaneseq
    %v756 = vshrl.u32 %v755, 7
    %v757 = vsub.s32 %v754, %v756
    %v758 = vrot.slane %v750, %v757
    %v760 = vunpack.c.l.s4 1983009808
    %v761 = vunpack.c.0.s8 %v760
    %v762 = vlaneseq
    %v763 = vshrl.u32 %v762, 7
    %v764 = vsub.s32 %v761, %v763
    %v765 = vrot.slane %v751, %v764
    %v766 = vcombine.low %v594, %v596
    %v767 = vcombine.high %v594, %v596
    %v769 = vunpack.c.l.s4 1983009808
    %v770 = vunpack.c.0.s8 %v769
    %v771 = vlaneseq
    %v772 = vshrl.u32 %v771, 7
    %v773 = vsub.s32 %v770, %v772
    %v774 = vrot.slane %v766, %v773
    %v776 = vunpack.c.l.s4 1983009808
    %v777 = vunpack.c.0.s8 %v776
    %v778 = vlaneseq
    %v779 = vshrl.u32 %v778, 7
    %v780 = vsub.s32 %v777, %v779
    %v781 = vrot.slane %v767, %v780
    %v782 = vcombine.low %v595, %v597
    %v783 = vcombine.high %v595, %v597
    %v785 = vunpack.c.l.s4 1983009808
    %v786 = vunpack.c.0.s8 %v785
    %v787 = vlaneseq
    %v788 = vshrl.u32 %v787, 7
    %v789 = vsub.s32 %v786, %v788
    %v790 = vrot.slane %v782, %v789
    %v792 = vunpack.c.l.s4 1983009808
    %v793 = vunpack.c.0.s8 %v792
    %v794 = vlaneseq
    %v795 = vshrl.u32 %v794, 7
    %v796 = vsub.s32 %v793, %v795
    %v797 = vrot.slane %v783, %v796
    %v798 = vcombine.low %v742, %v758
    %v799 = vcombine.high %v742, %v758
    %v801 = vunpack.c.l.s4 1934713408
    %v802 = vunpack.c.0.s8 %v801
    %v803 = vlaneseq
    %v804 = vshrl.u32 %v803, 7
    %v805 = vsub.s32 %v802, %v804
    %v806 = vrot.slane %v798, %v805
    %v808 = vunpack.c.l.s4 1934713408
    %v809 = vunpack.c.0.s8 %v808
    %v810 = vlaneseq
    %v811 = vshrl.u32 %v810, 7
    %v812 = vsub.s32 %v809, %v811
    %v813 = vrot.slane %v799, %v812
    %v814 = vcombine.low %v749, %v765
    %v815 = vcombine.high %v749, %v765
    %v817 = vunpack.c.l.s4 1934713408
    %v818 = vunpack.c.0.s8 %v817
    %v819 = vlaneseq
    %v820 = vshrl.u32 %v819, 7
    %v821 = vsub.s32 %v818, %v820
    %v822 = vrot.slane %v814, %v821
    %v824 = vunpack.c.l.s4 1934713408
    %v825 = vunpack.c.0.s8 %v824
    %v826 = vlaneseq
    %v827 = vshrl.u32 %v826, 7
    %v828 = vsub.s32 %v825, %v827
    %v829 = vrot.slane %v815, %v828
    %v830 = vcombine.low %v774, %v790
    %v831 = vcombine.high %v774, %v790
    %v833 = vunpack.c.l.s4 1934713408
    %v834 = vunpack.c.0.s8 %v833
    %v835 = vlaneseq
    %v836 = vshrl.u32 %v835, 7
    %v837 = vsub.s32 %v834, %v836
    %v838 = vrot.slane %v830, %v837
    %v840 = vunpack.c.l.s4 1934713408
    %v841 = vunpack.c.0.s8 %v840
    %v842 = vlaneseq
    %v843 = vshrl.u32 %v842, 7
    %v844 = vsub.s32 %v841, %v843
    %v845 = vrot.slane %v831, %v844
    %v846 = vcombine.low %v781, %v797
    %v847 = vcombine.high %v781, %v797
    %v849 = vunpack.c.l.s4 1934713408
    %v850 = vunpack.c.0.s8 %v849
    %v851 = vlaneseq
    %v852 = vshrl.u32 %v851, 7
    %v853 = vsub.s32 %v850, %v852
    %v854 = vrot.slane %v846, %v853
    %v856 = vunpack.c.l.s4 1934713408
    %v857 = vunpack.c.0.s8 %v856
    %v858 = vlaneseq
    %v859 = vshrl.u32 %v858, 7
    %v860 = vsub.s32 %v857, %v859
    %v861 = vrot.slane %v847, %v860
    %v862 = vcombine.low %v806, %v838
    %v863 = vcombine.high %v806, %v838
    %v864 = vcombine.low %v813, %v845
    %v865 = vcombine.high %v813, %v845
    %v866 = vcombine.low %v822, %v854
    %v867 = vcombine.high %v822, %v854
    %v868 = vcombine.low %v829, %v861
    %v869 = vcombine.high %v829, %v861
    %v870 = vcombine.low %v726, %v728
    %v871 = vcombine.high %v726, %v728
    %v873 = vunpack.c.l.s4 1983009808
    %v874 = vunpack.c.0.s8 %v873
    %v875 = vlaneseq
    %v876 = vshrl.u32 %v875, 7
    %v877 = vsub.s32 %v874, %v876
    %v878 = vrot.slane %v870, %v877
    %v880 = vunpack.c.l.s4 1983009808
    %v881 = vunpack.c.0.s8 %v880
    %v882 = vlaneseq
    %v883 = vshrl.u32 %v882, 7
    %v884 = vsub.s32 %v881, %v883
    %v885 = vrot.slane %v871, %v884
    %v886 = vcombine.low %v727, %v729
    %v887 = vcombine.high %v727, %v729
    %v889 = vunpack.c.l.s4 1983009808
    %v890 = vunpack.c.0.s8 %v889
    %v891 = vlaneseq
    %v892 = vshrl.u32 %v891, 7
    %v893 = vsub.s32 %v890, %v892
    %v894 = vrot.slane %v886, %v893
    %v896 = vunpack.c.l.s4 1983009808
    %v897 = vunpack.c.0.s8 %v896
    %v898 = vlaneseq
    %v899 = vshrl.u32 %v898, 7
    %v900 = vsub.s32 %v897, %v899
    %v901 = vrot.slane %v887, %v900
    %v902 = vcombine.low %v730, %v732
    %v903 = vcombine.high %v730, %v732
    %v905 = vunpack.c.l.s4 1983009808
    %v906 = vunpack.c.0.s8 %v905
    %v907 = vlaneseq
    %v908 = vshrl.u32 %v907, 7
    %v909 = vsub.s32 %v906, %v908
    %v910 = vrot.slane %v902, %v909
    %v912 = vunpack.c.l.s4 1983009808
    %v913 = vunpack.c.0.s8 %v912
    %v914 = vlaneseq
    %v915 = vshrl.u32 %v914, 7
    %v916 = vsub.s32 %v913, %v915
    %v917 = vrot.slane %v903, %v916
    %v918 = vcombine.low %v731, %v733
    %v919 = vcombine.high %v731, %v733
    %v921 = vunpack.c.l.s4 1983009808
    %v922 = vunpack.c.0.s8 %v921
    %v923 = vlaneseq
    %v924 = vshrl.u32 %v923, 7
    %v925 = vsub.s32 %v922, %v924
    %v926 = vrot.slane %v918, %v925
    %v928 = vunpack.c.l.s4 1983009808
    %v929 = vunpack.c.0.s8 %v928
    %v930 = vlaneseq
    %v931 = vshrl.u32 %v930, 7
    %v932 = vsub.s32 %v929, %v931
    %v933 = vrot.slane %v919, %v932
    %v934 = vcombine.low %v878, %v894
    %v935 = vcombine.high %v878, %v894
    %v937 = vunpack.c.l.s4 1934713408
    %v938 = vunpack.c.0.s8 %v937
    %v939 = vlaneseq
    %v940 = vshrl.u32 %v939, 7
    %v941 = vsub.s32 %v938, %v940
    %v942 = vrot.slane %v934, %v941
    %v944 = vunpack.c.l.s4 1934713408
    %v945 = vunpack.c.0.s8 %v944
    %v946 = vlaneseq
    %v947 = vshrl.u32 %v946, 7
    %v948 = vsub.s32 %v945, %v947
    %v949 = vrot.slane %v935, %v948
    %v950 = vcombine.low %v885, %v901
    %v951 = vcombine.high %v885, %v901
    %v953 = vunpack.c.l.s4 1934713408
    %v954 = vunpack.c.0.s8 %v953
    %v955 = vlaneseq
    %v956 = vshrl.u32 %v955, 7
    %v957 = vsub.s32 %v954, %v956
    %v958 = vrot.slane %v950, %v957
    %v960 = vunpack.c.l.s4 1934713408
    %v961 = vunpack.c.0.s8 %v960
    %v962 = vlaneseq
    %v963 = vshrl.u32 %v962, 7
    %v964 = vsub.s32 %v961, %v963
    %v965 = vrot.slane %v951, %v964
    %v966 = vcombine.low %v910, %v926
    %v967 = vcombine.high %v910, %v926
    %v969 = vunpack.c.l.s4 1934713408
    %v970 = vunpack.c.0.s8 %v969
    %v971 = vlaneseq
    %v972 = vshrl.u32 %v971, 7
    %v973 = vsub.s32 %v970, %v972
    %v974 = vrot.slane %v966, %v973
    %v976 = vunpack.c.l.s4 1934713408
    %v977 = vunpack.c.0.s8 %v976
    %v978 = vlaneseq
    %v979 = vshrl.u32 %v978, 7
    %v980 = vsub.s32 %v977, %v979
    %v981 = vrot.slane %v967, %v980
    %v982 = vcombine.low %v917, %v933
    %v983 = vcombine.high %v917, %v933
    %v985 = vunpack.c.l.s4 1934713408
    %v986 = vunpack.c.0.s8 %v985
    %v987 = vlaneseq
    %v988 = vshrl.u32 %v987, 7
    %v989 = vsub.s32 %v986, %v988
    %v990 = vrot.slane %v982, %v989
    %v992 = vunpack.c.l.s4 1934713408
    %v993 = vunpack.c.0.s8 %v992
    %v994 = vlaneseq
    %v995 = vshrl.u32 %v994, 7
    %v996 = vsub.s32 %v993, %v995
    %v997 = vrot.slane %v983, %v996
    %v998 = vcombine.low %v942, %v974
    %v999 = vcombine.high %v942, %v974
    %v1000 = vcombine.low %v949, %v981
    %v1001 = vcombine.high %v949, %v981
    %v1002 = vcombine.low %v958, %v990
    %v1003 = vcombine.high %v958, %v990
    %v1004 = vcombine.low %v965, %v997
    %v1005 = vcombine.high %v965, %v997
    %1008 = vrot.lane.b32.xlu0 %v318, 124
    %v1009 = vpop.permute.xlu0 %1008
    %1010 = vrot.lane.b32.xlu0 %v323, 124
    %v1011 = vpop.permute.xlu0 %1010
    %1014 = vrot.lane.b32.xlu0 %v318, 120
    %v1015 = vpop.permute.xlu0 %1014
    %1016 = vrot.lane.b32.xlu0 %v323, 120
    %v1017 = vpop.permute.xlu0 %1016
    %1020 = vrot.lane.b32.xlu0 %v318, 116
    %v1021 = vpop.permute.xlu0 %1020
    %1022 = vrot.lane.b32.xlu0 %v323, 116
    %v1023 = vpop.permute.xlu0 %1022
    %1026 = vrot.lane.b32.xlu0 %v318, 112
    %v1027 = vpop.permute.xlu0 %1026
    %1028 = vrot.lane.b32.xlu0 %v323, 112
    %v1029 = vpop.permute.xlu0 %1028
    %1032 = vrot.lane.b32.xlu0 %v318, 108
    %v1033 = vpop.permute.xlu0 %1032
    %1034 = vrot.lane.b32.xlu0 %v323, 108
    %v1035 = vpop.permute.xlu0 %1034
    %1038 = vrot.lane.b32.xlu0 %v318, 104
    %v1039 = vpop.permute.xlu0 %1038
    %1040 = vrot.lane.b32.xlu0 %v323, 104
    %v1041 = vpop.permute.xlu0 %1040
    %1044 = vrot.lane.b32.xlu0 %v318, 100
    %v1045 = vpop.permute.xlu0 %1044
    %1046 = vrot.lane.b32.xlu0 %v323, 100
    %v1047 = vpop.permute.xlu0 %1046
    %v1050 = vcombine.low %v318, %v1015
    %v1051 = vcombine.high %v318, %v1015
    %v1053 = vunpack.c.l.s4 1983009808
    %v1054 = vunpack.c.0.s8 %v1053
    %v1055 = vlaneseq
    %v1056 = vshrl.u32 %v1055, 7
    %v1057 = vsub.s32 %v1054, %v1056
    %v1058 = vrot.slane %v1050, %v1057
    %v1060 = vunpack.c.l.s4 1983009808
    %v1061 = vunpack.c.0.s8 %v1060
    %v1062 = vlaneseq
    %v1063 = vshrl.u32 %v1062, 7
    %v1064 = vsub.s32 %v1061, %v1063
    %v1065 = vrot.slane %v1051, %v1064
    %v1066 = vcombine.low %v1009, %v1021
    %v1067 = vcombine.high %v1009, %v1021
    %v1069 = vunpack.c.l.s4 1983009808
    %v1070 = vunpack.c.0.s8 %v1069
    %v1071 = vlaneseq
    %v1072 = vshrl.u32 %v1071, 7
    %v1073 = vsub.s32 %v1070, %v1072
    %v1074 = vrot.slane %v1066, %v1073
    %v1076 = vunpack.c.l.s4 1983009808
    %v1077 = vunpack.c.0.s8 %v1076
    %v1078 = vlaneseq
    %v1079 = vshrl.u32 %v1078, 7
    %v1080 = vsub.s32 %v1077, %v1079
    %v1081 = vrot.slane %v1067, %v1080
    %v1082 = vcombine.low %v1027, %v1039
    %v1083 = vcombine.high %v1027, %v1039
    %v1085 = vunpack.c.l.s4 1983009808
    %v1086 = vunpack.c.0.s8 %v1085
    %v1087 = vlaneseq
    %v1088 = vshrl.u32 %v1087, 7
    %v1089 = vsub.s32 %v1086, %v1088
    %v1090 = vrot.slane %v1082, %v1089
    %v1092 = vunpack.c.l.s4 1983009808
    %v1093 = vunpack.c.0.s8 %v1092
    %v1094 = vlaneseq
    %v1095 = vshrl.u32 %v1094, 7
    %v1096 = vsub.s32 %v1093, %v1095
    %v1097 = vrot.slane %v1083, %v1096
    %v1098 = vcombine.low %v1033, %v1045
    %v1099 = vcombine.high %v1033, %v1045
    %v1101 = vunpack.c.l.s4 1983009808
    %v1102 = vunpack.c.0.s8 %v1101
    %v1103 = vlaneseq
    %v1104 = vshrl.u32 %v1103, 7
    %v1105 = vsub.s32 %v1102, %v1104
    %v1106 = vrot.slane %v1098, %v1105
    %v1108 = vunpack.c.l.s4 1983009808
    %v1109 = vunpack.c.0.s8 %v1108
    %v1110 = vlaneseq
    %v1111 = vshrl.u32 %v1110, 7
    %v1112 = vsub.s32 %v1109, %v1111
    %v1113 = vrot.slane %v1099, %v1112
    %v1114 = vcombine.low %v1058, %v1074
    %v1115 = vcombine.high %v1058, %v1074
    %v1117 = vunpack.c.l.s4 1934713408
    %v1118 = vunpack.c.0.s8 %v1117
    %v1119 = vlaneseq
    %v1120 = vshrl.u32 %v1119, 7
    %v1121 = vsub.s32 %v1118, %v1120
    %v1122 = vrot.slane %v1114, %v1121
    %v1124 = vunpack.c.l.s4 1934713408
    %v1125 = vunpack.c.0.s8 %v1124
    %v1126 = vlaneseq
    %v1127 = vshrl.u32 %v1126, 7
    %v1128 = vsub.s32 %v1125, %v1127
    %v1129 = vrot.slane %v1115, %v1128
    %v1130 = vcombine.low %v1065, %v1081
    %v1131 = vcombine.high %v1065, %v1081
    %v1133 = vunpack.c.l.s4 1934713408
    %v1134 = vunpack.c.0.s8 %v1133
    %v1135 = vlaneseq
    %v1136 = vshrl.u32 %v1135, 7
    %v1137 = vsub.s32 %v1134, %v1136
    %v1138 = vrot.slane %v1130, %v1137
    %v1140 = vunpack.c.l.s4 1934713408
    %v1141 = vunpack.c.0.s8 %v1140
    %v1142 = vlaneseq
    %v1143 = vshrl.u32 %v1142, 7
    %v1144 = vsub.s32 %v1141, %v1143
    %v1145 = vrot.slane %v1131, %v1144
    %v1146 = vcombine.low %v1090, %v1106
    %v1147 = vcombine.high %v1090, %v1106
    %v1149 = vunpack.c.l.s4 1934713408
    %v1150 = vunpack.c.0.s8 %v1149
    %v1151 = vlaneseq
    %v1152 = vshrl.u32 %v1151, 7
    %v1153 = vsub.s32 %v1150, %v1152
    %v1154 = vrot.slane %v1146, %v1153
    %v1156 = vunpack.c.l.s4 1934713408
    %v1157 = vunpack.c.0.s8 %v1156
    %v1158 = vlaneseq
    %v1159 = vshrl.u32 %v1158, 7
    %v1160 = vsub.s32 %v1157, %v1159
    %v1161 = vrot.slane %v1147, %v1160
    %v1162 = vcombine.low %v1097, %v1113
    %v1163 = vcombine.high %v1097, %v1113
    %v1165 = vunpack.c.l.s4 1934713408
    %v1166 = vunpack.c.0.s8 %v1165
    %v1167 = vlaneseq
    %v1168 = vshrl.u32 %v1167, 7
    %v1169 = vsub.s32 %v1166, %v1168
    %v1170 = vrot.slane %v1162, %v1169
    %v1172 = vunpack.c.l.s4 1934713408
    %v1173 = vunpack.c.0.s8 %v1172
    %v1174 = vlaneseq
    %v1175 = vshrl.u32 %v1174, 7
    %v1176 = vsub.s32 %v1173, %v1175
    %v1177 = vrot.slane %v1163, %v1176
    %v1178 = vcombine.low %v1122, %v1154
    %v1179 = vcombine.high %v1122, %v1154
    %v1180 = vcombine.low %v1129, %v1161
    %v1181 = vcombine.high %v1129, %v1161
    %v1182 = vcombine.low %v1138, %v1170
    %v1183 = vcombine.high %v1138, %v1170
    %v1184 = vcombine.low %v1145, %v1177
    %v1185 = vcombine.high %v1145, %v1177
    %v1186 = vcombine.low %v323, %v1017
    %v1187 = vcombine.high %v323, %v1017
    %v1189 = vunpack.c.l.s4 1983009808
    %v1190 = vunpack.c.0.s8 %v1189
    %v1191 = vlaneseq
    %v1192 = vshrl.u32 %v1191, 7
    %v1193 = vsub.s32 %v1190, %v1192
    %v1194 = vrot.slane %v1186, %v1193
    %v1196 = vunpack.c.l.s4 1983009808
    %v1197 = vunpack.c.0.s8 %v1196
    %v1198 = vlaneseq
    %v1199 = vshrl.u32 %v1198, 7
    %v1200 = vsub.s32 %v1197, %v1199
    %v1201 = vrot.slane %v1187, %v1200
    %v1202 = vcombine.low %v1011, %v1023
    %v1203 = vcombine.high %v1011, %v1023
    %v1205 = vunpack.c.l.s4 1983009808
    %v1206 = vunpack.c.0.s8 %v1205
    %v1207 = vlaneseq
    %v1208 = vshrl.u32 %v1207, 7
    %v1209 = vsub.s32 %v1206, %v1208
    %v1210 = vrot.slane %v1202, %v1209
    %v1212 = vunpack.c.l.s4 1983009808
    %v1213 = vunpack.c.0.s8 %v1212
    %v1214 = vlaneseq
    %v1215 = vshrl.u32 %v1214, 7
    %v1216 = vsub.s32 %v1213, %v1215
    %v1217 = vrot.slane %v1203, %v1216
    %v1218 = vcombine.low %v1029, %v1041
    %v1219 = vcombine.high %v1029, %v1041
    %v1221 = vunpack.c.l.s4 1983009808
    %v1222 = vunpack.c.0.s8 %v1221
    %v1223 = vlaneseq
    %v1224 = vshrl.u32 %v1223, 7
    %v1225 = vsub.s32 %v1222, %v1224
    %v1226 = vrot.slane %v1218, %v1225
    %v1228 = vunpack.c.l.s4 1983009808
    %v1229 = vunpack.c.0.s8 %v1228
    %v1230 = vlaneseq
    %v1231 = vshrl.u32 %v1230, 7
    %v1232 = vsub.s32 %v1229, %v1231
    %v1233 = vrot.slane %v1219, %v1232
    %v1234 = vcombine.low %v1035, %v1047
    %v1235 = vcombine.high %v1035, %v1047
    %v1237 = vunpack.c.l.s4 1983009808
    %v1238 = vunpack.c.0.s8 %v1237
    %v1239 = vlaneseq
    %v1240 = vshrl.u32 %v1239, 7
    %v1241 = vsub.s32 %v1238, %v1240
    %v1242 = vrot.slane %v1234, %v1241
    %v1244 = vunpack.c.l.s4 1983009808
    %v1245 = vunpack.c.0.s8 %v1244
    %v1246 = vlaneseq
    %v1247 = vshrl.u32 %v1246, 7
    %v1248 = vsub.s32 %v1245, %v1247
    %v1249 = vrot.slane %v1235, %v1248
    %v1250 = vcombine.low %v1194, %v1210
    %v1251 = vcombine.high %v1194, %v1210
    %v1253 = vunpack.c.l.s4 1934713408
    %v1254 = vunpack.c.0.s8 %v1253
    %v1255 = vlaneseq
    %v1256 = vshrl.u32 %v1255, 7
    %v1257 = vsub.s32 %v1254, %v1256
    %v1258 = vrot.slane %v1250, %v1257
    %v1260 = vunpack.c.l.s4 1934713408
    %v1261 = vunpack.c.0.s8 %v1260
    %v1262 = vlaneseq
    %v1263 = vshrl.u32 %v1262, 7
    %v1264 = vsub.s32 %v1261, %v1263
    %v1265 = vrot.slane %v1251, %v1264
    %v1266 = vcombine.low %v1201, %v1217
    %v1267 = vcombine.high %v1201, %v1217
    %v1269 = vunpack.c.l.s4 1934713408
    %v1270 = vunpack.c.0.s8 %v1269
    %v1271 = vlaneseq
    %v1272 = vshrl.u32 %v1271, 7
    %v1273 = vsub.s32 %v1270, %v1272
    %v1274 = vrot.slane %v1266, %v1273
    %v1276 = vunpack.c.l.s4 1934713408
    %v1277 = vunpack.c.0.s8 %v1276
    %v1278 = vlaneseq
    %v1279 = vshrl.u32 %v1278, 7
    %v1280 = vsub.s32 %v1277, %v1279
    %v1281 = vrot.slane %v1267, %v1280
    %v1282 = vcombine.low %v1226, %v1242
    %v1283 = vcombine.high %v1226, %v1242
    %v1285 = vunpack.c.l.s4 1934713408
    %v1286 = vunpack.c.0.s8 %v1285
    %v1287 = vlaneseq
    %v1288 = vshrl.u32 %v1287, 7
    %v1289 = vsub.s32 %v1286, %v1288
    %v1290 = vrot.slane %v1282, %v1289
    %v1292 = vunpack.c.l.s4 1934713408
    %v1293 = vunpack.c.0.s8 %v1292
    %v1294 = vlaneseq
    %v1295 = vshrl.u32 %v1294, 7
    %v1296 = vsub.s32 %v1293, %v1295
    %v1297 = vrot.slane %v1283, %v1296
    %v1298 = vcombine.low %v1233, %v1249
    %v1299 = vcombine.high %v1233, %v1249
    %v1301 = vunpack.c.l.s4 1934713408
    %v1302 = vunpack.c.0.s8 %v1301
    %v1303 = vlaneseq
    %v1304 = vshrl.u32 %v1303, 7
    %v1305 = vsub.s32 %v1302, %v1304
    %v1306 = vrot.slane %v1298, %v1305
    %v1308 = vunpack.c.l.s4 1934713408
    %v1309 = vunpack.c.0.s8 %v1308
    %v1310 = vlaneseq
    %v1311 = vshrl.u32 %v1310, 7
    %v1312 = vsub.s32 %v1309, %v1311
    %v1313 = vrot.slane %v1299, %v1312
    %v1314 = vcombine.low %v1258, %v1290
    %v1315 = vcombine.high %v1258, %v1290
    %v1316 = vcombine.low %v1265, %v1297
    %v1317 = vcombine.high %v1265, %v1297
    %v1318 = vcombine.low %v1274, %v1306
    %v1319 = vcombine.high %v1274, %v1306
    %v1320 = vcombine.low %v1281, %v1313
    %v1321 = vcombine.high %v1281, %v1313
    %v1322 = vcombine.low %v1178, %v1180
    %v1323 = vcombine.high %v1178, %v1180
    %v1325 = vunpack.c.l.s4 1983009808
    %v1326 = vunpack.c.0.s8 %v1325
    %v1327 = vlaneseq
    %v1328 = vshrl.u32 %v1327, 7
    %v1329 = vsub.s32 %v1326, %v1328
    %v1330 = vrot.slane %v1322, %v1329
    %v1332 = vunpack.c.l.s4 1983009808
    %v1333 = vunpack.c.0.s8 %v1332
    %v1334 = vlaneseq
    %v1335 = vshrl.u32 %v1334, 7
    %v1336 = vsub.s32 %v1333, %v1335
    %v1337 = vrot.slane %v1323, %v1336
    %v1338 = vcombine.low %v1179, %v1181
    %v1339 = vcombine.high %v1179, %v1181
    %v1341 = vunpack.c.l.s4 1983009808
    %v1342 = vunpack.c.0.s8 %v1341
    %v1343 = vlaneseq
    %v1344 = vshrl.u32 %v1343, 7
    %v1345 = vsub.s32 %v1342, %v1344
    %v1346 = vrot.slane %v1338, %v1345
    %v1348 = vunpack.c.l.s4 1983009808
    %v1349 = vunpack.c.0.s8 %v1348
    %v1350 = vlaneseq
    %v1351 = vshrl.u32 %v1350, 7
    %v1352 = vsub.s32 %v1349, %v1351
    %v1353 = vrot.slane %v1339, %v1352
    %v1354 = vcombine.low %v1182, %v1184
    %v1355 = vcombine.high %v1182, %v1184
    %v1357 = vunpack.c.l.s4 1983009808
    %v1358 = vunpack.c.0.s8 %v1357
    %v1359 = vlaneseq
    %v1360 = vshrl.u32 %v1359, 7
    %v1361 = vsub.s32 %v1358, %v1360
    %v1362 = vrot.slane %v1354, %v1361
    %v1364 = vunpack.c.l.s4 1983009808
    %v1365 = vunpack.c.0.s8 %v1364
    %v1366 = vlaneseq
    %v1367 = vshrl.u32 %v1366, 7
    %v1368 = vsub.s32 %v1365, %v1367
    %v1369 = vrot.slane %v1355, %v1368
    %v1370 = vcombine.low %v1183, %v1185
    %v1371 = vcombine.high %v1183, %v1185
    %v1373 = vunpack.c.l.s4 1983009808
    %v1374 = vunpack.c.0.s8 %v1373
    %v1375 = vlaneseq
    %v1376 = vshrl.u32 %v1375, 7
    %v1377 = vsub.s32 %v1374, %v1376
    %v1378 = vrot.slane %v1370, %v1377
    %v1380 = vunpack.c.l.s4 1983009808
    %v1381 = vunpack.c.0.s8 %v1380
    %v1382 = vlaneseq
    %v1383 = vshrl.u32 %v1382, 7
    %v1384 = vsub.s32 %v1381, %v1383
    %v1385 = vrot.slane %v1371, %v1384
    %v1386 = vcombine.low %v1330, %v1346
    %v1387 = vcombine.high %v1330, %v1346
    %v1389 = vunpack.c.l.s4 1934713408
    %v1390 = vunpack.c.0.s8 %v1389
    %v1391 = vlaneseq
    %v1392 = vshrl.u32 %v1391, 7
    %v1393 = vsub.s32 %v1390, %v1392
    %v1394 = vrot.slane %v1386, %v1393
    %v1396 = vunpack.c.l.s4 1934713408
    %v1397 = vunpack.c.0.s8 %v1396
    %v1398 = vlaneseq
    %v1399 = vshrl.u32 %v1398, 7
    %v1400 = vsub.s32 %v1397, %v1399
    %v1401 = vrot.slane %v1387, %v1400
    %v1402 = vcombine.low %v1337, %v1353
    %v1403 = vcombine.high %v1337, %v1353
    %v1405 = vunpack.c.l.s4 1934713408
    %v1406 = vunpack.c.0.s8 %v1405
    %v1407 = vlaneseq
    %v1408 = vshrl.u32 %v1407, 7
    %v1409 = vsub.s32 %v1406, %v1408
    %v1410 = vrot.slane %v1402, %v1409
    %v1412 = vunpack.c.l.s4 1934713408
    %v1413 = vunpack.c.0.s8 %v1412
    %v1414 = vlaneseq
    %v1415 = vshrl.u32 %v1414, 7
    %v1416 = vsub.s32 %v1413, %v1415
    %v1417 = vrot.slane %v1403, %v1416
    %v1418 = vcombine.low %v1362, %v1378
    %v1419 = vcombine.high %v1362, %v1378
    %v1421 = vunpack.c.l.s4 1934713408
    %v1422 = vunpack.c.0.s8 %v1421
    %v1423 = vlaneseq
    %v1424 = vshrl.u32 %v1423, 7
    %v1425 = vsub.s32 %v1422, %v1424
    %v1426 = vrot.slane %v1418, %v1425
    %v1428 = vunpack.c.l.s4 1934713408
    %v1429 = vunpack.c.0.s8 %v1428
    %v1430 = vlaneseq
    %v1431 = vshrl.u32 %v1430, 7
    %v1432 = vsub.s32 %v1429, %v1431
    %v1433 = vrot.slane %v1419, %v1432
    %v1434 = vcombine.low %v1369, %v1385
    %v1435 = vcombine.high %v1369, %v1385
    %v1437 = vunpack.c.l.s4 1934713408
    %v1438 = vunpack.c.0.s8 %v1437
    %v1439 = vlaneseq
    %v1440 = vshrl.u32 %v1439, 7
    %v1441 = vsub.s32 %v1438, %v1440
    %v1442 = vrot.slane %v1434, %v1441
    %v1444 = vunpack.c.l.s4 1934713408
    %v1445 = vunpack.c.0.s8 %v1444
    %v1446 = vlaneseq
    %v1447 = vshrl.u32 %v1446, 7
    %v1448 = vsub.s32 %v1445, %v1447
    %v1449 = vrot.slane %v1435, %v1448
    %v1450 = vcombine.low %v1394, %v1426
    %v1451 = vcombine.high %v1394, %v1426
    %v1452 = vcombine.low %v1401, %v1433
    %v1453 = vcombine.high %v1401, %v1433
    %v1454 = vcombine.low %v1410, %v1442
    %v1455 = vcombine.high %v1410, %v1442
    %v1456 = vcombine.low %v1417, %v1449
    %v1457 = vcombine.high %v1417, %v1449
    %v1458 = vcombine.low %v1314, %v1316
    %v1459 = vcombine.high %v1314, %v1316
    %v1461 = vunpack.c.l.s4 1983009808
    %v1462 = vunpack.c.0.s8 %v1461
    %v1463 = vlaneseq
    %v1464 = vshrl.u32 %v1463, 7
    %v1465 = vsub.s32 %v1462, %v1464
    %v1466 = vrot.slane %v1458, %v1465
    %v1468 = vunpack.c.l.s4 1983009808
    %v1469 = vunpack.c.0.s8 %v1468
    %v1470 = vlaneseq
    %v1471 = vshrl.u32 %v1470, 7
    %v1472 = vsub.s32 %v1469, %v1471
    %v1473 = vrot.slane %v1459, %v1472
    %v1474 = vcombine.low %v1315, %v1317
    %v1475 = vcombine.high %v1315, %v1317
    %v1477 = vunpack.c.l.s4 1983009808
    %v1478 = vunpack.c.0.s8 %v1477
    %v1479 = vlaneseq
    %v1480 = vshrl.u32 %v1479, 7
    %v1481 = vsub.s32 %v1478, %v1480
    %v1482 = vrot.slane %v1474, %v1481
    %v1484 = vunpack.c.l.s4 1983009808
    %v1485 = vunpack.c.0.s8 %v1484
    %v1486 = vlaneseq
    %v1487 = vshrl.u32 %v1486, 7
    %v1488 = vsub.s32 %v1485, %v1487
    %v1489 = vrot.slane %v1475, %v1488
    %v1490 = vcombine.low %v1318, %v1320
    %v1491 = vcombine.high %v1318, %v1320
    %v1493 = vunpack.c.l.s4 1983009808
    %v1494 = vunpack.c.0.s8 %v1493
    %v1495 = vlaneseq
    %v1496 = vshrl.u32 %v1495, 7
    %v1497 = vsub.s32 %v1494, %v1496
    %v1498 = vrot.slane %v1490, %v1497
    %v1500 = vunpack.c.l.s4 1983009808
    %v1501 = vunpack.c.0.s8 %v1500
    %v1502 = vlaneseq
    %v1503 = vshrl.u32 %v1502, 7
    %v1504 = vsub.s32 %v1501, %v1503
    %v1505 = vrot.slane %v1491, %v1504
    %v1506 = vcombine.low %v1319, %v1321
    %v1507 = vcombine.high %v1319, %v1321
    %v1509 = vunpack.c.l.s4 1983009808
    %v1510 = vunpack.c.0.s8 %v1509
    %v1511 = vlaneseq
    %v1512 = vshrl.u32 %v1511, 7
    %v1513 = vsub.s32 %v1510, %v1512
    %v1514 = vrot.slane %v1506, %v1513
    %v1516 = vunpack.c.l.s4 1983009808
    %v1517 = vunpack.c.0.s8 %v1516
    %v1518 = vlaneseq
    %v1519 = vshrl.u32 %v1518, 7
    %v1520 = vsub.s32 %v1517, %v1519
    %v1521 = vrot.slane %v1507, %v1520
    %v1522 = vcombine.low %v1466, %v1482
    %v1523 = vcombine.high %v1466, %v1482
    %v1525 = vunpack.c.l.s4 1934713408
    %v1526 = vunpack.c.0.s8 %v1525
    %v1527 = vlaneseq
    %v1528 = vshrl.u32 %v1527, 7
    %v1529 = vsub.s32 %v1526, %v1528
    %v1530 = vrot.slane %v1522, %v1529
    %v1532 = vunpack.c.l.s4 1934713408
    %v1533 = vunpack.c.0.s8 %v1532
    %v1534 = vlaneseq
    %v1535 = vshrl.u32 %v1534, 7
    %v1536 = vsub.s32 %v1533, %v1535
    %v1537 = vrot.slane %v1523, %v1536
    %v1538 = vcombine.low %v1473, %v1489
    %v1539 = vcombine.high %v1473, %v1489
    %v1541 = vunpack.c.l.s4 1934713408
    %v1542 = vunpack.c.0.s8 %v1541
    %v1543 = vlaneseq
    %v1544 = vshrl.u32 %v1543, 7
    %v1545 = vsub.s32 %v1542, %v1544
    %v1546 = vrot.slane %v1538, %v1545
    %v1548 = vunpack.c.l.s4 1934713408
    %v1549 = vunpack.c.0.s8 %v1548
    %v1550 = vlaneseq
    %v1551 = vshrl.u32 %v1550, 7
    %v1552 = vsub.s32 %v1549, %v1551
    %v1553 = vrot.slane %v1539, %v1552
    %v1554 = vcombine.low %v1498, %v1514
    %v1555 = vcombine.high %v1498, %v1514
    %v1557 = vunpack.c.l.s4 1934713408
    %v1558 = vunpack.c.0.s8 %v1557
    %v1559 = vlaneseq
    %v1560 = vshrl.u32 %v1559, 7
    %v1561 = vsub.s32 %v1558, %v1560
    %v1562 = vrot.slane %v1554, %v1561
    %v1564 = vunpack.c.l.s4 1934713408
    %v1565 = vunpack.c.0.s8 %v1564
    %v1566 = vlaneseq
    %v1567 = vshrl.u32 %v1566, 7
    %v1568 = vsub.s32 %v1565, %v1567
    %v1569 = vrot.slane %v1555, %v1568
    %v1570 = vcombine.low %v1505, %v1521
    %v1571 = vcombine.high %v1505, %v1521
    %v1573 = vunpack.c.l.s4 1934713408
    %v1574 = vunpack.c.0.s8 %v1573
    %v1575 = vlaneseq
    %v1576 = vshrl.u32 %v1575, 7
    %v1577 = vsub.s32 %v1574, %v1576
    %v1578 = vrot.slane %v1570, %v1577
    %v1580 = vunpack.c.l.s4 1934713408
    %v1581 = vunpack.c.0.s8 %v1580
    %v1582 = vlaneseq
    %v1583 = vshrl.u32 %v1582, 7
    %v1584 = vsub.s32 %v1581, %v1583
    %v1585 = vrot.slane %v1571, %v1584
    %v1586 = vcombine.low %v1530, %v1562
    %v1587 = vcombine.high %v1530, %v1562
    %v1588 = vcombine.low %v1537, %v1569
    %v1589 = vcombine.high %v1537, %v1569
    %v1590 = vcombine.low %v1546, %v1578
    %v1591 = vcombine.high %v1546, %v1578
    %v1592 = vcombine.low %v1553, %v1585
    %v1593 = vcombine.high %v1553, %v1585
    %1596 = vrot.lane.b32.xlu0 %v410, 124
    %v1597 = vpop.permute.xlu0 %1596
    %1598 = vrot.lane.b32.xlu0 %v415, 124
    %v1599 = vpop.permute.xlu0 %1598
    %1602 = vrot.lane.b32.xlu0 %v410, 120
    %v1603 = vpop.permute.xlu0 %1602
    %1604 = vrot.lane.b32.xlu0 %v415, 120
    %v1605 = vpop.permute.xlu0 %1604
    %1608 = vrot.lane.b32.xlu0 %v410, 116
    %v1609 = vpop.permute.xlu0 %1608
    %1610 = vrot.lane.b32.xlu0 %v415, 116
    %v1611 = vpop.permute.xlu0 %1610
    %1614 = vrot.lane.b32.xlu0 %v410, 112
    %v1615 = vpop.permute.xlu0 %1614
    %1616 = vrot.lane.b32.xlu0 %v415, 112
    %v1617 = vpop.permute.xlu0 %1616
    %1620 = vrot.lane.b32.xlu0 %v410, 108
    %v1621 = vpop.permute.xlu0 %1620
    %1622 = vrot.lane.b32.xlu0 %v415, 108
    %v1623 = vpop.permute.xlu0 %1622
    %1626 = vrot.lane.b32.xlu0 %v410, 104
    %v1627 = vpop.permute.xlu0 %1626
    %1628 = vrot.lane.b32.xlu0 %v415, 104
    %v1629 = vpop.permute.xlu0 %1628
    %1632 = vrot.lane.b32.xlu0 %v410, 100
    %v1633 = vpop.permute.xlu0 %1632
    %1634 = vrot.lane.b32.xlu0 %v415, 100
    %v1635 = vpop.permute.xlu0 %1634
    %v1638 = vcombine.low %v410, %v1603
    %v1639 = vcombine.high %v410, %v1603
    %v1641 = vunpack.c.l.s4 1983009808
    %v1642 = vunpack.c.0.s8 %v1641
    %v1643 = vlaneseq
    %v1644 = vshrl.u32 %v1643, 7
    %v1645 = vsub.s32 %v1642, %v1644
    %v1646 = vrot.slane %v1638, %v1645
    %v1648 = vunpack.c.l.s4 1983009808
    %v1649 = vunpack.c.0.s8 %v1648
    %v1650 = vlaneseq
    %v1651 = vshrl.u32 %v1650, 7
    %v1652 = vsub.s32 %v1649, %v1651
    %v1653 = vrot.slane %v1639, %v1652
    %v1654 = vcombine.low %v1597, %v1609
    %v1655 = vcombine.high %v1597, %v1609
    %v1657 = vunpack.c.l.s4 1983009808
    %v1658 = vunpack.c.0.s8 %v1657
    %v1659 = vlaneseq
    %v1660 = vshrl.u32 %v1659, 7
    %v1661 = vsub.s32 %v1658, %v1660
    %v1662 = vrot.slane %v1654, %v1661
    %v1664 = vunpack.c.l.s4 1983009808
    %v1665 = vunpack.c.0.s8 %v1664
    %v1666 = vlaneseq
    %v1667 = vshrl.u32 %v1666, 7
    %v1668 = vsub.s32 %v1665, %v1667
    %v1669 = vrot.slane %v1655, %v1668
    %v1670 = vcombine.low %v1615, %v1627
    %v1671 = vcombine.high %v1615, %v1627
    %v1673 = vunpack.c.l.s4 1983009808
    %v1674 = vunpack.c.0.s8 %v1673
    %v1675 = vlaneseq
    %v1676 = vshrl.u32 %v1675, 7
    %v1677 = vsub.s32 %v1674, %v1676
    %v1678 = vrot.slane %v1670, %v1677
    %v1680 = vunpack.c.l.s4 1983009808
    %v1681 = vunpack.c.0.s8 %v1680
    %v1682 = vlaneseq
    %v1683 = vshrl.u32 %v1682, 7
    %v1684 = vsub.s32 %v1681, %v1683
    %v1685 = vrot.slane %v1671, %v1684
    %v1686 = vcombine.low %v1621, %v1633
    %v1687 = vcombine.high %v1621, %v1633
    %v1689 = vunpack.c.l.s4 1983009808
    %v1690 = vunpack.c.0.s8 %v1689
    %v1691 = vlaneseq
    %v1692 = vshrl.u32 %v1691, 7
    %v1693 = vsub.s32 %v1690, %v1692
    %v1694 = vrot.slane %v1686, %v1693
    %v1696 = vunpack.c.l.s4 1983009808
    %v1697 = vunpack.c.0.s8 %v1696
    %v1698 = vlaneseq
    %v1699 = vshrl.u32 %v1698, 7
    %v1700 = vsub.s32 %v1697, %v1699
    %v1701 = vrot.slane %v1687, %v1700
    %v1702 = vcombine.low %v1646, %v1662
    %v1703 = vcombine.high %v1646, %v1662
    %v1705 = vunpack.c.l.s4 1934713408
    %v1706 = vunpack.c.0.s8 %v1705
    %v1707 = vlaneseq
    %v1708 = vshrl.u32 %v1707, 7
    %v1709 = vsub.s32 %v1706, %v1708
    %v1710 = vrot.slane %v1702, %v1709
    %v1712 = vunpack.c.l.s4 1934713408
    %v1713 = vunpack.c.0.s8 %v1712
    %v1714 = vlaneseq
    %v1715 = vshrl.u32 %v1714, 7
    %v1716 = vsub.s32 %v1713, %v1715
    %v1717 = vrot.slane %v1703, %v1716
    %v1718 = vcombine.low %v1653, %v1669
    %v1719 = vcombine.high %v1653, %v1669
    %v1721 = vunpack.c.l.s4 1934713408
    %v1722 = vunpack.c.0.s8 %v1721
    %v1723 = vlaneseq
    %v1724 = vshrl.u32 %v1723, 7
    %v1725 = vsub.s32 %v1722, %v1724
    %v1726 = vrot.slane %v1718, %v1725
    %v1728 = vunpack.c.l.s4 1934713408
    %v1729 = vunpack.c.0.s8 %v1728
    %v1730 = vlaneseq
    %v1731 = vshrl.u32 %v1730, 7
    %v1732 = vsub.s32 %v1729, %v1731
    %v1733 = vrot.slane %v1719, %v1732
    %v1734 = vcombine.low %v1678, %v1694
    %v1735 = vcombine.high %v1678, %v1694
    %v1737 = vunpack.c.l.s4 1934713408
    %v1738 = vunpack.c.0.s8 %v1737
    %v1739 = vlaneseq
    %v1740 = vshrl.u32 %v1739, 7
    %v1741 = vsub.s32 %v1738, %v1740
    %v1742 = vrot.slane %v1734, %v1741
    %v1744 = vunpack.c.l.s4 1934713408
    %v1745 = vunpack.c.0.s8 %v1744
    %v1746 = vlaneseq
    %v1747 = vshrl.u32 %v1746, 7
    %v1748 = vsub.s32 %v1745, %v1747
    %v1749 = vrot.slane %v1735, %v1748
    %v1750 = vcombine.low %v1685, %v1701
    %v1751 = vcombine.high %v1685, %v1701
    %v1753 = vunpack.c.l.s4 1934713408
    %v1754 = vunpack.c.0.s8 %v1753
    %v1755 = vlaneseq
    %v1756 = vshrl.u32 %v1755, 7
    %v1757 = vsub.s32 %v1754, %v1756
    %v1758 = vrot.slane %v1750, %v1757
    %v1760 = vunpack.c.l.s4 1934713408
    %v1761 = vunpack.c.0.s8 %v1760
    %v1762 = vlaneseq
    %v1763 = vshrl.u32 %v1762, 7
    %v1764 = vsub.s32 %v1761, %v1763
    %v1765 = vrot.slane %v1751, %v1764
    %v1766 = vcombine.low %v1710, %v1742
    %v1767 = vcombine.high %v1710, %v1742
    %v1768 = vcombine.low %v1717, %v1749
    %v1769 = vcombine.high %v1717, %v1749
    %v1770 = vcombine.low %v1726, %v1758
    %v1771 = vcombine.high %v1726, %v1758
    %v1772 = vcombine.low %v1733, %v1765
    %v1773 = vcombine.high %v1733, %v1765
    %v1774 = vcombine.low %v415, %v1605
    %v1775 = vcombine.high %v415, %v1605
    %v1777 = vunpack.c.l.s4 1983009808
    %v1778 = vunpack.c.0.s8 %v1777
    %v1779 = vlaneseq
    %v1780 = vshrl.u32 %v1779, 7
    %v1781 = vsub.s32 %v1778, %v1780
    %v1782 = vrot.slane %v1774, %v1781
    %v1784 = vunpack.c.l.s4 1983009808
    %v1785 = vunpack.c.0.s8 %v1784
    %v1786 = vlaneseq
    %v1787 = vshrl.u32 %v1786, 7
    %v1788 = vsub.s32 %v1785, %v1787
    %v1789 = vrot.slane %v1775, %v1788
    %v1790 = vcombine.low %v1599, %v1611
    %v1791 = vcombine.high %v1599, %v1611
    %v1793 = vunpack.c.l.s4 1983009808
    %v1794 = vunpack.c.0.s8 %v1793
    %v1795 = vlaneseq
    %v1796 = vshrl.u32 %v1795, 7
    %v1797 = vsub.s32 %v1794, %v1796
    %v1798 = vrot.slane %v1790, %v1797
    %v1800 = vunpack.c.l.s4 1983009808
    %v1801 = vunpack.c.0.s8 %v1800
    %v1802 = vlaneseq
    %v1803 = vshrl.u32 %v1802, 7
    %v1804 = vsub.s32 %v1801, %v1803
    %v1805 = vrot.slane %v1791, %v1804
    %v1806 = vcombine.low %v1617, %v1629
    %v1807 = vcombine.high %v1617, %v1629
    %v1809 = vunpack.c.l.s4 1983009808
    %v1810 = vunpack.c.0.s8 %v1809
    %v1811 = vlaneseq
    %v1812 = vshrl.u32 %v1811, 7
    %v1813 = vsub.s32 %v1810, %v1812
    %v1814 = vrot.slane %v1806, %v1813
    %v1816 = vunpack.c.l.s4 1983009808
    %v1817 = vunpack.c.0.s8 %v1816
    %v1818 = vlaneseq
    %v1819 = vshrl.u32 %v1818, 7
    %v1820 = vsub.s32 %v1817, %v1819
    %v1821 = vrot.slane %v1807, %v1820
    %v1822 = vcombine.low %v1623, %v1635
    %v1823 = vcombine.high %v1623, %v1635
    %v1825 = vunpack.c.l.s4 1983009808
    %v1826 = vunpack.c.0.s8 %v1825
    %v1827 = vlaneseq
    %v1828 = vshrl.u32 %v1827, 7
    %v1829 = vsub.s32 %v1826, %v1828
    %v1830 = vrot.slane %v1822, %v1829
    %v1832 = vunpack.c.l.s4 1983009808
    %v1833 = vunpack.c.0.s8 %v1832
    %v1834 = vlaneseq
    %v1835 = vshrl.u32 %v1834, 7
    %v1836 = vsub.s32 %v1833, %v1835
    %v1837 = vrot.slane %v1823, %v1836
    %v1838 = vcombine.low %v1782, %v1798
    %v1839 = vcombine.high %v1782, %v1798
    %v1841 = vunpack.c.l.s4 1934713408
    %v1842 = vunpack.c.0.s8 %v1841
    %v1843 = vlaneseq
    %v1844 = vshrl.u32 %v1843, 7
    %v1845 = vsub.s32 %v1842, %v1844
    %v1846 = vrot.slane %v1838, %v1845
    %v1848 = vunpack.c.l.s4 1934713408
    %v1849 = vunpack.c.0.s8 %v1848
    %v1850 = vlaneseq
    %v1851 = vshrl.u32 %v1850, 7
    %v1852 = vsub.s32 %v1849, %v1851
    %v1853 = vrot.slane %v1839, %v1852
    %v1854 = vcombine.low %v1789, %v1805
    %v1855 = vcombine.high %v1789, %v1805
    %v1857 = vunpack.c.l.s4 1934713408
    %v1858 = vunpack.c.0.s8 %v1857
    %v1859 = vlaneseq
    %v1860 = vshrl.u32 %v1859, 7
    %v1861 = vsub.s32 %v1858, %v1860
    %v1862 = vrot.slane %v1854, %v1861
    %v1864 = vunpack.c.l.s4 1934713408
    %v1865 = vunpack.c.0.s8 %v1864
    %v1866 = vlaneseq
    %v1867 = vshrl.u32 %v1866, 7
    %v1868 = vsub.s32 %v1865, %v1867
    %v1869 = vrot.slane %v1855, %v1868
    %v1870 = vcombine.low %v1814, %v1830
    %v1871 = vcombine.high %v1814, %v1830
    %v1873 = vunpack.c.l.s4 1934713408
    %v1874 = vunpack.c.0.s8 %v1873
    %v1875 = vlaneseq
    %v1876 = vshrl.u32 %v1875, 7
    %v1877 = vsub.s32 %v1874, %v1876
    %v1878 = vrot.slane %v1870, %v1877
    %v1880 = vunpack.c.l.s4 1934713408
    %v1881 = vunpack.c.0.s8 %v1880
    %v1882 = vlaneseq
    %v1883 = vshrl.u32 %v1882, 7
    %v1884 = vsub.s32 %v1881, %v1883
    %v1885 = vrot.slane %v1871, %v1884
    %v1886 = vcombine.low %v1821, %v1837
    %v1887 = vcombine.high %v1821, %v1837
    %v1889 = vunpack.c.l.s4 1934713408
    %v1890 = vunpack.c.0.s8 %v1889
    %v1891 = vlaneseq
    %v1892 = vshrl.u32 %v1891, 7
    %v1893 = vsub.s32 %v1890, %v1892
    %v1894 = vrot.slane %v1886, %v1893
    %v1896 = vunpack.c.l.s4 1934713408
    %v1897 = vunpack.c.0.s8 %v1896
    %v1898 = vlaneseq
    %v1899 = vshrl.u32 %v1898, 7
    %v1900 = vsub.s32 %v1897, %v1899
    %v1901 = vrot.slane %v1887, %v1900
    %v1902 = vcombine.low %v1846, %v1878
    %v1903 = vcombine.high %v1846, %v1878
    %v1904 = vcombine.low %v1853, %v1885
    %v1905 = vcombine.high %v1853, %v1885
    %v1906 = vcombine.low %v1862, %v1894
    %v1907 = vcombine.high %v1862, %v1894
    %v1908 = vcombine.low %v1869, %v1901
    %v1909 = vcombine.high %v1869, %v1901
    %v1910 = vcombine.low %v1766, %v1768
    %v1911 = vcombine.high %v1766, %v1768
    %v1913 = vunpack.c.l.s4 1983009808
    %v1914 = vunpack.c.0.s8 %v1913
    %v1915 = vlaneseq
    %v1916 = vshrl.u32 %v1915, 7
    %v1917 = vsub.s32 %v1914, %v1916
    %v1918 = vrot.slane %v1910, %v1917
    %v1920 = vunpack.c.l.s4 1983009808
    %v1921 = vunpack.c.0.s8 %v1920
    %v1922 = vlaneseq
    %v1923 = vshrl.u32 %v1922, 7
    %v1924 = vsub.s32 %v1921, %v1923
    %v1925 = vrot.slane %v1911, %v1924
    %v1926 = vcombine.low %v1767, %v1769
    %v1927 = vcombine.high %v1767, %v1769
    %v1929 = vunpack.c.l.s4 1983009808
    %v1930 = vunpack.c.0.s8 %v1929
    %v1931 = vlaneseq
    %v1932 = vshrl.u32 %v1931, 7
    %v1933 = vsub.s32 %v1930, %v1932
    %v1934 = vrot.slane %v1926, %v1933
    %v1936 = vunpack.c.l.s4 1983009808
    %v1937 = vunpack.c.0.s8 %v1936
    %v1938 = vlaneseq
    %v1939 = vshrl.u32 %v1938, 7
    %v1940 = vsub.s32 %v1937, %v1939
    %v1941 = vrot.slane %v1927, %v1940
    %v1942 = vcombine.low %v1770, %v1772
    %v1943 = vcombine.high %v1770, %v1772
    %v1945 = vunpack.c.l.s4 1983009808
    %v1946 = vunpack.c.0.s8 %v1945
    %v1947 = vlaneseq
    %v1948 = vshrl.u32 %v1947, 7
    %v1949 = vsub.s32 %v1946, %v1948
    %v1950 = vrot.slane %v1942, %v1949
    %v1952 = vunpack.c.l.s4 1983009808
    %v1953 = vunpack.c.0.s8 %v1952
    %v1954 = vlaneseq
    %v1955 = vshrl.u32 %v1954, 7
    %v1956 = vsub.s32 %v1953, %v1955
    %v1957 = vrot.slane %v1943, %v1956
    %v1958 = vcombine.low %v1771, %v1773
    %v1959 = vcombine.high %v1771, %v1773
    %v1961 = vunpack.c.l.s4 1983009808
    %v1962 = vunpack.c.0.s8 %v1961
    %v1963 = vlaneseq
    %v1964 = vshrl.u32 %v1963, 7
    %v1965 = vsub.s32 %v1962, %v1964
    %v1966 = vrot.slane %v1958, %v1965
    %v1968 = vunpack.c.l.s4 1983009808
    %v1969 = vunpack.c.0.s8 %v1968
    %v1970 = vlaneseq
    %v1971 = vshrl.u32 %v1970, 7
    %v1972 = vsub.s32 %v1969, %v1971
    %v1973 = vrot.slane %v1959, %v1972
    %v1974 = vcombine.low %v1918, %v1934
    %v1975 = vcombine.high %v1918, %v1934
    %v1977 = vunpack.c.l.s4 1934713408
    %v1978 = vunpack.c.0.s8 %v1977
    %v1979 = vlaneseq
    %v1980 = vshrl.u32 %v1979, 7
    %v1981 = vsub.s32 %v1978, %v1980
    %v1982 = vrot.slane %v1974, %v1981
    %v1984 = vunpack.c.l.s4 1934713408
    %v1985 = vunpack.c.0.s8 %v1984
    %v1986 = vlaneseq
    %v1987 = vshrl.u32 %v1986, 7
    %v1988 = vsub.s32 %v1985, %v1987
    %v1989 = vrot.slane %v1975, %v1988
    %v1990 = vcombine.low %v1925, %v1941
    %v1991 = vcombine.high %v1925, %v1941
    %v1993 = vunpack.c.l.s4 1934713408
    %v1994 = vunpack.c.0.s8 %v1993
    %v1995 = vlaneseq
    %v1996 = vshrl.u32 %v1995, 7
    %v1997 = vsub.s32 %v1994, %v1996
    %v1998 = vrot.slane %v1990, %v1997
    %v2000 = vunpack.c.l.s4 1934713408
    %v2001 = vunpack.c.0.s8 %v2000
    %v2002 = vlaneseq
    %v2003 = vshrl.u32 %v2002, 7
    %v2004 = vsub.s32 %v2001, %v2003
    %v2005 = vrot.slane %v1991, %v2004
    %v2006 = vcombine.low %v1950, %v1966
    %v2007 = vcombine.high %v1950, %v1966
    %v2009 = vunpack.c.l.s4 1934713408
    %v2010 = vunpack.c.0.s8 %v2009
    %v2011 = vlaneseq
    %v2012 = vshrl.u32 %v2011, 7
    %v2013 = vsub.s32 %v2010, %v2012
    %v2014 = vrot.slane %v2006, %v2013
    %v2016 = vunpack.c.l.s4 1934713408
    %v2017 = vunpack.c.0.s8 %v2016
    %v2018 = vlaneseq
    %v2019 = vshrl.u32 %v2018, 7
    %v2020 = vsub.s32 %v2017, %v2019
    %v2021 = vrot.slane %v2007, %v2020
    %v2022 = vcombine.low %v1957, %v1973
    %v2023 = vcombine.high %v1957, %v1973
    %v2025 = vunpack.c.l.s4 1934713408
    %v2026 = vunpack.c.0.s8 %v2025
    %v2027 = vlaneseq
    %v2028 = vshrl.u32 %v2027, 7
    %v2029 = vsub.s32 %v2026, %v2028
    %v2030 = vrot.slane %v2022, %v2029
    %v2032 = vunpack.c.l.s4 1934713408
    %v2033 = vunpack.c.0.s8 %v2032
    %v2034 = vlaneseq
    %v2035 = vshrl.u32 %v2034, 7
    %v2036 = vsub.s32 %v2033, %v2035
    %v2037 = vrot.slane %v2023, %v2036
    %v2038 = vcombine.low %v1982, %v2014
    %v2039 = vcombine.high %v1982, %v2014
    %v2040 = vcombine.low %v1989, %v2021
    %v2041 = vcombine.high %v1989, %v2021
    %v2042 = vcombine.low %v1998, %v2030
    %v2043 = vcombine.high %v1998, %v2030
    %v2044 = vcombine.low %v2005, %v2037
    %v2045 = vcombine.high %v2005, %v2037
    %v2046 = vcombine.low %v1902, %v1904
    %v2047 = vcombine.high %v1902, %v1904
    %v2049 = vunpack.c.l.s4 1983009808
    %v2050 = vunpack.c.0.s8 %v2049
    %v2051 = vlaneseq
    %v2052 = vshrl.u32 %v2051, 7
    %v2053 = vsub.s32 %v2050, %v2052
    %v2054 = vrot.slane %v2046, %v2053
    %v2056 = vunpack.c.l.s4 1983009808
    %v2057 = vunpack.c.0.s8 %v2056
    %v2058 = vlaneseq
    %v2059 = vshrl.u32 %v2058, 7
    %v2060 = vsub.s32 %v2057, %v2059
    %v2061 = vrot.slane %v2047, %v2060
    %v2062 = vcombine.low %v1903, %v1905
    %v2063 = vcombine.high %v1903, %v1905
    %v2065 = vunpack.c.l.s4 1983009808
    %v2066 = vunpack.c.0.s8 %v2065
    %v2067 = vlaneseq
    %v2068 = vshrl.u32 %v2067, 7
    %v2069 = vsub.s32 %v2066, %v2068
    %v2070 = vrot.slane %v2062, %v2069
    %v2072 = vunpack.c.l.s4 1983009808
    %v2073 = vunpack.c.0.s8 %v2072
    %v2074 = vlaneseq
    %v2075 = vshrl.u32 %v2074, 7
    %v2076 = vsub.s32 %v2073, %v2075
    %v2077 = vrot.slane %v2063, %v2076
    %v2078 = vcombine.low %v1906, %v1908
    %v2079 = vcombine.high %v1906, %v1908
    %v2081 = vunpack.c.l.s4 1983009808
    %v2082 = vunpack.c.0.s8 %v2081
    %v2083 = vlaneseq
    %v2084 = vshrl.u32 %v2083, 7
    %v2085 = vsub.s32 %v2082, %v2084
    %v2086 = vrot.slane %v2078, %v2085
    %v2088 = vunpack.c.l.s4 1983009808
    %v2089 = vunpack.c.0.s8 %v2088
    %v2090 = vlaneseq
    %v2091 = vshrl.u32 %v2090, 7
    %v2092 = vsub.s32 %v2089, %v2091
    %v2093 = vrot.slane %v2079, %v2092
    %v2094 = vcombine.low %v1907, %v1909
    %v2095 = vcombine.high %v1907, %v1909
    %v2097 = vunpack.c.l.s4 1983009808
    %v2098 = vunpack.c.0.s8 %v2097
    %v2099 = vlaneseq
    %v2100 = vshrl.u32 %v2099, 7
    %v2101 = vsub.s32 %v2098, %v2100
    %v2102 = vrot.slane %v2094, %v2101
    %v2104 = vunpack.c.l.s4 1983009808
    %v2105 = vunpack.c.0.s8 %v2104
    %v2106 = vlaneseq
    %v2107 = vshrl.u32 %v2106, 7
    %v2108 = vsub.s32 %v2105, %v2107
    %v2109 = vrot.slane %v2095, %v2108
    %v2110 = vcombine.low %v2054, %v2070
    %v2111 = vcombine.high %v2054, %v2070
    %v2113 = vunpack.c.l.s4 1934713408
    %v2114 = vunpack.c.0.s8 %v2113
    %v2115 = vlaneseq
    %v2116 = vshrl.u32 %v2115, 7
    %v2117 = vsub.s32 %v2114, %v2116
    %v2118 = vrot.slane %v2110, %v2117
    %v2120 = vunpack.c.l.s4 1934713408
    %v2121 = vunpack.c.0.s8 %v2120
    %v2122 = vlaneseq
    %v2123 = vshrl.u32 %v2122, 7
    %v2124 = vsub.s32 %v2121, %v2123
    %v2125 = vrot.slane %v2111, %v2124
    %v2126 = vcombine.low %v2061, %v2077
    %v2127 = vcombine.high %v2061, %v2077
    %v2129 = vunpack.c.l.s4 1934713408
    %v2130 = vunpack.c.0.s8 %v2129
    %v2131 = vlaneseq
    %v2132 = vshrl.u32 %v2131, 7
    %v2133 = vsub.s32 %v2130, %v2132
    %v2134 = vrot.slane %v2126, %v2133
    %v2136 = vunpack.c.l.s4 1934713408
    %v2137 = vunpack.c.0.s8 %v2136
    %v2138 = vlaneseq
    %v2139 = vshrl.u32 %v2138, 7
    %v2140 = vsub.s32 %v2137, %v2139
    %v2141 = vrot.slane %v2127, %v2140
    %v2142 = vcombine.low %v2086, %v2102
    %v2143 = vcombine.high %v2086, %v2102
    %v2145 = vunpack.c.l.s4 1934713408
    %v2146 = vunpack.c.0.s8 %v2145
    %v2147 = vlaneseq
    %v2148 = vshrl.u32 %v2147, 7
    %v2149 = vsub.s32 %v2146, %v2148
    %v2150 = vrot.slane %v2142, %v2149
    %v2152 = vunpack.c.l.s4 1934713408
    %v2153 = vunpack.c.0.s8 %v2152
    %v2154 = vlaneseq
    %v2155 = vshrl.u32 %v2154, 7
    %v2156 = vsub.s32 %v2153, %v2155
    %v2157 = vrot.slane %v2143, %v2156
    %v2158 = vcombine.low %v2093, %v2109
    %v2159 = vcombine.high %v2093, %v2109
    %v2161 = vunpack.c.l.s4 1934713408
    %v2162 = vunpack.c.0.s8 %v2161
    %v2163 = vlaneseq
    %v2164 = vshrl.u32 %v2163, 7
    %v2165 = vsub.s32 %v2162, %v2164
    %v2166 = vrot.slane %v2158, %v2165
    %v2168 = vunpack.c.l.s4 1934713408
    %v2169 = vunpack.c.0.s8 %v2168
    %v2170 = vlaneseq
    %v2171 = vshrl.u32 %v2170, 7
    %v2172 = vsub.s32 %v2169, %v2171
    %v2173 = vrot.slane %v2159, %v2172
    %v2174 = vcombine.low %v2118, %v2150
    %v2175 = vcombine.high %v2118, %v2150
    %v2176 = vcombine.low %v2125, %v2157
    %v2177 = vcombine.high %v2125, %v2157
    %v2178 = vcombine.low %v2134, %v2166
    %v2179 = vcombine.high %v2134, %v2166
    %v2180 = vcombine.low %v2141, %v2173
    %v2181 = vcombine.high %v2141, %v2173
    %vm2182 = vcmask 31744
    %v2184 = vsel %vm2182, %v862, 0
    %v2187 = vsel %vm2182, %v1450, 0
    %2189 = vmatprep.subr.mxu0 0.0
    %2190 = vmatpush1.xpose.msra.mxu0 %v2187
    %2191 = vmatprep.subr.mxu0 0.0
    %2192 = vmatpush1.xpose.msra.mxu0 0.0
    %2193 = vmatprep.subr.mxu0 0.0
    %2194 = vmatpush1.xpose.msra.mxu0 0.0
    %2195 = vmatprep.subr.mxu0 0.0
    %2196 = vmatpush1.xpose.msra.mxu0 0.0
    %2197 = vmatprep.subr.mxu0 0.0
    %2198 = vmatpush1.xpose.msra.mxu0 0.0
    %2199 = vmatprep.subr.mxu0 0.0
    %2200 = vmatpush1.xpose.msra.mxu0 0.0
    %2201 = vmatprep.subr.mxu0 0.0
    %2202 = vmatpush1.xpose.msra.mxu0 0.0
    %2203 = vmatprep.subr.mxu0 0.0
    %2204 = vmatpush1.xpose.msra.mxu0 0.0
    %2205 = vmatprep.subr.mxu0 0.0
    %2206 = vmatpush1.xpose.msra.mxu0 0.0
    %2207 = vmatprep.subr.mxu0 0.0
    %2208 = vmatpush1.xpose.msra.mxu0 0.0
    %2209 = vmatprep.subr.mxu0 0.0
    %2210 = vmatpush1.xpose.msra.mxu0 0.0
    %2211 = vmatprep.subr.mxu0 0.0
    %2212 = vmatpush1.xpose.msra.mxu0 0.0
    %2213 = vmatprep.subr.mxu0 0.0
    %2214 = vmatpush1.xpose.msra.mxu0 0.0
    %2215 = vmatprep.subr.mxu0 0.0
    %2216 = vmatpush1.xpose.msra.mxu0 0.0
    %2217 = vmatprep.subr.mxu0 0.0
    %2218 = vmatpush1.xpose.msra.mxu0 0.0
    %2219 = vmatprep.subr.mxu0 0.0
    %2220 = vmatpush1.xpose.msra.mxu0 0.0
    %2221 = vmatprep.subr.mxu0 0.0
    %2222 = vmatpush1.xpose.msra.mxu0 0.0
    %2223 = vmatprep.subr.mxu0 0.0
    %2224 = vmatpush1.xpose.msra.mxu0 0.0
    %2225 = vmatprep.subr.mxu0 0.0
    %2226 = vmatpush1.xpose.msra.mxu0 0.0
    %2227 = vmatprep.subr.mxu0 0.0
    %2228 = vmatpush1.xpose.msra.mxu0 0.0
    %2229 = vmatprep.subr.mxu0 0.0
    %2230 = vmatpush1.xpose.msra.mxu0 0.0
    %2231 = vmatprep.subr.mxu0 0.0
    %2232 = vmatpush1.xpose.msra.mxu0 0.0
    %2233 = vmatprep.subr.mxu0 0.0
    %2234 = vmatpush1.xpose.msra.mxu0 0.0
    %2235 = vmatprep.subr.mxu0 0.0
    %2236 = vmatpush1.xpose.msra.mxu0 0.0
    %2237 = vmatprep.subr.mxu0 0.0
    %2238 = vmatpush1.xpose.msra.mxu0 0.0
    %2239 = vmatprep.subr.mxu0 0.0
    %2240 = vmatpush1.xpose.msra.mxu0 0.0
    %2241 = vmatprep.subr.mxu0 0.0
    %2242 = vmatpush1.xpose.msra.mxu0 0.0
    %2243 = vmatprep.subr.mxu0 0.0
    %2244 = vmatpush1.xpose.msra.mxu0 0.0
    %2245 = vmatprep.subr.mxu0 0.0
    %2246 = vmatpush1.xpose.msra.mxu0 0.0
    %2247 = vmatprep.subr.mxu0 0.0
    %2248 = vmatpush1.xpose.msra.mxu0 0.0
    %2249 = vmatprep.subr.mxu0 0.0
    %2250 = vmatpush1.xpose.msra.mxu0 0.0
    %2251 = vmatprep.subr.mxu0 0.0
    %2252 = vmatpush1.xpose.msra.mxu0 0.0
    %2253 = vmatprep.mubr.f32.mxu0 0.0
    %2254 = vmatmul.mubr.f32.gmra.mrb[0].mxu0 %v2184
    %v2255 = vpop.f32.mrb[0].mxu0
    %v2256 = vadd.f32 0.0, %v2255
    %v2257 = vpop.f32.mrb[0].mxu0
    %2258 = vdwg.mxu0
    %v2260 = vsel %vm2182, %v863, 0
    %v2263 = vsel %vm2182, %v1451, 0
    %2265 = vmatprep.subr.mxu0 0.0
    %2266 = vmatpush1.xpose.msra.mxu0 %v2263
    %2267 = vmatprep.subr.mxu0 0.0
    %2268 = vmatpush1.xpose.msra.mxu0 0.0
    %2269 = vmatprep.subr.mxu0 0.0
    %2270 = vmatpush1.xpose.msra.mxu0 0.0
    %2271 = vmatprep.subr.mxu0 0.0
    %2272 = vmatpush1.xpose.msra.mxu0 0.0
    %2273 = vmatprep.subr.mxu0 0.0
    %2274 = vmatpush1.xpose.msra.mxu0 0.0
    %2275 = vmatprep.subr.mxu0 0.0
    %2276 = vmatpush1.xpose.msra.mxu0 0.0
    %2277 = vmatprep.subr.mxu0 0.0
    %2278 = vmatpush1.xpose.msra.mxu0 0.0
    %2279 = vmatprep.subr.mxu0 0.0
    %2280 = vmatpush1.xpose.msra.mxu0 0.0
    %2281 = vmatprep.subr.mxu0 0.0
    %2282 = vmatpush1.xpose.msra.mxu0 0.0
    %2283 = vmatprep.subr.mxu0 0.0
    %2284 = vmatpush1.xpose.msra.mxu0 0.0
    %2285 = vmatprep.subr.mxu0 0.0
    %2286 = vmatpush1.xpose.msra.mxu0 0.0
    %2287 = vmatprep.subr.mxu0 0.0
    %2288 = vmatpush1.xpose.msra.mxu0 0.0
    %2289 = vmatprep.subr.mxu0 0.0
    %2290 = vmatpush1.xpose.msra.mxu0 0.0
    %2291 = vmatprep.subr.mxu0 0.0
    %2292 = vmatpush1.xpose.msra.mxu0 0.0
    %2293 = vmatprep.subr.mxu0 0.0
    %2294 = vmatpush1.xpose.msra.mxu0 0.0
    %2295 = vmatprep.subr.mxu0 0.0
    %2296 = vmatpush1.xpose.msra.mxu0 0.0
    %2297 = vmatprep.subr.mxu0 0.0
    %2298 = vmatpush1.xpose.msra.mxu0 0.0
    %2299 = vmatprep.subr.mxu0 0.0
    %2300 = vmatpush1.xpose.msra.mxu0 0.0
    %2301 = vmatprep.subr.mxu0 0.0
    %2302 = vmatpush1.xpose.msra.mxu0 0.0
    %2303 = vmatprep.subr.mxu0 0.0
    %2304 = vmatpush1.xpose.msra.mxu0 0.0
    %2305 = vmatprep.subr.mxu0 0.0
    %2306 = vmatpush1.xpose.msra.mxu0 0.0
    %2307 = vmatprep.subr.mxu0 0.0
    %2308 = vmatpush1.xpose.msra.mxu0 0.0
    %2309 = vmatprep.subr.mxu0 0.0
    %2310 = vmatpush1.xpose.msra.mxu0 0.0
    %2311 = vmatprep.subr.mxu0 0.0
    %2312 = vmatpush1.xpose.msra.mxu0 0.0
    %2313 = vmatprep.subr.mxu0 0.0
    %2314 = vmatpush1.xpose.msra.mxu0 0.0
    %2315 = vmatprep.subr.mxu0 0.0
    %2316 = vmatpush1.xpose.msra.mxu0 0.0
    %2317 = vmatprep.subr.mxu0 0.0
    %2318 = vmatpush1.xpose.msra.mxu0 0.0
    %2319 = vmatprep.subr.mxu0 0.0
    %2320 = vmatpush1.xpose.msra.mxu0 0.0
    %2321 = vmatprep.subr.mxu0 0.0
    %2322 = vmatpush1.xpose.msra.mxu0 0.0
    %2323 = vmatprep.subr.mxu0 0.0
    %2324 = vmatpush1.xpose.msra.mxu0 0.0
    %2325 = vmatprep.subr.mxu0 0.0
    %2326 = vmatpush1.xpose.msra.mxu0 0.0
    %2327 = vmatprep.subr.mxu0 0.0
    %2328 = vmatpush1.xpose.msra.mxu0 0.0
    %2329 = vmatprep.mubr.f32.mxu0 0.0
    %2330 = vmatmul.mubr.f32.gmra.mrb[0].mxu0 %v2260
    %v2331 = vpop.f32.mrb[0].mxu0
    %v2332 = vadd.f32 0.0, %v2331
    %v2333 = vpop.f32.mrb[0].mxu0
    %2334 = vdwg.mxu0
    %v2336 = vsel %vm2182, %v864, 0
    %v2339 = vsel %vm2182, %v1452, 0
    %2341 = vmatprep.subr.mxu0 0.0
    %2342 = vmatpush1.xpose.msra.mxu0 %v2339
    %2343 = vmatprep.subr.mxu0 0.0
    %2344 = vmatpush1.xpose.msra.mxu0 0.0
    %2345 = vmatprep.subr.mxu0 0.0
    %2346 = vmatpush1.xpose.msra.mxu0 0.0
    %2347 = vmatprep.subr.mxu0 0.0
    %2348 = vmatpush1.xpose.msra.mxu0 0.0
    %2349 = vmatprep.subr.mxu0 0.0
    %2350 = vmatpush1.xpose.msra.mxu0 0.0
    %2351 = vmatprep.subr.mxu0 0.0
    %2352 = vmatpush1.xpose.msra.mxu0 0.0
    %2353 = vmatprep.subr.mxu0 0.0
    %2354 = vmatpush1.xpose.msra.mxu0 0.0
    %2355 = vmatprep.subr.mxu0 0.0
    %2356 = vmatpush1.xpose.msra.mxu0 0.0
    %2357 = vmatprep.subr.mxu0 0.0
    %2358 = vmatpush1.xpose.msra.mxu0 0.0
    %2359 = vmatprep.subr.mxu0 0.0
    %2360 = vmatpush1.xpose.msra.mxu0 0.0
    %2361 = vmatprep.subr.mxu0 0.0
    %2362 = vmatpush1.xpose.msra.mxu0 0.0
    %2363 = vmatprep.subr.mxu0 0.0
    %2364 = vmatpush1.xpose.msra.mxu0 0.0
    %2365 = vmatprep.subr.mxu0 0.0
    %2366 = vmatpush1.xpose.msra.mxu0 0.0
    %2367 = vmatprep.subr.mxu0 0.0
    %2368 = vmatpush1.xpose.msra.mxu0 0.0
    %2369 = vmatprep.subr.mxu0 0.0
    %2370 = vmatpush1.xpose.msra.mxu0 0.0
    %2371 = vmatprep.subr.mxu0 0.0
    %2372 = vmatpush1.xpose.msra.mxu0 0.0
    %2373 = vmatprep.subr.mxu0 0.0
    %2374 = vmatpush1.xpose.msra.mxu0 0.0
    %2375 = vmatprep.subr.mxu0 0.0
    %2376 = vmatpush1.xpose.msra.mxu0 0.0
    %2377 = vmatprep.subr.mxu0 0.0
    %2378 = vmatpush1.xpose.msra.mxu0 0.0
    %2379 = vmatprep.subr.mxu0 0.0
    %2380 = vmatpush1.xpose.msra.mxu0 0.0
    %2381 = vmatprep.subr.mxu0 0.0
    %2382 = vmatpush1.xpose.msra.mxu0 0.0
    %2383 = vmatprep.subr.mxu0 0.0
    %2384 = vmatpush1.xpose.msra.mxu0 0.0
    %2385 = vmatprep.subr.mxu0 0.0
    %2386 = vmatpush1.xpose.msra.mxu0 0.0
    %2387 = vmatprep.subr.mxu0 0.0
    %2388 = vmatpush1.xpose.msra.mxu0 0.0
    %2389 = vmatprep.subr.mxu0 0.0
    %2390 = vmatpush1.xpose.msra.mxu0 0.0
    %2391 = vmatprep.subr.mxu0 0.0
    %2392 = vmatpush1.xpose.msra.mxu0 0.0
    %2393 = vmatprep.subr.mxu0 0.0
    %2394 = vmatpush1.xpose.msra.mxu0 0.0
    %2395 = vmatprep.subr.mxu0 0.0
    %2396 = vmatpush1.xpose.msra.mxu0 0.0
    %2397 = vmatprep.subr.mxu0 0.0
    %2398 = vmatpush1.xpose.msra.mxu0 0.0
    %2399 = vmatprep.subr.mxu0 0.0
    %2400 = vmatpush1.xpose.msra.mxu0 0.0
    %2401 = vmatprep.subr.mxu0 0.0
    %2402 = vmatpush1.xpose.msra.mxu0 0.0
    %2403 = vmatprep.subr.mxu0 0.0
    %2404 = vmatpush1.xpose.msra.mxu0 0.0
    %2405 = vmatprep.mubr.f32.mxu0 0.0
    %2406 = vmatmul.mubr.f32.gmra.mrb[0].mxu0 %v2336
    %v2407 = vpop.f32.mrb[0].mxu0
    %v2408 = vadd.f32 0.0, %v2407
    %v2409 = vpop.f32.mrb[0].mxu0
    %2410 = vdwg.mxu0
    %v2412 = vsel %vm2182, %v865, 0
    %v2415 = vsel %vm2182, %v1453, 0
    %2417 = vmatprep.subr.mxu0 0.0
    %2418 = vmatpush1.xpose.msra.mxu0 %v2415
    %2419 = vmatprep.subr.mxu0 0.0
    %2420 = vmatpush1.xpose.msra.mxu0 0.0
    %2421 = vmatprep.subr.mxu0 0.0
    %2422 = vmatpush1.xpose.msra.mxu0 0.0
    %2423 = vmatprep.subr.mxu0 0.0
    %2424 = vmatpush1.xpose.msra.mxu0 0.0
    %2425 = vmatprep.subr.mxu0 0.0
    %2426 = vmatpush1.xpose.msra.mxu0 0.0
    %2427 = vmatprep.subr.mxu0 0.0
    %2428 = vmatpush1.xpose.msra.mxu0 0.0
    %2429 = vmatprep.subr.mxu0 0.0
    %2430 = vmatpush1.xpose.msra.mxu0 0.0
    %2431 = vmatprep.subr.mxu0 0.0
    %2432 = vmatpush1.xpose.msra.mxu0 0.0
    %2433 = vmatprep.subr.mxu0 0.0
    %2434 = vmatpush1.xpose.msra.mxu0 0.0
    %2435 = vmatprep.subr.mxu0 0.0
    %2436 = vmatpush1.xpose.msra.mxu0 0.0
    %2437 = vmatprep.subr.mxu0 0.0
    %2438 = vmatpush1.xpose.msra.mxu0 0.0
    %2439 = vmatprep.subr.mxu0 0.0
    %2440 = vmatpush1.xpose.msra.mxu0 0.0
    %2441 = vmatprep.subr.mxu0 0.0
    %2442 = vmatpush1.xpose.msra.mxu0 0.0
    %2443 = vmatprep.subr.mxu0 0.0
    %2444 = vmatpush1.xpose.msra.mxu0 0.0
    %2445 = vmatprep.subr.mxu0 0.0
    %2446 = vmatpush1.xpose.msra.mxu0 0.0
    %2447 = vmatprep.subr.mxu0 0.0
    %2448 = vmatpush1.xpose.msra.mxu0 0.0
    %2449 = vmatprep.subr.mxu0 0.0
    %2450 = vmatpush1.xpose.msra.mxu0 0.0
    %2451 = vmatprep.subr.mxu0 0.0
    %2452 = vmatpush1.xpose.msra.mxu0 0.0
    %2453 = vmatprep.subr.mxu0 0.0
    %2454 = vmatpush1.xpose.msra.mxu0 0.0
    %2455 = vmatprep.subr.mxu0 0.0
    %2456 = vmatpush1.xpose.msra.mxu0 0.0
    %2457 = vmatprep.subr.mxu0 0.0
    %2458 = vmatpush1.xpose.msra.mxu0 0.0
    %2459 = vmatprep.subr.mxu0 0.0
    %2460 = vmatpush1.xpose.msra.mxu0 0.0
    %2461 = vmatprep.subr.mxu0 0.0
    %2462 = vmatpush1.xpose.msra.mxu0 0.0
    %2463 = vmatprep.subr.mxu0 0.0
    %2464 = vmatpush1.xpose.msra.mxu0 0.0
    %2465 = vmatprep.subr.mxu0 0.0
    %2466 = vmatpush1.xpose.msra.mxu0 0.0
    %2467 = vmatprep.subr.mxu0 0.0
    %2468 = vmatpush1.xpose.msra.mxu0 0.0
    %2469 = vmatprep.subr.mxu0 0.0
    %2470 = vmatpush1.xpose.msra.mxu0 0.0
    %2471 = vmatprep.subr.mxu0 0.0
    %2472 = vmatpush1.xpose.msra.mxu0 0.0
    %2473 = vmatprep.subr.mxu0 0.0
    %2474 = vmatpush1.xpose.msra.mxu0 0.0
    %2475 = vmatprep.subr.mxu0 0.0
    %2476 = vmatpush1.xpose.msra.mxu0 0.0
    %2477 = vmatprep.subr.mxu0 0.0
    %2478 = vmatpush1.xpose.msra.mxu0 0.0
    %2479 = vmatprep.subr.mxu0 0.0
    %2480 = vmatpush1.xpose.msra.mxu0 0.0
    %2481 = vmatprep.mubr.f32.mxu0 0.0
    %2482 = vmatmul.mubr.f32.gmra.mrb[0].mxu0 %v2412
    %v2483 = vpop.f32.mrb[0].mxu0
    %v2484 = vadd.f32 0.0, %v2483
    %v2485 = vpop.f32.mrb[0].mxu0
    %2486 = vdwg.mxu0
    %v2488 = vsel %vm2182, %v866, 0
    %v2491 = vsel %vm2182, %v1454, 0
    %2493 = vmatprep.subr.mxu0 0.0
    %2494 = vmatpush1.xpose.msra.mxu0 %v2491
    %2495 = vmatprep.subr.mxu0 0.0
    %2496 = vmatpush1.xpose.msra.mxu0 0.0
    %2497 = vmatprep.subr.mxu0 0.0
    %2498 = vmatpush1.xpose.msra.mxu0 0.0
    %2499 = vmatprep.subr.mxu0 0.0
    %2500 = vmatpush1.xpose.msra.mxu0 0.0
    %2501 = vmatprep.subr.mxu0 0.0
    %2502 = vmatpush1.xpose.msra.mxu0 0.0
    %2503 = vmatprep.subr.mxu0 0.0
    %2504 = vmatpush1.xpose.msra.mxu0 0.0
    %2505 = vmatprep.subr.mxu0 0.0
    %2506 = vmatpush1.xpose.msra.mxu0 0.0
    %2507 = vmatprep.subr.mxu0 0.0
    %2508 = vmatpush1.xpose.msra.mxu0 0.0
    %2509 = vmatprep.subr.mxu0 0.0
    %2510 = vmatpush1.xpose.msra.mxu0 0.0
    %2511 = vmatprep.subr.mxu0 0.0
    %2512 = vmatpush1.xpose.msra.mxu0 0.0
    %2513 = vmatprep.subr.mxu0 0.0
    %2514 = vmatpush1.xpose.msra.mxu0 0.0
    %2515 = vmatprep.subr.mxu0 0.0
    %2516 = vmatpush1.xpose.msra.mxu0 0.0
    %2517 = vmatprep.subr.mxu0 0.0
    %2518 = vmatpush1.xpose.msra.mxu0 0.0
    %2519 = vmatprep.subr.mxu0 0.0
    %2520 = vmatpush1.xpose.msra.mxu0 0.0
    %2521 = vmatprep.subr.mxu0 0.0
    %2522 = vmatpush1.xpose.msra.mxu0 0.0
    %2523 = vmatprep.subr.mxu0 0.0
    %2524 = vmatpush1.xpose.msra.mxu0 0.0
    %2525 = vmatprep.subr.mxu0 0.0
    %2526 = vmatpush1.xpose.msra.mxu0 0.0
    %2527 = vmatprep.subr.mxu0 0.0
    %2528 = vmatpush1.xpose.msra.mxu0 0.0
    %2529 = vmatprep.subr.mxu0 0.0
    %2530 = vmatpush1.xpose.msra.mxu0 0.0
    %2531 = vmatprep.subr.mxu0 0.0
    %2532 = vmatpush1.xpose.msra.mxu0 0.0
    %2533 = vmatprep.subr.mxu0 0.0
    %2534 = vmatpush1.xpose.msra.mxu0 0.0
    %2535 = vmatprep.subr.mxu0 0.0
    %2536 = vmatpush1.xpose.msra.mxu0 0.0
    %2537 = vmatprep.subr.mxu0 0.0
    %2538 = vmatpush1.xpose.msra.mxu0 0.0
    %2539 = vmatprep.subr.mxu0 0.0
    %2540 = vmatpush1.xpose.msra.mxu0 0.0
    %2541 = vmatprep.subr.mxu0 0.0
    %2542 = vmatpush1.xpose.msra.mxu0 0.0
    %2543 = vmatprep.subr.mxu0 0.0
    %2544 = vmatpush1.xpose.msra.mxu0 0.0
    %2545 = vmatprep.subr.mxu0 0.0
    %2546 = vmatpush1.xpose.msra.mxu0 0.0
    %2547 = vmatprep.subr.mxu0 0.0
    %2548 = vmatpush1.xpose.msra.mxu0 0.0
    %2549 = vmatprep.subr.mxu0 0.0
    %2550 = vmatpush1.xpose.msra.mxu0 0.0
    %2551 = vmatprep.subr.mxu0 0.0
    %2552 = vmatpush1.xpose.msra.mxu0 0.0
    %2553 = vmatprep.subr.mxu0 0.0
    %2554 = vmatpush1.xpose.msra.mxu0 0.0
    %2555 = vmatprep.subr.mxu0 0.0
    %2556 = vmatpush1.xpose.msra.mxu0 0.0
    %2557 = vmatprep.mubr.f32.mxu0 0.0
    %2558 = vmatmul.mubr.f32.gmra.mrb[0].mxu0 %v2488
    %v2559 = vpop.f32.mrb[0].mxu0
    %v2560 = vadd.f32 0.0, %v2559
    %v2561 = vpop.f32.mrb[0].mxu0
    %2562 = vdwg.mxu0
    %v2564 = vsel %vm2182, %v867, 0
    %v2567 = vsel %vm2182, %v1455, 0
    %2569 = vmatprep.subr.mxu0 0.0
    %2570 = vmatpush1.xpose.msra.mxu0 %v2567
    %2571 = vmatprep.subr.mxu0 0.0
    %2572 = vmatpush1.xpose.msra.mxu0 0.0
    %2573 = vmatprep.subr.mxu0 0.0
    %2574 = vmatpush1.xpose.msra.mxu0 0.0
    %2575 = vmatprep.subr.mxu0 0.0
    %2576 = vmatpush1.xpose.msra.mxu0 0.0
    %2577 = vmatprep.subr.mxu0 0.0
    %2578 = vmatpush1.xpose.msra.mxu0 0.0
    %2579 = vmatprep.subr.mxu0 0.0
    %2580 = vmatpush1.xpose.msra.mxu0 0.0
    %2581 = vmatprep.subr.mxu0 0.0
    %2582 = vmatpush1.xpose.msra.mxu0 0.0
    %2583 = vmatprep.subr.mxu0 0.0
    %2584 = vmatpush1.xpose.msra.mxu0 0.0
    %2585 = vmatprep.subr.mxu0 0.0
    %2586 = vmatpush1.xpose.msra.mxu0 0.0
    %2587 = vmatprep.subr.mxu0 0.0
    %2588 = vmatpush1.xpose.msra.mxu0 0.0
    %2589 = vmatprep.subr.mxu0 0.0
    %2590 = vmatpush1.xpose.msra.mxu0 0.0
    %2591 = vmatprep.subr.mxu0 0.0
    %2592 = vmatpush1.xpose.msra.mxu0 0.0
    %2593 = vmatprep.subr.mxu0 0.0
    %2594 = vmatpush1.xpose.msra.mxu0 0.0
    %2595 = vmatprep.subr.mxu0 0.0
    %2596 = vmatpush1.xpose.msra.mxu0 0.0
    %2597 = vmatprep.subr.mxu0 0.0
    %2598 = vmatpush1.xpose.msra.mxu0 0.0
    %2599 = vmatprep.subr.mxu0 0.0
    %2600 = vmatpush1.xpose.msra.mxu0 0.0
    %2601 = vmatprep.subr.mxu0 0.0
    %2602 = vmatpush1.xpose.msra.mxu0 0.0
    %2603 = vmatprep.subr.mxu0 0.0
    %2604 = vmatpush1.xpose.msra.mxu0 0.0
    %2605 = vmatprep.subr.mxu0 0.0
    %2606 = vmatpush1.xpose.msra.mxu0 0.0
    %2607 = vmatprep.subr.mxu0 0.0
    %2608 = vmatpush1.xpose.msra.mxu0 0.0
    %2609 = vmatprep.subr.mxu0 0.0
    %2610 = vmatpush1.xpose.msra.mxu0 0.0
    %2611 = vmatprep.subr.mxu0 0.0
    %2612 = vmatpush1.xpose.msra.mxu0 0.0
    %2613 = vmatprep.subr.mxu0 0.0
    %2614 = vmatpush1.xpose.msra.mxu0 0.0
    %2615 = vmatprep.subr.mxu0 0.0
    %2616 = vmatpush1.xpose.msra.mxu0 0.0
    %2617 = vmatprep.subr.mxu0 0.0
    %2618 = vmatpush1.xpose.msra.mxu0 0.0
    %2619 = vmatprep.subr.mxu0 0.0
    %2620 = vmatpush1.xpose.msra.mxu0 0.0
    %2621 = vmatprep.subr.mxu0 0.0
    %2622 = vmatpush1.xpose.msra.mxu0 0.0
    %2623 = vmatprep.subr.mxu0 0.0
    %2624 = vmatpush1.xpose.msra.mxu0 0.0
    %2625 = vmatprep.subr.mxu0 0.0
    %2626 = vmatpush1.xpose.msra.mxu0 0.0
    %2627 = vmatprep.subr.mxu0 0.0
    %2628 = vmatpush1.xpose.msra.mxu0 0.0
    %2629 = vmatprep.subr.mxu0 0.0
    %2630 = vmatpush1.xpose.msra.mxu0 0.0
    %2631 = vmatprep.subr.mxu0 0.0
    %2632 = vmatpush1.xpose.msra.mxu0 0.0
    %2633 = vmatprep.mubr.f32.mxu0 0.0
    %2634 = vmatmul.mubr.f32.gmra.mrb[0].mxu0 %v2564
    %v2635 = vpop.f32.mrb[0].mxu0
    %v2636 = vadd.f32 0.0, %v2635
    %v2637 = vpop.f32.mrb[0].mxu0
    %2638 = vdwg.mxu0
    %v2640 = vsel %vm2182, %v868, 0
    %v2643 = vsel %vm2182, %v1456, 0
    %2645 = vmatprep.subr.mxu0 0.0
    %2646 = vmatpush1.xpose.msra.mxu0 %v2643
    %2647 = vmatprep.subr.mxu0 0.0
    %2648 = vmatpush1.xpose.msra.mxu0 0.0
    %2649 = vmatprep.subr.mxu0 0.0
    %2650 = vmatpush1.xpose.msra.mxu0 0.0
    %2651 = vmatprep.subr.mxu0 0.0
    %2652 = vmatpush1.xpose.msra.mxu0 0.0
    %2653 = vmatprep.subr.mxu0 0.0
    %2654 = vmatpush1.xpose.msra.mxu0 0.0
    %2655 = vmatprep.subr.mxu0 0.0
    %2656 = vmatpush1.xpose.msra.mxu0 0.0
    %2657 = vmatprep.subr.mxu0 0.0
    %2658 = vmatpush1.xpose.msra.mxu0 0.0
    %2659 = vmatprep.subr.mxu0 0.0
    %2660 = vmatpush1.xpose.msra.mxu0 0.0
    %2661 = vmatprep.subr.mxu0 0.0
    %2662 = vmatpush1.xpose.msra.mxu0 0.0
    %2663 = vmatprep.subr.mxu0 0.0
    %2664 = vmatpush1.xpose.msra.mxu0 0.0
    %2665 = vmatprep.subr.mxu0 0.0
    %2666 = vmatpush1.xpose.msra.mxu0 0.0
    %2667 = vmatprep.subr.mxu0 0.0
    %2668 = vmatpush1.xpose.msra.mxu0 0.0
    %2669 = vmatprep.subr.mxu0 0.0
    %2670 = vmatpush1.xpose.msra.mxu0 0.0
    %2671 = vmatprep.subr.mxu0 0.0
    %2672 = vmatpush1.xpose.msra.mxu0 0.0
    %2673 = vmatprep.subr.mxu0 0.0
    %2674 = vmatpush1.xpose.msra.mxu0 0.0
    %2675 = vmatprep.subr.mxu0 0.0
    %2676 = vmatpush1.xpose.msra.mxu0 0.0
    %2677 = vmatprep.subr.mxu0 0.0
    %2678 = vmatpush1.xpose.msra.mxu0 0.0
    %2679 = vmatprep.subr.mxu0 0.0
    %2680 = vmatpush1.xpose.msra.mxu0 0.0
    %2681 = vmatprep.subr.mxu0 0.0
    %2682 = vmatpush1.xpose.msra.mxu0 0.0
    %2683 = vmatprep.subr.mxu0 0.0
    %2684 = vmatpush1.xpose.msra.mxu0 0.0
    %2685 = vmatprep.subr.mxu0 0.0
    %2686 = vmatpush1.xpose.msra.mxu0 0.0
    %2687 = vmatprep.subr.mxu0 0.0
    %2688 = vmatpush1.xpose.msra.mxu0 0.0
    %2689 = vmatprep.subr.mxu0 0.0
    %2690 = vmatpush1.xpose.msra.mxu0 0.0
    %2691 = vmatprep.subr.mxu0 0.0
    %2692 = vmatpush1.xpose.msra.mxu0 0.0
    %2693 = vmatprep.subr.mxu0 0.0
    %2694 = vmatpush1.xpose.msra.mxu0 0.0
    %2695 = vmatprep.subr.mxu0 0.0
    %2696 = vmatpush1.xpose.msra.mxu0 0.0
    %2697 = vmatprep.subr.mxu0 0.0
    %2698 = vmatpush1.xpose.msra.mxu0 0.0
    %2699 = vmatprep.subr.mxu0 0.0
    %2700 = vmatpush1.xpose.msra.mxu0 0.0
    %2701 = vmatprep.subr.mxu0 0.0
    %2702 = vmatpush1.xpose.msra.mxu0 0.0
    %2703 = vmatprep.subr.mxu0 0.0
    %2704 = vmatpush1.xpose.msra.mxu0 0.0
    %2705 = vmatprep.subr.mxu0 0.0
    %2706 = vmatpush1.xpose.msra.mxu0 0.0
    %2707 = vmatprep.subr.mxu0 0.0
    %2708 = vmatpush1.xpose.msra.mxu0 0.0
    %2709 = vmatprep.mubr.f32.mxu0 0.0
    %2710 = vmatmul.mubr.f32.gmra.mrb[0].mxu0 %v2640
    %v2711 = vpop.f32.mrb[0].mxu0
    %v2712 = vadd.f32 0.0, %v2711
    %v2713 = vpop.f32.mrb[0].mxu0
    %2714 = vdwg.mxu0
    %v2716 = vsel %vm2182, %v869, 0
    %v2719 = vsel %vm2182, %v1457, 0
    %2721 = vmatprep.subr.mxu0 0.0
    %2722 = vmatpush1.xpose.msra.mxu0 %v2719
    %2723 = vmatprep.subr.mxu0 0.0
    %2724 = vmatpush1.xpose.msra.mxu0 0.0
    %2725 = vmatprep.subr.mxu0 0.0
    %2726 = vmatpush1.xpose.msra.mxu0 0.0
    %2727 = vmatprep.subr.mxu0 0.0
    %2728 = vmatpush1.xpose.msra.mxu0 0.0
    %2729 = vmatprep.subr.mxu0 0.0
    %2730 = vmatpush1.xpose.msra.mxu0 0.0
    %2731 = vmatprep.subr.mxu0 0.0
    %2732 = vmatpush1.xpose.msra.mxu0 0.0
    %2733 = vmatprep.subr.mxu0 0.0
    %2734 = vmatpush1.xpose.msra.mxu0 0.0
    %2735 = vmatprep.subr.mxu0 0.0
    %2736 = vmatpush1.xpose.msra.mxu0 0.0
    %2737 = vmatprep.subr.mxu0 0.0
    %2738 = vmatpush1.xpose.msra.mxu0 0.0
    %2739 = vmatprep.subr.mxu0 0.0
    %2740 = vmatpush1.xpose.msra.mxu0 0.0
    %2741 = vmatprep.subr.mxu0 0.0
    %2742 = vmatpush1.xpose.msra.mxu0 0.0
    %2743 = vmatprep.subr.mxu0 0.0
    %2744 = vmatpush1.xpose.msra.mxu0 0.0
    %2745 = vmatprep.subr.mxu0 0.0
    %2746 = vmatpush1.xpose.msra.mxu0 0.0
    %2747 = vmatprep.subr.mxu0 0.0
    %2748 = vmatpush1.xpose.msra.mxu0 0.0
    %2749 = vmatprep.subr.mxu0 0.0
    %2750 = vmatpush1.xpose.msra.mxu0 0.0
    %2751 = vmatprep.subr.mxu0 0.0
    %2752 = vmatpush1.xpose.msra.mxu0 0.0
    %2753 = vmatprep.subr.mxu0 0.0
    %2754 = vmatpush1.xpose.msra.mxu0 0.0
    %2755 = vmatprep.subr.mxu0 0.0
    %2756 = vmatpush1.xpose.msra.mxu0 0.0
    %2757 = vmatprep.subr.mxu0 0.0
    %2758 = vmatpush1.xpose.msra.mxu0 0.0
    %2759 = vmatprep.subr.mxu0 0.0
    %2760 = vmatpush1.xpose.msra.mxu0 0.0
    %2761 = vmatprep.subr.mxu0 0.0
    %2762 = vmatpush1.xpose.msra.mxu0 0.0
    %2763 = vmatprep.subr.mxu0 0.0
    %2764 = vmatpush1.xpose.msra.mxu0 0.0
    %2765 = vmatprep.subr.mxu0 0.0
    %2766 = vmatpush1.xpose.msra.mxu0 0.0
    %2767 = vmatprep.subr.mxu0 0.0
    %2768 = vmatpush1.xpose.msra.mxu0 0.0
    %2769 = vmatprep.subr.mxu0 0.0
    %2770 = vmatpush1.xpose.msra.mxu0 0.0
    %2771 = vmatprep.subr.mxu0 0.0
    %2772 = vmatpush1.xpose.msra.mxu0 0.0
    %2773 = vmatprep.subr.mxu0 0.0
    %2774 = vmatpush1.xpose.msra.mxu0 0.0
    %2775 = vmatprep.subr.mxu0 0.0
    %2776 = vmatpush1.xpose.msra.mxu0 0.0
    %2777 = vmatprep.subr.mxu0 0.0
    %2778 = vmatpush1.xpose.msra.mxu0 0.0
    %2779 = vmatprep.subr.mxu0 0.0
    %2780 = vmatpush1.xpose.msra.mxu0 0.0
    %2781 = vmatprep.subr.mxu0 0.0
    %2782 = vmatpush1.xpose.msra.mxu0 0.0
    %2783 = vmatprep.subr.mxu0 0.0
    %2784 = vmatpush1.xpose.msra.mxu0 0.0
    %2785 = vmatprep.mubr.f32.mxu0 0.0
    %2786 = vmatmul.mubr.f32.gmra.mrb[0].mxu0 %v2716
    %v2787 = vpop.f32.mrb[0].mxu0
    %v2788 = vadd.f32 0.0, %v2787
    %v2789 = vpop.f32.mrb[0].mxu0
    %2790 = vdwg.mxu0
    %v2792 = vsel %vm2182, %v998, 0
    %v2795 = vsel %vm2182, %v1586, 0
    %2797 = vmatprep.subr.mxu0 0.0
    %2798 = vmatpush1.xpose.msra.mxu0 %v2795
    %2799 = vmatprep.subr.mxu0 0.0
    %2800 = vmatpush1.xpose.msra.mxu0 0.0
    %2801 = vmatprep.subr.mxu0 0.0
    %2802 = vmatpush1.xpose.msra.mxu0 0.0
    %2803 = vmatprep.subr.mxu0 0.0
    %2804 = vmatpush1.xpose.msra.mxu0 0.0
    %2805 = vmatprep.subr.mxu0 0.0
    %2806 = vmatpush1.xpose.msra.mxu0 0.0
    %2807 = vmatprep.subr.mxu0 0.0
    %2808 = vmatpush1.xpose.msra.mxu0 0.0
    %2809 = vmatprep.subr.mxu0 0.0
    %2810 = vmatpush1.xpose.msra.mxu0 0.0
    %2811 = vmatprep.subr.mxu0 0.0
    %2812 = vmatpush1.xpose.msra.mxu0 0.0
    %2813 = vmatprep.subr.mxu0 0.0
    %2814 = vmatpush1.xpose.msra.mxu0 0.0
    %2815 = vmatprep.subr.mxu0 0.0
    %2816 = vmatpush1.xpose.msra.mxu0 0.0
    %2817 = vmatprep.subr.mxu0 0.0
    %2818 = vmatpush1.xpose.msra.mxu0 0.0
    %2819 = vmatprep.subr.mxu0 0.0
    %2820 = vmatpush1.xpose.msra.mxu0 0.0
    %2821 = vmatprep.subr.mxu0 0.0
    %2822 = vmatpush1.xpose.msra.mxu0 0.0
    %2823 = vmatprep.subr.mxu0 0.0
    %2824 = vmatpush1.xpose.msra.mxu0 0.0
    %2825 = vmatprep.subr.mxu0 0.0
    %2826 = vmatpush1.xpose.msra.mxu0 0.0
    %2827 = vmatprep.subr.mxu0 0.0
    %2828 = vmatpush1.xpose.msra.mxu0 0.0
    %2829 = vmatprep.subr.mxu0 0.0
    %2830 = vmatpush1.xpose.msra.mxu0 0.0
    %2831 = vmatprep.subr.mxu0 0.0
    %2832 = vmatpush1.xpose.msra.mxu0 0.0
    %2833 = vmatprep.subr.mxu0 0.0
    %2834 = vmatpush1.xpose.msra.mxu0 0.0
    %2835 = vmatprep.subr.mxu0 0.0
    %2836 = vmatpush1.xpose.msra.mxu0 0.0
    %2837 = vmatprep.subr.mxu0 0.0
    %2838 = vmatpush1.xpose.msra.mxu0 0.0
    %2839 = vmatprep.subr.mxu0 0.0
    %2840 = vmatpush1.xpose.msra.mxu0 0.0
    %2841 = vmatprep.subr.mxu0 0.0
    %2842 = vmatpush1.xpose.msra.mxu0 0.0
    %2843 = vmatprep.subr.mxu0 0.0
    %2844 = vmatpush1.xpose.msra.mxu0 0.0
    %2845 = vmatprep.subr.mxu0 0.0
    %2846 = vmatpush1.xpose.msra.mxu0 0.0
    %2847 = vmatprep.subr.mxu0 0.0
    %2848 = vmatpush1.xpose.msra.mxu0 0.0
    %2849 = vmatprep.subr.mxu0 0.0
    %2850 = vmatpush1.xpose.msra.mxu0 0.0
    %2851 = vmatprep.subr.mxu0 0.0
    %2852 = vmatpush1.xpose.msra.mxu0 0.0
    %2853 = vmatprep.subr.mxu0 0.0
    %2854 = vmatpush1.xpose.msra.mxu0 0.0
    %2855 = vmatprep.subr.mxu0 0.0
    %2856 = vmatpush1.xpose.msra.mxu0 0.0
    %2857 = vmatprep.subr.mxu0 0.0
    %2858 = vmatpush1.xpose.msra.mxu0 0.0
    %2859 = vmatprep.subr.mxu0 0.0
    %2860 = vmatpush1.xpose.msra.mxu0 0.0
    %2861 = vmatprep.mubr.f32.mxu0 0.0
    %2862 = vmatmul.mubr.f32.gmra.mrb[0].mxu0 %v2792
    %v2863 = vpop.f32.mrb[0].mxu0
    %v2864 = vadd.f32 0.0, %v2863
    %v2865 = vpop.f32.mrb[0].mxu0
    %2866 = vdwg.mxu0
    %v2868 = vsel %vm2182, %v999, 0
    %v2871 = vsel %vm2182, %v1587, 0
    %2873 = vmatprep.subr.mxu0 0.0
    %2874 = vmatpush1.xpose.msra.mxu0 %v2871
    %2875 = vmatprep.subr.mxu0 0.0
    %2876 = vmatpush1.xpose.msra.mxu0 0.0
    %2877 = vmatprep.subr.mxu0 0.0
    %2878 = vmatpush1.xpose.msra.mxu0 0.0
    %2879 = vmatprep.subr.mxu0 0.0
    %2880 = vmatpush1.xpose.msra.mxu0 0.0
    %2881 = vmatprep.subr.mxu0 0.0
    %2882 = vmatpush1.xpose.msra.mxu0 0.0
    %2883 = vmatprep.subr.mxu0 0.0
    %2884 = vmatpush1.xpose.msra.mxu0 0.0
    %2885 = vmatprep.subr.mxu0 0.0
    %2886 = vmatpush1.xpose.msra.mxu0 0.0
    %2887 = vmatprep.subr.mxu0 0.0
    %2888 = vmatpush1.xpose.msra.mxu0 0.0
    %2889 = vmatprep.subr.mxu0 0.0
    %2890 = vmatpush1.xpose.msra.mxu0 0.0
    %2891 = vmatprep.subr.mxu0 0.0
    %2892 = vmatpush1.xpose.msra.mxu0 0.0
    %2893 = vmatprep.subr.mxu0 0.0
    %2894 = vmatpush1.xpose.msra.mxu0 0.0
    %2895 = vmatprep.subr.mxu0 0.0
    %2896 = vmatpush1.xpose.msra.mxu0 0.0
    %2897 = vmatprep.subr.mxu0 0.0
    %2898 = vmatpush1.xpose.msra.mxu0 0.0
    %2899 = vmatprep.subr.mxu0 0.0
    %2900 = vmatpush1.xpose.msra.mxu0 0.0
    %2901 = vmatprep.subr.mxu0 0.0
    %2902 = vmatpush1.xpose.msra.mxu0 0.0
    %2903 = vmatprep.subr.mxu0 0.0
    %2904 = vmatpush1.xpose.msra.mxu0 0.0
    %2905 = vmatprep.subr.mxu0 0.0
    %2906 = vmatpush1.xpose.msra.mxu0 0.0
    %2907 = vmatprep.subr.mxu0 0.0
    %2908 = vmatpush1.xpose.msra.mxu0 0.0
    %2909 = vmatprep.subr.mxu0 0.0
    %2910 = vmatpush1.xpose.msra.mxu0 0.0
    %2911 = vmatprep.subr.mxu0 0.0
    %2912 = vmatpush1.xpose.msra.mxu0 0.0
    %2913 = vmatprep.subr.mxu0 0.0
    %2914 = vmatpush1.xpose.msra.mxu0 0.0
    %2915 = vmatprep.subr.mxu0 0.0
    %2916 = vmatpush1.xpose.msra.mxu0 0.0
    %2917 = vmatprep.subr.mxu0 0.0
    %2918 = vmatpush1.xpose.msra.mxu0 0.0
    %2919 = vmatprep.subr.mxu0 0.0
    %2920 = vmatpush1.xpose.msra.mxu0 0.0
    %2921 = vmatprep.subr.mxu0 0.0
    %2922 = vmatpush1.xpose.msra.mxu0 0.0
    %2923 = vmatprep.subr.mxu0 0.0
    %2924 = vmatpush1.xpose.msra.mxu0 0.0
    %2925 = vmatprep.subr.mxu0 0.0
    %2926 = vmatpush1.xpose.msra.mxu0 0.0
    %2927 = vmatprep.subr.mxu0 0.0
    %2928 = vmatpush1.xpose.msra.mxu0 0.0
    %2929 = vmatprep.subr.mxu0 0.0
    %2930 = vmatpush1.xpose.msra.mxu0 0.0
    %2931 = vmatprep.subr.mxu0 0.0
    %2932 = vmatpush1.xpose.msra.mxu0 0.0
    %2933 = vmatprep.subr.mxu0 0.0
    %2934 = vmatpush1.xpose.msra.mxu0 0.0
    %2935 = vmatprep.subr.mxu0 0.0
    %2936 = vmatpush1.xpose.msra.mxu0 0.0
    %2937 = vmatprep.mubr.f32.mxu0 0.0
    %2938 = vmatmul.mubr.f32.gmra.mrb[0].mxu0 %v2868
    %v2939 = vpop.f32.mrb[0].mxu0
    %v2940 = vadd.f32 0.0, %v2939
    %v2941 = vpop.f32.mrb[0].mxu0
    %2942 = vdwg.mxu0
    %v2944 = vsel %vm2182, %v1000, 0
    %v2947 = vsel %vm2182, %v1588, 0
    %2949 = vmatprep.subr.mxu0 0.0
    %2950 = vmatpush1.xpose.msra.mxu0 %v2947
    %2951 = vmatprep.subr.mxu0 0.0
    %2952 = vmatpush1.xpose.msra.mxu0 0.0
    %2953 = vmatprep.subr.mxu0 0.0
    %2954 = vmatpush1.xpose.msra.mxu0 0.0
    %2955 = vmatprep.subr.mxu0 0.0
    %2956 = vmatpush1.xpose.msra.mxu0 0.0
    %2957 = vmatprep.subr.mxu0 0.0
    %2958 = vmatpush1.xpose.msra.mxu0 0.0
    %2959 = vmatprep.subr.mxu0 0.0
    %2960 = vmatpush1.xpose.msra.mxu0 0.0
    %2961 = vmatprep.subr.mxu0 0.0
    %2962 = vmatpush1.xpose.msra.mxu0 0.0
    %2963 = vmatprep.subr.mxu0 0.0
    %2964 = vmatpush1.xpose.msra.mxu0 0.0
    %2965 = vmatprep.subr.mxu0 0.0
    %2966 = vmatpush1.xpose.msra.mxu0 0.0
    %2967 = vmatprep.subr.mxu0 0.0
    %2968 = vmatpush1.xpose.msra.mxu0 0.0
    %2969 = vmatprep.subr.mxu0 0.0
    %2970 = vmatpush1.xpose.msra.mxu0 0.0
    %2971 = vmatprep.subr.mxu0 0.0
    %2972 = vmatpush1.xpose.msra.mxu0 0.0
    %2973 = vmatprep.subr.mxu0 0.0
    %2974 = vmatpush1.xpose.msra.mxu0 0.0
    %2975 = vmatprep.subr.mxu0 0.0
    %2976 = vmatpush1.xpose.msra.mxu0 0.0
    %2977 = vmatprep.subr.mxu0 0.0
    %2978 = vmatpush1.xpose.msra.mxu0 0.0
    %2979 = vmatprep.subr.mxu0 0.0
    %2980 = vmatpush1.xpose.msra.mxu0 0.0
    %2981 = vmatprep.subr.mxu0 0.0
    %2982 = vmatpush1.xpose.msra.mxu0 0.0
    %2983 = vmatprep.subr.mxu0 0.0
    %2984 = vmatpush1.xpose.msra.mxu0 0.0
    %2985 = vmatprep.subr.mxu0 0.0
    %2986 = vmatpush1.xpose.msra.mxu0 0.0
    %2987 = vmatprep.subr.mxu0 0.0
    %2988 = vmatpush1.xpose.msra.mxu0 0.0
    %2989 = vmatprep.subr.mxu0 0.0
    %2990 = vmatpush1.xpose.msra.mxu0 0.0
    %2991 = vmatprep.subr.mxu0 0.0
    %2992 = vmatpush1.xpose.msra.mxu0 0.0
    %2993 = vmatprep.subr.mxu0 0.0
    %2994 = vmatpush1.xpose.msra.mxu0 0.0
    %2995 = vmatprep.subr.mxu0 0.0
    %2996 = vmatpush1.xpose.msra.mxu0 0.0
    %2997 = vmatprep.subr.mxu0 0.0
    %2998 = vmatpush1.xpose.msra.mxu0 0.0
    %2999 = vmatprep.subr.mxu0 0.0
    %3000 = vmatpush1.xpose.msra.mxu0 0.0
    %3001 = vmatprep.subr.mxu0 0.0
    %3002 = vmatpush1.xpose.msra.mxu0 0.0
    %3003 = vmatprep.subr.mxu0 0.0
    %3004 = vmatpush1.xpose.msra.mxu0 0.0
    %3005 = vmatprep.subr.mxu0 0.0
    %3006 = vmatpush1.xpose.msra.mxu0 0.0
    %3007 = vmatprep.subr.mxu0 0.0
    %3008 = vmatpush1.xpose.msra.mxu0 0.0
    %3009 = vmatprep.subr.mxu0 0.0
    %3010 = vmatpush1.xpose.msra.mxu0 0.0
    %3011 = vmatprep.subr.mxu0 0.0
    %3012 = vmatpush1.xpose.msra.mxu0 0.0
    %3013 = vmatprep.mubr.f32.mxu0 0.0
    %3014 = vmatmul.mubr.f32.gmra.mrb[0].mxu0 %v2944
    %v3015 = vpop.f32.mrb[0].mxu0
    %v3016 = vadd.f32 0.0, %v3015
    %v3017 = vpop.f32.mrb[0].mxu0
    %3018 = vdwg.mxu0
    %v3020 = vsel %vm2182, %v1001, 0
    %v3023 = vsel %vm2182, %v1589, 0
    %3025 = vmatprep.subr.mxu0 0.0
    %3026 = vmatpush1.xpose.msra.mxu0 %v3023
    %3027 = vmatprep.subr.mxu0 0.0
    %3028 = vmatpush1.xpose.msra.mxu0 0.0
    %3029 = vmatprep.subr.mxu0 0.0
    %3030 = vmatpush1.xpose.msra.mxu0 0.0
    %3031 = vmatprep.subr.mxu0 0.0
    %3032 = vmatpush1.xpose.msra.mxu0 0.0
    %3033 = vmatprep.subr.mxu0 0.0
    %3034 = vmatpush1.xpose.msra.mxu0 0.0
    %3035 = vmatprep.subr.mxu0 0.0
    %3036 = vmatpush1.xpose.msra.mxu0 0.0
    %3037 = vmatprep.subr.mxu0 0.0
    %3038 = vmatpush1.xpose.msra.mxu0 0.0
    %3039 = vmatprep.subr.mxu0 0.0
    %3040 = vmatpush1.xpose.msra.mxu0 0.0
    %3041 = vmatprep.subr.mxu0 0.0
    %3042 = vmatpush1.xpose.msra.mxu0 0.0
    %3043 = vmatprep.subr.mxu0 0.0
    %3044 = vmatpush1.xpose.msra.mxu0 0.0
    %3045 = vmatprep.subr.mxu0 0.0
    %3046 = vmatpush1.xpose.msra.mxu0 0.0
    %3047 = vmatprep.subr.mxu0 0.0
    %3048 = vmatpush1.xpose.msra.mxu0 0.0
    %3049 = vmatprep.subr.mxu0 0.0
    %3050 = vmatpush1.xpose.msra.mxu0 0.0
    %3051 = vmatprep.subr.mxu0 0.0
    %3052 = vmatpush1.xpose.msra.mxu0 0.0
    %3053 = vmatprep.subr.mxu0 0.0
    %3054 = vmatpush1.xpose.msra.mxu0 0.0
    %3055 = vmatprep.subr.mxu0 0.0
    %3056 = vmatpush1.xpose.msra.mxu0 0.0
    %3057 = vmatprep.subr.mxu0 0.0
    %3058 = vmatpush1.xpose.msra.mxu0 0.0
    %3059 = vmatprep.subr.mxu0 0.0
    %3060 = vmatpush1.xpose.msra.mxu0 0.0
    %3061 = vmatprep.subr.mxu0 0.0
    %3062 = vmatpush1.xpose.msra.mxu0 0.0
    %3063 = vmatprep.subr.mxu0 0.0
    %3064 = vmatpush1.xpose.msra.mxu0 0.0
    %3065 = vmatprep.subr.mxu0 0.0
    %3066 = vmatpush1.xpose.msra.mxu0 0.0
    %3067 = vmatprep.subr.mxu0 0.0
    %3068 = vmatpush1.xpose.msra.mxu0 0.0
    %3069 = vmatprep.subr.mxu0 0.0
    %3070 = vmatpush1.xpose.msra.mxu0 0.0
    %3071 = vmatprep.subr.mxu0 0.0
    %3072 = vmatpush1.xpose.msra.mxu0 0.0
    %3073 = vmatprep.subr.mxu0 0.0
    %3074 = vmatpush1.xpose.msra.mxu0 0.0
    %3075 = vmatprep.subr.mxu0 0.0
    %3076 = vmatpush1.xpose.msra.mxu0 0.0
    %3077 = vmatprep.subr.mxu0 0.0
    %3078 = vmatpush1.xpose.msra.mxu0 0.0
    %3079 = vmatprep.subr.mxu0 0.0
    %3080 = vmatpush1.xpose.msra.mxu0 0.0
    %3081 = vmatprep.subr.mxu0 0.0
    %3082 = vmatpush1.xpose.msra.mxu0 0.0
    %3083 = vmatprep.subr.mxu0 0.0
    %3084 = vmatpush1.xpose.msra.mxu0 0.0
    %3085 = vmatprep.subr.mxu0 0.0
    %3086 = vmatpush1.xpose.msra.mxu0 0.0
    %3087 = vmatprep.subr.mxu0 0.0
    %3088 = vmatpush1.xpose.msra.mxu0 0.0
    %3089 = vmatprep.mubr.f32.mxu0 0.0
    %3090 = vmatmul.mubr.f32.gmra.mrb[0].mxu0 %v3020
    %v3091 = vpop.f32.mrb[0].mxu0
    %v3092 = vadd.f32 0.0, %v3091
    %v3093 = vpop.f32.mrb[0].mxu0
    %3094 = vdwg.mxu0
    %v3096 = vsel %vm2182, %v1002, 0
    %v3099 = vsel %vm2182, %v1590, 0
    %3101 = vmatprep.subr.mxu0 0.0
    %3102 = vmatpush1.xpose.msra.mxu0 %v3099
    %3103 = vmatprep.subr.mxu0 0.0
    %3104 = vmatpush1.xpose.msra.mxu0 0.0
    %3105 = vmatprep.subr.mxu0 0.0
    %3106 = vmatpush1.xpose.msra.mxu0 0.0
    %3107 = vmatprep.subr.mxu0 0.0
    %3108 = vmatpush1.xpose.msra.mxu0 0.0
    %3109 = vmatprep.subr.mxu0 0.0
    %3110 = vmatpush1.xpose.msra.mxu0 0.0
    %3111 = vmatprep.subr.mxu0 0.0
    %3112 = vmatpush1.xpose.msra.mxu0 0.0
    %3113 = vmatprep.subr.mxu0 0.0
    %3114 = vmatpush1.xpose.msra.mxu0 0.0
    %3115 = vmatprep.subr.mxu0 0.0
    %3116 = vmatpush1.xpose.msra.mxu0 0.0
    %3117 = vmatprep.subr.mxu0 0.0
    %3118 = vmatpush1.xpose.msra.mxu0 0.0
    %3119 = vmatprep.subr.mxu0 0.0
    %3120 = vmatpush1.xpose.msra.mxu0 0.0
    %3121 = vmatprep.subr.mxu0 0.0
    %3122 = vmatpush1.xpose.msra.mxu0 0.0
    %3123 = vmatprep.subr.mxu0 0.0
    %3124 = vmatpush1.xpose.msra.mxu0 0.0
    %3125 = vmatprep.subr.mxu0 0.0
    %3126 = vmatpush1.xpose.msra.mxu0 0.0
    %3127 = vmatprep.subr.mxu0 0.0
    %3128 = vmatpush1.xpose.msra.mxu0 0.0
    %3129 = vmatprep.subr.mxu0 0.0
    %3130 = vmatpush1.xpose.msra.mxu0 0.0
    %3131 = vmatprep.subr.mxu0 0.0
    %3132 = vmatpush1.xpose.msra.mxu0 0.0
    %3133 = vmatprep.subr.mxu0 0.0
    %3134 = vmatpush1.xpose.msra.mxu0 0.0
    %3135 = vmatprep.subr.mxu0 0.0
    %3136 = vmatpush1.xpose.msra.mxu0 0.0
    %3137 = vmatprep.subr.mxu0 0.0
    %3138 = vmatpush1.xpose.msra.mxu0 0.0
    %3139 = vmatprep.subr.mxu0 0.0
    %3140 = vmatpush1.xpose.msra.mxu0 0.0
    %3141 = vmatprep.subr.mxu0 0.0
    %3142 = vmatpush1.xpose.msra.mxu0 0.0
    %3143 = vmatprep.subr.mxu0 0.0
    %3144 = vmatpush1.xpose.msra.mxu0 0.0
    %3145 = vmatprep.subr.mxu0 0.0
    %3146 = vmatpush1.xpose.msra.mxu0 0.0
    %3147 = vmatprep.subr.mxu0 0.0
    %3148 = vmatpush1.xpose.msra.mxu0 0.0
    %3149 = vmatprep.subr.mxu0 0.0
    %3150 = vmatpush1.xpose.msra.mxu0 0.0
    %3151 = vmatprep.subr.mxu0 0.0
    %3152 = vmatpush1.xpose.msra.mxu0 0.0
    %3153 = vmatprep.subr.mxu0 0.0
    %3154 = vmatpush1.xpose.msra.mxu0 0.0
    %3155 = vmatprep.subr.mxu0 0.0
    %3156 = vmatpush1.xpose.msra.mxu0 0.0
    %3157 = vmatprep.subr.mxu0 0.0
    %3158 = vmatpush1.xpose.msra.mxu0 0.0
    %3159 = vmatprep.subr.mxu0 0.0
    %3160 = vmatpush1.xpose.msra.mxu0 0.0
    %3161 = vmatprep.subr.mxu0 0.0
    %3162 = vmatpush1.xpose.msra.mxu0 0.0
    %3163 = vmatprep.subr.mxu0 0.0
    %3164 = vmatpush1.xpose.msra.mxu0 0.0
    %3165 = vmatprep.mubr.f32.mxu0 0.0
    %3166 = vmatmul.mubr.f32.gmra.mrb[0].mxu0 %v3096
    %v3167 = vpop.f32.mrb[0].mxu0
    %v3168 = vadd.f32 0.0, %v3167
    %v3169 = vpop.f32.mrb[0].mxu0
    %3170 = vdwg.mxu0
    %v3172 = vsel %vm2182, %v1003, 0
    %v3175 = vsel %vm2182, %v1591, 0
    %3177 = vmatprep.subr.mxu0 0.0
    %3178 = vmatpush1.xpose.msra.mxu0 %v3175
    %3179 = vmatprep.subr.mxu0 0.0
    %3180 = vmatpush1.xpose.msra.mxu0 0.0
    %3181 = vmatprep.subr.mxu0 0.0
    %3182 = vmatpush1.xpose.msra.mxu0 0.0
    %3183 = vmatprep.subr.mxu0 0.0
    %3184 = vmatpush1.xpose.msra.mxu0 0.0
    %3185 = vmatprep.subr.mxu0 0.0
    %3186 = vmatpush1.xpose.msra.mxu0 0.0
    %3187 = vmatprep.subr.mxu0 0.0
    %3188 = vmatpush1.xpose.msra.mxu0 0.0
    %3189 = vmatprep.subr.mxu0 0.0
    %3190 = vmatpush1.xpose.msra.mxu0 0.0
    %3191 = vmatprep.subr.mxu0 0.0
    %3192 = vmatpush1.xpose.msra.mxu0 0.0
    %3193 = vmatprep.subr.mxu0 0.0
    %3194 = vmatpush1.xpose.msra.mxu0 0.0
    %3195 = vmatprep.subr.mxu0 0.0
    %3196 = vmatpush1.xpose.msra.mxu0 0.0
    %3197 = vmatprep.subr.mxu0 0.0
    %3198 = vmatpush1.xpose.msra.mxu0 0.0
    %3199 = vmatprep.subr.mxu0 0.0
    %3200 = vmatpush1.xpose.msra.mxu0 0.0
    %3201 = vmatprep.subr.mxu0 0.0
    %3202 = vmatpush1.xpose.msra.mxu0 0.0
    %3203 = vmatprep.subr.mxu0 0.0
    %3204 = vmatpush1.xpose.msra.mxu0 0.0
    %3205 = vmatprep.subr.mxu0 0.0
    %3206 = vmatpush1.xpose.msra.mxu0 0.0
    %3207 = vmatprep.subr.mxu0 0.0
    %3208 = vmatpush1.xpose.msra.mxu0 0.0
    %3209 = vmatprep.subr.mxu0 0.0
    %3210 = vmatpush1.xpose.msra.mxu0 0.0
    %3211 = vmatprep.subr.mxu0 0.0
    %3212 = vmatpush1.xpose.msra.mxu0 0.0
    %3213 = vmatprep.subr.mxu0 0.0
    %3214 = vmatpush1.xpose.msra.mxu0 0.0
    %3215 = vmatprep.subr.mxu0 0.0
    %3216 = vmatpush1.xpose.msra.mxu0 0.0
    %3217 = vmatprep.subr.mxu0 0.0
    %3218 = vmatpush1.xpose.msra.mxu0 0.0
    %3219 = vmatprep.subr.mxu0 0.0
    %3220 = vmatpush1.xpose.msra.mxu0 0.0
    %3221 = vmatprep.subr.mxu0 0.0
    %3222 = vmatpush1.xpose.msra.mxu0 0.0
    %3223 = vmatprep.subr.mxu0 0.0
    %3224 = vmatpush1.xpose.msra.mxu0 0.0
    %3225 = vmatprep.subr.mxu0 0.0
    %3226 = vmatpush1.xpose.msra.mxu0 0.0
    %3227 = vmatprep.subr.mxu0 0.0
    %3228 = vmatpush1.xpose.msra.mxu0 0.0
    %3229 = vmatprep.subr.mxu0 0.0
    %3230 = vmatpush1.xpose.msra.mxu0 0.0
    %3231 = vmatprep.subr.mxu0 0.0
    %3232 = vmatpush1.xpose.msra.mxu0 0.0
    %3233 = vmatprep.subr.mxu0 0.0
    %3234 = vmatpush1.xpose.msra.mxu0 0.0
    %3235 = vmatprep.subr.mxu0 0.0
    %3236 = vmatpush1.xpose.msra.mxu0 0.0
    %3237 = vmatprep.subr.mxu0 0.0
    %3238 = vmatpush1.xpose.msra.mxu0 0.0
    %3239 = vmatprep.subr.mxu0 0.0
    %3240 = vmatpush1.xpose.msra.mxu0 0.0
    %3241 = vmatprep.mubr.f32.mxu0 0.0
    %3242 = vmatmul.mubr.f32.gmra.mrb[0].mxu0 %v3172
    %v3243 = vpop.f32.mrb[0].mxu0
    %v3244 = vadd.f32 0.0, %v3243
    %v3245 = vpop.f32.mrb[0].mxu0
    %3246 = vdwg.mxu0
    %v3248 = vsel %vm2182, %v1004, 0
    %v3251 = vsel %vm2182, %v1592, 0
    %3253 = vmatprep.subr.mxu0 0.0
    %3254 = vmatpush1.xpose.msra.mxu0 %v3251
    %3255 = vmatprep.subr.mxu0 0.0
    %3256 = vmatpush1.xpose.msra.mxu0 0.0
    %3257 = vmatprep.subr.mxu0 0.0
    %3258 = vmatpush1.xpose.msra.mxu0 0.0
    %3259 = vmatprep.subr.mxu0 0.0
    %3260 = vmatpush1.xpose.msra.mxu0 0.0
    %3261 = vmatprep.subr.mxu0 0.0
    %3262 = vmatpush1.xpose.msra.mxu0 0.0
    %3263 = vmatprep.subr.mxu0 0.0
    %3264 = vmatpush1.xpose.msra.mxu0 0.0
    %3265 = vmatprep.subr.mxu0 0.0
    %3266 = vmatpush1.xpose.msra.mxu0 0.0
    %3267 = vmatprep.subr.mxu0 0.0
    %3268 = vmatpush1.xpose.msra.mxu0 0.0
    %3269 = vmatprep.subr.mxu0 0.0
    %3270 = vmatpush1.xpose.msra.mxu0 0.0
    %3271 = vmatprep.subr.mxu0 0.0
    %3272 = vmatpush1.xpose.msra.mxu0 0.0
    %3273 = vmatprep.subr.mxu0 0.0
    %3274 = vmatpush1.xpose.msra.mxu0 0.0
    %3275 = vmatprep.subr.mxu0 0.0
    %3276 = vmatpush1.xpose.msra.mxu0 0.0
    %3277 = vmatprep.subr.mxu0 0.0
    %3278 = vmatpush1.xpose.msra.mxu0 0.0
    %3279 = vmatprep.subr.mxu0 0.0
    %3280 = vmatpush1.xpose.msra.mxu0 0.0
    %3281 = vmatprep.subr.mxu0 0.0
    %3282 = vmatpush1.xpose.msra.mxu0 0.0
    %3283 = vmatprep.subr.mxu0 0.0
    %3284 = vmatpush1.xpose.msra.mxu0 0.0
    %3285 = vmatprep.subr.mxu0 0.0
    %3286 = vmatpush1.xpose.msra.mxu0 0.0
    %3287 = vmatprep.subr.mxu0 0.0
    %3288 = vmatpush1.xpose.msra.mxu0 0.0
    %3289 = vmatprep.subr.mxu0 0.0
    %3290 = vmatpush1.xpose.msra.mxu0 0.0
    %3291 = vmatprep.subr.mxu0 0.0
    %3292 = vmatpush1.xpose.msra.mxu0 0.0
    %3293 = vmatprep.subr.mxu0 0.0
    %3294 = vmatpush1.xpose.msra.mxu0 0.0
    %3295 = vmatprep.subr.mxu0 0.0
    %3296 = vmatpush1.xpose.msra.mxu0 0.0
    %3297 = vmatprep.subr.mxu0 0.0
    %3298 = vmatpush1.xpose.msra.mxu0 0.0
    %3299 = vmatprep.subr.mxu0 0.0
    %3300 = vmatpush1.xpose.msra.mxu0 0.0
    %3301 = vmatprep.subr.mxu0 0.0
    %3302 = vmatpush1.xpose.msra.mxu0 0.0
    %3303 = vmatprep.subr.mxu0 0.0
    %3304 = vmatpush1.xpose.msra.mxu0 0.0
    %3305 = vmatprep.subr.mxu0 0.0
    %3306 = vmatpush1.xpose.msra.mxu0 0.0
    %3307 = vmatprep.subr.mxu0 0.0
    %3308 = vmatpush1.xpose.msra.mxu0 0.0
    %3309 = vmatprep.subr.mxu0 0.0
    %3310 = vmatpush1.xpose.msra.mxu0 0.0
    %3311 = vmatprep.subr.mxu0 0.0
    %3312 = vmatpush1.xpose.msra.mxu0 0.0
    %3313 = vmatprep.subr.mxu0 0.0
    %3314 = vmatpush1.xpose.msra.mxu0 0.0
    %3315 = vmatprep.subr.mxu0 0.0
    %3316 = vmatpush1.xpose.msra.mxu0 0.0
    %3317 = vmatprep.mubr.f32.mxu0 0.0
    %3318 = vmatmul.mubr.f32.gmra.mrb[0].mxu0 %v3248
    %v3319 = vpop.f32.mrb[0].mxu0
    %v3320 = vadd.f32 0.0, %v3319
    %v3321 = vpop.f32.mrb[0].mxu0
    %3322 = vdwg.mxu0
    %v3324 = vsel %vm2182, %v1005, 0
    %v3327 = vsel %vm2182, %v1593, 0
    %3329 = vmatprep.subr.mxu0 0.0
    %3330 = vmatpush1.xpose.msra.mxu0 %v3327
    %3331 = vmatprep.subr.mxu0 0.0
    %3332 = vmatpush1.xpose.msra.mxu0 0.0
    %3333 = vmatprep.subr.mxu0 0.0
    %3334 = vmatpush1.xpose.msra.mxu0 0.0
    %3335 = vmatprep.subr.mxu0 0.0
    %3336 = vmatpush1.xpose.msra.mxu0 0.0
    %3337 = vmatprep.subr.mxu0 0.0
    %3338 = vmatpush1.xpose.msra.mxu0 0.0
    %3339 = vmatprep.subr.mxu0 0.0
    %3340 = vmatpush1.xpose.msra.mxu0 0.0
    %3341 = vmatprep.subr.mxu0 0.0
    %3342 = vmatpush1.xpose.msra.mxu0 0.0
    %3343 = vmatprep.subr.mxu0 0.0
    %3344 = vmatpush1.xpose.msra.mxu0 0.0
    %3345 = vmatprep.subr.mxu0 0.0
    %3346 = vmatpush1.xpose.msra.mxu0 0.0
    %3347 = vmatprep.subr.mxu0 0.0
    %3348 = vmatpush1.xpose.msra.mxu0 0.0
    %3349 = vmatprep.subr.mxu0 0.0
    %3350 = vmatpush1.xpose.msra.mxu0 0.0
    %3351 = vmatprep.subr.mxu0 0.0
    %3352 = vmatpush1.xpose.msra.mxu0 0.0
    %3353 = vmatprep.subr.mxu0 0.0
    %3354 = vmatpush1.xpose.msra.mxu0 0.0
    %3355 = vmatprep.subr.mxu0 0.0
    %3356 = vmatpush1.xpose.msra.mxu0 0.0
    %3357 = vmatprep.subr.mxu0 0.0
    %3358 = vmatpush1.xpose.msra.mxu0 0.0
    %3359 = vmatprep.subr.mxu0 0.0
    %3360 = vmatpush1.xpose.msra.mxu0 0.0
    %3361 = vmatprep.subr.mxu0 0.0
    %3362 = vmatpush1.xpose.msra.mxu0 0.0
    %3363 = vmatprep.subr.mxu0 0.0
    %3364 = vmatpush1.xpose.msra.mxu0 0.0
    %3365 = vmatprep.subr.mxu0 0.0
    %3366 = vmatpush1.xpose.msra.mxu0 0.0
    %3367 = vmatprep.subr.mxu0 0.0
    %3368 = vmatpush1.xpose.msra.mxu0 0.0
    %3369 = vmatprep.subr.mxu0 0.0
    %3370 = vmatpush1.xpose.msra.mxu0 0.0
    %3371 = vmatprep.subr.mxu0 0.0
    %3372 = vmatpush1.xpose.msra.mxu0 0.0
    %3373 = vmatprep.subr.mxu0 0.0
    %3374 = vmatpush1.xpose.msra.mxu0 0.0
    %3375 = vmatprep.subr.mxu0 0.0
    %3376 = vmatpush1.xpose.msra.mxu0 0.0
    %3377 = vmatprep.subr.mxu0 0.0
    %3378 = vmatpush1.xpose.msra.mxu0 0.0
    %3379 = vmatprep.subr.mxu0 0.0
    %3380 = vmatpush1.xpose.msra.mxu0 0.0
    %3381 = vmatprep.subr.mxu0 0.0
    %3382 = vmatpush1.xpose.msra.mxu0 0.0
    %3383 = vmatprep.subr.mxu0 0.0
    %3384 = vmatpush1.xpose.msra.mxu0 0.0
    %3385 = vmatprep.subr.mxu0 0.0
    %3386 = vmatpush1.xpose.msra.mxu0 0.0
    %3387 = vmatprep.subr.mxu0 0.0
    %3388 = vmatpush1.xpose.msra.mxu0 0.0
    %3389 = vmatprep.subr.mxu0 0.0
    %3390 = vmatpush1.xpose.msra.mxu0 0.0
    %3391 = vmatprep.subr.mxu0 0.0
    %3392 = vmatpush1.xpose.msra.mxu0 0.0
    %3393 = vmatprep.mubr.f32.mxu0 0.0
    %3394 = vmatmul.mubr.f32.gmra.mrb[0].mxu0 %v3324
    %v3395 = vpop.f32.mrb[0].mxu0
    %v3396 = vadd.f32 0.0, %v3395
    %v3397 = vpop.f32.mrb[0].mxu0
    %3398 = vdwg.mxu0
    %vm3399 = vcmask 64512
    %v3400 = vsel %vm3399, %v2256, -inf
    %3401 = vmax.xlane.f32.xlu0 %v3400
    %v3402 = vpop.xlane.xlu0 %3401
    %v3403 = vsel %vm3399, %v2332, -inf
    %3404 = vmax.xlane.f32.xlu0 %v3403
    %v3405 = vpop.xlane.xlu0 %3404
    %v3406 = vsel %vm3399, %v2408, -inf
    %3407 = vmax.xlane.f32.xlu0 %v3406
    %v3408 = vpop.xlane.xlu0 %3407
    %v3409 = vsel %vm3399, %v2484, -inf
    %3410 = vmax.xlane.f32.xlu0 %v3409
    %v3411 = vpop.xlane.xlu0 %3410
    %v3412 = vsel %vm3399, %v2560, -inf
    %3413 = vmax.xlane.f32.xlu0 %v3412
    %v3414 = vpop.xlane.xlu0 %3413
    %v3415 = vsel %vm3399, %v2636, -inf
    %3416 = vmax.xlane.f32.xlu0 %v3415
    %v3417 = vpop.xlane.xlu0 %3416
    %v3418 = vsel %vm3399, %v2712, -inf
    %3419 = vmax.xlane.f32.xlu0 %v3418
    %v3420 = vpop.xlane.xlu0 %3419
    %v3421 = vsel %vm3399, %v2788, -inf
    %3422 = vmax.xlane.f32.xlu0 %v3421
    %v3423 = vpop.xlane.xlu0 %3422
    %v3424 = vsel %vm3399, %v2864, -inf
    %3425 = vmax.xlane.f32.xlu0 %v3424
    %v3426 = vpop.xlane.xlu0 %3425
    %v3427 = vsel %vm3399, %v2940, -inf
    %3428 = vmax.xlane.f32.xlu0 %v3427
    %v3429 = vpop.xlane.xlu0 %3428
    %v3430 = vsel %vm3399, %v3016, -inf
    %3431 = vmax.xlane.f32.xlu0 %v3430
    %v3432 = vpop.xlane.xlu0 %3431
    %v3433 = vsel %vm3399, %v3092, -inf
    %3434 = vmax.xlane.f32.xlu0 %v3433
    %v3435 = vpop.xlane.xlu0 %3434
    %v3436 = vsel %vm3399, %v3168, -inf
    %3437 = vmax.xlane.f32.xlu0 %v3436
    %v3438 = vpop.xlane.xlu0 %3437
    %v3439 = vsel %vm3399, %v3244, -inf
    %3440 = vmax.xlane.f32.xlu0 %v3439
    %v3441 = vpop.xlane.xlu0 %3440
    %v3442 = vsel %vm3399, %v3320, -inf
    %3443 = vmax.xlane.f32.xlu0 %v3442
    %v3444 = vpop.xlane.xlu0 %3443
    %v3445 = vsel %vm3399, %v3396, -inf
    %3446 = vmax.xlane.f32.xlu0 %v3445
    %v3447 = vpop.xlane.xlu0 %3446
    %v3448 = vsub.f32 %v2256, %v3402
    %v3449 = vsub.f32 %v2332, %v3405
    %v3450 = vsub.f32 %v2408, %v3408
    %v3451 = vsub.f32 %v2484, %v3411
    %v3452 = vsub.f32 %v2560, %v3414
    %v3453 = vsub.f32 %v2636, %v3417
    %v3454 = vsub.f32 %v2712, %v3420
    %v3455 = vsub.f32 %v2788, %v3423
    %v3456 = vsub.f32 %v2864, %v3426
    %v3457 = vsub.f32 %v2940, %v3429
    %v3458 = vsub.f32 %v3016, %v3432
    %v3459 = vsub.f32 %v3092, %v3435
    %v3460 = vsub.f32 %v3168, %v3438
    %v3461 = vsub.f32 %v3244, %v3441
    %v3462 = vsub.f32 %v3320, %v3444
    %v3463 = vsub.f32 %v3396, %v3447
    %v3464 = vmul.f32 %v3448, 1.442695
    %v3465 = vpow.pop %v3464
    %v3466 = vmul.f32 %v3449, 1.442695
    %v3467 = vpow.pop %v3466
    %v3468 = vmul.f32 %v3450, 1.442695
    %v3469 = vpow.pop %v3468
    %v3470 = vmul.f32 %v3451, 1.442695
    %v3471 = vpow.pop %v3470
    %v3472 = vmul.f32 %v3452, 1.442695
    %v3473 = vpow.pop %v3472
    %v3474 = vmul.f32 %v3453, 1.442695
    %v3475 = vpow.pop %v3474
    %v3476 = vmul.f32 %v3454, 1.442695
    %v3477 = vpow.pop %v3476
    %v3478 = vmul.f32 %v3455, 1.442695
    %v3479 = vpow.pop %v3478
    %v3480 = vmul.f32 %v3456, 1.442695
    %v3481 = vpow.pop %v3480
    %v3482 = vmul.f32 %v3457, 1.442695
    %v3483 = vpow.pop %v3482
    %v3484 = vmul.f32 %v3458, 1.442695
    %v3485 = vpow.pop %v3484
    %v3486 = vmul.f32 %v3459, 1.442695
    %v3487 = vpow.pop %v3486
    %v3488 = vmul.f32 %v3460, 1.442695
    %v3489 = vpow.pop %v3488
    %v3490 = vmul.f32 %v3461, 1.442695
    %v3491 = vpow.pop %v3490
    %v3492 = vmul.f32 %v3462, 1.442695
    %v3493 = vpow.pop %v3492
    %v3494 = vmul.f32 %v3463, 1.442695
    %v3495 = vpow.pop %v3494
    %v3496 = vsel %vm3399, %v3465, 0.0
    %3497 = vadd.xlane.f32.xlu0 %v3496
    %v3498 = vpop.xlane.xlu0 %3497
    %v3499 = vsel %vm3399, %v3467, 0.0
    %3500 = vadd.xlane.f32.xlu0 %v3499
    %v3501 = vpop.xlane.xlu0 %3500
    %v3502 = vsel %vm3399, %v3469, 0.0
    %3503 = vadd.xlane.f32.xlu0 %v3502
    %v3504 = vpop.xlane.xlu0 %3503
    %v3505 = vsel %vm3399, %v3471, 0.0
    %3506 = vadd.xlane.f32.xlu0 %v3505
    %v3507 = vpop.xlane.xlu0 %3506
    %v3508 = vsel %vm3399, %v3473, 0.0
    %3509 = vadd.xlane.f32.xlu0 %v3508
    %v3510 = vpop.xlane.xlu0 %3509
    %v3511 = vsel %vm3399, %v3475, 0.0
    %3512 = vadd.xlane.f32.xlu0 %v3511
    %v3513 = vpop.xlane.xlu0 %3512
    %v3514 = vsel %vm3399, %v3477, 0.0
    %3515 = vadd.xlane.f32.xlu0 %v3514
    %v3516 = vpop.xlane.xlu0 %3515
    %v3517 = vsel %vm3399, %v3479, 0.0
    %3518 = vadd.xlane.f32.xlu0 %v3517
    %v3519 = vpop.xlane.xlu0 %3518
    %v3520 = vsel %vm3399, %v3481, 0.0
    %3521 = vadd.xlane.f32.xlu0 %v3520
    %v3522 = vpop.xlane.xlu0 %3521
    %v3523 = vsel %vm3399, %v3483, 0.0
    %3524 = vadd.xlane.f32.xlu0 %v3523
    %v3525 = vpop.xlane.xlu0 %3524
    %v3526 = vsel %vm3399, %v3485, 0.0
    %3527 = vadd.xlane.f32.xlu0 %v3526
    %v3528 = vpop.xlane.xlu0 %3527
    %v3529 = vsel %vm3399, %v3487, 0.0
    %3530 = vadd.xlane.f32.xlu0 %v3529
    %v3531 = vpop.xlane.xlu0 %3530
    %v3532 = vsel %vm3399, %v3489, 0.0
    %3533 = vadd.xlane.f32.xlu0 %v3532
    %v3534 = vpop.xlane.xlu0 %3533
    %v3535 = vsel %vm3399, %v3491, 0.0
    %3536 = vadd.xlane.f32.xlu0 %v3535
    %v3537 = vpop.xlane.xlu0 %3536
    %v3538 = vsel %vm3399, %v3493, 0.0
    %3539 = vadd.xlane.f32.xlu0 %v3538
    %v3540 = vpop.xlane.xlu0 %3539
    %v3541 = vsel %vm3399, %v3495, 0.0
    %3542 = vadd.xlane.f32.xlu0 %v3541
    %v3543 = vpop.xlane.xlu0 %3542
    %v3544 = vrcp.pop %v3498
    %v3545 = vrcp.pop %v3501
    %v3546 = vrcp.pop %v3504
    %v3547 = vrcp.pop %v3507
    %v3548 = vrcp.pop %v3510
    %v3549 = vrcp.pop %v3513
    %v3550 = vrcp.pop %v3516
    %v3551 = vrcp.pop %v3519
    %v3552 = vrcp.pop %v3522
    %v3553 = vrcp.pop %v3525
    %v3554 = vrcp.pop %v3528
    %v3555 = vrcp.pop %v3531
    %v3556 = vrcp.pop %v3534
    %v3557 = vrcp.pop %v3537
    %v3558 = vrcp.pop %v3540
    %v3559 = vrcp.pop %v3543
    %v3560 = vmul.f32 %v3465, %v3544
    %v3561 = vmul.f32 %v3467, %v3545
    %v3562 = vmul.f32 %v3469, %v3546
    %v3563 = vmul.f32 %v3471, %v3547
    %v3564 = vmul.f32 %v3473, %v3548
    %v3565 = vmul.f32 %v3475, %v3549
    %v3566 = vmul.f32 %v3477, %v3550
    %v3567 = vmul.f32 %v3479, %v3551
    %v3568 = vmul.f32 %v3481, %v3552
    %v3569 = vmul.f32 %v3483, %v3553
    %v3570 = vmul.f32 %v3485, %v3554
    %v3571 = vmul.f32 %v3487, %v3555
    %v3572 = vmul.f32 %v3489, %v3556
    %v3573 = vmul.f32 %v3491, %v3557
    %v3574 = vmul.f32 %v3493, %v3558
    %v3575 = vmul.f32 %v3495, %v3559
    %3576 = vst.msk [vmem:[#allocation15] sm:$0xff] %vm3399, %v3560
    %3577 = vst.msk [vmem:[#allocation15 + $0x8] sm:$0xff] %vm3399, %v3561
    %3578 = vst.msk [vmem:[#allocation15 + $0x10] sm:$0xff] %vm3399, %v3562
    %3579 = vst.msk [vmem:[#allocation15 + $0x18] sm:$0xff] %vm3399, %v3563
    %3580 = vst.msk [vmem:[#allocation15 + $0x20] sm:$0xff] %vm3399, %v3564
    %3581 = vst.msk [vmem:[#allocation15 + $0x28] sm:$0xff] %vm3399, %v3565
    %3582 = vst.msk [vmem:[#allocation15 + $0x30] sm:$0xff] %vm3399, %v3566
    %3583 = vst.msk [vmem:[#allocation15 + $0x38] sm:$0xff] %vm3399, %v3567
    %3584 = vst.msk [vmem:[#allocation15 + $0x40] sm:$0xff] %vm3399, %v3568
    %3585 = vst.msk [vmem:[#allocation15 + $0x48] sm:$0xff] %vm3399, %v3569
    %3586 = vst.msk [vmem:[#allocation15 + $0x50] sm:$0xff] %vm3399, %v3570
    %3587 = vst.msk [vmem:[#allocation15 + $0x58] sm:$0xff] %vm3399, %v3571
    %3588 = vst.msk [vmem:[#allocation15 + $0x60] sm:$0xff] %vm3399, %v3572
    %3589 = vst.msk [vmem:[#allocation15 + $0x68] sm:$0xff] %vm3399, %v3573
    %3590 = vst.msk [vmem:[#allocation15 + $0x70] sm:$0xff] %vm3399, %v3574
    %3591 = vst.msk [vmem:[#allocation15 + $0x78] sm:$0xff] %vm3399, %v3575
    %v3593 = vsel %vm3399, %v3560, 0
    %3595 = vmatprep.subr.mxu0 0.0
    %3596 = vmatpush1.msra.mxu0 %v2038
    %3597 = vmatprep.subr.mxu0 0.0
    %3598 = vmatpush1.msra.mxu0 0.0
    %3599 = vmatprep.subr.mxu0 0.0
    %3600 = vmatpush1.msra.mxu0 0.0
    %3601 = vmatprep.subr.mxu0 0.0
    %3602 = vmatpush1.msra.mxu0 0.0
    %3603 = vmatprep.subr.mxu0 0.0
    %3604 = vmatpush1.msra.mxu0 0.0
    %3605 = vmatprep.subr.mxu0 0.0
    %3606 = vmatpush1.msra.mxu0 0.0
    %3607 = vmatprep.subr.mxu0 0.0
    %3608 = vmatpush1.msra.mxu0 0.0
    %3609 = vmatprep.subr.mxu0 0.0
    %3610 = vmatpush1.msra.mxu0 0.0
    %3611 = vmatprep.subr.mxu0 0.0
    %3612 = vmatpush1.msra.mxu0 0.0
    %3613 = vmatprep.subr.mxu0 0.0
    %3614 = vmatpush1.msra.mxu0 0.0
    %3615 = vmatprep.subr.mxu0 0.0
    %3616 = vmatpush1.msra.mxu0 0.0
    %3617 = vmatprep.subr.mxu0 0.0
    %3618 = vmatpush1.msra.mxu0 0.0
    %3619 = vmatprep.subr.mxu0 0.0
    %3620 = vmatpush1.msra.mxu0 0.0
    %3621 = vmatprep.subr.mxu0 0.0
    %3622 = vmatpush1.msra.mxu0 0.0
    %3623 = vmatprep.subr.mxu0 0.0
    %3624 = vmatpush1.msra.mxu0 0.0
    %3625 = vmatprep.subr.mxu0 0.0
    %3626 = vmatpush1.msra.mxu0 0.0
    %3627 = vmatprep.subr.mxu0 0.0
    %3628 = vmatpush1.msra.mxu0 0.0
    %3629 = vmatprep.subr.mxu0 0.0
    %3630 = vmatpush1.msra.mxu0 0.0
    %3631 = vmatprep.subr.mxu0 0.0
    %3632 = vmatpush1.msra.mxu0 0.0
    %3633 = vmatprep.subr.mxu0 0.0
    %3634 = vmatpush1.msra.mxu0 0.0
    %3635 = vmatprep.subr.mxu0 0.0
    %3636 = vmatpush1.msra.mxu0 0.0
    %3637 = vmatprep.subr.mxu0 0.0
    %3638 = vmatpush1.msra.mxu0 0.0
    %3639 = vmatprep.subr.mxu0 0.0
    %3640 = vmatpush1.msra.mxu0 0.0
    %3641 = vmatprep.subr.mxu0 0.0
    %3642 = vmatpush1.msra.mxu0 0.0
    %3643 = vmatprep.subr.mxu0 0.0
    %3644 = vmatpush1.msra.mxu0 0.0
    %3645 = vmatprep.subr.mxu0 0.0
    %3646 = vmatpush1.msra.mxu0 0.0
    %3647 = vmatprep.subr.mxu0 0.0
    %3648 = vmatpush1.msra.mxu0 0.0
    %3649 = vmatprep.subr.mxu0 0.0
    %3650 = vmatpush1.msra.mxu0 0.0
    %3651 = vmatprep.subr.mxu0 0.0
    %3652 = vmatpush1.msra.mxu0 0.0
    %3653 = vmatprep.subr.mxu0 0.0
    %3654 = vmatpush1.msra.mxu0 0.0
    %3655 = vmatprep.subr.mxu0 0.0
    %3656 = vmatpush1.msra.mxu0 0.0
    %3657 = vmatprep.subr.mxu0 0.0
    %3658 = vmatpush1.msra.mxu0 0.0
    %3659 = vmatprep.mubr.f32.mxu0 0.0
    %3660 = vmatmul.mubr.f32.gmra.mrb[0].mxu0 %v3593
    %v3661 = vpop.f32.mrb[0].mxu0
    %v3662 = vadd.f32 0.0, %v3661
    %v3663 = vpop.f32.mrb[0].mxu0
    %3664 = vdwg.mxu0
    %v3666 = vsel %vm3399, %v3561, 0
    %3668 = vmatprep.subr.mxu0 0.0
    %3669 = vmatpush1.msra.mxu0 %v2039
    %3670 = vmatprep.subr.mxu0 0.0
    %3671 = vmatpush1.msra.mxu0 0.0
    %3672 = vmatprep.subr.mxu0 0.0
    %3673 = vmatpush1.msra.mxu0 0.0
    %3674 = vmatprep.subr.mxu0 0.0
    %3675 = vmatpush1.msra.mxu0 0.0
    %3676 = vmatprep.subr.mxu0 0.0
    %3677 = vmatpush1.msra.mxu0 0.0
    %3678 = vmatprep.subr.mxu0 0.0
    %3679 = vmatpush1.msra.mxu0 0.0
    %3680 = vmatprep.subr.mxu0 0.0
    %3681 = vmatpush1.msra.mxu0 0.0
    %3682 = vmatprep.subr.mxu0 0.0
    %3683 = vmatpush1.msra.mxu0 0.0
    %3684 = vmatprep.subr.mxu0 0.0
    %3685 = vmatpush1.msra.mxu0 0.0
    %3686 = vmatprep.subr.mxu0 0.0
    %3687 = vmatpush1.msra.mxu0 0.0
    %3688 = vmatprep.subr.mxu0 0.0
    %3689 = vmatpush1.msra.mxu0 0.0
    %3690 = vmatprep.subr.mxu0 0.0
    %3691 = vmatpush1.msra.mxu0 0.0
    %3692 = vmatprep.subr.mxu0 0.0
    %3693 = vmatpush1.msra.mxu0 0.0
    %3694 = vmatprep.subr.mxu0 0.0
    %3695 = vmatpush1.msra.mxu0 0.0
    %3696 = vmatprep.subr.mxu0 0.0
    %3697 = vmatpush1.msra.mxu0 0.0
    %3698 = vmatprep.subr.mxu0 0.0
    %3699 = vmatpush1.msra.mxu0 0.0
    %3700 = vmatprep.subr.mxu0 0.0
    %3701 = vmatpush1.msra.mxu0 0.0
    %3702 = vmatprep.subr.mxu0 0.0
    %3703 = vmatpush1.msra.mxu0 0.0
    %3704 = vmatprep.subr.mxu0 0.0
    %3705 = vmatpush1.msra.mxu0 0.0
    %3706 = vmatprep.subr.mxu0 0.0
    %3707 = vmatpush1.msra.mxu0 0.0
    %3708 = vmatprep.subr.mxu0 0.0
    %3709 = vmatpush1.msra.mxu0 0.0
    %3710 = vmatprep.subr.mxu0 0.0
    %3711 = vmatpush1.msra.mxu0 0.0
    %3712 = vmatprep.subr.mxu0 0.0
    %3713 = vmatpush1.msra.mxu0 0.0
    %3714 = vmatprep.subr.mxu0 0.0
    %3715 = vmatpush1.msra.mxu0 0.0
    %3716 = vmatprep.subr.mxu0 0.0
    %3717 = vmatpush1.msra.mxu0 0.0
    %3718 = vmatprep.subr.mxu0 0.0
    %3719 = vmatpush1.msra.mxu0 0.0
    %3720 = vmatprep.subr.mxu0 0.0
    %3721 = vmatpush1.msra.mxu0 0.0
    %3722 = vmatprep.subr.mxu0 0.0
    %3723 = vmatpush1.msra.mxu0 0.0
    %3724 = vmatprep.subr.mxu0 0.0
    %3725 = vmatpush1.msra.mxu0 0.0
    %3726 = vmatprep.subr.mxu0 0.0
    %3727 = vmatpush1.msra.mxu0 0.0
    %3728 = vmatprep.subr.mxu0 0.0
    %3729 = vmatpush1.msra.mxu0 0.0
    %3730 = vmatprep.subr.mxu0 0.0
    %3731 = vmatpush1.msra.mxu0 0.0
    %3732 = vmatprep.mubr.f32.mxu0 0.0
    %3733 = vmatmul.mubr.f32.gmra.mrb[0].mxu0 %v3666
    %v3734 = vpop.f32.mrb[0].mxu0
    %v3735 = vadd.f32 0.0, %v3734
    %v3736 = vpop.f32.mrb[0].mxu0
    %3737 = vdwg.mxu0
    %v3739 = vsel %vm3399, %v3562, 0
    %3741 = vmatprep.subr.mxu0 0.0
    %3742 = vmatpush1.msra.mxu0 %v2040
    %3743 = vmatprep.subr.mxu0 0.0
    %3744 = vmatpush1.msra.mxu0 0.0
    %3745 = vmatprep.subr.mxu0 0.0
    %3746 = vmatpush1.msra.mxu0 0.0
    %3747 = vmatprep.subr.mxu0 0.0
    %3748 = vmatpush1.msra.mxu0 0.0
    %3749 = vmatprep.subr.mxu0 0.0
    %3750 = vmatpush1.msra.mxu0 0.0
    %3751 = vmatprep.subr.mxu0 0.0
    %3752 = vmatpush1.msra.mxu0 0.0
    %3753 = vmatprep.subr.mxu0 0.0
    %3754 = vmatpush1.msra.mxu0 0.0
    %3755 = vmatprep.subr.mxu0 0.0
    %3756 = vmatpush1.msra.mxu0 0.0
    %3757 = vmatprep.subr.mxu0 0.0
    %3758 = vmatpush1.msra.mxu0 0.0
    %3759 = vmatprep.subr.mxu0 0.0
    %3760 = vmatpush1.msra.mxu0 0.0
    %3761 = vmatprep.subr.mxu0 0.0
    %3762 = vmatpush1.msra.mxu0 0.0
    %3763 = vmatprep.subr.mxu0 0.0
    %3764 = vmatpush1.msra.mxu0 0.0
    %3765 = vmatprep.subr.mxu0 0.0
    %3766 = vmatpush1.msra.mxu0 0.0
    %3767 = vmatprep.subr.mxu0 0.0
    %3768 = vmatpush1.msra.mxu0 0.0
    %3769 = vmatprep.subr.mxu0 0.0
    %3770 = vmatpush1.msra.mxu0 0.0
    %3771 = vmatprep.subr.mxu0 0.0
    %3772 = vmatpush1.msra.mxu0 0.0
    %3773 = vmatprep.subr.mxu0 0.0
    %3774 = vmatpush1.msra.mxu0 0.0
    %3775 = vmatprep.subr.mxu0 0.0
    %3776 = vmatpush1.msra.mxu0 0.0
    %3777 = vmatprep.subr.mxu0 0.0
    %3778 = vmatpush1.msra.mxu0 0.0
    %3779 = vmatprep.subr.mxu0 0.0
    %3780 = vmatpush1.msra.mxu0 0.0
    %3781 = vmatprep.subr.mxu0 0.0
    %3782 = vmatpush1.msra.mxu0 0.0
    %3783 = vmatprep.subr.mxu0 0.0
    %3784 = vmatpush1.msra.mxu0 0.0
    %3785 = vmatprep.subr.mxu0 0.0
    %3786 = vmatpush1.msra.mxu0 0.0
    %3787 = vmatprep.subr.mxu0 0.0
    %3788 = vmatpush1.msra.mxu0 0.0
    %3789 = vmatprep.subr.mxu0 0.0
    %3790 = vmatpush1.msra.mxu0 0.0
    %3791 = vmatprep.subr.mxu0 0.0
    %3792 = vmatpush1.msra.mxu0 0.0
    %3793 = vmatprep.subr.mxu0 0.0
    %3794 = vmatpush1.msra.mxu0 0.0
    %3795 = vmatprep.subr.mxu0 0.0
    %3796 = vmatpush1.msra.mxu0 0.0
    %3797 = vmatprep.subr.mxu0 0.0
    %3798 = vmatpush1.msra.mxu0 0.0
    %3799 = vmatprep.subr.mxu0 0.0
    %3800 = vmatpush1.msra.mxu0 0.0
    %3801 = vmatprep.subr.mxu0 0.0
    %3802 = vmatpush1.msra.mxu0 0.0
    %3803 = vmatprep.subr.mxu0 0.0
    %3804 = vmatpush1.msra.mxu0 0.0
    %3805 = vmatprep.mubr.f32.mxu0 0.0
    %3806 = vmatmul.mubr.f32.gmra.mrb[0].mxu0 %v3739
    %v3807 = vpop.f32.mrb[0].mxu0
    %v3808 = vadd.f32 0.0, %v3807
    %v3809 = vpop.f32.mrb[0].mxu0
    %3810 = vdwg.mxu0
    %v3812 = vsel %vm3399, %v3563, 0
    %3814 = vmatprep.subr.mxu0 0.0
    %3815 = vmatpush1.msra.mxu0 %v2041
    %3816 = vmatprep.subr.mxu0 0.0
    %3817 = vmatpush1.msra.mxu0 0.0
    %3818 = vmatprep.subr.mxu0 0.0
    %3819 = vmatpush1.msra.mxu0 0.0
    %3820 = vmatprep.subr.mxu0 0.0
    %3821 = vmatpush1.msra.mxu0 0.0
    %3822 = vmatprep.subr.mxu0 0.0
    %3823 = vmatpush1.msra.mxu0 0.0
    %3824 = vmatprep.subr.mxu0 0.0
    %3825 = vmatpush1.msra.mxu0 0.0
    %3826 = vmatprep.subr.mxu0 0.0
    %3827 = vmatpush1.msra.mxu0 0.0
    %3828 = vmatprep.subr.mxu0 0.0
    %3829 = vmatpush1.msra.mxu0 0.0
    %3830 = vmatprep.subr.mxu0 0.0
    %3831 = vmatpush1.msra.mxu0 0.0
    %3832 = vmatprep.subr.mxu0 0.0
    %3833 = vmatpush1.msra.mxu0 0.0
    %3834 = vmatprep.subr.mxu0 0.0
    %3835 = vmatpush1.msra.mxu0 0.0
    %3836 = vmatprep.subr.mxu0 0.0
    %3837 = vmatpush1.msra.mxu0 0.0
    %3838 = vmatprep.subr.mxu0 0.0
    %3839 = vmatpush1.msra.mxu0 0.0
    %3840 = vmatprep.subr.mxu0 0.0
    %3841 = vmatpush1.msra.mxu0 0.0
    %3842 = vmatprep.subr.mxu0 0.0
    %3843 = vmatpush1.msra.mxu0 0.0
    %3844 = vmatprep.subr.mxu0 0.0
    %3845 = vmatpush1.msra.mxu0 0.0
    %3846 = vmatprep.subr.mxu0 0.0
    %3847 = vmatpush1.msra.mxu0 0.0
    %3848 = vmatprep.subr.mxu0 0.0
    %3849 = vmatpush1.msra.mxu0 0.0
    %3850 = vmatprep.subr.mxu0 0.0
    %3851 = vmatpush1.msra.mxu0 0.0
    %3852 = vmatprep.subr.mxu0 0.0
    %3853 = vmatpush1.msra.mxu0 0.0
    %3854 = vmatprep.subr.mxu0 0.0
    %3855 = vmatpush1.msra.mxu0 0.0
    %3856 = vmatprep.subr.mxu0 0.0
    %3857 = vmatpush1.msra.mxu0 0.0
    %3858 = vmatprep.subr.mxu0 0.0
    %3859 = vmatpush1.msra.mxu0 0.0
    %3860 = vmatprep.subr.mxu0 0.0
    %3861 = vmatpush1.msra.mxu0 0.0
    %3862 = vmatprep.subr.mxu0 0.0
    %3863 = vmatpush1.msra.mxu0 0.0
    %3864 = vmatprep.subr.mxu0 0.0
    %3865 = vmatpush1.msra.mxu0 0.0
    %3866 = vmatprep.subr.mxu0 0.0
    %3867 = vmatpush1.msra.mxu0 0.0
    %3868 = vmatprep.subr.mxu0 0.0
    %3869 = vmatpush1.msra.mxu0 0.0
    %3870 = vmatprep.subr.mxu0 0.0
    %3871 = vmatpush1.msra.mxu0 0.0
    %3872 = vmatprep.subr.mxu0 0.0
    %3873 = vmatpush1.msra.mxu0 0.0
    %3874 = vmatprep.subr.mxu0 0.0
    %3875 = vmatpush1.msra.mxu0 0.0
    %3876 = vmatprep.subr.mxu0 0.0
    %3877 = vmatpush1.msra.mxu0 0.0
    %3878 = vmatprep.mubr.f32.mxu0 0.0
    %3879 = vmatmul.mubr.f32.gmra.mrb[0].mxu0 %v3812
    %v3880 = vpop.f32.mrb[0].mxu0
    %v3881 = vadd.f32 0.0, %v3880
    %v3882 = vpop.f32.mrb[0].mxu0
    %3883 = vdwg.mxu0
    %v3885 = vsel %vm3399, %v3564, 0
    %3887 = vmatprep.subr.mxu0 0.0
    %3888 = vmatpush1.msra.mxu0 %v2042
    %3889 = vmatprep.subr.mxu0 0.0
    %3890 = vmatpush1.msra.mxu0 0.0
    %3891 = vmatprep.subr.mxu0 0.0
    %3892 = vmatpush1.msra.mxu0 0.0
    %3893 = vmatprep.subr.mxu0 0.0
    %3894 = vmatpush1.msra.mxu0 0.0
    %3895 = vmatprep.subr.mxu0 0.0
    %3896 = vmatpush1.msra.mxu0 0.0
    %3897 = vmatprep.subr.mxu0 0.0
    %3898 = vmatpush1.msra.mxu0 0.0
    %3899 = vmatprep.subr.mxu0 0.0
    %3900 = vmatpush1.msra.mxu0 0.0
    %3901 = vmatprep.subr.mxu0 0.0
    %3902 = vmatpush1.msra.mxu0 0.0
    %3903 = vmatprep.subr.mxu0 0.0
    %3904 = vmatpush1.msra.mxu0 0.0
    %3905 = vmatprep.subr.mxu0 0.0
    %3906 = vmatpush1.msra.mxu0 0.0
    %3907 = vmatprep.subr.mxu0 0.0
    %3908 = vmatpush1.msra.mxu0 0.0
    %3909 = vmatprep.subr.mxu0 0.0
    %3910 = vmatpush1.msra.mxu0 0.0
    %3911 = vmatprep.subr.mxu0 0.0
    %3912 = vmatpush1.msra.mxu0 0.0
    %3913 = vmatprep.subr.mxu0 0.0
    %3914 = vmatpush1.msra.mxu0 0.0
    %3915 = vmatprep.subr.mxu0 0.0
    %3916 = vmatpush1.msra.mxu0 0.0
    %3917 = vmatprep.subr.mxu0 0.0
    %3918 = vmatpush1.msra.mxu0 0.0
    %3919 = vmatprep.subr.mxu0 0.0
    %3920 = vmatpush1.msra.mxu0 0.0
    %3921 = vmatprep.subr.mxu0 0.0
    %3922 = vmatpush1.msra.mxu0 0.0
    %3923 = vmatprep.subr.mxu0 0.0
    %3924 = vmatpush1.msra.mxu0 0.0
    %3925 = vmatprep.subr.mxu0 0.0
    %3926 = vmatpush1.msra.mxu0 0.0
    %3927 = vmatprep.subr.mxu0 0.0
    %3928 = vmatpush1.msra.mxu0 0.0
    %3929 = vmatprep.subr.mxu0 0.0
    %3930 = vmatpush1.msra.mxu0 0.0
    %3931 = vmatprep.subr.mxu0 0.0
    %3932 = vmatpush1.msra.mxu0 0.0
    %3933 = vmatprep.subr.mxu0 0.0
    %3934 = vmatpush1.msra.mxu0 0.0
    %3935 = vmatprep.subr.mxu0 0.0
    %3936 = vmatpush1.msra.mxu0 0.0
    %3937 = vmatprep.subr.mxu0 0.0
    %3938 = vmatpush1.msra.mxu0 0.0
    %3939 = vmatprep.subr.mxu0 0.0
    %3940 = vmatpush1.msra.mxu0 0.0
    %3941 = vmatprep.subr.mxu0 0.0
    %3942 = vmatpush1.msra.mxu0 0.0
    %3943 = vmatprep.subr.mxu0 0.0
    %3944 = vmatpush1.msra.mxu0 0.0
    %3945 = vmatprep.subr.mxu0 0.0
    %3946 = vmatpush1.msra.mxu0 0.0
    %3947 = vmatprep.subr.mxu0 0.0
    %3948 = vmatpush1.msra.mxu0 0.0
    %3949 = vmatprep.subr.mxu0 0.0
    %3950 = vmatpush1.msra.mxu0 0.0
    %3951 = vmatprep.mubr.f32.mxu0 0.0
    %3952 = vmatmul.mubr.f32.gmra.mrb[0].mxu0 %v3885
    %v3953 = vpop.f32.mrb[0].mxu0
    %v3954 = vadd.f32 0.0, %v3953
    %v3955 = vpop.f32.mrb[0].mxu0
    %3956 = vdwg.mxu0
    %v3958 = vsel %vm3399, %v3565, 0
    %3960 = vmatprep.subr.mxu0 0.0
    %3961 = vmatpush1.msra.mxu0 %v2043
    %3962 = vmatprep.subr.mxu0 0.0
    %3963 = vmatpush1.msra.mxu0 0.0
    %3964 = vmatprep.subr.mxu0 0.0
    %3965 = vmatpush1.msra.mxu0 0.0
    %3966 = vmatprep.subr.mxu0 0.0
    %3967 = vmatpush1.msra.mxu0 0.0
    %3968 = vmatprep.subr.mxu0 0.0
    %3969 = vmatpush1.msra.mxu0 0.0
    %3970 = vmatprep.subr.mxu0 0.0
    %3971 = vmatpush1.msra.mxu0 0.0
    %3972 = vmatprep.subr.mxu0 0.0
    %3973 = vmatpush1.msra.mxu0 0.0
    %3974 = vmatprep.subr.mxu0 0.0
    %3975 = vmatpush1.msra.mxu0 0.0
    %3976 = vmatprep.subr.mxu0 0.0
    %3977 = vmatpush1.msra.mxu0 0.0
    %3978 = vmatprep.subr.mxu0 0.0
    %3979 = vmatpush1.msra.mxu0 0.0
    %3980 = vmatprep.subr.mxu0 0.0
    %3981 = vmatpush1.msra.mxu0 0.0
    %3982 = vmatprep.subr.mxu0 0.0
    %3983 = vmatpush1.msra.mxu0 0.0
    %3984 = vmatprep.subr.mxu0 0.0
    %3985 = vmatpush1.msra.mxu0 0.0
    %3986 = vmatprep.subr.mxu0 0.0
    %3987 = vmatpush1.msra.mxu0 0.0
    %3988 = vmatprep.subr.mxu0 0.0
    %3989 = vmatpush1.msra.mxu0 0.0
    %3990 = vmatprep.subr.mxu0 0.0
    %3991 = vmatpush1.msra.mxu0 0.0
    %3992 = vmatprep.subr.mxu0 0.0
    %3993 = vmatpush1.msra.mxu0 0.0
    %3994 = vmatprep.subr.mxu0 0.0
    %3995 = vmatpush1.msra.mxu0 0.0
    %3996 = vmatprep.subr.mxu0 0.0
    %3997 = vmatpush1.msra.mxu0 0.0
    %3998 = vmatprep.subr.mxu0 0.0
    %3999 = vmatpush1.msra.mxu0 0.0
    %4000 = vmatprep.subr.mxu0 0.0
    %4001 = vmatpush1.msra.mxu0 0.0
    %4002 = vmatprep.subr.mxu0 0.0
    %4003 = vmatpush1.msra.mxu0 0.0
    %4004 = vmatprep.subr.mxu0 0.0
    %4005 = vmatpush1.msra.mxu0 0.0
    %4006 = vmatprep.subr.mxu0 0.0
    %4007 = vmatpush1.msra.mxu0 0.0
    %4008 = vmatprep.subr.mxu0 0.0
    %4009 = vmatpush1.msra.mxu0 0.0
    %4010 = vmatprep.subr.mxu0 0.0
    %4011 = vmatpush1.msra.mxu0 0.0
    %4012 = vmatprep.subr.mxu0 0.0
    %4013 = vmatpush1.msra.mxu0 0.0
    %4014 = vmatprep.subr.mxu0 0.0
    %4015 = vmatpush1.msra.mxu0 0.0
    %4016 = vmatprep.subr.mxu0 0.0
    %4017 = vmatpush1.msra.mxu0 0.0
    %4018 = vmatprep.subr.mxu0 0.0
    %4019 = vmatpush1.msra.mxu0 0.0
    %4020 = vmatprep.subr.mxu0 0.0
    %4021 = vmatpush1.msra.mxu0 0.0
    %4022 = vmatprep.subr.mxu0 0.0
    %4023 = vmatpush1.msra.mxu0 0.0
    %4024 = vmatprep.mubr.f32.mxu0 0.0
    %4025 = vmatmul.mubr.f32.gmra.mrb[0].mxu0 %v3958
    %v4026 = vpop.f32.mrb[0].mxu0
    %v4027 = vadd.f32 0.0, %v4026
    %v4028 = vpop.f32.mrb[0].mxu0
    %4029 = vdwg.mxu0
    %v4031 = vsel %vm3399, %v3566, 0
    %4033 = vmatprep.subr.mxu0 0.0
    %4034 = vmatpush1.msra.mxu0 %v2044
    %4035 = vmatprep.subr.mxu0 0.0
    %4036 = vmatpush1.msra.mxu0 0.0
    %4037 = vmatprep.subr.mxu0 0.0
    %4038 = vmatpush1.msra.mxu0 0.0
    %4039 = vmatprep.subr.mxu0 0.0
    %4040 = vmatpush1.msra.mxu0 0.0
    %4041 = vmatprep.subr.mxu0 0.0
    %4042 = vmatpush1.msra.mxu0 0.0
    %4043 = vmatprep.subr.mxu0 0.0
    %4044 = vmatpush1.msra.mxu0 0.0
    %4045 = vmatprep.subr.mxu0 0.0
    %4046 = vmatpush1.msra.mxu0 0.0
    %4047 = vmatprep.subr.mxu0 0.0
    %4048 = vmatpush1.msra.mxu0 0.0
    %4049 = vmatprep.subr.mxu0 0.0
    %4050 = vmatpush1.msra.mxu0 0.0
    %4051 = vmatprep.subr.mxu0 0.0
    %4052 = vmatpush1.msra.mxu0 0.0
    %4053 = vmatprep.subr.mxu0 0.0
    %4054 = vmatpush1.msra.mxu0 0.0
    %4055 = vmatprep.subr.mxu0 0.0
    %4056 = vmatpush1.msra.mxu0 0.0
    %4057 = vmatprep.subr.mxu0 0.0
    %4058 = vmatpush1.msra.mxu0 0.0
    %4059 = vmatprep.subr.mxu0 0.0
    %4060 = vmatpush1.msra.mxu0 0.0
    %4061 = vmatprep.subr.mxu0 0.0
    %4062 = vmatpush1.msra.mxu0 0.0
    %4063 = vmatprep.subr.mxu0 0.0
    %4064 = vmatpush1.msra.mxu0 0.0
    %4065 = vmatprep.subr.mxu0 0.0
    %4066 = vmatpush1.msra.mxu0 0.0
    %4067 = vmatprep.subr.mxu0 0.0
    %4068 = vmatpush1.msra.mxu0 0.0
    %4069 = vmatprep.subr.mxu0 0.0
    %4070 = vmatpush1.msra.mxu0 0.0
    %4071 = vmatprep.subr.mxu0 0.0
    %4072 = vmatpush1.msra.mxu0 0.0
    %4073 = vmatprep.subr.mxu0 0.0
    %4074 = vmatpush1.msra.mxu0 0.0
    %4075 = vmatprep.subr.mxu0 0.0
    %4076 = vmatpush1.msra.mxu0 0.0
    %4077 = vmatprep.subr.mxu0 0.0
    %4078 = vmatpush1.msra.mxu0 0.0
    %4079 = vmatprep.subr.mxu0 0.0
    %4080 = vmatpush1.msra.mxu0 0.0
    %4081 = vmatprep.subr.mxu0 0.0
    %4082 = vmatpush1.msra.mxu0 0.0
    %4083 = vmatprep.subr.mxu0 0.0
    %4084 = vmatpush1.msra.mxu0 0.0
    %4085 = vmatprep.subr.mxu0 0.0
    %4086 = vmatpush1.msra.mxu0 0.0
    %4087 = vmatprep.subr.mxu0 0.0
    %4088 = vmatpush1.msra.mxu0 0.0
    %4089 = vmatprep.subr.mxu0 0.0
    %4090 = vmatpush1.msra.mxu0 0.0
    %4091 = vmatprep.subr.mxu0 0.0
    %4092 = vmatpush1.msra.mxu0 0.0
    %4093 = vmatprep.subr.mxu0 0.0
    %4094 = vmatpush1.msra.mxu0 0.0
    %4095 = vmatprep.subr.mxu0 0.0
    %4096 = vmatpush1.msra.mxu0 0.0
    %4097 = vmatprep.mubr.f32.mxu0 0.0
    %4098 = vmatmul.mubr.f32.gmra.mrb[0].mxu0 %v4031
    %v4099 = vpop.f32.mrb[0].mxu0
    %v4100 = vadd.f32 0.0, %v4099
    %v4101 = vpop.f32.mrb[0].mxu0
    %4102 = vdwg.mxu0
    %v4104 = vsel %vm3399, %v3567, 0
    %4106 = vmatprep.subr.mxu0 0.0
    %4107 = vmatpush1.msra.mxu0 %v2045
    %4108 = vmatprep.subr.mxu0 0.0
    %4109 = vmatpush1.msra.mxu0 0.0
    %4110 = vmatprep.subr.mxu0 0.0
    %4111 = vmatpush1.msra.mxu0 0.0
    %4112 = vmatprep.subr.mxu0 0.0
    %4113 = vmatpush1.msra.mxu0 0.0
    %4114 = vmatprep.subr.mxu0 0.0
    %4115 = vmatpush1.msra.mxu0 0.0
    %4116 = vmatprep.subr.mxu0 0.0
    %4117 = vmatpush1.msra.mxu0 0.0
    %4118 = vmatprep.subr.mxu0 0.0
    %4119 = vmatpush1.msra.mxu0 0.0
    %4120 = vmatprep.subr.mxu0 0.0
    %4121 = vmatpush1.msra.mxu0 0.0
    %4122 = vmatprep.subr.mxu0 0.0
    %4123 = vmatpush1.msra.mxu0 0.0
    %4124 = vmatprep.subr.mxu0 0.0
    %4125 = vmatpush1.msra.mxu0 0.0
    %4126 = vmatprep.subr.mxu0 0.0
    %4127 = vmatpush1.msra.mxu0 0.0
    %4128 = vmatprep.subr.mxu0 0.0
    %4129 = vmatpush1.msra.mxu0 0.0
    %4130 = vmatprep.subr.mxu0 0.0
    %4131 = vmatpush1.msra.mxu0 0.0
    %4132 = vmatprep.subr.mxu0 0.0
    %4133 = vmatpush1.msra.mxu0 0.0
    %4134 = vmatprep.subr.mxu0 0.0
    %4135 = vmatpush1.msra.mxu0 0.0
    %4136 = vmatprep.subr.mxu0 0.0
    %4137 = vmatpush1.msra.mxu0 0.0
    %4138 = vmatprep.subr.mxu0 0.0
    %4139 = vmatpush1.msra.mxu0 0.0
    %4140 = vmatprep.subr.mxu0 0.0
    %4141 = vmatpush1.msra.mxu0 0.0
    %4142 = vmatprep.subr.mxu0 0.0
    %4143 = vmatpush1.msra.mxu0 0.0
    %4144 = vmatprep.subr.mxu0 0.0
    %4145 = vmatpush1.msra.mxu0 0.0
    %4146 = vmatprep.subr.mxu0 0.0
    %4147 = vmatpush1.msra.mxu0 0.0
    %4148 = vmatprep.subr.mxu0 0.0
    %4149 = vmatpush1.msra.mxu0 0.0
    %4150 = vmatprep.subr.mxu0 0.0
    %4151 = vmatpush1.msra.mxu0 0.0
    %4152 = vmatprep.subr.mxu0 0.0
    %4153 = vmatpush1.msra.mxu0 0.0
    %4154 = vmatprep.subr.mxu0 0.0
    %4155 = vmatpush1.msra.mxu0 0.0
    %4156 = vmatprep.subr.mxu0 0.0
    %4157 = vmatpush1.msra.mxu0 0.0
    %4158 = vmatprep.subr.mxu0 0.0
    %4159 = vmatpush1.msra.mxu0 0.0
    %4160 = vmatprep.subr.mxu0 0.0
    %4161 = vmatpush1.msra.mxu0 0.0
    %4162 = vmatprep.subr.mxu0 0.0
    %4163 = vmatpush1.msra.mxu0 0.0
    %4164 = vmatprep.subr.mxu0 0.0
    %4165 = vmatpush1.msra.mxu0 0.0
    %4166 = vmatprep.subr.mxu0 0.0
    %4167 = vmatpush1.msra.mxu0 0.0
    %4168 = vmatprep.subr.mxu0 0.0
    %4169 = vmatpush1.msra.mxu0 0.0
    %4170 = vmatprep.mubr.f32.mxu0 0.0
    %4171 = vmatmul.mubr.f32.gmra.mrb[0].mxu0 %v4104
    %v4172 = vpop.f32.mrb[0].mxu0
    %v4173 = vadd.f32 0.0, %v4172
    %v4174 = vpop.f32.mrb[0].mxu0
    %4175 = vdwg.mxu0
    %v4177 = vsel %vm3399, %v3568, 0
    %4179 = vmatprep.subr.mxu0 0.0
    %4180 = vmatpush1.msra.mxu0 %v2174
    %4181 = vmatprep.subr.mxu0 0.0
    %4182 = vmatpush1.msra.mxu0 0.0
    %4183 = vmatprep.subr.mxu0 0.0
    %4184 = vmatpush1.msra.mxu0 0.0
    %4185 = vmatprep.subr.mxu0 0.0
    %4186 = vmatpush1.msra.mxu0 0.0
    %4187 = vmatprep.subr.mxu0 0.0
    %4188 = vmatpush1.msra.mxu0 0.0
    %4189 = vmatprep.subr.mxu0 0.0
    %4190 = vmatpush1.msra.mxu0 0.0
    %4191 = vmatprep.subr.mxu0 0.0
    %4192 = vmatpush1.msra.mxu0 0.0
    %4193 = vmatprep.subr.mxu0 0.0
    %4194 = vmatpush1.msra.mxu0 0.0
    %4195 = vmatprep.subr.mxu0 0.0
    %4196 = vmatpush1.msra.mxu0 0.0
    %4197 = vmatprep.subr.mxu0 0.0
    %4198 = vmatpush1.msra.mxu0 0.0
    %4199 = vmatprep.subr.mxu0 0.0
    %4200 = vmatpush1.msra.mxu0 0.0
    %4201 = vmatprep.subr.mxu0 0.0
    %4202 = vmatpush1.msra.mxu0 0.0
    %4203 = vmatprep.subr.mxu0 0.0
    %4204 = vmatpush1.msra.mxu0 0.0
    %4205 = vmatprep.subr.mxu0 0.0
    %4206 = vmatpush1.msra.mxu0 0.0
    %4207 = vmatprep.subr.mxu0 0.0
    %4208 = vmatpush1.msra.mxu0 0.0
    %4209 = vmatprep.subr.mxu0 0.0
    %4210 = vmatpush1.msra.mxu0 0.0
    %4211 = vmatprep.subr.mxu0 0.0
    %4212 = vmatpush1.msra.mxu0 0.0
    %4213 = vmatprep.subr.mxu0 0.0
    %4214 = vmatpush1.msra.mxu0 0.0
    %4215 = vmatprep.subr.mxu0 0.0
    %4216 = vmatpush1.msra.mxu0 0.0
    %4217 = vmatprep.subr.mxu0 0.0
    %4218 = vmatpush1.msra.mxu0 0.0
    %4219 = vmatprep.subr.mxu0 0.0
    %4220 = vmatpush1.msra.mxu0 0.0
    %4221 = vmatprep.subr.mxu0 0.0
    %4222 = vmatpush1.msra.mxu0 0.0
    %4223 = vmatprep.subr.mxu0 0.0
    %4224 = vmatpush1.msra.mxu0 0.0
    %4225 = vmatprep.subr.mxu0 0.0
    %4226 = vmatpush1.msra.mxu0 0.0
    %4227 = vmatprep.subr.mxu0 0.0
    %4228 = vmatpush1.msra.mxu0 0.0
    %4229 = vmatprep.subr.mxu0 0.0
    %4230 = vmatpush1.msra.mxu0 0.0
    %4231 = vmatprep.subr.mxu0 0.0
    %4232 = vmatpush1.msra.mxu0 0.0
    %4233 = vmatprep.subr.mxu0 0.0
    %4234 = vmatpush1.msra.mxu0 0.0
    %4235 = vmatprep.subr.mxu0 0.0
    %4236 = vmatpush1.msra.mxu0 0.0
    %4237 = vmatprep.subr.mxu0 0.0
    %4238 = vmatpush1.msra.mxu0 0.0
    %4239 = vmatprep.subr.mxu0 0.0
    %4240 = vmatpush1.msra.mxu0 0.0
    %4241 = vmatprep.subr.mxu0 0.0
    %4242 = vmatpush1.msra.mxu0 0.0
    %4243 = vmatprep.mubr.f32.mxu0 0.0
    %4244 = vmatmul.mubr.f32.gmra.mrb[0].mxu0 %v4177
    %v4245 = vpop.f32.mrb[0].mxu0
    %v4246 = vadd.f32 0.0, %v4245
    %v4247 = vpop.f32.mrb[0].mxu0
    %4248 = vdwg.mxu0
    %v4250 = vsel %vm3399, %v3569, 0
    %4252 = vmatprep.subr.mxu0 0.0
    %4253 = vmatpush1.msra.mxu0 %v2175
    %4254 = vmatprep.subr.mxu0 0.0
    %4255 = vmatpush1.msra.mxu0 0.0
    %4256 = vmatprep.subr.mxu0 0.0
    %4257 = vmatpush1.msra.mxu0 0.0
    %4258 = vmatprep.subr.mxu0 0.0
    %4259 = vmatpush1.msra.mxu0 0.0
    %4260 = vmatprep.subr.mxu0 0.0
    %4261 = vmatpush1.msra.mxu0 0.0
    %4262 = vmatprep.subr.mxu0 0.0
    %4263 = vmatpush1.msra.mxu0 0.0
    %4264 = vmatprep.subr.mxu0 0.0
    %4265 = vmatpush1.msra.mxu0 0.0
    %4266 = vmatprep.subr.mxu0 0.0
    %4267 = vmatpush1.msra.mxu0 0.0
    %4268 = vmatprep.subr.mxu0 0.0
    %4269 = vmatpush1.msra.mxu0 0.0
    %4270 = vmatprep.subr.mxu0 0.0
    %4271 = vmatpush1.msra.mxu0 0.0
    %4272 = vmatprep.subr.mxu0 0.0
    %4273 = vmatpush1.msra.mxu0 0.0
    %4274 = vmatprep.subr.mxu0 0.0
    %4275 = vmatpush1.msra.mxu0 0.0
    %4276 = vmatprep.subr.mxu0 0.0
    %4277 = vmatpush1.msra.mxu0 0.0
    %4278 = vmatprep.subr.mxu0 0.0
    %4279 = vmatpush1.msra.mxu0 0.0
    %4280 = vmatprep.subr.mxu0 0.0
    %4281 = vmatpush1.msra.mxu0 0.0
    %4282 = vmatprep.subr.mxu0 0.0
    %4283 = vmatpush1.msra.mxu0 0.0
    %4284 = vmatprep.subr.mxu0 0.0
    %4285 = vmatpush1.msra.mxu0 0.0
    %4286 = vmatprep.subr.mxu0 0.0
    %4287 = vmatpush1.msra.mxu0 0.0
    %4288 = vmatprep.subr.mxu0 0.0
    %4289 = vmatpush1.msra.mxu0 0.0
    %4290 = vmatprep.subr.mxu0 0.0
    %4291 = vmatpush1.msra.mxu0 0.0
    %4292 = vmatprep.subr.mxu0 0.0
    %4293 = vmatpush1.msra.mxu0 0.0
    %4294 = vmatprep.subr.mxu0 0.0
    %4295 = vmatpush1.msra.mxu0 0.0
    %4296 = vmatprep.subr.mxu0 0.0
    %4297 = vmatpush1.msra.mxu0 0.0
    %4298 = vmatprep.subr.mxu0 0.0
    %4299 = vmatpush1.msra.mxu0 0.0
    %4300 = vmatprep.subr.mxu0 0.0
    %4301 = vmatpush1.msra.mxu0 0.0
    %4302 = vmatprep.subr.mxu0 0.0
    %4303 = vmatpush1.msra.mxu0 0.0
    %4304 = vmatprep.subr.mxu0 0.0
    %4305 = vmatpush1.msra.mxu0 0.0
    %4306 = vmatprep.subr.mxu0 0.0
    %4307 = vmatpush1.msra.mxu0 0.0
    %4308 = vmatprep.subr.mxu0 0.0
    %4309 = vmatpush1.msra.mxu0 0.0
    %4310 = vmatprep.subr.mxu0 0.0
    %4311 = vmatpush1.msra.mxu0 0.0
    %4312 = vmatprep.subr.mxu0 0.0
    %4313 = vmatpush1.msra.mxu0 0.0
    %4314 = vmatprep.subr.mxu0 0.0
    %4315 = vmatpush1.msra.mxu0 0.0
    %4316 = vmatprep.mubr.f32.mxu0 0.0
    %4317 = vmatmul.mubr.f32.gmra.mrb[0].mxu0 %v4250
    %v4318 = vpop.f32.mrb[0].mxu0
    %v4319 = vadd.f32 0.0, %v4318
    %v4320 = vpop.f32.mrb[0].mxu0
    %4321 = vdwg.mxu0
    %v4323 = vsel %vm3399, %v3570, 0
    %4325 = vmatprep.subr.mxu0 0.0
    %4326 = vmatpush1.msra.mxu0 %v2176
    %4327 = vmatprep.subr.mxu0 0.0
    %4328 = vmatpush1.msra.mxu0 0.0
    %4329 = vmatprep.subr.mxu0 0.0
    %4330 = vmatpush1.msra.mxu0 0.0
    %4331 = vmatprep.subr.mxu0 0.0
    %4332 = vmatpush1.msra.mxu0 0.0
    %4333 = vmatprep.subr.mxu0 0.0
    %4334 = vmatpush1.msra.mxu0 0.0
    %4335 = vmatprep.subr.mxu0 0.0
    %4336 = vmatpush1.msra.mxu0 0.0
    %4337 = vmatprep.subr.mxu0 0.0
    %4338 = vmatpush1.msra.mxu0 0.0
    %4339 = vmatprep.subr.mxu0 0.0
    %4340 = vmatpush1.msra.mxu0 0.0
    %4341 = vmatprep.subr.mxu0 0.0
    %4342 = vmatpush1.msra.mxu0 0.0
    %4343 = vmatprep.subr.mxu0 0.0
    %4344 = vmatpush1.msra.mxu0 0.0
    %4345 = vmatprep.subr.mxu0 0.0
    %4346 = vmatpush1.msra.mxu0 0.0
    %4347 = vmatprep.subr.mxu0 0.0
    %4348 = vmatpush1.msra.mxu0 0.0
    %4349 = vmatprep.subr.mxu0 0.0
    %4350 = vmatpush1.msra.mxu0 0.0
    %4351 = vmatprep.subr.mxu0 0.0
    %4352 = vmatpush1.msra.mxu0 0.0
    %4353 = vmatprep.subr.mxu0 0.0
    %4354 = vmatpush1.msra.mxu0 0.0
    %4355 = vmatprep.subr.mxu0 0.0
    %4356 = vmatpush1.msra.mxu0 0.0
    %4357 = vmatprep.subr.mxu0 0.0
    %4358 = vmatpush1.msra.mxu0 0.0
    %4359 = vmatprep.subr.mxu0 0.0
    %4360 = vmatpush1.msra.mxu0 0.0
    %4361 = vmatprep.subr.mxu0 0.0
    %4362 = vmatpush1.msra.mxu0 0.0
    %4363 = vmatprep.subr.mxu0 0.0
    %4364 = vmatpush1.msra.mxu0 0.0
    %4365 = vmatprep.subr.mxu0 0.0
    %4366 = vmatpush1.msra.mxu0 0.0
    %4367 = vmatprep.subr.mxu0 0.0
    %4368 = vmatpush1.msra.mxu0 0.0
    %4369 = vmatprep.subr.mxu0 0.0
    %4370 = vmatpush1.msra.mxu0 0.0
    %4371 = vmatprep.subr.mxu0 0.0
    %4372 = vmatpush1.msra.mxu0 0.0
    %4373 = vmatprep.subr.mxu0 0.0
    %4374 = vmatpush1.msra.mxu0 0.0
    %4375 = vmatprep.subr.mxu0 0.0
    %4376 = vmatpush1.msra.mxu0 0.0
    %4377 = vmatprep.subr.mxu0 0.0
    %4378 = vmatpush1.msra.mxu0 0.0
    %4379 = vmatprep.subr.mxu0 0.0
    %4380 = vmatpush1.msra.mxu0 0.0
    %4381 = vmatprep.subr.mxu0 0.0
    %4382 = vmatpush1.msra.mxu0 0.0
    %4383 = vmatprep.subr.mxu0 0.0
    %4384 = vmatpush1.msra.mxu0 0.0
    %4385 = vmatprep.subr.mxu0 0.0
    %4386 = vmatpush1.msra.mxu0 0.0
    %4387 = vmatprep.subr.mxu0 0.0
    %4388 = vmatpush1.msra.mxu0 0.0
    %4389 = vmatprep.mubr.f32.mxu0 0.0
    %4390 = vmatmul.mubr.f32.gmra.mrb[0].mxu0 %v4323
    %v4391 = vpop.f32.mrb[0].mxu0
    %v4392 = vadd.f32 0.0, %v4391
    %v4393 = vpop.f32.mrb[0].mxu0
    %4394 = vdwg.mxu0
    %v4396 = vsel %vm3399, %v3571, 0
    %4398 = vmatprep.subr.mxu0 0.0
    %4399 = vmatpush1.msra.mxu0 %v2177
    %4400 = vmatprep.subr.mxu0 0.0
    %4401 = vmatpush1.msra.mxu0 0.0
    %4402 = vmatprep.subr.mxu0 0.0
    %4403 = vmatpush1.msra.mxu0 0.0
    %4404 = vmatprep.subr.mxu0 0.0
    %4405 = vmatpush1.msra.mxu0 0.0
    %4406 = vmatprep.subr.mxu0 0.0
    %4407 = vmatpush1.msra.mxu0 0.0
    %4408 = vmatprep.subr.mxu0 0.0
    %4409 = vmatpush1.msra.mxu0 0.0
    %4410 = vmatprep.subr.mxu0 0.0
    %4411 = vmatpush1.msra.mxu0 0.0
    %4412 = vmatprep.subr.mxu0 0.0
    %4413 = vmatpush1.msra.mxu0 0.0
    %4414 = vmatprep.subr.mxu0 0.0
    %4415 = vmatpush1.msra.mxu0 0.0
    %4416 = vmatprep.subr.mxu0 0.0
    %4417 = vmatpush1.msra.mxu0 0.0
    %4418 = vmatprep.subr.mxu0 0.0
    %4419 = vmatpush1.msra.mxu0 0.0
    %4420 = vmatprep.subr.mxu0 0.0
    %4421 = vmatpush1.msra.mxu0 0.0
    %4422 = vmatprep.subr.mxu0 0.0
    %4423 = vmatpush1.msra.mxu0 0.0
    %4424 = vmatprep.subr.mxu0 0.0
    %4425 = vmatpush1.msra.mxu0 0.0
    %4426 = vmatprep.subr.mxu0 0.0
    %4427 = vmatpush1.msra.mxu0 0.0
    %4428 = vmatprep.subr.mxu0 0.0
    %4429 = vmatpush1.msra.mxu0 0.0
    %4430 = vmatprep.subr.mxu0 0.0
    %4431 = vmatpush1.msra.mxu0 0.0
    %4432 = vmatprep.subr.mxu0 0.0
    %4433 = vmatpush1.msra.mxu0 0.0
    %4434 = vmatprep.subr.mxu0 0.0
    %4435 = vmatpush1.msra.mxu0 0.0
    %4436 = vmatprep.subr.mxu0 0.0
    %4437 = vmatpush1.msra.mxu0 0.0
    %4438 = vmatprep.subr.mxu0 0.0
    %4439 = vmatpush1.msra.mxu0 0.0
    %4440 = vmatprep.subr.mxu0 0.0
    %4441 = vmatpush1.msra.mxu0 0.0
    %4442 = vmatprep.subr.mxu0 0.0
    %4443 = vmatpush1.msra.mxu0 0.0
    %4444 = vmatprep.subr.mxu0 0.0
    %4445 = vmatpush1.msra.mxu0 0.0
    %4446 = vmatprep.subr.mxu0 0.0
    %4447 = vmatpush1.msra.mxu0 0.0
    %4448 = vmatprep.subr.mxu0 0.0
    %4449 = vmatpush1.msra.mxu0 0.0
    %4450 = vmatprep.subr.mxu0 0.0
    %4451 = vmatpush1.msra.mxu0 0.0
    %4452 = vmatprep.subr.mxu0 0.0
    %4453 = vmatpush1.msra.mxu0 0.0
    %4454 = vmatprep.subr.mxu0 0.0
    %4455 = vmatpush1.msra.mxu0 0.0
    %4456 = vmatprep.subr.mxu0 0.0
    %4457 = vmatpush1.msra.mxu0 0.0
    %4458 = vmatprep.subr.mxu0 0.0
    %4459 = vmatpush1.msra.mxu0 0.0
    %4460 = vmatprep.subr.mxu0 0.0
    %4461 = vmatpush1.msra.mxu0 0.0
    %4462 = vmatprep.mubr.f32.mxu0 0.0
    %4463 = vmatmul.mubr.f32.gmra.mrb[0].mxu0 %v4396
    %v4464 = vpop.f32.mrb[0].mxu0
    %v4465 = vadd.f32 0.0, %v4464
    %v4466 = vpop.f32.mrb[0].mxu0
    %4467 = vdwg.mxu0
    %v4469 = vsel %vm3399, %v3572, 0
    %4471 = vmatprep.subr.mxu0 0.0
    %4472 = vmatpush1.msra.mxu0 %v2178
    %4473 = vmatprep.subr.mxu0 0.0
    %4474 = vmatpush1.msra.mxu0 0.0
    %4475 = vmatprep.subr.mxu0 0.0
    %4476 = vmatpush1.msra.mxu0 0.0
    %4477 = vmatprep.subr.mxu0 0.0
    %4478 = vmatpush1.msra.mxu0 0.0
    %4479 = vmatprep.subr.mxu0 0.0
    %4480 = vmatpush1.msra.mxu0 0.0
    %4481 = vmatprep.subr.mxu0 0.0
    %4482 = vmatpush1.msra.mxu0 0.0
    %4483 = vmatprep.subr.mxu0 0.0
    %4484 = vmatpush1.msra.mxu0 0.0
    %4485 = vmatprep.subr.mxu0 0.0
    %4486 = vmatpush1.msra.mxu0 0.0
    %4487 = vmatprep.subr.mxu0 0.0
    %4488 = vmatpush1.msra.mxu0 0.0
    %4489 = vmatprep.subr.mxu0 0.0
    %4490 = vmatpush1.msra.mxu0 0.0
    %4491 = vmatprep.subr.mxu0 0.0
    %4492 = vmatpush1.msra.mxu0 0.0
    %4493 = vmatprep.subr.mxu0 0.0
    %4494 = vmatpush1.msra.mxu0 0.0
    %4495 = vmatprep.subr.mxu0 0.0
    %4496 = vmatpush1.msra.mxu0 0.0
    %4497 = vmatprep.subr.mxu0 0.0
    %4498 = vmatpush1.msra.mxu0 0.0
    %4499 = vmatprep.subr.mxu0 0.0
    %4500 = vmatpush1.msra.mxu0 0.0
    %4501 = vmatprep.subr.mxu0 0.0
    %4502 = vmatpush1.msra.mxu0 0.0
    %4503 = vmatprep.subr.mxu0 0.0
    %4504 = vmatpush1.msra.mxu0 0.0
    %4505 = vmatprep.subr.mxu0 0.0
    %4506 = vmatpush1.msra.mxu0 0.0
    %4507 = vmatprep.subr.mxu0 0.0
    %4508 = vmatpush1.msra.mxu0 0.0
    %4509 = vmatprep.subr.mxu0 0.0
    %4510 = vmatpush1.msra.mxu0 0.0
    %4511 = vmatprep.subr.mxu0 0.0
    %4512 = vmatpush1.msra.mxu0 0.0
    %4513 = vmatprep.subr.mxu0 0.0
    %4514 = vmatpush1.msra.mxu0 0.0
    %4515 = vmatprep.subr.mxu0 0.0
    %4516 = vmatpush1.msra.mxu0 0.0
    %4517 = vmatprep.subr.mxu0 0.0
    %4518 = vmatpush1.msra.mxu0 0.0
    %4519 = vmatprep.subr.mxu0 0.0
    %4520 = vmatpush1.msra.mxu0 0.0
    %4521 = vmatprep.subr.mxu0 0.0
    %4522 = vmatpush1.msra.mxu0 0.0
    %4523 = vmatprep.subr.mxu0 0.0
    %4524 = vmatpush1.msra.mxu0 0.0
    %4525 = vmatprep.subr.mxu0 0.0
    %4526 = vmatpush1.msra.mxu0 0.0
    %4527 = vmatprep.subr.mxu0 0.0
    %4528 = vmatpush1.msra.mxu0 0.0
    %4529 = vmatprep.subr.mxu0 0.0
    %4530 = vmatpush1.msra.mxu0 0.0
    %4531 = vmatprep.subr.mxu0 0.0
    %4532 = vmatpush1.msra.mxu0 0.0
    %4533 = vmatprep.subr.mxu0 0.0
    %4534 = vmatpush1.msra.mxu0 0.0
    %4535 = vmatprep.mubr.f32.mxu0 0.0
    %4536 = vmatmul.mubr.f32.gmra.mrb[0].mxu0 %v4469
    %v4537 = vpop.f32.mrb[0].mxu0
    %v4538 = vadd.f32 0.0, %v4537
    %v4539 = vpop.f32.mrb[0].mxu0
    %4540 = vdwg.mxu0
    %v4542 = vsel %vm3399, %v3573, 0
    %4544 = vmatprep.subr.mxu0 0.0
    %4545 = vmatpush1.msra.mxu0 %v2179
    %4546 = vmatprep.subr.mxu0 0.0
    %4547 = vmatpush1.msra.mxu0 0.0
    %4548 = vmatprep.subr.mxu0 0.0
    %4549 = vmatpush1.msra.mxu0 0.0
    %4550 = vmatprep.subr.mxu0 0.0
    %4551 = vmatpush1.msra.mxu0 0.0
    %4552 = vmatprep.subr.mxu0 0.0
    %4553 = vmatpush1.msra.mxu0 0.0
    %4554 = vmatprep.subr.mxu0 0.0
    %4555 = vmatpush1.msra.mxu0 0.0
    %4556 = vmatprep.subr.mxu0 0.0
    %4557 = vmatpush1.msra.mxu0 0.0
    %4558 = vmatprep.subr.mxu0 0.0
    %4559 = vmatpush1.msra.mxu0 0.0
    %4560 = vmatprep.subr.mxu0 0.0
    %4561 = vmatpush1.msra.mxu0 0.0
    %4562 = vmatprep.subr.mxu0 0.0
    %4563 = vmatpush1.msra.mxu0 0.0
    %4564 = vmatprep.subr.mxu0 0.0
    %4565 = vmatpush1.msra.mxu0 0.0
    %4566 = vmatprep.subr.mxu0 0.0
    %4567 = vmatpush1.msra.mxu0 0.0
    %4568 = vmatprep.subr.mxu0 0.0
    %4569 = vmatpush1.msra.mxu0 0.0
    %4570 = vmatprep.subr.mxu0 0.0
    %4571 = vmatpush1.msra.mxu0 0.0
    %4572 = vmatprep.subr.mxu0 0.0
    %4573 = vmatpush1.msra.mxu0 0.0
    %4574 = vmatprep.subr.mxu0 0.0
    %4575 = vmatpush1.msra.mxu0 0.0
    %4576 = vmatprep.subr.mxu0 0.0
    %4577 = vmatpush1.msra.mxu0 0.0
    %4578 = vmatprep.subr.mxu0 0.0
    %4579 = vmatpush1.msra.mxu0 0.0
    %4580 = vmatprep.subr.mxu0 0.0
    %4581 = vmatpush1.msra.mxu0 0.0
    %4582 = vmatprep.subr.mxu0 0.0
    %4583 = vmatpush1.msra.mxu0 0.0
    %4584 = vmatprep.subr.mxu0 0.0
    %4585 = vmatpush1.msra.mxu0 0.0
    %4586 = vmatprep.subr.mxu0 0.0
    %4587 = vmatpush1.msra.mxu0 0.0
    %4588 = vmatprep.subr.mxu0 0.0
    %4589 = vmatpush1.msra.mxu0 0.0
    %4590 = vmatprep.subr.mxu0 0.0
    %4591 = vmatpush1.msra.mxu0 0.0
    %4592 = vmatprep.subr.mxu0 0.0
    %4593 = vmatpush1.msra.mxu0 0.0
    %4594 = vmatprep.subr.mxu0 0.0
    %4595 = vmatpush1.msra.mxu0 0.0
    %4596 = vmatprep.subr.mxu0 0.0
    %4597 = vmatpush1.msra.mxu0 0.0
    %4598 = vmatprep.subr.mxu0 0.0
    %4599 = vmatpush1.msra.mxu0 0.0
    %4600 = vmatprep.subr.mxu0 0.0
    %4601 = vmatpush1.msra.mxu0 0.0
    %4602 = vmatprep.subr.mxu0 0.0
    %4603 = vmatpush1.msra.mxu0 0.0
    %4604 = vmatprep.subr.mxu0 0.0
    %4605 = vmatpush1.msra.mxu0 0.0
    %4606 = vmatprep.subr.mxu0 0.0
    %4607 = vmatpush1.msra.mxu0 0.0
    %4608 = vmatprep.mubr.f32.mxu0 0.0
    %4609 = vmatmul.mubr.f32.gmra.mrb[0].mxu0 %v4542
    %v4610 = vpop.f32.mrb[0].mxu0
    %v4611 = vadd.f32 0.0, %v4610
    %v4612 = vpop.f32.mrb[0].mxu0
    %4613 = vdwg.mxu0
    %v4615 = vsel %vm3399, %v3574, 0
    %4617 = vmatprep.subr.mxu0 0.0
    %4618 = vmatpush1.msra.mxu0 %v2180
    %4619 = vmatprep.subr.mxu0 0.0
    %4620 = vmatpush1.msra.mxu0 0.0
    %4621 = vmatprep.subr.mxu0 0.0
    %4622 = vmatpush1.msra.mxu0 0.0
    %4623 = vmatprep.subr.mxu0 0.0
    %4624 = vmatpush1.msra.mxu0 0.0
    %4625 = vmatprep.subr.mxu0 0.0
    %4626 = vmatpush1.msra.mxu0 0.0
    %4627 = vmatprep.subr.mxu0 0.0
    %4628 = vmatpush1.msra.mxu0 0.0
    %4629 = vmatprep.subr.mxu0 0.0
    %4630 = vmatpush1.msra.mxu0 0.0
    %4631 = vmatprep.subr.mxu0 0.0
    %4632 = vmatpush1.msra.mxu0 0.0
    %4633 = vmatprep.subr.mxu0 0.0
    %4634 = vmatpush1.msra.mxu0 0.0
    %4635 = vmatprep.subr.mxu0 0.0
    %4636 = vmatpush1.msra.mxu0 0.0
    %4637 = vmatprep.subr.mxu0 0.0
    %4638 = vmatpush1.msra.mxu0 0.0
    %4639 = vmatprep.subr.mxu0 0.0
    %4640 = vmatpush1.msra.mxu0 0.0
    %4641 = vmatprep.subr.mxu0 0.0
    %4642 = vmatpush1.msra.mxu0 0.0
    %4643 = vmatprep.subr.mxu0 0.0
    %4644 = vmatpush1.msra.mxu0 0.0
    %4645 = vmatprep.subr.mxu0 0.0
    %4646 = vmatpush1.msra.mxu0 0.0
    %4647 = vmatprep.subr.mxu0 0.0
    %4648 = vmatpush1.msra.mxu0 0.0
    %4649 = vmatprep.subr.mxu0 0.0
    %4650 = vmatpush1.msra.mxu0 0.0
    %4651 = vmatprep.subr.mxu0 0.0
    %4652 = vmatpush1.msra.mxu0 0.0
    %4653 = vmatprep.subr.mxu0 0.0
    %4654 = vmatpush1.msra.mxu0 0.0
    %4655 = vmatprep.subr.mxu0 0.0
    %4656 = vmatpush1.msra.mxu0 0.0
    %4657 = vmatprep.subr.mxu0 0.0
    %4658 = vmatpush1.msra.mxu0 0.0
    %4659 = vmatprep.subr.mxu0 0.0
    %4660 = vmatpush1.msra.mxu0 0.0
    %4661 = vmatprep.subr.mxu0 0.0
    %4662 = vmatpush1.msra.mxu0 0.0
    %4663 = vmatprep.subr.mxu0 0.0
    %4664 = vmatpush1.msra.mxu0 0.0
    %4665 = vmatprep.subr.mxu0 0.0
    %4666 = vmatpush1.msra.mxu0 0.0
    %4667 = vmatprep.subr.mxu0 0.0
    %4668 = vmatpush1.msra.mxu0 0.0
    %4669 = vmatprep.subr.mxu0 0.0
    %4670 = vmatpush1.msra.mxu0 0.0
    %4671 = vmatprep.subr.mxu0 0.0
    %4672 = vmatpush1.msra.mxu0 0.0
    %4673 = vmatprep.subr.mxu0 0.0
    %4674 = vmatpush1.msra.mxu0 0.0
    %4675 = vmatprep.subr.mxu0 0.0
    %4676 = vmatpush1.msra.mxu0 0.0
    %4677 = vmatprep.subr.mxu0 0.0
    %4678 = vmatpush1.msra.mxu0 0.0
    %4679 = vmatprep.subr.mxu0 0.0
    %4680 = vmatpush1.msra.mxu0 0.0
    %4681 = vmatprep.mubr.f32.mxu0 0.0
    %4682 = vmatmul.mubr.f32.gmra.mrb[0].mxu0 %v4615
    %v4683 = vpop.f32.mrb[0].mxu0
    %v4684 = vadd.f32 0.0, %v4683
    %v4685 = vpop.f32.mrb[0].mxu0
    %4686 = vdwg.mxu0
    %v4688 = vsel %vm3399, %v3575, 0
    %4690 = vmatprep.subr.mxu0 0.0
    %4691 = vmatpush1.msra.mxu0 %v2181
    %4692 = vmatprep.subr.mxu0 0.0
    %4693 = vmatpush1.msra.mxu0 0.0
    %4694 = vmatprep.subr.mxu0 0.0
    %4695 = vmatpush1.msra.mxu0 0.0
    %4696 = vmatprep.subr.mxu0 0.0
    %4697 = vmatpush1.msra.mxu0 0.0
    %4698 = vmatprep.subr.mxu0 0.0
    %4699 = vmatpush1.msra.mxu0 0.0
    %4700 = vmatprep.subr.mxu0 0.0
    %4701 = vmatpush1.msra.mxu0 0.0
    %4702 = vmatprep.subr.mxu0 0.0
    %4703 = vmatpush1.msra.mxu0 0.0
    %4704 = vmatprep.subr.mxu0 0.0
    %4705 = vmatpush1.msra.mxu0 0.0
    %4706 = vmatprep.subr.mxu0 0.0
    %4707 = vmatpush1.msra.mxu0 0.0
    %4708 = vmatprep.subr.mxu0 0.0
    %4709 = vmatpush1.msra.mxu0 0.0
    %4710 = vmatprep.subr.mxu0 0.0
    %4711 = vmatpush1.msra.mxu0 0.0
    %4712 = vmatprep.subr.mxu0 0.0
    %4713 = vmatpush1.msra.mxu0 0.0
    %4714 = vmatprep.subr.mxu0 0.0
    %4715 = vmatpush1.msra.mxu0 0.0
    %4716 = vmatprep.subr.mxu0 0.0
    %4717 = vmatpush1.msra.mxu0 0.0
    %4718 = vmatprep.subr.mxu0 0.0
    %4719 = vmatpush1.msra.mxu0 0.0
    %4720 = vmatprep.subr.mxu0 0.0
    %4721 = vmatpush1.msra.mxu0 0.0
    %4722 = vmatprep.subr.mxu0 0.0
    %4723 = vmatpush1.msra.mxu0 0.0
    %4724 = vmatprep.subr.mxu0 0.0
    %4725 = vmatpush1.msra.mxu0 0.0
    %4726 = vmatprep.subr.mxu0 0.0
    %4727 = vmatpush1.msra.mxu0 0.0
    %4728 = vmatprep.subr.mxu0 0.0
    %4729 = vmatpush1.msra.mxu0 0.0
    %4730 = vmatprep.subr.mxu0 0.0
    %4731 = vmatpush1.msra.mxu0 0.0
    %4732 = vmatprep.subr.mxu0 0.0
    %4733 = vmatpush1.msra.mxu0 0.0
    %4734 = vmatprep.subr.mxu0 0.0
    %4735 = vmatpush1.msra.mxu0 0.0
    %4736 = vmatprep.subr.mxu0 0.0
    %4737 = vmatpush1.msra.mxu0 0.0
    %4738 = vmatprep.subr.mxu0 0.0
    %4739 = vmatpush1.msra.mxu0 0.0
    %4740 = vmatprep.subr.mxu0 0.0
    %4741 = vmatpush1.msra.mxu0 0.0
    %4742 = vmatprep.subr.mxu0 0.0
    %4743 = vmatpush1.msra.mxu0 0.0
    %4744 = vmatprep.subr.mxu0 0.0
    %4745 = vmatpush1.msra.mxu0 0.0
    %4746 = vmatprep.subr.mxu0 0.0
    %4747 = vmatpush1.msra.mxu0 0.0
    %4748 = vmatprep.subr.mxu0 0.0
    %4749 = vmatpush1.msra.mxu0 0.0
    %4750 = vmatprep.subr.mxu0 0.0
    %4751 = vmatpush1.msra.mxu0 0.0
    %4752 = vmatprep.subr.mxu0 0.0
    %4753 = vmatpush1.msra.mxu0 0.0
    %4754 = vmatprep.mubr.f32.mxu0 0.0
    %4755 = vmatmul.mubr.f32.gmra.mrb[0].mxu0 %v4688
    %v4756 = vpop.f32.mrb[0].mxu0
    %v4757 = vadd.f32 0.0, %v4756
    %v4758 = vpop.f32.mrb[0].mxu0
    %4759 = vdwg.mxu0
    %v4760 = vcombine.low %v3662, %v3808
    %v4761 = vcombine.high %v3662, %v3808
    %v4763 = vunpack.c.l.s4 1983009808
    %v4764 = vunpack.c.0.s8 %v4763
    %v4765 = vlaneseq
    %v4766 = vshrl.u32 %v4765, 7
    %v4767 = vsub.s32 %v4764, %v4766
    %v4768 = vrot.slane %v4760, %v4767
    %v4770 = vunpack.c.l.s4 1983009808
    %v4771 = vunpack.c.0.s8 %v4770
    %v4772 = vlaneseq
    %v4773 = vshrl.u32 %v4772, 7
    %v4774 = vsub.s32 %v4771, %v4773
    %v4775 = vrot.slane %v4761, %v4774
    %v4776 = vcombine.low %v3735, %v3881
    %v4777 = vcombine.high %v3735, %v3881
    %v4779 = vunpack.c.l.s4 1983009808
    %v4780 = vunpack.c.0.s8 %v4779
    %v4781 = vlaneseq
    %v4782 = vshrl.u32 %v4781, 7
    %v4783 = vsub.s32 %v4780, %v4782
    %v4784 = vrot.slane %v4776, %v4783
    %v4786 = vunpack.c.l.s4 1983009808
    %v4787 = vunpack.c.0.s8 %v4786
    %v4788 = vlaneseq
    %v4789 = vshrl.u32 %v4788, 7
    %v4790 = vsub.s32 %v4787, %v4789
    %v4791 = vrot.slane %v4777, %v4790
    %v4792 = vcombine.low %v3954, %v4100
    %v4793 = vcombine.high %v3954, %v4100
    %v4795 = vunpack.c.l.s4 1983009808
    %v4796 = vunpack.c.0.s8 %v4795
    %v4797 = vlaneseq
    %v4798 = vshrl.u32 %v4797, 7
    %v4799 = vsub.s32 %v4796, %v4798
    %v4800 = vrot.slane %v4792, %v4799
    %v4802 = vunpack.c.l.s4 1983009808
    %v4803 = vunpack.c.0.s8 %v4802
    %v4804 = vlaneseq
    %v4805 = vshrl.u32 %v4804, 7
    %v4806 = vsub.s32 %v4803, %v4805
    %v4807 = vrot.slane %v4793, %v4806
    %v4808 = vcombine.low %v4027, %v4173
    %v4809 = vcombine.high %v4027, %v4173
    %v4811 = vunpack.c.l.s4 1983009808
    %v4812 = vunpack.c.0.s8 %v4811
    %v4813 = vlaneseq
    %v4814 = vshrl.u32 %v4813, 7
    %v4815 = vsub.s32 %v4812, %v4814
    %v4816 = vrot.slane %v4808, %v4815
    %v4818 = vunpack.c.l.s4 1983009808
    %v4819 = vunpack.c.0.s8 %v4818
    %v4820 = vlaneseq
    %v4821 = vshrl.u32 %v4820, 7
    %v4822 = vsub.s32 %v4819, %v4821
    %v4823 = vrot.slane %v4809, %v4822
    %v4824 = vcombine.low %v4768, %v4784
    %v4825 = vcombine.high %v4768, %v4784
    %v4827 = vunpack.c.l.s4 1934713408
    %v4828 = vunpack.c.0.s8 %v4827
    %v4829 = vlaneseq
    %v4830 = vshrl.u32 %v4829, 7
    %v4831 = vsub.s32 %v4828, %v4830
    %v4832 = vrot.slane %v4824, %v4831
    %v4834 = vunpack.c.l.s4 1934713408
    %v4835 = vunpack.c.0.s8 %v4834
    %v4836 = vlaneseq
    %v4837 = vshrl.u32 %v4836, 7
    %v4838 = vsub.s32 %v4835, %v4837
    %v4839 = vrot.slane %v4825, %v4838
    %v4840 = vcombine.low %v4775, %v4791
    %v4841 = vcombine.high %v4775, %v4791
    %v4843 = vunpack.c.l.s4 1934713408
    %v4844 = vunpack.c.0.s8 %v4843
    %v4845 = vlaneseq
    %v4846 = vshrl.u32 %v4845, 7
    %v4847 = vsub.s32 %v4844, %v4846
    %v4848 = vrot.slane %v4840, %v4847
    %v4850 = vunpack.c.l.s4 1934713408
    %v4851 = vunpack.c.0.s8 %v4850
    %v4852 = vlaneseq
    %v4853 = vshrl.u32 %v4852, 7
    %v4854 = vsub.s32 %v4851, %v4853
    %v4855 = vrot.slane %v4841, %v4854
    %v4856 = vcombine.low %v4800, %v4816
    %v4857 = vcombine.high %v4800, %v4816
    %v4859 = vunpack.c.l.s4 1934713408
    %v4860 = vunpack.c.0.s8 %v4859
    %v4861 = vlaneseq
    %v4862 = vshrl.u32 %v4861, 7
    %v4863 = vsub.s32 %v4860, %v4862
    %v4864 = vrot.slane %v4856, %v4863
    %v4866 = vunpack.c.l.s4 1934713408
    %v4867 = vunpack.c.0.s8 %v4866
    %v4868 = vlaneseq
    %v4869 = vshrl.u32 %v4868, 7
    %v4870 = vsub.s32 %v4867, %v4869
    %v4871 = vrot.slane %v4857, %v4870
    %v4872 = vcombine.low %v4807, %v4823
    %v4873 = vcombine.high %v4807, %v4823
    %v4875 = vunpack.c.l.s4 1934713408
    %v4876 = vunpack.c.0.s8 %v4875
    %v4877 = vlaneseq
    %v4878 = vshrl.u32 %v4877, 7
    %v4879 = vsub.s32 %v4876, %v4878
    %v4880 = vrot.slane %v4872, %v4879
    %v4882 = vunpack.c.l.s4 1934713408
    %v4883 = vunpack.c.0.s8 %v4882
    %v4884 = vlaneseq
    %v4885 = vshrl.u32 %v4884, 7
    %v4886 = vsub.s32 %v4883, %v4885
    %v4887 = vrot.slane %v4873, %v4886
    %v4888 = vcombine.low %v4832, %v4864
    %v4889 = vcombine.high %v4832, %v4864
    %v4890 = vcombine.low %v4839, %v4871
    %v4891 = vcombine.high %v4839, %v4871
    %v4892 = vcombine.low %v4848, %v4880
    %v4893 = vcombine.high %v4848, %v4880
    %v4894 = vcombine.low %v4855, %v4887
    %v4895 = vcombine.high %v4855, %v4887
    %v4896 = vcombine.low %v4246, %v4392
    %v4897 = vcombine.high %v4246, %v4392
    %v4899 = vunpack.c.l.s4 1983009808
    %v4900 = vunpack.c.0.s8 %v4899
    %v4901 = vlaneseq
    %v4902 = vshrl.u32 %v4901, 7
    %v4903 = vsub.s32 %v4900, %v4902
    %v4904 = vrot.slane %v4896, %v4903
    %v4906 = vunpack.c.l.s4 1983009808
    %v4907 = vunpack.c.0.s8 %v4906
    %v4908 = vlaneseq
    %v4909 = vshrl.u32 %v4908, 7
    %v4910 = vsub.s32 %v4907, %v4909
    %v4911 = vrot.slane %v4897, %v4910
    %v4912 = vcombine.low %v4319, %v4465
    %v4913 = vcombine.high %v4319, %v4465
    %v4915 = vunpack.c.l.s4 1983009808
    %v4916 = vunpack.c.0.s8 %v4915
    %v4917 = vlaneseq
    %v4918 = vshrl.u32 %v4917, 7
    %v4919 = vsub.s32 %v4916, %v4918
    %v4920 = vrot.slane %v4912, %v4919
    %v4922 = vunpack.c.l.s4 1983009808
    %v4923 = vunpack.c.0.s8 %v4922
    %v4924 = vlaneseq
    %v4925 = vshrl.u32 %v4924, 7
    %v4926 = vsub.s32 %v4923, %v4925
    %v4927 = vrot.slane %v4913, %v4926
    %v4928 = vcombine.low %v4538, %v4684
    %v4929 = vcombine.high %v4538, %v4684
    %v4931 = vunpack.c.l.s4 1983009808
    %v4932 = vunpack.c.0.s8 %v4931
    %v4933 = vlaneseq
    %v4934 = vshrl.u32 %v4933, 7
    %v4935 = vsub.s32 %v4932, %v4934
    %v4936 = vrot.slane %v4928, %v4935
    %v4938 = vunpack.c.l.s4 1983009808
    %v4939 = vunpack.c.0.s8 %v4938
    %v4940 = vlaneseq
    %v4941 = vshrl.u32 %v4940, 7
    %v4942 = vsub.s32 %v4939, %v4941
    %v4943 = vrot.slane %v4929, %v4942
    %v4944 = vcombine.low %v4611, %v4757
    %v4945 = vcombine.high %v4611, %v4757
    %v4947 = vunpack.c.l.s4 1983009808
    %v4948 = vunpack.c.0.s8 %v4947
    %v4949 = vlaneseq
    %v4950 = vshrl.u32 %v4949, 7
    %v4951 = vsub.s32 %v4948, %v4950
    %v4952 = vrot.slane %v4944, %v4951
    %v4954 = vunpack.c.l.s4 1983009808
    %v4955 = vunpack.c.0.s8 %v4954
    %v4956 = vlaneseq
    %v4957 = vshrl.u32 %v4956, 7
    %v4958 = vsub.s32 %v4955, %v4957
    %v4959 = vrot.slane %v4945, %v4958
    %v4960 = vcombine.low %v4904, %v4920
    %v4961 = vcombine.high %v4904, %v4920
    %v4963 = vunpack.c.l.s4 1934713408
    %v4964 = vunpack.c.0.s8 %v4963
    %v4965 = vlaneseq
    %v4966 = vshrl.u32 %v4965, 7
    %v4967 = vsub.s32 %v4964, %v4966
    %v4968 = vrot.slane %v4960, %v4967
    %v4970 = vunpack.c.l.s4 1934713408
    %v4971 = vunpack.c.0.s8 %v4970
    %v4972 = vlaneseq
    %v4973 = vshrl.u32 %v4972, 7
    %v4974 = vsub.s32 %v4971, %v4973
    %v4975 = vrot.slane %v4961, %v4974
    %v4976 = vcombine.low %v4911, %v4927
    %v4977 = vcombine.high %v4911, %v4927
    %v4979 = vunpack.c.l.s4 1934713408
    %v4980 = vunpack.c.0.s8 %v4979
    %v4981 = vlaneseq
    %v4982 = vshrl.u32 %v4981, 7
    %v4983 = vsub.s32 %v4980, %v4982
    %v4984 = vrot.slane %v4976, %v4983
    %v4986 = vunpack.c.l.s4 1934713408
    %v4987 = vunpack.c.0.s8 %v4986
    %v4988 = vlaneseq
    %v4989 = vshrl.u32 %v4988, 7
    %v4990 = vsub.s32 %v4987, %v4989
    %v4991 = vrot.slane %v4977, %v4990
    %v4992 = vcombine.low %v4936, %v4952
    %v4993 = vcombine.high %v4936, %v4952
    %v4995 = vunpack.c.l.s4 1934713408
    %v4996 = vunpack.c.0.s8 %v4995
    %v4997 = vlaneseq
    %v4998 = vshrl.u32 %v4997, 7
    %v4999 = vsub.s32 %v4996, %v4998
    %v5000 = vrot.slane %v4992, %v4999
    %v5002 = vunpack.c.l.s4 1934713408
    %v5003 = vunpack.c.0.s8 %v5002
    %v5004 = vlaneseq
    %v5005 = vshrl.u32 %v5004, 7
    %v5006 = vsub.s32 %v5003, %v5005
    %v5007 = vrot.slane %v4993, %v5006
    %v5008 = vcombine.low %v4943, %v4959
    %v5009 = vcombine.high %v4943, %v4959
    %v5011 = vunpack.c.l.s4 1934713408
    %v5012 = vunpack.c.0.s8 %v5011
    %v5013 = vlaneseq
    %v5014 = vshrl.u32 %v5013, 7
    %v5015 = vsub.s32 %v5012, %v5014
    %v5016 = vrot.slane %v5008, %v5015
    %v5018 = vunpack.c.l.s4 1934713408
    %v5019 = vunpack.c.0.s8 %v5018
    %v5020 = vlaneseq
    %v5021 = vshrl.u32 %v5020, 7
    %v5022 = vsub.s32 %v5019, %v5021
    %v5023 = vrot.slane %v5009, %v5022
    %v5024 = vcombine.low %v4968, %v5000
    %v5025 = vcombine.high %v4968, %v5000
    %v5026 = vcombine.low %v4975, %v5007
    %v5027 = vcombine.high %v4975, %v5007
    %v5028 = vcombine.low %v4984, %v5016
    %v5029 = vcombine.high %v4984, %v5016
    %v5030 = vcombine.low %v4991, %v5023
    %v5031 = vcombine.high %v4991, %v5023
    %v5032 = vcombine.low %v4888, %v4890
    %v5033 = vcombine.high %v4888, %v4890
    %v5035 = vunpack.c.l.s4 1983009808
    %v5036 = vunpack.c.0.s8 %v5035
    %v5037 = vlaneseq
    %v5038 = vshrl.u32 %v5037, 7
    %v5039 = vsub.s32 %v5036, %v5038
    %v5040 = vrot.slane %v5032, %v5039
    %v5042 = vunpack.c.l.s4 1983009808
    %v5043 = vunpack.c.0.s8 %v5042
    %v5044 = vlaneseq
    %v5045 = vshrl.u32 %v5044, 7
    %v5046 = vsub.s32 %v5043, %v5045
    %v5047 = vrot.slane %v5033, %v5046
    %v5048 = vcombine.low %v4889, %v4891
    %v5049 = vcombine.high %v4889, %v4891
    %v5051 = vunpack.c.l.s4 1983009808
    %v5052 = vunpack.c.0.s8 %v5051
    %v5053 = vlaneseq
    %v5054 = vshrl.u32 %v5053, 7
    %v5055 = vsub.s32 %v5052, %v5054
    %v5056 = vrot.slane %v5048, %v5055
    %v5058 = vunpack.c.l.s4 1983009808
    %v5059 = vunpack.c.0.s8 %v5058
    %v5060 = vlaneseq
    %v5061 = vshrl.u32 %v5060, 7
    %v5062 = vsub.s32 %v5059, %v5061
    %v5063 = vrot.slane %v5049, %v5062
    %v5064 = vcombine.low %v4892, %v4894
    %v5065 = vcombine.high %v4892, %v4894
    %v5067 = vunpack.c.l.s4 1983009808
    %v5068 = vunpack.c.0.s8 %v5067
    %v5069 = vlaneseq
    %v5070 = vshrl.u32 %v5069, 7
    %v5071 = vsub.s32 %v5068, %v5070
    %v5072 = vrot.slane %v5064, %v5071
    %v5074 = vunpack.c.l.s4 1983009808
    %v5075 = vunpack.c.0.s8 %v5074
    %v5076 = vlaneseq
    %v5077 = vshrl.u32 %v5076, 7
    %v5078 = vsub.s32 %v5075, %v5077
    %v5079 = vrot.slane %v5065, %v5078
    %v5080 = vcombine.low %v4893, %v4895
    %v5081 = vcombine.high %v4893, %v4895
    %v5083 = vunpack.c.l.s4 1983009808
    %v5084 = vunpack.c.0.s8 %v5083
    %v5085 = vlaneseq
    %v5086 = vshrl.u32 %v5085, 7
    %v5087 = vsub.s32 %v5084, %v5086
    %v5088 = vrot.slane %v5080, %v5087
    %v5090 = vunpack.c.l.s4 1983009808
    %v5091 = vunpack.c.0.s8 %v5090
    %v5092 = vlaneseq
    %v5093 = vshrl.u32 %v5092, 7
    %v5094 = vsub.s32 %v5091, %v5093
    %v5095 = vrot.slane %v5081, %v5094
    %v5096 = vcombine.low %v5040, %v5056
    %v5097 = vcombine.high %v5040, %v5056
    %v5099 = vunpack.c.l.s4 1934713408
    %v5100 = vunpack.c.0.s8 %v5099
    %v5101 = vlaneseq
    %v5102 = vshrl.u32 %v5101, 7
    %v5103 = vsub.s32 %v5100, %v5102
    %v5104 = vrot.slane %v5096, %v5103
    %v5106 = vunpack.c.l.s4 1934713408
    %v5107 = vunpack.c.0.s8 %v5106
    %v5108 = vlaneseq
    %v5109 = vshrl.u32 %v5108, 7
    %v5110 = vsub.s32 %v5107, %v5109
    %v5111 = vrot.slane %v5097, %v5110
    %v5112 = vcombine.low %v5047, %v5063
    %v5113 = vcombine.high %v5047, %v5063
    %v5115 = vunpack.c.l.s4 1934713408
    %v5116 = vunpack.c.0.s8 %v5115
    %v5117 = vlaneseq
    %v5118 = vshrl.u32 %v5117, 7
    %v5119 = vsub.s32 %v5116, %v5118
    %v5120 = vrot.slane %v5112, %v5119
    %v5122 = vunpack.c.l.s4 1934713408
    %v5123 = vunpack.c.0.s8 %v5122
    %v5124 = vlaneseq
    %v5125 = vshrl.u32 %v5124, 7
    %v5126 = vsub.s32 %v5123, %v5125
    %v5127 = vrot.slane %v5113, %v5126
    %v5128 = vcombine.low %v5072, %v5088
    %v5129 = vcombine.high %v5072, %v5088
    %v5131 = vunpack.c.l.s4 1934713408
    %v5132 = vunpack.c.0.s8 %v5131
    %v5133 = vlaneseq
    %v5134 = vshrl.u32 %v5133, 7
    %v5135 = vsub.s32 %v5132, %v5134
    %v5136 = vrot.slane %v5128, %v5135
    %v5138 = vunpack.c.l.s4 1934713408
    %v5139 = vunpack.c.0.s8 %v5138
    %v5140 = vlaneseq
    %v5141 = vshrl.u32 %v5140, 7
    %v5142 = vsub.s32 %v5139, %v5141
    %v5143 = vrot.slane %v5129, %v5142
    %v5144 = vcombine.low %v5079, %v5095
    %v5145 = vcombine.high %v5079, %v5095
    %v5147 = vunpack.c.l.s4 1934713408
    %v5148 = vunpack.c.0.s8 %v5147
    %v5149 = vlaneseq
    %v5150 = vshrl.u32 %v5149, 7
    %v5151 = vsub.s32 %v5148, %v5150
    %v5152 = vrot.slane %v5144, %v5151
    %v5154 = vunpack.c.l.s4 1934713408
    %v5155 = vunpack.c.0.s8 %v5154
    %v5156 = vlaneseq
    %v5157 = vshrl.u32 %v5156, 7
    %v5158 = vsub.s32 %v5155, %v5157
    %v5159 = vrot.slane %v5145, %v5158
    %v5160 = vcombine.low %v5104, %v5136
    %v5161 = vcombine.high %v5104, %v5136
    %v5162 = vcombine.low %v5111, %v5143
    %v5163 = vcombine.high %v5111, %v5143
    %v5164 = vcombine.low %v5120, %v5152
    %v5165 = vcombine.high %v5120, %v5152
    %v5166 = vcombine.low %v5127, %v5159
    %v5167 = vcombine.high %v5127, %v5159
    %v5168 = vcombine.low %v5024, %v5026
    %v5169 = vcombine.high %v5024, %v5026
    %v5171 = vunpack.c.l.s4 1983009808
    %v5172 = vunpack.c.0.s8 %v5171
    %v5173 = vlaneseq
    %v5174 = vshrl.u32 %v5173, 7
    %v5175 = vsub.s32 %v5172, %v5174
    %v5176 = vrot.slane %v5168, %v5175
    %v5178 = vunpack.c.l.s4 1983009808
    %v5179 = vunpack.c.0.s8 %v5178
    %v5180 = vlaneseq
    %v5181 = vshrl.u32 %v5180, 7
    %v5182 = vsub.s32 %v5179, %v5181
    %v5183 = vrot.slane %v5169, %v5182
    %v5184 = vcombine.low %v5025, %v5027
    %v5185 = vcombine.high %v5025, %v5027
    %v5187 = vunpack.c.l.s4 1983009808
    %v5188 = vunpack.c.0.s8 %v5187
    %v5189 = vlaneseq
    %v5190 = vshrl.u32 %v5189, 7
    %v5191 = vsub.s32 %v5188, %v5190
    %v5192 = vrot.slane %v5184, %v5191
    %v5194 = vunpack.c.l.s4 1983009808
    %v5195 = vunpack.c.0.s8 %v5194
    %v5196 = vlaneseq
    %v5197 = vshrl.u32 %v5196, 7
    %v5198 = vsub.s32 %v5195, %v5197
    %v5199 = vrot.slane %v5185, %v5198
    %v5200 = vcombine.low %v5028, %v5030
    %v5201 = vcombine.high %v5028, %v5030
    %v5203 = vunpack.c.l.s4 1983009808
    %v5204 = vunpack.c.0.s8 %v5203
    %v5205 = vlaneseq
    %v5206 = vshrl.u32 %v5205, 7
    %v5207 = vsub.s32 %v5204, %v5206
    %v5208 = vrot.slane %v5200, %v5207
    %v5210 = vunpack.c.l.s4 1983009808
    %v5211 = vunpack.c.0.s8 %v5210
    %v5212 = vlaneseq
    %v5213 = vshrl.u32 %v5212, 7
    %v5214 = vsub.s32 %v5211, %v5213
    %v5215 = vrot.slane %v5201, %v5214
    %v5216 = vcombine.low %v5029, %v5031
    %v5217 = vcombine.high %v5029, %v5031
    %v5219 = vunpack.c.l.s4 1983009808
    %v5220 = vunpack.c.0.s8 %v5219
    %v5221 = vlaneseq
    %v5222 = vshrl.u32 %v5221, 7
    %v5223 = vsub.s32 %v5220, %v5222
    %v5224 = vrot.slane %v5216, %v5223
    %v5226 = vunpack.c.l.s4 1983009808
    %v5227 = vunpack.c.0.s8 %v5226
    %v5228 = vlaneseq
    %v5229 = vshrl.u32 %v5228, 7
    %v5230 = vsub.s32 %v5227, %v5229
    %v5231 = vrot.slane %v5217, %v5230
    %v5232 = vcombine.low %v5176, %v5192
    %v5233 = vcombine.high %v5176, %v5192
    %v5235 = vunpack.c.l.s4 1934713408
    %v5236 = vunpack.c.0.s8 %v5235
    %v5237 = vlaneseq
    %v5238 = vshrl.u32 %v5237, 7
    %v5239 = vsub.s32 %v5236, %v5238
    %v5240 = vrot.slane %v5232, %v5239
    %v5242 = vunpack.c.l.s4 1934713408
    %v5243 = vunpack.c.0.s8 %v5242
    %v5244 = vlaneseq
    %v5245 = vshrl.u32 %v5244, 7
    %v5246 = vsub.s32 %v5243, %v5245
    %v5247 = vrot.slane %v5233, %v5246
    %v5248 = vcombine.low %v5183, %v5199
    %v5249 = vcombine.high %v5183, %v5199
    %v5251 = vunpack.c.l.s4 1934713408
    %v5252 = vunpack.c.0.s8 %v5251
    %v5253 = vlaneseq
    %v5254 = vshrl.u32 %v5253, 7
    %v5255 = vsub.s32 %v5252, %v5254
    %v5256 = vrot.slane %v5248, %v5255
    %v5258 = vunpack.c.l.s4 1934713408
    %v5259 = vunpack.c.0.s8 %v5258
    %v5260 = vlaneseq
    %v5261 = vshrl.u32 %v5260, 7
    %v5262 = vsub.s32 %v5259, %v5261
    %v5263 = vrot.slane %v5249, %v5262
    %v5264 = vcombine.low %v5208, %v5224
    %v5265 = vcombine.high %v5208, %v5224
    %v5267 = vunpack.c.l.s4 1934713408
    %v5268 = vunpack.c.0.s8 %v5267
    %v5269 = vlaneseq
    %v5270 = vshrl.u32 %v5269, 7
    %v5271 = vsub.s32 %v5268, %v5270
    %v5272 = vrot.slane %v5264, %v5271
    %v5274 = vunpack.c.l.s4 1934713408
    %v5275 = vunpack.c.0.s8 %v5274
    %v5276 = vlaneseq
    %v5277 = vshrl.u32 %v5276, 7
    %v5278 = vsub.s32 %v5275, %v5277
    %v5279 = vrot.slane %v5265, %v5278
    %v5280 = vcombine.low %v5215, %v5231
    %v5281 = vcombine.high %v5215, %v5231
    %v5283 = vunpack.c.l.s4 1934713408
    %v5284 = vunpack.c.0.s8 %v5283
    %v5285 = vlaneseq
    %v5286 = vshrl.u32 %v5285, 7
    %v5287 = vsub.s32 %v5284, %v5286
    %v5288 = vrot.slane %v5280, %v5287
    %v5290 = vunpack.c.l.s4 1934713408
    %v5291 = vunpack.c.0.s8 %v5290
    %v5292 = vlaneseq
    %v5293 = vshrl.u32 %v5292, 7
    %v5294 = vsub.s32 %v5291, %v5293
    %v5295 = vrot.slane %v5281, %v5294
    %v5296 = vcombine.low %v5240, %v5272
    %v5297 = vcombine.high %v5240, %v5272
    %v5298 = vcombine.low %v5247, %v5279
    %v5299 = vcombine.high %v5247, %v5279
    %v5300 = vcombine.low %v5256, %v5288
    %v5301 = vcombine.high %v5256, %v5288
    %v5302 = vcombine.low %v5263, %v5295
    %v5303 = vcombine.high %v5263, %v5295
    %5306 = vrot.lane.b32.xlu0 %v5161, 4
    %v5307 = vpop.permute.xlu0 %5306
    %5308 = vrot.lane.b32.xlu0 %v5297, 4
    %v5309 = vpop.permute.xlu0 %5308
    %5314 = vrot.lane.b32.xlu0 %v5162, 8
    %v5315 = vpop.permute.xlu0 %5314
    %5316 = vrot.lane.b32.xlu0 %v5298, 8
    %v5317 = vpop.permute.xlu0 %5316
    %5322 = vrot.lane.b32.xlu0 %v5163, 12
    %v5323 = vpop.permute.xlu0 %5322
    %5324 = vrot.lane.b32.xlu0 %v5299, 12
    %v5325 = vpop.permute.xlu0 %5324
    %5330 = vrot.lane.b32.xlu0 %v5164, 16
    %v5331 = vpop.permute.xlu0 %5330
    %5332 = vrot.lane.b32.xlu0 %v5300, 16
    %v5333 = vpop.permute.xlu0 %5332
    %5338 = vrot.lane.b32.xlu0 %v5165, 20
    %v5339 = vpop.permute.xlu0 %5338
    %5340 = vrot.lane.b32.xlu0 %v5301, 20
    %v5341 = vpop.permute.xlu0 %5340
    %5346 = vrot.lane.b32.xlu0 %v5166, 24
    %v5347 = vpop.permute.xlu0 %5346
    %5348 = vrot.lane.b32.xlu0 %v5302, 24
    %v5349 = vpop.permute.xlu0 %5348
    %5354 = vrot.lane.b32.xlu0 %v5167, 28
    %v5355 = vpop.permute.xlu0 %5354
    %5356 = vrot.lane.b32.xlu0 %v5303, 28
    %v5357 = vpop.permute.xlu0 %5356
    %v5360 = vsel %vm2182, %v5160, %v5307
    %v5361 = vsel %vm2182, %v5296, %v5309
    %v5362 = vsel %vm3399, %v5360, %v5315
    %v5363 = vsel %vm3399, %v5361, %v5317
    %vm5364 = vcmask 97280
    %v5365 = vsel %vm5364, %v5362, %v5323
    %v5366 = vsel %vm5364, %v5363, %v5325
    %vm5367 = vcmask 130048
    %v5368 = vsel %vm5367, %v5365, %v5331
    %v5369 = vsel %vm5367, %v5366, %v5333
    %vm5370 = vcmask 162816
    %v5371 = vsel %vm5370, %v5368, %v5339
    %v5372 = vsel %vm5370, %v5369, %v5341
    %vm5373 = vcmask 195584
    %v5374 = vsel %vm5373, %v5371, %v5347
    %v5375 = vsel %vm5373, %v5372, %v5349
    %vm5376 = vcmask 228352
    %v5377 = vsel %vm5376, %v5374, %v5355
    %v5378 = vsel %vm5376, %v5375, %v5357
    %v5379 = vld [vmem:[%s9] sm:$0xff]
    %v5380 = vld [vmem:[%s9 + $0x8] sm:$0xff]
    %v5381 = vld [vmem:[%s9 + $0x10] sm:$0xff]
    %v5382 = vld [vmem:[%s9 + $0x18] sm:$0xff]
    %v5383 = vld [vmem:[%s10] sm:$0x1]
    %v5385 = vlaneseq
    %v5386 = vshrl.u32 %v5385, 7
    %v5387 = vsub.s32 0, %v5386
    %v5388 = vrot.slane %v5383, %v5387
    %v5391 = vsel %vm152, %v5377, 0
    %v5394 = vsel %vm152, %v5378, 0
    %5396 = vmatprep.subr.mxu0 0.0
    %5397 = vmatpush1.msra.mxu0 %v5379
    %5398 = vmatprep.subr.mxu0 0.0
    %5399 = vmatpush1.msra.mxu0 %v5380
    %5400 = vmatprep.subr.mxu0 0.0
    %5401 = vmatpush1.msra.mxu0 %v5381
    %5402 = vmatprep.subr.mxu0 0.0
    %5403 = vmatpush1.msra.mxu0 %v5382
    %5404 = vmatprep.subr.mxu0 0.0
    %5405 = vmatpush1.msra.mxu0 0.0
    %5406 = vmatprep.subr.mxu0 0.0
    %5407 = vmatpush1.msra.mxu0 0.0
    %5408 = vmatprep.subr.mxu0 0.0
    %5409 = vmatpush1.msra.mxu0 0.0
    %5410 = vmatprep.subr.mxu0 0.0
    %5411 = vmatpush1.msra.mxu0 0.0
    %5412 = vmatprep.subr.mxu0 0.0
    %5413 = vmatpush1.msra.mxu0 0.0
    %5414 = vmatprep.subr.mxu0 0.0
    %5415 = vmatpush1.msra.mxu0 0.0
    %5416 = vmatprep.subr.mxu0 0.0
    %5417 = vmatpush1.msra.mxu0 0.0
    %5418 = vmatprep.subr.mxu0 0.0
    %5419 = vmatpush1.msra.mxu0 0.0
    %5420 = vmatprep.subr.mxu0 0.0
    %5421 = vmatpush1.msra.mxu0 0.0
    %5422 = vmatprep.subr.mxu0 0.0
    %5423 = vmatpush1.msra.mxu0 0.0
    %5424 = vmatprep.subr.mxu0 0.0
    %5425 = vmatpush1.msra.mxu0 0.0
    %5426 = vmatprep.subr.mxu0 0.0
    %5427 = vmatpush1.msra.mxu0 0.0
    %5428 = vmatprep.subr.mxu0 0.0
    %5429 = vmatpush1.msra.mxu0 0.0
    %5430 = vmatprep.subr.mxu0 0.0
    %5431 = vmatpush1.msra.mxu0 0.0
    %5432 = vmatprep.subr.mxu0 0.0
    %5433 = vmatpush1.msra.mxu0 0.0
    %5434 = vmatprep.subr.mxu0 0.0
    %5435 = vmatpush1.msra.mxu0 0.0
    %5436 = vmatprep.subr.mxu0 0.0
    %5437 = vmatpush1.msra.mxu0 0.0
    %5438 = vmatprep.subr.mxu0 0.0
    %5439 = vmatpush1.msra.mxu0 0.0
    %5440 = vmatprep.subr.mxu0 0.0
    %5441 = vmatpush1.msra.mxu0 0.0
    %5442 = vmatprep.subr.mxu0 0.0
    %5443 = vmatpush1.msra.mxu0 0.0
    %5444 = vmatprep.subr.mxu0 0.0
    %5445 = vmatpush1.msra.mxu0 0.0
    %5446 = vmatprep.subr.mxu0 0.0
    %5447 = vmatpush1.msra.mxu0 0.0
    %5448 = vmatprep.subr.mxu0 0.0
    %5449 = vmatpush1.msra.mxu0 0.0
    %5450 = vmatprep.subr.mxu0 0.0
    %5451 = vmatpush1.msra.mxu0 0.0
    %5452 = vmatprep.subr.mxu0 0.0
    %5453 = vmatpush1.msra.mxu0 0.0
    %5454 = vmatprep.subr.mxu0 0.0
    %5455 = vmatpush1.msra.mxu0 0.0
    %5456 = vmatprep.subr.mxu0 0.0
    %5457 = vmatpush1.msra.mxu0 0.0
    %5458 = vmatprep.subr.mxu0 0.0
    %5459 = vmatpush1.msra.mxu0 0.0
    %5460 = vmatprep.mubr.f32.mxu0 0.0
    %5461 = vmatmul.mubr.f32.gmra.mrb[0].mxu0 %v5391
    %v5462 = vpop.f32.mrb[0].mxu0
    %v5463 = vadd.f32 %v5388, %v5462
    %v5464 = vpop.f32.mrb[0].mxu0
    %5465 = vmatprep.mubr.f32.mxu0 0.0
    %5466 = vmatmul.mubr.f32.gmra.mrb[0].mxu0 %v5394
    %v5467 = vpop.f32.mrb[0].mxu0
    %v5468 = vadd.f32 %v5388, %v5467
    %v5469 = vpop.f32.mrb[0].mxu0
    %5470 = vdwg.mxu0
    %5471 = vst.msk [vmem:[#allocation14] sm:$0xff] %vm152, %v5463
    %5472 = vst.msk [vmem:[#allocation14 + $0x8] sm:$0xff] %vm152, %v5468
    // Predicated region
    $region74: #{tpu_custom_call.1} parent=1 // pred_check
      _
    $region75: #{tpu_custom_call.1} parent=1 // pred_check_branch
      %5474 = sbr.rel (0) target = $region77
    $region76: #{tpu_custom_call.1} parent=1 // pred_region
      %s5476 = ssub.s32 256, 256
      %5477 = vsyncadd [#allocation4], %s5476
      %s5478 = sshll.u32 [#allocation14], 4
      %s5479 = int_to_ptr.vmem [resolvable:$true] %s5478
      %5484 = dma.vmem_to_hbm [thread:$0]  %s5479, 256, %s11, [#allocation4], 128, 128, 8
    $region77: #{tpu_custom_call.1} parent=1 // pred_fallthru
      _
    // Predicated region
    $region78: #{tpu_custom_call.1} parent=1 // pred_check
      _
    $region79: #{tpu_custom_call.1} parent=1 // pred_check_branch
      %5486 = sbr.rel (0) target = $region81
    $region80: #{tpu_custom_call.1} parent=1 // pred_region
      %s5488 = ssub.s32 2048, 2048
      %5489 = vsyncadd [#allocation16], %s5488
      %s5490 = sshll.u32 [#allocation15], 4
      %s5491 = int_to_ptr.vmem [resolvable:$true] %s5490
      %5496 = dma.vmem_to_hbm [thread:$0]  %s5491, 2048, %s12, [#allocation16], 128, 128, 8
    $region81: #{tpu_custom_call.1} parent=1 // pred_fallthru
      _
    // Predicated region
    $region82: #{tpu_custom_call.1} parent=1 // pred_check
      _
    $region83: #{tpu_custom_call.1} parent=1 // pred_check_branch
      %5498 = sbr.rel (0) target = $region85
    $region84: #{tpu_custom_call.1} parent=1 // pred_region
      %5499 = dma.done [#allocation4], 256
    $region85: #{tpu_custom_call.1} parent=1 // pred_fallthru
      _
    // Predicated region
    $region86: #{tpu_custom_call.1} parent=1 // pred_check
      _
    $region87: #{tpu_custom_call.1} parent=1 // pred_check_branch
      %5501 = sbr.rel (0) target = $region89
    $region88: #{tpu_custom_call.1} parent=1 // pred_region
      %5502 = dma.done [#allocation16], 2048
    $region89: #{tpu_custom_call.1} parent=1 // pred_fallthru
      _
    %5503 = vsyncpa [#allocation3], 1
    %5504 = vsyncpa [#allocation6], 1
    %5505 = vsyncpa [#allocation9], 1
    %5506 = vsyncpa [#allocation12], 1
    %5507 = vsyncpa [#allocation4], 1
    %5508 = vsyncpa [#allocation16], 1

// kernel: tpu_custom_call.1
$region0: #{tpu_custom_call.1}
  #allocation0 [shape = 'u32[]', space=smem, size = 0x4, offset = 0x4, fixed_abs, tag = 'smem constant byte address 0x4 - core index']
  #allocation1 [shape = 'u32[144,128]{1,0:T(1,128)}', space=vmem, size = 0x12000, scoped, tag = 'internal scratch']
  %s0 = inlined_call_operand.hbm [shape: f32[2,8,32], index: 0, kind: input, shape index: {}]
  %s1 = inlined_call_operand.hbm [shape: f32[2,8,32], index: 1, kind: input, shape index: {}]
  %s2 = inlined_call_operand.hbm [shape: f32[2,8,32], index: 2, kind: input, shape index: {}]
  %s3 = inlined_call_operand.hbm [shape: f32[32,32], index: 3, kind: input, shape index: {}]
  %s4 = inlined_call_operand.vmem [shape: f32[1,32], index: 4, kind: input, shape index: {}]
  %s5 = inlined_call_operand.hbm [shape: f32[32,32], index: 5, kind: input, shape index: {}]
  %s6 = inlined_call_operand.vmem [shape: f32[1,32], index: 6, kind: input, shape index: {}]
  %s7 = inlined_call_operand.hbm [shape: f32[32,32], index: 7, kind: input, shape index: {}]
  %s8 = inlined_call_operand.hbm [shape: f32[1,32], index: 8, kind: input, shape index: {}]
  %s9 = inlined_call_operand.vmem [shape: f32[32,32], index: 9, kind: input, shape index: {}]
  %s10 = inlined_call_operand.vmem [shape: f32[1,32], index: 10, kind: input, shape index: {}]
  %s11 = inlined_call_operand.hbm [shape: f32[2,8,32], index: 11, kind: output, shape index: {0}]
  %s12 = inlined_call_operand.hbm [shape: f32[2,8,8,8], index: 12, kind: output, shape index: {1}]
  %13 = xla_tuple %s11, %s12
  %s14 = sld [smem:[#allocation0]]
  $region90: #{tpu_custom_call.1} parent=0
    _
  %s16 = ssub.s32 1, %s14
  %s17 = scalar_select 0, %s16, %s14
  $region1: #{tpu_custom_call.1} parent=0
    #allocation2 [shape = 'u8[8192]{0}', space=vmem, size = 0x2000, scoped, tag = 'input window, operand 0, single buffered']
    #allocation3 [shape = 's32[1]{0}', space=sflag, size = 0x4, scoped, tag = 'scoped memory for tpu_custom_call.1']
    #allocation4 [shape = 's32[1]{0}', space=sflag, size = 0x4, scoped, tag = 'scoped memory for tpu_custom_call.1']
    #allocation5 [shape = 'u8[8192]{0}', space=vmem, size = 0x2000, scoped, tag = 'input window, operand 1, single buffered']
    #allocation6 [shape = 's32[1]{0}', space=sflag, size = 0x4, scoped, tag = 'scoped memory for tpu_custom_call.1']
    #allocation7 [shape = 'u8[8192]{0}', space=vmem, size = 0x2000, scoped, tag = 'input window, operand 2, single buffered']
    #allocation8 [shape = 'u8[16384]{0}', space=vmem, size = 0x4000, scoped, tag = 'input window, operand 3, single buffered']
    #allocation9 [shape = 's32[1]{0}', space=sflag, size = 0x4, scoped, tag = 'scoped memory for tpu_custom_call.1']
    #allocation10 [shape = 'u8[16384]{0}', space=vmem, size = 0x4000, scoped, tag = 'input window, operand 5, single buffered']
    #allocation11 [shape = 'u8[16384]{0}', space=vmem, size = 0x4000, scoped, tag = 'input window, operand 7, single buffered']
    #allocation12 [shape = 's32[1]{0}', space=sflag, size = 0x4, scoped, tag = 'scoped memory for tpu_custom_call.1']
    #allocation13 [shape = 'u8[512]{0}', space=vmem, size = 0x400, scoped, tag = 'input window, operand 8, single buffered']
    #allocation14 [shape = 'u8[8192]{0}', space=vmem, size = 0x2000, scoped, tag = 'output window, operand 0, single buffered']
    #allocation15 [shape = 'u8[65536]{0}', space=vmem, size = 0x10000, scoped, tag = 'output window, operand 1, single buffered']
    #allocation16 [shape = 's32[1]{0}', space=sflag, size = 0x4, scoped, tag = 'scoped memory for tpu_custom_call.1']
    %18 = vsyncpa [#allocation3], 0
    %19 = vsyncpa [#allocation6], 0
    %20 = vsyncpa [#allocation9], 0
    %21 = vsyncpa [#allocation12], 0
    %22 = vsyncpa [#allocation4], 0
    %23 = vsyncpa [#allocation16], 0
    // Predicated region
    $region2: #{tpu_custom_call.1} parent=1 // pred_check
      _
    $region3: #{tpu_custom_call.1} parent=1 // pred_check_branch
      %25 = sbr.rel (0) target = $region5
    $region4: #{tpu_custom_call.1} parent=1 // pred_region
      %s27 = ssub.s32 256, 256
      %28 = vsyncadd [#allocation3], %s27
      %s29 = sshll.u32 [#allocation2], 4
      %s30 = int_to_ptr.vmem [resolvable:$true] %s29
      %35 = dma.hbm_to_vmem [thread:$0]  %s0, 256, %s30, [#allocation3], 128, 128, 8
    $region5: #{tpu_custom_call.1} parent=1 // pred_fallthru
      _
    // Predicated region
    $region6: #{tpu_custom_call.1} parent=1 // pred_check
      _
    $region7: #{tpu_custom_call.1} parent=1 // pred_check_branch
      %37 = sbr.rel (0) target = $region9
    $region8: #{tpu_custom_call.1} parent=1 // pred_region
      %s39 = ssub.s32 256, 256
      %40 = vsyncadd [#allocation6], %s39
      %s41 = sshll.u32 [#allocation5], 4
      %s42 = int_to_ptr.vmem [resolvable:$true] %s41
      %47 = dma.hbm_to_vmem [thread:$0]  %s1, 256, %s42, [#allocation6], 128, 128, 8
    $region9: #{tpu_custom_call.1} parent=1 // pred_fallthru
      _
    // Predicated region
    $region10: #{tpu_custom_call.1} parent=1 // pred_check
      _
    $region11: #{tpu_custom_call.1} parent=1 // pred_check_branch
      %49 = sbr.rel (0) target = $region13
    $region12: #{tpu_custom_call.1} parent=1 // pred_region
      %s51 = ssub.s32 256, 256
      %52 = vsyncadd [#allocation6], %s51
      %s53 = sshll.u32 [#allocation7], 4
      %s54 = int_to_ptr.vmem [resolvable:$true] %s53
      %59 = dma.hbm_to_vmem [thread:$0]  %s2, 256, %s54, [#allocation6], 128, 128, 8
    $region13: #{tpu_custom_call.1} parent=1 // pred_fallthru
      _
    // Predicated region
    $region14: #{tpu_custom_call.1} parent=1 // pred_check
      _
    $region15: #{tpu_custom_call.1} parent=1 // pred_check_branch
      %61 = sbr.rel (0) target = $region17
    $region16: #{tpu_custom_call.1} parent=1 // pred_region
      %s63 = ssub.s32 512, 512
      %64 = vsyncadd [#allocation9], %s63
      %s65 = sshll.u32 [#allocation8], 4
      %s66 = int_to_ptr.vmem [resolvable:$true] %s65
      %71 = dma.hbm_to_vmem [thread:$0]  %s3, 512, %s66, [#allocation9], 128, 128, 8
    $region17: #{tpu_custom_call.1} parent=1 // pred_fallthru
      _
    // Predicated region
    $region18: #{tpu_custom_call.1} parent=1 // pred_check
      _
    $region19: #{tpu_custom_call.1} parent=1 // pred_check_branch
      %73 = sbr.rel (0) target = $region21
    $region20: #{tpu_custom_call.1} parent=1 // pred_region
      _
    $region21: #{tpu_custom_call.1} parent=1 // pred_fallthru
      _
    // Predicated region
    $region22: #{tpu_custom_call.1} parent=1 // pred_check
      _
    $region23: #{tpu_custom_call.1} parent=1 // pred_check_branch
      %75 = sbr.rel (0) target = $region25
    $region24: #{tpu_custom_call.1} parent=1 // pred_region
      %s77 = ssub.s32 512, 512
      %78 = vsyncadd [#allocation9], %s77
      %s79 = sshll.u32 [#allocation10], 4
      %s80 = int_to_ptr.vmem [resolvable:$true] %s79
      %85 = dma.hbm_to_vmem [thread:$0]  %s5, 512, %s80, [#allocation9], 128, 128, 8
    $region25: #{tpu_custom_call.1} parent=1 // pred_fallthru
      _
    // Predicated region
    $region26: #{tpu_custom_call.1} parent=1 // pred_check
      _
    $region27: #{tpu_custom_call.1} parent=1 // pred_check_branch
      %87 = sbr.rel (0) target = $region29
    $region28: #{tpu_custom_call.1} parent=1 // pred_region
      _
    $region29: #{tpu_custom_call.1} parent=1 // pred_fallthru
      _
    // Predicated region
    $region30: #{tpu_custom_call.1} parent=1 // pred_check
      _
    $region31: #{tpu_custom_call.1} parent=1 // pred_check_branch
      %89 = sbr.rel (0) target = $region33
    $region32: #{tpu_custom_call.1} parent=1 // pred_region
      %s91 = ssub.s32 512, 512
      %92 = vsyncadd [#allocation12], %s91
      %s93 = sshll.u32 [#allocation11], 4
      %s94 = int_to_ptr.vmem [resolvable:$true] %s93
      %99 = dma.hbm_to_vmem [thread:$0]  %s7, 512, %s94, [#allocation12], 128, 128, 8
    $region33: #{tpu_custom_call.1} parent=1 // pred_fallthru
      _
    // Predicated region
    $region34: #{tpu_custom_call.1} parent=1 // pred_check
      _
    $region35: #{tpu_custom_call.1} parent=1 // pred_check_branch
      %101 = sbr.rel (0) target = $region37
    $region36: #{tpu_custom_call.1} parent=1 // pred_region
      %s103 = ssub.s32 16, 16
      %104 = vsyncadd [#allocation12], %s103
      %s106 = sshll.u32 [#allocation13], 4
      %s107 = int_to_ptr.vmem [resolvable:$true] %s106
      %109 = dma.hbm_to_vmem [thread:$0]  %s8, 16, %s107, [#allocation12]
    $region37: #{tpu_custom_call.1} parent=1 // pred_fallthru
      _
    // Predicated region
    $region38: #{tpu_custom_call.1} parent=1 // pred_check
      _
    $region39: #{tpu_custom_call.1} parent=1 // pred_check_branch
      %111 = sbr.rel (0) target = $region41
    $region40: #{tpu_custom_call.1} parent=1 // pred_region
      _
    $region41: #{tpu_custom_call.1} parent=1 // pred_fallthru
      _
    // Predicated region
    $region42: #{tpu_custom_call.1} parent=1 // pred_check
      _
    $region43: #{tpu_custom_call.1} parent=1 // pred_check_branch
      %113 = sbr.rel (0) target = $region45
    $region44: #{tpu_custom_call.1} parent=1 // pred_region
      _
    $region45: #{tpu_custom_call.1} parent=1 // pred_fallthru
      _
    // Predicated region
    $region46: #{tpu_custom_call.1} parent=1 // pred_check
      _
    $region47: #{tpu_custom_call.1} parent=1 // pred_check_branch
      %115 = sbr.rel (0) target = $region49
    $region48: #{tpu_custom_call.1} parent=1 // pred_region
      %116 = dma.done [#allocation3], 256
    $region49: #{tpu_custom_call.1} parent=1 // pred_fallthru
      _
    // Predicated region
    $region50: #{tpu_custom_call.1} parent=1 // pred_check
      _
    $region51: #{tpu_custom_call.1} parent=1 // pred_check_branch
      %118 = sbr.rel (0) target = $region53
    $region52: #{tpu_custom_call.1} parent=1 // pred_region
      %119 = dma.done [#allocation6], 256
    $region53: #{tpu_custom_call.1} parent=1 // pred_fallthru
      _
    // Predicated region
    $region54: #{tpu_custom_call.1} parent=1 // pred_check
      _
    $region55: #{tpu_custom_call.1} parent=1 // pred_check_branch
      %121 = sbr.rel (0) target = $region57
    $region56: #{tpu_custom_call.1} parent=1 // pred_region
      %122 = dma.done [#allocation6], 256
    $region57: #{tpu_custom_call.1} parent=1 // pred_fallthru
      _
    // Predicated region
    $region58: #{tpu_custom_call.1} parent=1 // pred_check
      _
    $region59: #{tpu_custom_call.1} parent=1 // pred_check_branch
      %124 = sbr.rel (0) target = $region61
    $region60: #{tpu_custom_call.1} parent=1 // pred_region
      %125 = dma.done [#allocation9], 512
    $region61: #{tpu_custom_call.1} parent=1 // pred_fallthru
      _
    // Predicated region
    $region62: #{tpu_custom_call.1} parent=1 // pred_check
      _
    $region63: #{tpu_custom_call.1} parent=1 // pred_check_branch
      %127 = sbr.rel (0) target = $region65
    $region64: #{tpu_custom_call.1} parent=1 // pred_region
      %128 = dma.done [#allocation9], 512
    $region65: #{tpu_custom_call.1} parent=1 // pred_fallthru
      _
    // Predicated region
    $region66: #{tpu_custom_call.1} parent=1 // pred_check
      _
    $region67: #{tpu_custom_call.1} parent=1 // pred_check_branch
      %130 = sbr.rel (0) target = $region69
    $region68: #{tpu_custom_call.1} parent=1 // pred_region
      %131 = dma.done [#allocation12], 512
    $region69: #{tpu_custom_call.1} parent=1 // pred_fallthru
      _
    // Predicated region
    $region70: #{tpu_custom_call.1} parent=1 // pred_check
      _
    $region71: #{tpu_custom_call.1} parent=1 // pred_check_branch
      %133 = sbr.rel (0) target = $region73
    $region72: #{tpu_custom_call.1} parent=1 // pred_region
      %134 = dma.done [#allocation12], 16
    $region73: #{tpu_custom_call.1} parent=1 // pred_fallthru
      _
    %v135 = vld [vmem:[#allocation2] sm:$0xff]
    %v136 = vld [vmem:[#allocation2 + $0x8] sm:$0xff]
    %v137 = vld [vmem:[#allocation5] sm:$0xff]
    %v138 = vld [vmem:[#allocation5 + $0x8] sm:$0xff]
    %v139 = vld [vmem:[#allocation7] sm:$0xff]
    %v140 = vld [vmem:[#allocation7 + $0x8] sm:$0xff]
    %v141 = vld [vmem:[#allocation8] sm:$0xff]
    %v142 = vld [vmem:[#allocation8 + $0x8] sm:$0xff]
    %v143 = vld [vmem:[#allocation8 + $0x10] sm:$0xff]
    %v144 = vld [vmem:[#allocation8 + $0x18] sm:$0xff]
    %v145 = vld [vmem:[%s4] sm:$0x1]
    %v147 = vlaneseq
    %v148 = vshrl.u32 %v147, 7
    %v149 = vsub.s32 0, %v148
    %v150 = vrot.slane %v145, %v149
    %vm152 = vcmask 261120
    %v154 = vsel %vm152, %v135, 0
    %v157 = vsel %vm152, %v136, 0
    %159 = vmatprep.subr.mxu0 0.0
    %160 = vmatpush1.msra.mxu0 %v141
    %161 = vmatprep.subr.mxu0 0.0
    %162 = vmatpush1.msra.mxu0 %v142
    %163 = vmatprep.subr.mxu0 0.0
    %164 = vmatpush1.msra.mxu0 %v143
    %165 = vmatprep.subr.mxu0 0.0
    %166 = vmatpush1.msra.mxu0 %v144
    %167 = vmatprep.subr.mxu0 0.0
    %168 = vmatpush1.msra.mxu0 0.0
    %169 = vmatprep.subr.mxu0 0.0
    %170 = vmatpush1.msra.mxu0 0.0
    %171 = vmatprep.subr.mxu0 0.0
    %172 = vmatpush1.msra.mxu0 0.0
    %173 = vmatprep.subr.mxu0 0.0
    %174 = vmatpush1.msra.mxu0 0.0
    %175 = vmatprep.subr.mxu0 0.0
    %176 = vmatpush1.msra.mxu0 0.0
    %177 = vmatprep.subr.mxu0 0.0
    %178 = vmatpush1.msra.mxu0 0.0
    %179 = vmatprep.subr.mxu0 0.0
    %180 = vmatpush1.msra.mxu0 0.0
    %181 = vmatprep.subr.mxu0 0.0
    %182 = vmatpush1.msra.mxu0 0.0
    %183 = vmatprep.subr.mxu0 0.0
    %184 = vmatpush1.msra.mxu0 0.0
    %185 = vmatprep.subr.mxu0 0.0
    %186 = vmatpush1.msra.mxu0 0.0
    %187 = vmatprep.subr.mxu0 0.0
    %188 = vmatpush1.msra.mxu0 0.0
    %189 = vmatprep.subr.mxu0 0.0
    %190 = vmatpush1.msra.mxu0 0.0
    %191 = vmatprep.subr.mxu0 0.0
    %192 = vmatpush1.msra.mxu0 0.0
    %193 = vmatprep.subr.mxu0 0.0
    %194 = vmatpush1.msra.mxu0 0.0
    %195 = vmatprep.subr.mxu0 0.0
    %196 = vmatpush1.msra.mxu0 0.0
    %197 = vmatprep.subr.mxu0 0.0
    %198 = vmatpush1.msra.mxu0 0.0
    %199 = vmatprep.subr.mxu0 0.0
    %200 = vmatpush1.msra.mxu0 0.0
    %201 = vmatprep.subr.mxu0 0.0
    %202 = vmatpush1.msra.mxu0 0.0
    %203 = vmatprep.subr.mxu0 0.0
    %204 = vmatpush1.msra.mxu0 0.0
    %205 = vmatprep.subr.mxu0 0.0
    %206 = vmatpush1.msra.mxu0 0.0
    %207 = vmatprep.subr.mxu0 0.0
    %208 = vmatpush1.msra.mxu0 0.0
    %209 = vmatprep.subr.mxu0 0.0
    %210 = vmatpush1.msra.mxu0 0.0
    %211 = vmatprep.subr.mxu0 0.0
    %212 = vmatpush1.msra.mxu0 0.0
    %213 = vmatprep.subr.mxu0 0.0
    %214 = vmatpush1.msra.mxu0 0.0
    %215 = vmatprep.subr.mxu0 0.0
    %216 = vmatpush1.msra.mxu0 0.0
    %217 = vmatprep.subr.mxu0 0.0
    %218 = vmatpush1.msra.mxu0 0.0
    %219 = vmatprep.subr.mxu0 0.0
    %220 = vmatpush1.msra.mxu0 0.0
    %221 = vmatprep.subr.mxu0 0.0
    %222 = vmatpush1.msra.mxu0 0.0
    %223 = vmatprep.mubr.f32.mxu0 0.0
    %224 = vmatmul.mubr.f32.gmra.mrb[0].mxu0 %v154
    %v225 = vpop.f32.mrb[0].mxu0
    %v226 = vadd.f32 %v150, %v225
    %v227 = vpop.f32.mrb[0].mxu0
    %228 = vmatprep.mubr.f32.mxu0 0.0
    %229 = vmatmul.mubr.f32.gmra.mrb[0].mxu0 %v157
    %v230 = vpop.f32.mrb[0].mxu0
    %v231 = vadd.f32 %v150, %v230
    %v232 = vpop.f32.mrb[0].mxu0
    %233 = vdwg.mxu0
    %v234 = vld [vmem:[#allocation10] sm:$0xff]
    %v235 = vld [vmem:[#allocation10 + $0x8] sm:$0xff]
    %v236 = vld [vmem:[#allocation10 + $0x10] sm:$0xff]
    %v237 = vld [vmem:[#allocation10 + $0x18] sm:$0xff]
    %v238 = vld [vmem:[%s6] sm:$0x1]
    %v240 = vlaneseq
    %v241 = vshrl.u32 %v240, 7
    %v242 = vsub.s32 0, %v241
    %v243 = vrot.slane %v238, %v242
    %v246 = vsel %vm152, %v137, 0
    %v249 = vsel %vm152, %v138, 0
    %251 = vmatprep.subr.mxu0 0.0
    %252 = vmatpush1.msra.mxu0 %v234
    %253 = vmatprep.subr.mxu0 0.0
    %254 = vmatpush1.msra.mxu0 %v235
    %255 = vmatprep.subr.mxu0 0.0
    %256 = vmatpush1.msra.mxu0 %v236
    %257 = vmatprep.subr.mxu0 0.0
    %258 = vmatpush1.msra.mxu0 %v237
    %259 = vmatprep.subr.mxu0 0.0
    %260 = vmatpush1.msra.mxu0 0.0
    %261 = vmatprep.subr.mxu0 0.0
    %262 = vmatpush1.msra.mxu0 0.0
    %263 = vmatprep.subr.mxu0 0.0
    %264 = vmatpush1.msra.mxu0 0.0
    %265 = vmatprep.subr.mxu0 0.0
    %266 = vmatpush1.msra.mxu0 0.0
    %267 = vmatprep.subr.mxu0 0.0
    %268 = vmatpush1.msra.mxu0 0.0
    %269 = vmatprep.subr.mxu0 0.0
    %270 = vmatpush1.msra.mxu0 0.0
    %271 = vmatprep.subr.mxu0 0.0
    %272 = vmatpush1.msra.mxu0 0.0
    %273 = vmatprep.subr.mxu0 0.0
    %274 = vmatpush1.msra.mxu0 0.0
    %275 = vmatprep.subr.mxu0 0.0
    %276 = vmatpush1.msra.mxu0 0.0
    %277 = vmatprep.subr.mxu0 0.0
    %278 = vmatpush1.msra.mxu0 0.0
    %279 = vmatprep.subr.mxu0 0.0
    %280 = vmatpush1.msra.mxu0 0.0
    %281 = vmatprep.subr.mxu0 0.0
    %282 = vmatpush1.msra.mxu0 0.0
    %283 = vmatprep.subr.mxu0 0.0
    %284 = vmatpush1.msra.mxu0 0.0
    %285 = vmatprep.subr.mxu0 0.0
    %286 = vmatpush1.msra.mxu0 0.0
    %287 = vmatprep.subr.mxu0 0.0
    %288 = vmatpush1.msra.mxu0 0.0
    %289 = vmatprep.subr.mxu0 0.0
    %290 = vmatpush1.msra.mxu0 0.0
    %291 = vmatprep.subr.mxu0 0.0
    %292 = vmatpush1.msra.mxu0 0.0
    %293 = vmatprep.subr.mxu0 0.0
    %294 = vmatpush1.msra.mxu0 0.0
    %295 = vmatprep.subr.mxu0 0.0
    %296 = vmatpush1.msra.mxu0 0.0
    %297 = vmatprep.subr.mxu0 0.0
    %298 = vmatpush1.msra.mxu0 0.0
    %299 = vmatprep.subr.mxu0 0.0
    %300 = vmatpush1.msra.mxu0 0.0
    %301 = vmatprep.subr.mxu0 0.0
    %302 = vmatpush1.msra.mxu0 0.0
    %303 = vmatprep.subr.mxu0 0.0
    %304 = vmatpush1.msra.mxu0 0.0
    %305 = vmatprep.subr.mxu0 0.0
    %306 = vmatpush1.msra.mxu0 0.0
    %307 = vmatprep.subr.mxu0 0.0
    %308 = vmatpush1.msra.mxu0 0.0
    %309 = vmatprep.subr.mxu0 0.0
    %310 = vmatpush1.msra.mxu0 0.0
    %311 = vmatprep.subr.mxu0 0.0
    %312 = vmatpush1.msra.mxu0 0.0
    %313 = vmatprep.subr.mxu0 0.0
    %314 = vmatpush1.msra.mxu0 0.0
    %315 = vmatprep.mubr.f32.mxu0 0.0
    %316 = vmatmul.mubr.f32.gmra.mrb[0].mxu0 %v246
    %v317 = vpop.f32.mrb[0].mxu0
    %v318 = vadd.f32 %v243, %v317
    %v319 = vpop.f32.mrb[0].mxu0
    %320 = vmatprep.mubr.f32.mxu0 0.0
    %321 = vmatmul.mubr.f32.gmra.mrb[0].mxu0 %v249
    %v322 = vpop.f32.mrb[0].mxu0
    %v323 = vadd.f32 %v243, %v322
    %v324 = vpop.f32.mrb[0].mxu0
    %325 = vdwg.mxu0
    %v326 = vld [vmem:[#allocation11] sm:$0xff]
    %v327 = vld [vmem:[#allocation11 + $0x8] sm:$0xff]
    %v328 = vld [vmem:[#allocation11 + $0x10] sm:$0xff]
    %v329 = vld [vmem:[#allocation11 + $0x18] sm:$0xff]
    %v330 = vld [vmem:[#allocation13] sm:$0x1]
    %v332 = vlaneseq
    %v333 = vshrl.u32 %v332, 7
    %v334 = vsub.s32 0, %v333
    %v335 = vrot.slane %v330, %v334
    %v338 = vsel %vm152, %v139, 0
    %v341 = vsel %vm152, %v140, 0
    %343 = vmatprep.subr.mxu0 0.0
    %344 = vmatpush1.msra.mxu0 %v326
    %345 = vmatprep.subr.mxu0 0.0
    %346 = vmatpush1.msra.mxu0 %v327
    %347 = vmatprep.subr.mxu0 0.0
    %348 = vmatpush1.msra.mxu0 %v328
    %349 = vmatprep.subr.mxu0 0.0
    %350 = vmatpush1.msra.mxu0 %v329
    %351 = vmatprep.subr.mxu0 0.0
    %352 = vmatpush1.msra.mxu0 0.0
    %353 = vmatprep.subr.mxu0 0.0
    %354 = vmatpush1.msra.mxu0 0.0
    %355 = vmatprep.subr.mxu0 0.0
    %356 = vmatpush1.msra.mxu0 0.0
    %357 = vmatprep.subr.mxu0 0.0
    %358 = vmatpush1.msra.mxu0 0.0
    %359 = vmatprep.subr.mxu0 0.0
    %360 = vmatpush1.msra.mxu0 0.0
    %361 = vmatprep.subr.mxu0 0.0
    %362 = vmatpush1.msra.mxu0 0.0
    %363 = vmatprep.subr.mxu0 0.0
    %364 = vmatpush1.msra.mxu0 0.0
    %365 = vmatprep.subr.mxu0 0.0
    %366 = vmatpush1.msra.mxu0 0.0
    %367 = vmatprep.subr.mxu0 0.0
    %368 = vmatpush1.msra.mxu0 0.0
    %369 = vmatprep.subr.mxu0 0.0
    %370 = vmatpush1.msra.mxu0 0.0
    %371 = vmatprep.subr.mxu0 0.0
    %372 = vmatpush1.msra.mxu0 0.0
    %373 = vmatprep.subr.mxu0 0.0
    %374 = vmatpush1.msra.mxu0 0.0
    %375 = vmatprep.subr.mxu0 0.0
    %376 = vmatpush1.msra.mxu0 0.0
    %377 = vmatprep.subr.mxu0 0.0
    %378 = vmatpush1.msra.mxu0 0.0
    %379 = vmatprep.subr.mxu0 0.0
    %380 = vmatpush1.msra.mxu0 0.0
    %381 = vmatprep.subr.mxu0 0.0
    %382 = vmatpush1.msra.mxu0 0.0
    %383 = vmatprep.subr.mxu0 0.0
    %384 = vmatpush1.msra.mxu0 0.0
    %385 = vmatprep.subr.mxu0 0.0
    %386 = vmatpush1.msra.mxu0 0.0
    %387 = vmatprep.subr.mxu0 0.0
    %388 = vmatpush1.msra.mxu0 0.0
    %389 = vmatprep.subr.mxu0 0.0
    %390 = vmatpush1.msra.mxu0 0.0
    %391 = vmatprep.subr.mxu0 0.0
    %392 = vmatpush1.msra.mxu0 0.0
    %393 = vmatprep.subr.mxu0 0.0
    %394 = vmatpush1.msra.mxu0 0.0
    %395 = vmatprep.subr.mxu0 0.0
    %396 = vmatpush1.msra.mxu0 0.0
    %397 = vmatprep.subr.mxu0 0.0
    %398 = vmatpush1.msra.mxu0 0.0
    %399 = vmatprep.subr.mxu0 0.0
    %400 = vmatpush1.msra.mxu0 0.0
    %401 = vmatprep.subr.mxu0 0.0
    %402 = vmatpush1.msra.mxu0 0.0
    %403 = vmatprep.subr.mxu0 0.0
    %404 = vmatpush1.msra.mxu0 0.0
    %405 = vmatprep.subr.mxu0 0.0
    %406 = vmatpush1.msra.mxu0 0.0
    %407 = vmatprep.mubr.f32.mxu0 0.0
    %408 = vmatmul.mubr.f32.gmra.mrb[0].mxu0 %v338
    %v409 = vpop.f32.mrb[0].mxu0
    %v410 = vadd.f32 %v335, %v409
    %v411 = vpop.f32.mrb[0].mxu0
    %412 = vmatprep.mubr.f32.mxu0 0.0
    %413 = vmatmul.mubr.f32.gmra.mrb[0].mxu0 %v341
    %v414 = vpop.f32.mrb[0].mxu0
    %v415 = vadd.f32 %v335, %v414
    %v416 = vpop.f32.mrb[0].mxu0
    %417 = vdwg.mxu0
    %420 = vrot.lane.b32.xlu0 %v226, 124
    %v421 = vpop.permute.xlu0 %420
    %422 = vrot.lane.b32.xlu0 %v231, 124
    %v423 = vpop.permute.xlu0 %422
    %426 = vrot.lane.b32.xlu0 %v226, 120
    %v427 = vpop.permute.xlu0 %426
    %428 = vrot.lane.b32.xlu0 %v231, 120
    %v429 = vpop.permute.xlu0 %428
    %432 = vrot.lane.b32.xlu0 %v226, 116
    %v433 = vpop.permute.xlu0 %432
    %434 = vrot.lane.b32.xlu0 %v231, 116
    %v435 = vpop.permute.xlu0 %434
    %438 = vrot.lane.b32.xlu0 %v226, 112
    %v439 = vpop.permute.xlu0 %438
    %440 = vrot.lane.b32.xlu0 %v231, 112
    %v441 = vpop.permute.xlu0 %440
    %444 = vrot.lane.b32.xlu0 %v226, 108
    %v445 = vpop.permute.xlu0 %444
    %446 = vrot.lane.b32.xlu0 %v231, 108
    %v447 = vpop.permute.xlu0 %446
    %450 = vrot.lane.b32.xlu0 %v226, 104
    %v451 = vpop.permute.xlu0 %450
    %452 = vrot.lane.b32.xlu0 %v231, 104
    %v453 = vpop.permute.xlu0 %452
    %456 = vrot.lane.b32.xlu0 %v226, 100
    %v457 = vpop.permute.xlu0 %456
    %458 = vrot.lane.b32.xlu0 %v231, 100
    %v459 = vpop.permute.xlu0 %458
    %v462 = vcombine.low %v226, %v427
    %v463 = vcombine.high %v226, %v427
    %v465 = vunpack.c.l.s4 1983009808
    %v466 = vunpack.c.0.s8 %v465
    %v467 = vlaneseq
    %v468 = vshrl.u32 %v467, 7
    %v469 = vsub.s32 %v466, %v468
    %v470 = vrot.slane %v462, %v469
    %v472 = vunpack.c.l.s4 1983009808
    %v473 = vunpack.c.0.s8 %v472
    %v474 = vlaneseq
    %v475 = vshrl.u32 %v474, 7
    %v476 = vsub.s32 %v473, %v475
    %v477 = vrot.slane %v463, %v476
    %v478 = vcombine.low %v421, %v433
    %v479 = vcombine.high %v421, %v433
    %v481 = vunpack.c.l.s4 1983009808
    %v482 = vunpack.c.0.s8 %v481
    %v483 = vlaneseq
    %v484 = vshrl.u32 %v483, 7
    %v485 = vsub.s32 %v482, %v484
    %v486 = vrot.slane %v478, %v485
    %v488 = vunpack.c.l.s4 1983009808
    %v489 = vunpack.c.0.s8 %v488
    %v490 = vlaneseq
    %v491 = vshrl.u32 %v490, 7
    %v492 = vsub.s32 %v489, %v491
    %v493 = vrot.slane %v479, %v492
    %v494 = vcombine.low %v439, %v451
    %v495 = vcombine.high %v439, %v451
    %v497 = vunpack.c.l.s4 1983009808
    %v498 = vunpack.c.0.s8 %v497
    %v499 = vlaneseq
    %v500 = vshrl.u32 %v499, 7
    %v501 = vsub.s32 %v498, %v500
    %v502 = vrot.slane %v494, %v501
    %v504 = vunpack.c.l.s4 1983009808
    %v505 = vunpack.c.0.s8 %v504
    %v506 = vlaneseq
    %v507 = vshrl.u32 %v506, 7
    %v508 = vsub.s32 %v505, %v507
    %v509 = vrot.slane %v495, %v508
    %v510 = vcombine.low %v445, %v457
    %v511 = vcombine.high %v445, %v457
    %v513 = vunpack.c.l.s4 1983009808
    %v514 = vunpack.c.0.s8 %v513
    %v515 = vlaneseq
    %v516 = vshrl.u32 %v515, 7
    %v517 = vsub.s32 %v514, %v516
    %v518 = vrot.slane %v510, %v517
    %v520 = vunpack.c.l.s4 1983009808
    %v521 = vunpack.c.0.s8 %v520
    %v522 = vlaneseq
    %v523 = vshrl.u32 %v522, 7
    %v524 = vsub.s32 %v521, %v523
    %v525 = vrot.slane %v511, %v524
    %v526 = vcombine.low %v470, %v486
    %v527 = vcombine.high %v470, %v486
    %v529 = vunpack.c.l.s4 1934713408
    %v530 = vunpack.c.0.s8 %v529
    %v531 = vlaneseq
    %v532 = vshrl.u32 %v531, 7
    %v533 = vsub.s32 %v530, %v532
    %v534 = vrot.slane %v526, %v533
    %v536 = vunpack.c.l.s4 1934713408
    %v537 = vunpack.c.0.s8 %v536
    %v538 = vlaneseq
    %v539 = vshrl.u32 %v538, 7
    %v540 = vsub.s32 %v537, %v539
    %v541 = vrot.slane %v527, %v540
    %v542 = vcombine.low %v477, %v493
    %v543 = vcombine.high %v477, %v493
    %v545 = vunpack.c.l.s4 1934713408
    %v546 = vunpack.c.0.s8 %v545
    %v547 = vlaneseq
    %v548 = vshrl.u32 %v547, 7
    %v549 = vsub.s32 %v546, %v548
    %v550 = vrot.slane %v542, %v549
    %v552 = vunpack.c.l.s4 1934713408
    %v553 = vunpack.c.0.s8 %v552
    %v554 = vlaneseq
    %v555 = vshrl.u32 %v554, 7
    %v556 = vsub.s32 %v553, %v555
    %v557 = vrot.slane %v543, %v556
    %v558 = vcombine.low %v502, %v518
    %v559 = vcombine.high %v502, %v518
    %v561 = vunpack.c.l.s4 1934713408
    %v562 = vunpack.c.0.s8 %v561
    %v563 = vlaneseq
    %v564 = vshrl.u32 %v563, 7
    %v565 = vsub.s32 %v562, %v564
    %v566 = vrot.slane %v558, %v565
    %v568 = vunpack.c.l.s4 1934713408
    %v569 = vunpack.c.0.s8 %v568
    %v570 = vlaneseq
    %v571 = vshrl.u32 %v570, 7
    %v572 = vsub.s32 %v569, %v571
    %v573 = vrot.slane %v559, %v572
    %v574 = vcombine.low %v509, %v525
    %v575 = vcombine.high %v509, %v525
    %v577 = vunpack.c.l.s4 1934713408
    %v578 = vunpack.c.0.s8 %v577
    %v579 = vlaneseq
    %v580 = vshrl.u32 %v579, 7
    %v581 = vsub.s32 %v578, %v580
    %v582 = vrot.slane %v574, %v581
    %v584 = vunpack.c.l.s4 1934713408
    %v585 = vunpack.c.0.s8 %v584
    %v586 = vlaneseq
    %v587 = vshrl.u32 %v586, 7
    %v588 = vsub.s32 %v585, %v587
    %v589 = vrot.slane %v575, %v588
    %v590 = vcombine.low %v534, %v566
    %v591 = vcombine.high %v534, %v566
    %v592 = vcombine.low %v541, %v573
    %v593 = vcombine.high %v541, %v573
    %v594 = vcombine.low %v550, %v582
    %v595 = vcombine.high %v550, %v582
    %v596 = vcombine.low %v557, %v589
    %v597 = vcombine.high %v557, %v589
    %v598 = vcombine.low %v231, %v429
    %v599 = vcombine.high %v231, %v429
    %v601 = vunpack.c.l.s4 1983009808
    %v602 = vunpack.c.0.s8 %v601
    %v603 = vlaneseq
    %v604 = vshrl.u32 %v603, 7
    %v605 = vsub.s32 %v602, %v604
    %v606 = vrot.slane %v598, %v605
    %v608 = vunpack.c.l.s4 1983009808
    %v609 = vunpack.c.0.s8 %v608
    %v610 = vlaneseq
    %v611 = vshrl.u32 %v610, 7
    %v612 = vsub.s32 %v609, %v611
    %v613 = vrot.slane %v599, %v612
    %v614 = vcombine.low %v423, %v435
    %v615 = vcombine.high %v423, %v435
    %v617 = vunpack.c.l.s4 1983009808
    %v618 = vunpack.c.0.s8 %v617
    %v619 = vlaneseq
    %v620 = vshrl.u32 %v619, 7
    %v621 = vsub.s32 %v618, %v620
    %v622 = vrot.slane %v614, %v621
    %v624 = vunpack.c.l.s4 1983009808
    %v625 = vunpack.c.0.s8 %v624
    %v626 = vlaneseq
    %v627 = vshrl.u32 %v626, 7
    %v628 = vsub.s32 %v625, %v627
    %v629 = vrot.slane %v615, %v628
    %v630 = vcombine.low %v441, %v453
    %v631 = vcombine.high %v441, %v453
    %v633 = vunpack.c.l.s4 1983009808
    %v634 = vunpack.c.0.s8 %v633
    %v635 = vlaneseq
    %v636 = vshrl.u32 %v635, 7
    %v637 = vsub.s32 %v634, %v636
    %v638 = vrot.slane %v630, %v637
    %v640 = vunpack.c.l.s4 1983009808
    %v641 = vunpack.c.0.s8 %v640
    %v642 = vlaneseq
    %v643 = vshrl.u32 %v642, 7
    %v644 = vsub.s32 %v641, %v643
    %v645 = vrot.slane %v631, %v644
    %v646 = vcombine.low %v447, %v459
    %v647 = vcombine.high %v447, %v459
    %v649 = vunpack.c.l.s4 1983009808
    %v650 = vunpack.c.0.s8 %v649
    %v651 = vlaneseq
    %v652 = vshrl.u32 %v651, 7
    %v653 = vsub.s32 %v650, %v652
    %v654 = vrot.slane %v646, %v653
    %v656 = vunpack.c.l.s4 1983009808
    %v657 = vunpack.c.0.s8 %v656
    %v658 = vlaneseq
    %v659 = vshrl.u32 %v658, 7
    %v660 = vsub.s32 %v657, %v659
    %v661 = vrot.slane %v647, %v660
    %v662 = vcombine.low %v606, %v622
    %v663 = vcombine.high %v606, %v622
    %v665 = vunpack.c.l.s4 1934713408
    %v666 = vunpack.c.0.s8 %v665
    %v667 = vlaneseq
    %v668 = vshrl.u32 %v667, 7
    %v669 = vsub.s32 %v666, %v668
    %v670 = vrot.slane %v662, %v669
    %v672 = vunpack.c.l.s4 1934713408
    %v673 = vunpack.c.0.s8 %v672
    %v674 = vlaneseq
    %v675 = vshrl.u32 %v674, 7
    %v676 = vsub.s32 %v673, %v675
    %v677 = vrot.slane %v663, %v676
    %v678 = vcombine.low %v613, %v629
    %v679 = vcombine.high %v613, %v629
    %v681 = vunpack.c.l.s4 1934713408
    %v682 = vunpack.c.0.s8 %v681
    %v683 = vlaneseq
    %v684 = vshrl.u32 %v683, 7
    %v685 = vsub.s32 %v682, %v684
    %v686 = vrot.slane %v678, %v685
    %v688 = vunpack.c.l.s4 1934713408
    %v689 = vunpack.c.0.s8 %v688
    %v690 = vlaneseq
    %v691 = vshrl.u32 %v690, 7
    %v692 = vsub.s32 %v689, %v691
    %v693 = vrot.slane %v679, %v692
    %v694 = vcombine.low %v638, %v654
    %v695 = vcombine.high %v638, %v654
    %v697 = vunpack.c.l.s4 1934713408
    %v698 = vunpack.c.0.s8 %v697
    %v699 = vlaneseq
    %v700 = vshrl.u32 %v699, 7
    %v701 = vsub.s32 %v698, %v700
    %v702 = vrot.slane %v694, %v701
    %v704 = vunpack.c.l.s4 1934713408
    %v705 = vunpack.c.0.s8 %v704
    %v706 = vlaneseq
    %v707 = vshrl.u32 %v706, 7
    %v708 = vsub.s32 %v705, %v707
    %v709 = vrot.slane %v695, %v708
    %v710 = vcombine.low %v645, %v661
    %v711 = vcombine.high %v645, %v661
    %v713 = vunpack.c.l.s4 1934713408
    %v714 = vunpack.c.0.s8 %v713
    %v715 = vlaneseq
    %v716 = vshrl.u32 %v715, 7
    %v717 = vsub.s32 %v714, %v716
    %v718 = vrot.slane %v710, %v717
    %v720 = vunpack.c.l.s4 1934713408
    %v721 = vunpack.c.0.s8 %v720
    %v722 = vlaneseq
    %v723 = vshrl.u32 %v722, 7
    %v724 = vsub.s32 %v721, %v723
    %v725 = vrot.slane %v711, %v724
    %v726 = vcombine.low %v670, %v702
    %v727 = vcombine.high %v670, %v702
    %v728 = vcombine.low %v677, %v709
    %v729 = vcombine.high %v677, %v709
    %v730 = vcombine.low %v686, %v718
    %v731 = vcombine.high %v686, %v718
    %v732 = vcombine.low %v693, %v725
    %v733 = vcombine.high %v693, %v725
    %v734 = vcombine.low %v590, %v592
    %v735 = vcombine.high %v590, %v592
    %v737 = vunpack.c.l.s4 1983009808
    %v738 = vunpack.c.0.s8 %v737
    %v739 = vlaneseq
    %v740 = vshrl.u32 %v739, 7
    %v741 = vsub.s32 %v738, %v740
    %v742 = vrot.slane %v734, %v741
    %v744 = vunpack.c.l.s4 1983009808
    %v745 = vunpack.c.0.s8 %v744
    %v746 = vlaneseq
    %v747 = vshrl.u32 %v746, 7
    %v748 = vsub.s32 %v745, %v747
    %v749 = vrot.slane %v735, %v748
    %v750 = vcombine.low %v591, %v593
    %v751 = vcombine.high %v591, %v593
    %v753 = vunpack.c.l.s4 1983009808
    %v754 = vunpack.c.0.s8 %v753
    %v755 = vlaneseq
    %v756 = vshrl.u32 %v755, 7
    %v757 = vsub.s32 %v754, %v756
    %v758 = vrot.slane %v750, %v757
    %v760 = vunpack.c.l.s4 1983009808
    %v761 = vunpack.c.0.s8 %v760
    %v762 = vlaneseq
    %v763 = vshrl.u32 %v762, 7
    %v764 = vsub.s32 %v761, %v763
    %v765 = vrot.slane %v751, %v764
    %v766 = vcombine.low %v594, %v596
    %v767 = vcombine.high %v594, %v596
    %v769 = vunpack.c.l.s4 1983009808
    %v770 = vunpack.c.0.s8 %v769
    %v771 = vlaneseq
    %v772 = vshrl.u32 %v771, 7
    %v773 = vsub.s32 %v770, %v772
    %v774 = vrot.slane %v766, %v773
    %v776 = vunpack.c.l.s4 1983009808
    %v777 = vunpack.c.0.s8 %v776
    %v778 = vlaneseq
    %v779 = vshrl.u32 %v778, 7
    %v780 = vsub.s32 %v777, %v779
    %v781 = vrot.slane %v767, %v780
    %v782 = vcombine.low %v595, %v597
    %v783 = vcombine.high %v595, %v597
    %v785 = vunpack.c.l.s4 1983009808
    %v786 = vunpack.c.0.s8 %v785
    %v787 = vlaneseq
    %v788 = vshrl.u32 %v787, 7
    %v789 = vsub.s32 %v786, %v788
    %v790 = vrot.slane %v782, %v789
    %v792 = vunpack.c.l.s4 1983009808
    %v793 = vunpack.c.0.s8 %v792
    %v794 = vlaneseq
    %v795 = vshrl.u32 %v794, 7
    %v796 = vsub.s32 %v793, %v795
    %v797 = vrot.slane %v783, %v796
    %v798 = vcombine.low %v742, %v758
    %v799 = vcombine.high %v742, %v758
    %v801 = vunpack.c.l.s4 1934713408
    %v802 = vunpack.c.0.s8 %v801
    %v803 = vlaneseq
    %v804 = vshrl.u32 %v803, 7
    %v805 = vsub.s32 %v802, %v804
    %v806 = vrot.slane %v798, %v805
    %v808 = vunpack.c.l.s4 1934713408
    %v809 = vunpack.c.0.s8 %v808
    %v810 = vlaneseq
    %v811 = vshrl.u32 %v810, 7
    %v812 = vsub.s32 %v809, %v811
    %v813 = vrot.slane %v799, %v812
    %v814 = vcombine.low %v749, %v765
    %v815 = vcombine.high %v749, %v765
    %v817 = vunpack.c.l.s4 1934713408
    %v818 = vunpack.c.0.s8 %v817
    %v819 = vlaneseq
    %v820 = vshrl.u32 %v819, 7
    %v821 = vsub.s32 %v818, %v820
    %v822 = vrot.slane %v814, %v821
    %v824 = vunpack.c.l.s4 1934713408
    %v825 = vunpack.c.0.s8 %v824
    %v826 = vlaneseq
    %v827 = vshrl.u32 %v826, 7
    %v828 = vsub.s32 %v825, %v827
    %v829 = vrot.slane %v815, %v828
    %v830 = vcombine.low %v774, %v790
    %v831 = vcombine.high %v774, %v790
    %v833 = vunpack.c.l.s4 1934713408
    %v834 = vunpack.c.0.s8 %v833
    %v835 = vlaneseq
    %v836 = vshrl.u32 %v835, 7
    %v837 = vsub.s32 %v834, %v836
    %v838 = vrot.slane %v830, %v837
    %v840 = vunpack.c.l.s4 1934713408
    %v841 = vunpack.c.0.s8 %v840
    %v842 = vlaneseq
    %v843 = vshrl.u32 %v842, 7
    %v844 = vsub.s32 %v841, %v843
    %v845 = vrot.slane %v831, %v844
    %v846 = vcombine.low %v781, %v797
    %v847 = vcombine.high %v781, %v797
    %v849 = vunpack.c.l.s4 1934713408
    %v850 = vunpack.c.0.s8 %v849
    %v851 = vlaneseq
    %v852 = vshrl.u32 %v851, 7
    %v853 = vsub.s32 %v850, %v852
    %v854 = vrot.slane %v846, %v853
    %v856 = vunpack.c.l.s4 1934713408
    %v857 = vunpack.c.0.s8 %v856
    %v858 = vlaneseq
    %v859 = vshrl.u32 %v858, 7
    %v860 = vsub.s32 %v857, %v859
    %v861 = vrot.slane %v847, %v860
    %v862 = vcombine.low %v806, %v838
    %v863 = vcombine.high %v806, %v838
    %v864 = vcombine.low %v813, %v845
    %v865 = vcombine.high %v813, %v845
    %v866 = vcombine.low %v822, %v854
    %v867 = vcombine.high %v822, %v854
    %v868 = vcombine.low %v829, %v861
    %v869 = vcombine.high %v829, %v861
    %v870 = vcombine.low %v726, %v728
    %v871 = vcombine.high %v726, %v728
    %v873 = vunpack.c.l.s4 1983009808
    %v874 = vunpack.c.0.s8 %v873
    %v875 = vlaneseq
    %v876 = vshrl.u32 %v875, 7
    %v877 = vsub.s32 %v874, %v876
    %v878 = vrot.slane %v870, %v877
    %v880 = vunpack.c.l.s4 1983009808
    %v881 = vunpack.c.0.s8 %v880
    %v882 = vlaneseq
    %v883 = vshrl.u32 %v882, 7
    %v884 = vsub.s32 %v881, %v883
    %v885 = vrot.slane %v871, %v884
    %v886 = vcombine.low %v727, %v729
    %v887 = vcombine.high %v727, %v729
    %v889 = vunpack.c.l.s4 1983009808
    %v890 = vunpack.c.0.s8 %v889
    %v891 = vlaneseq
    %v892 = vshrl.u32 %v891, 7
    %v893 = vsub.s32 %v890, %v892
    %v894 = vrot.slane %v886, %v893
    %v896 = vunpack.c.l.s4 1983009808
    %v897 = vunpack.c.0.s8 %v896
    %v898 = vlaneseq
    %v899 = vshrl.u32 %v898, 7
    %v900 = vsub.s32 %v897, %v899
    %v901 = vrot.slane %v887, %v900
    %v902 = vcombine.low %v730, %v732
    %v903 = vcombine.high %v730, %v732
    %v905 = vunpack.c.l.s4 1983009808
    %v906 = vunpack.c.0.s8 %v905
    %v907 = vlaneseq
    %v908 = vshrl.u32 %v907, 7
    %v909 = vsub.s32 %v906, %v908
    %v910 = vrot.slane %v902, %v909
    %v912 = vunpack.c.l.s4 1983009808
    %v913 = vunpack.c.0.s8 %v912
    %v914 = vlaneseq
    %v915 = vshrl.u32 %v914, 7
    %v916 = vsub.s32 %v913, %v915
    %v917 = vrot.slane %v903, %v916
    %v918 = vcombine.low %v731, %v733
    %v919 = vcombine.high %v731, %v733
    %v921 = vunpack.c.l.s4 1983009808
    %v922 = vunpack.c.0.s8 %v921
    %v923 = vlaneseq
    %v924 = vshrl.u32 %v923, 7
    %v925 = vsub.s32 %v922, %v924
    %v926 = vrot.slane %v918, %v925
    %v928 = vunpack.c.l.s4 1983009808
    %v929 = vunpack.c.0.s8 %v928
    %v930 = vlaneseq
    %v931 = vshrl.u32 %v930, 7
    %v932 = vsub.s32 %v929, %v931
    %v933 = vrot.slane %v919, %v932
    %v934 = vcombine.low %v878, %v894
    %v935 = vcombine.high %v878, %v894
    %v937 = vunpack.c.l.s4 1934713408
    %v938 = vunpack.c.0.s8 %v937
    %v939 = vlaneseq
    %v940 = vshrl.u32 %v939, 7
    %v941 = vsub.s32 %v938, %v940
    %v942 = vrot.slane %v934, %v941
    %v944 = vunpack.c.l.s4 1934713408
    %v945 = vunpack.c.0.s8 %v944
    %v946 = vlaneseq
    %v947 = vshrl.u32 %v946, 7
    %v948 = vsub.s32 %v945, %v947
    %v949 = vrot.slane %v935, %v948
    %v950 = vcombine.low %v885, %v901
    %v951 = vcombine.high %v885, %v901
    %v953 = vunpack.c.l.s4 1934713408
    %v954 = vunpack.c.0.s8 %v953
    %v955 = vlaneseq
    %v956 = vshrl.u32 %v955, 7
    %v957 = vsub.s32 %v954, %v956
    %v958 = vrot.slane %v950, %v957
    %v960 = vunpack.c.l.s4 1934713408
    %v961 = vunpack.c.0.s8 %v960
    %v962 = vlaneseq
    %v963 = vshrl.u32 %v962, 7
    %v964 = vsub.s32 %v961, %v963
    %v965 = vrot.slane %v951, %v964
    %v966 = vcombine.low %v910, %v926
    %v967 = vcombine.high %v910, %v926
    %v969 = vunpack.c.l.s4 1934713408
    %v970 = vunpack.c.0.s8 %v969
    %v971 = vlaneseq
    %v972 = vshrl.u32 %v971, 7
    %v973 = vsub.s32 %v970, %v972
    %v974 = vrot.slane %v966, %v973
    %v976 = vunpack.c.l.s4 1934713408
    %v977 = vunpack.c.0.s8 %v976
    %v978 = vlaneseq
    %v979 = vshrl.u32 %v978, 7
    %v980 = vsub.s32 %v977, %v979
    %v981 = vrot.slane %v967, %v980
    %v982 = vcombine.low %v917, %v933
    %v983 = vcombine.high %v917, %v933
    %v985 = vunpack.c.l.s4 1934713408
    %v986 = vunpack.c.0.s8 %v985
    %v987 = vlaneseq
    %v988 = vshrl.u32 %v987, 7
    %v989 = vsub.s32 %v986, %v988
    %v990 = vrot.slane %v982, %v989
    %v992 = vunpack.c.l.s4 1934713408
    %v993 = vunpack.c.0.s8 %v992
    %v994 = vlaneseq
    %v995 = vshrl.u32 %v994, 7
    %v996 = vsub.s32 %v993, %v995
    %v997 = vrot.slane %v983, %v996
    %v998 = vcombine.low %v942, %v974
    %v999 = vcombine.high %v942, %v974
    %v1000 = vcombine.low %v949, %v981
    %v1001 = vcombine.high %v949, %v981
    %v1002 = vcombine.low %v958, %v990
    %v1003 = vcombine.high %v958, %v990
    %v1004 = vcombine.low %v965, %v997
    %v1005 = vcombine.high %v965, %v997
    %1008 = vrot.lane.b32.xlu0 %v318, 124
    %v1009 = vpop.permute.xlu0 %1008
    %1010 = vrot.lane.b32.xlu0 %v323, 124
    %v1011 = vpop.permute.xlu0 %1010
    %1014 = vrot.lane.b32.xlu0 %v318, 120
    %v1015 = vpop.permute.xlu0 %1014
    %1016 = vrot.lane.b32.xlu0 %v323, 120
    %v1017 = vpop.permute.xlu0 %1016
    %1020 = vrot.lane.b32.xlu0 %v318, 116
    %v1021 = vpop.permute.xlu0 %1020
    %1022 = vrot.lane.b32.xlu0 %v323, 116
    %v1023 = vpop.permute.xlu0 %1022
    %1026 = vrot.lane.b32.xlu0 %v318, 112
    %v1027 = vpop.permute.xlu0 %1026
    %1028 = vrot.lane.b32.xlu0 %v323, 112
    %v1029 = vpop.permute.xlu0 %1028
    %1032 = vrot.lane.b32.xlu0 %v318, 108
    %v1033 = vpop.permute.xlu0 %1032
    %1034 = vrot.lane.b32.xlu0 %v323, 108
    %v1035 = vpop.permute.xlu0 %1034
    %1038 = vrot.lane.b32.xlu0 %v318, 104
    %v1039 = vpop.permute.xlu0 %1038
    %1040 = vrot.lane.b32.xlu0 %v323, 104
    %v1041 = vpop.permute.xlu0 %1040
    %1044 = vrot.lane.b32.xlu0 %v318, 100
    %v1045 = vpop.permute.xlu0 %1044
    %1046 = vrot.lane.b32.xlu0 %v323, 100
    %v1047 = vpop.permute.xlu0 %1046
    %v1050 = vcombine.low %v318, %v1015
    %v1051 = vcombine.high %v318, %v1015
    %v1053 = vunpack.c.l.s4 1983009808
    %v1054 = vunpack.c.0.s8 %v1053
    %v1055 = vlaneseq
    %v1056 = vshrl.u32 %v1055, 7
    %v1057 = vsub.s32 %v1054, %v1056
    %v1058 = vrot.slane %v1050, %v1057
    %v1060 = vunpack.c.l.s4 1983009808
    %v1061 = vunpack.c.0.s8 %v1060
    %v1062 = vlaneseq
    %v1063 = vshrl.u32 %v1062, 7
    %v1064 = vsub.s32 %v1061, %v1063
    %v1065 = vrot.slane %v1051, %v1064
    %v1066 = vcombine.low %v1009, %v1021
    %v1067 = vcombine.high %v1009, %v1021
    %v1069 = vunpack.c.l.s4 1983009808
    %v1070 = vunpack.c.0.s8 %v1069
    %v1071 = vlaneseq
    %v1072 = vshrl.u32 %v1071, 7
    %v1073 = vsub.s32 %v1070, %v1072
    %v1074 = vrot.slane %v1066, %v1073
    %v1076 = vunpack.c.l.s4 1983009808
    %v1077 = vunpack.c.0.s8 %v1076
    %v1078 = vlaneseq
    %v1079 = vshrl.u32 %v1078, 7
    %v1080 = vsub.s32 %v1077, %v1079
    %v1081 = vrot.slane %v1067, %v1080
    %v1082 = vcombine.low %v1027, %v1039
    %v1083 = vcombine.high %v1027, %v1039
    %v1085 = vunpack.c.l.s4 1983009808
    %v1086 = vunpack.c.0.s8 %v1085
    %v1087 = vlaneseq
    %v1088 = vshrl.u32 %v1087, 7
    %v1089 = vsub.s32 %v1086, %v1088
    %v1090 = vrot.slane %v1082, %v1089
    %v1092 = vunpack.c.l.s4 1983009808
    %v1093 = vunpack.c.0.s8 %v1092
    %v1094 = vlaneseq
    %v1095 = vshrl.u32 %v1094, 7
    %v1096 = vsub.s32 %v1093, %v1095
    %v1097 = vrot.slane %v1083, %v1096
    %v1098 = vcombine.low %v1033, %v1045
    %v1099 = vcombine.high %v1033, %v1045
    %v1101 = vunpack.c.l.s4 1983009808
    %v1102 = vunpack.c.0.s8 %v1101
    %v1103 = vlaneseq
    %v1104 = vshrl.u32 %v1103, 7
    %v1105 = vsub.s32 %v1102, %v1104
    %v1106 = vrot.slane %v1098, %v1105
    %v1108 = vunpack.c.l.s4 1983009808
    %v1109 = vunpack.c.0.s8 %v1108
    %v1110 = vlaneseq
    %v1111 = vshrl.u32 %v1110, 7
    %v1112 = vsub.s32 %v1109, %v1111
    %v1113 = vrot.slane %v1099, %v1112
    %v1114 = vcombine.low %v1058, %v1074
    %v1115 = vcombine.high %v1058, %v1074
    %v1117 = vunpack.c.l.s4 1934713408
    %v1118 = vunpack.c.0.s8 %v1117
    %v1119 = vlaneseq
    %v1120 = vshrl.u32 %v1119, 7
    %v1121 = vsub.s32 %v1118, %v1120
    %v1122 = vrot.slane %v1114, %v1121
    %v1124 = vunpack.c.l.s4 1934713408
    %v1125 = vunpack.c.0.s8 %v1124
    %v1126 = vlaneseq
    %v1127 = vshrl.u32 %v1126, 7
    %v1128 = vsub.s32 %v1125, %v1127
    %v1129 = vrot.slane %v1115, %v1128
    %v1130 = vcombine.low %v1065, %v1081
    %v1131 = vcombine.high %v1065, %v1081
    %v1133 = vunpack.c.l.s4 1934713408
    %v1134 = vunpack.c.0.s8 %v1133
    %v1135 = vlaneseq
    %v1136 = vshrl.u32 %v1135, 7
    %v1137 = vsub.s32 %v1134, %v1136
    %v1138 = vrot.slane %v1130, %v1137
    %v1140 = vunpack.c.l.s4 1934713408
    %v1141 = vunpack.c.0.s8 %v1140
    %v1142 = vlaneseq
    %v1143 = vshrl.u32 %v1142, 7
    %v1144 = vsub.s32 %v1141, %v1143
    %v1145 = vrot.slane %v1131, %v1144
    %v1146 = vcombine.low %v1090, %v1106
    %v1147 = vcombine.high %v1090, %v1106
    %v1149 = vunpack.c.l.s4 1934713408
    %v1150 = vunpack.c.0.s8 %v1149
    %v1151 = vlaneseq
    %v1152 = vshrl.u32 %v1151, 7
    %v1153 = vsub.s32 %v1150, %v1152
    %v1154 = vrot.slane %v1146, %v1153
    %v1156 = vunpack.c.l.s4 1934713408
    %v1157 = vunpack.c.0.s8 %v1156
    %v1158 = vlaneseq
    %v1159 = vshrl.u32 %v1158, 7
    %v1160 = vsub.s32 %v1157, %v1159
    %v1161 = vrot.slane %v1147, %v1160
    %v1162 = vcombine.low %v1097, %v1113
    %v1163 = vcombine.high %v1097, %v1113
    %v1165 = vunpack.c.l.s4 1934713408
    %v1166 = vunpack.c.0.s8 %v1165
    %v1167 = vlaneseq
    %v1168 = vshrl.u32 %v1167, 7
    %v1169 = vsub.s32 %v1166, %v1168
    %v1170 = vrot.slane %v1162, %v1169
    %v1172 = vunpack.c.l.s4 1934713408
    %v1173 = vunpack.c.0.s8 %v1172
    %v1174 = vlaneseq
    %v1175 = vshrl.u32 %v1174, 7
    %v1176 = vsub.s32 %v1173, %v1175
    %v1177 = vrot.slane %v1163, %v1176
    %v1178 = vcombine.low %v1122, %v1154
    %v1179 = vcombine.high %v1122, %v1154
    %v1180 = vcombine.low %v1129, %v1161
    %v1181 = vcombine.high %v1129, %v1161
    %v1182 = vcombine.low %v1138, %v1170
    %v1183 = vcombine.high %v1138, %v1170
    %v1184 = vcombine.low %v1145, %v1177
    %v1185 = vcombine.high %v1145, %v1177
    %v1186 = vcombine.low %v323, %v1017
    %v1187 = vcombine.high %v323, %v1017
    %v1189 = vunpack.c.l.s4 1983009808
    %v1190 = vunpack.c.0.s8 %v1189
    %v1191 = vlaneseq
    %v1192 = vshrl.u32 %v1191, 7
    %v1193 = vsub.s32 %v1190, %v1192
    %v1194 = vrot.slane %v1186, %v1193
    %v1196 = vunpack.c.l.s4 1983009808
    %v1197 = vunpack.c.0.s8 %v1196
    %v1198 = vlaneseq
    %v1199 = vshrl.u32 %v1198, 7
    %v1200 = vsub.s32 %v1197, %v1199
    %v1201 = vrot.slane %v1187, %v1200
    %v1202 = vcombine.low %v1011, %v1023
    %v1203 = vcombine.high %v1011, %v1023
    %v1205 = vunpack.c.l.s4 1983009808
    %v1206 = vunpack.c.0.s8 %v1205
    %v1207 = vlaneseq
    %v1208 = vshrl.u32 %v1207, 7
    %v1209 = vsub.s32 %v1206, %v1208
    %v1210 = vrot.slane %v1202, %v1209
    %v1212 = vunpack.c.l.s4 1983009808
    %v1213 = vunpack.c.0.s8 %v1212
    %v1214 = vlaneseq
    %v1215 = vshrl.u32 %v1214, 7
    %v1216 = vsub.s32 %v1213, %v1215
    %v1217 = vrot.slane %v1203, %v1216
    %v1218 = vcombine.low %v1029, %v1041
    %v1219 = vcombine.high %v1029, %v1041
    %v1221 = vunpack.c.l.s4 1983009808
    %v1222 = vunpack.c.0.s8 %v1221
    %v1223 = vlaneseq
    %v1224 = vshrl.u32 %v1223, 7
    %v1225 = vsub.s32 %v1222, %v1224
    %v1226 = vrot.slane %v1218, %v1225
    %v1228 = vunpack.c.l.s4 1983009808
    %v1229 = vunpack.c.0.s8 %v1228
    %v1230 = vlaneseq
    %v1231 = vshrl.u32 %v1230, 7
    %v1232 = vsub.s32 %v1229, %v1231
    %v1233 = vrot.slane %v1219, %v1232
    %v1234 = vcombine.low %v1035, %v1047
    %v1235 = vcombine.high %v1035, %v1047
    %v1237 = vunpack.c.l.s4 1983009808
    %v1238 = vunpack.c.0.s8 %v1237
    %v1239 = vlaneseq
    %v1240 = vshrl.u32 %v1239, 7
    %v1241 = vsub.s32 %v1238, %v1240
    %v1242 = vrot.slane %v1234, %v1241
    %v1244 = vunpack.c.l.s4 1983009808
    %v1245 = vunpack.c.0.s8 %v1244
    %v1246 = vlaneseq
    %v1247 = vshrl.u32 %v1246, 7
    %v1248 = vsub.s32 %v1245, %v1247
    %v1249 = vrot.slane %v1235, %v1248
    %v1250 = vcombine.low %v1194, %v1210
    %v1251 = vcombine.high %v1194, %v1210
    %v1253 = vunpack.c.l.s4 1934713408
    %v1254 = vunpack.c.0.s8 %v1253
    %v1255 = vlaneseq
    %v1256 = vshrl.u32 %v1255, 7
    %v1257 = vsub.s32 %v1254, %v1256
    %v1258 = vrot.slane %v1250, %v1257
    %v1260 = vunpack.c.l.s4 1934713408
    %v1261 = vunpack.c.0.s8 %v1260
    %v1262 = vlaneseq
    %v1263 = vshrl.u32 %v1262, 7
    %v1264 = vsub.s32 %v1261, %v1263
    %v1265 = vrot.slane %v1251, %v1264
    %v1266 = vcombine.low %v1201, %v1217
    %v1267 = vcombine.high %v1201, %v1217
    %v1269 = vunpack.c.l.s4 1934713408
    %v1270 = vunpack.c.0.s8 %v1269
    %v1271 = vlaneseq
    %v1272 = vshrl.u32 %v1271, 7
    %v1273 = vsub.s32 %v1270, %v1272
    %v1274 = vrot.slane %v1266, %v1273
    %v1276 = vunpack.c.l.s4 1934713408
    %v1277 = vunpack.c.0.s8 %v1276
    %v1278 = vlaneseq
    %v1279 = vshrl.u32 %v1278, 7
    %v1280 = vsub.s32 %v1277, %v1279
    %v1281 = vrot.slane %v1267, %v1280
    %v1282 = vcombine.low %v1226, %v1242
    %v1283 = vcombine.high %v1226, %v1242
    %v1285 = vunpack.c.l.s4 1934713408
    %v1286 = vunpack.c.0.s8 %v1285
    %v1287 = vlaneseq
    %v1288 = vshrl.u32 %v1287, 7
    %v1289 = vsub.s32 %v1286, %v1288
    %v1290 = vrot.slane %v1282, %v1289
    %v1292 = vunpack.c.l.s4 1934713408
    %v1293 = vunpack.c.0.s8 %v1292
    %v1294 = vlaneseq
    %v1295 = vshrl.u32 %v1294, 7
    %v1296 = vsub.s32 %v1293, %v1295
    %v1297 = vrot.slane %v1283, %v1296
    %v1298 = vcombine.low %v1233, %v1249
    %v1299 = vcombine.high %v1233, %v1249
    %v1301 = vunpack.c.l.s4 1934713408
    %v1302 = vunpack.c.0.s8 %v1301
    %v1303 = vlaneseq
    %v1304 = vshrl.u32 %v1303, 7
    %v1305 = vsub.s32 %v1302, %v1304
    %v1306 = vrot.slane %v1298, %v1305
    %v1308 = vunpack.c.l.s4 1934713408
    %v1309 = vunpack.c.0.s8 %v1308
    %v1310 = vlaneseq
    %v1311 = vshrl.u32 %v1310, 7
    %v1312 = vsub.s32 %v1309, %v1311
    %v1313 = vrot.slane %v1299, %v1312
    %v1314 = vcombine.low %v1258, %v1290
    %v1315 = vcombine.high %v1258, %v1290
    %v1316 = vcombine.low %v1265, %v1297
    %v1317 = vcombine.high %v1265, %v1297
    %v1318 = vcombine.low %v1274, %v1306
    %v1319 = vcombine.high %v1274, %v1306
    %v1320 = vcombine.low %v1281, %v1313
    %v1321 = vcombine.high %v1281, %v1313
    %v1322 = vcombine.low %v1178, %v1180
    %v1323 = vcombine.high %v1178, %v1180
    %v1325 = vunpack.c.l.s4 1983009808
    %v1326 = vunpack.c.0.s8 %v1325
    %v1327 = vlaneseq
    %v1328 = vshrl.u32 %v1327, 7
    %v1329 = vsub.s32 %v1326, %v1328
    %v1330 = vrot.slane %v1322, %v1329
    %v1332 = vunpack.c.l.s4 1983009808
    %v1333 = vunpack.c.0.s8 %v1332
    %v1334 = vlaneseq
    %v1335 = vshrl.u32 %v1334, 7
    %v1336 = vsub.s32 %v1333, %v1335
    %v1337 = vrot.slane %v1323, %v1336
    %v1338 = vcombine.low %v1179, %v1181
    %v1339 = vcombine.high %v1179, %v1181
    %v1341 = vunpack.c.l.s4 1983009808
    %v1342 = vunpack.c.0.s8 %v1341
    %v1343 = vlaneseq
    %v1344 = vshrl.u32 %v1343, 7
    %v1345 = vsub.s32 %v1342, %v1344
    %v1346 = vrot.slane %v1338, %v1345
    %v1348 = vunpack.c.l.s4 1983009808
    %v1349 = vunpack.c.0.s8 %v1348
    %v1350 = vlaneseq
    %v1351 = vshrl.u32 %v1350, 7
    %v1352 = vsub.s32 %v1349, %v1351
    %v1353 = vrot.slane %v1339, %v1352
    %v1354 = vcombine.low %v1182, %v1184
    %v1355 = vcombine.high %v1182, %v1184
    %v1357 = vunpack.c.l.s4 1983009808
    %v1358 = vunpack.c.0.s8 %v1357
    %v1359 = vlaneseq
    %v1360 = vshrl.u32 %v1359, 7
    %v1361 = vsub.s32 %v1358, %v1360
    %v1362 = vrot.slane %v1354, %v1361
    %v1364 = vunpack.c.l.s4 1983009808
    %v1365 = vunpack.c.0.s8 %v1364
    %v1366 = vlaneseq
    %v1367 = vshrl.u32 %v1366, 7
    %v1368 = vsub.s32 %v1365, %v1367
    %v1369 = vrot.slane %v1355, %v1368
    %v1370 = vcombine.low %v1183, %v1185
    %v1371 = vcombine.high %v1183, %v1185
    %v1373 = vunpack.c.l.s4 1983009808
    %v1374 = vunpack.c.0.s8 %v1373
    %v1375 = vlaneseq
    %v1376 = vshrl.u32 %v1375, 7
    %v1377 = vsub.s32 %v1374, %v1376
    %v1378 = vrot.slane %v1370, %v1377
    %v1380 = vunpack.c.l.s4 1983009808
    %v1381 = vunpack.c.0.s8 %v1380
    %v1382 = vlaneseq
    %v1383 = vshrl.u32 %v1382, 7
    %v1384 = vsub.s32 %v1381, %v1383
    %v1385 = vrot.slane %v1371, %v1384
    %v1386 = vcombine.low %v1330, %v1346
    %v1387 = vcombine.high %v1330, %v1346
    %v1389 = vunpack.c.l.s4 1934713408
    %v1390 = vunpack.c.0.s8 %v1389
    %v1391 = vlaneseq
    %v1392 = vshrl.u32 %v1391, 7
    %v1393 = vsub.s32 %v1390, %v1392
    %v1394 = vrot.slane %v1386, %v1393
    %v1396 = vunpack.c.l.s4 1934713408
    %v1397 = vunpack.c.0.s8 %v1396
    %v1398 = vlaneseq
    %v1399 = vshrl.u32 %v1398, 7
    %v1400 = vsub.s32 %v1397, %v1399
    %v1401 = vrot.slane %v1387, %v1400
    %v1402 = vcombine.low %v1337, %v1353
    %v1403 = vcombine.high %v1337, %v1353
    %v1405 = vunpack.c.l.s4 1934713408
    %v1406 = vunpack.c.0.s8 %v1405
    %v1407 = vlaneseq
    %v1408 = vshrl.u32 %v1407, 7
    %v1409 = vsub.s32 %v1406, %v1408
    %v1410 = vrot.slane %v1402, %v1409
    %v1412 = vunpack.c.l.s4 1934713408
    %v1413 = vunpack.c.0.s8 %v1412
    %v1414 = vlaneseq
    %v1415 = vshrl.u32 %v1414, 7
    %v1416 = vsub.s32 %v1413, %v1415
    %v1417 = vrot.slane %v1403, %v1416
    %v1418 = vcombine.low %v1362, %v1378
    %v1419 = vcombine.high %v1362, %v1378
    %v1421 = vunpack.c.l.s4 1934713408
    %v1422 = vunpack.c.0.s8 %v1421
    %v1423 = vlaneseq
    %v1424 = vshrl.u32 %v1423, 7
    %v1425 = vsub.s32 %v1422, %v1424
    %v1426 = vrot.slane %v1418, %v1425
    %v1428 = vunpack.c.l.s4 1934713408
    %v1429 = vunpack.c.0.s8 %v1428
    %v1430 = vlaneseq
    %v1431 = vshrl.u32 %v1430, 7
    %v1432 = vsub.s32 %v1429, %v1431
    %v1433 = vrot.slane %v1419, %v1432
    %v1434 = vcombine.low %v1369, %v1385
    %v1435 = vcombine.high %v1369, %v1385
    %v1437 = vunpack.c.l.s4 1934713408
    %v1438 = vunpack.c.0.s8 %v1437
    %v1439 = vlaneseq
    %v1440 = vshrl.u32 %v1439, 7
    %v1441 = vsub.s32 %v1438, %v1440
    %v1442 = vrot.slane %v1434, %v1441
    %v1444 = vunpack.c.l.s4 1934713408
    %v1445 = vunpack.c.0.s8 %v1444
    %v1446 = vlaneseq
    %v1447 = vshrl.u32 %v1446, 7
    %v1448 = vsub.s32 %v1445, %v1447
    %v1449 = vrot.slane %v1435, %v1448
    %v1450 = vcombine.low %v1394, %v1426
    %v1451 = vcombine.high %v1394, %v1426
    %v1452 = vcombine.low %v1401, %v1433
    %v1453 = vcombine.high %v1401, %v1433
    %v1454 = vcombine.low %v1410, %v1442
    %v1455 = vcombine.high %v1410, %v1442
    %v1456 = vcombine.low %v1417, %v1449
    %v1457 = vcombine.high %v1417, %v1449
    %v1458 = vcombine.low %v1314, %v1316
    %v1459 = vcombine.high %v1314, %v1316
    %v1461 = vunpack.c.l.s4 1983009808
    %v1462 = vunpack.c.0.s8 %v1461
    %v1463 = vlaneseq
    %v1464 = vshrl.u32 %v1463, 7
    %v1465 = vsub.s32 %v1462, %v1464
    %v1466 = vrot.slane %v1458, %v1465
    %v1468 = vunpack.c.l.s4 1983009808
    %v1469 = vunpack.c.0.s8 %v1468
    %v1470 = vlaneseq
    %v1471 = vshrl.u32 %v1470, 7
    %v1472 = vsub.s32 %v1469, %v1471
    %v1473 = vrot.slane %v1459, %v1472
    %v1474 = vcombine.low %v1315, %v1317
    %v1475 = vcombine.high %v1315, %v1317
    %v1477 = vunpack.c.l.s4 1983009808
    %v1478 = vunpack.c.0.s8 %v1477
    %v1479 = vlaneseq
    %v1480 = vshrl.u32 %v1479, 7
    %v1481 = vsub.s32 %v1478, %v1480
    %v1482 = vrot.slane %v1474, %v1481
    %v1484 = vunpack.c.l.s4 1983009808
    %v1485 = vunpack.c.0.s8 %v1484
    %v1486 = vlaneseq
    %v1487 = vshrl.u32 %v1486, 7
    %v1488 = vsub.s32 %v1485, %v1487
    %v1489 = vrot.slane %v1475, %v1488
    %v1490 = vcombine.low %v1318, %v1320
    %v1491 = vcombine.high %v1318, %v1320
    %v1493 = vunpack.c.l.s4 1983009808
    %v1494 = vunpack.c.0.s8 %v1493
    %v1495 = vlaneseq
    %v1496 = vshrl.u32 %v1495, 7
    %v1497 = vsub.s32 %v1494, %v1496
    %v1498 = vrot.slane %v1490, %v1497
    %v1500 = vunpack.c.l.s4 1983009808
    %v1501 = vunpack.c.0.s8 %v1500
    %v1502 = vlaneseq
    %v1503 = vshrl.u32 %v1502, 7
    %v1504 = vsub.s32 %v1501, %v1503
    %v1505 = vrot.slane %v1491, %v1504
    %v1506 = vcombine.low %v1319, %v1321
    %v1507 = vcombine.high %v1319, %v1321
    %v1509 = vunpack.c.l.s4 1983009808
    %v1510 = vunpack.c.0.s8 %v1509
    %v1511 = vlaneseq
    %v1512 = vshrl.u32 %v1511, 7
    %v1513 = vsub.s32 %v1510, %v1512
    %v1514 = vrot.slane %v1506, %v1513
    %v1516 = vunpack.c.l.s4 1983009808
    %v1517 = vunpack.c.0.s8 %v1516
    %v1518 = vlaneseq
    %v1519 = vshrl.u32 %v1518, 7
    %v1520 = vsub.s32 %v1517, %v1519
    %v1521 = vrot.slane %v1507, %v1520
    %v1522 = vcombine.low %v1466, %v1482
    %v1523 = vcombine.high %v1466, %v1482
    %v1525 = vunpack.c.l.s4 1934713408
    %v1526 = vunpack.c.0.s8 %v1525
    %v1527 = vlaneseq
    %v1528 = vshrl.u32 %v1527, 7
    %v1529 = vsub.s32 %v1526, %v1528
    %v1530 = vrot.slane %v1522, %v1529
    %v1532 = vunpack.c.l.s4 1934713408
    %v1533 = vunpack.c.0.s8 %v1532
    %v1534 = vlaneseq
    %v1535 = vshrl.u32 %v1534, 7
    %v1536 = vsub.s32 %v1533, %v1535
    %v1537 = vrot.slane %v1523, %v1536
    %v1538 = vcombine.low %v1473, %v1489
    %v1539 = vcombine.high %v1473, %v1489
    %v1541 = vunpack.c.l.s4 1934713408
    %v1542 = vunpack.c.0.s8 %v1541
    %v1543 = vlaneseq
    %v1544 = vshrl.u32 %v1543, 7
    %v1545 = vsub.s32 %v1542, %v1544
    %v1546 = vrot.slane %v1538, %v1545
    %v1548 = vunpack.c.l.s4 1934713408
    %v1549 = vunpack.c.0.s8 %v1548
    %v1550 = vlaneseq
    %v1551 = vshrl.u32 %v1550, 7
    %v1552 = vsub.s32 %v1549, %v1551
    %v1553 = vrot.slane %v1539, %v1552
    %v1554 = vcombine.low %v1498, %v1514
    %v1555 = vcombine.high %v1498, %v1514
    %v1557 = vunpack.c.l.s4 1934713408
    %v1558 = vunpack.c.0.s8 %v1557
    %v1559 = vlaneseq
    %v1560 = vshrl.u32 %v1559, 7
    %v1561 = vsub.s32 %v1558, %v1560
    %v1562 = vrot.slane %v1554, %v1561
    %v1564 = vunpack.c.l.s4 1934713408
    %v1565 = vunpack.c.0.s8 %v1564
    %v1566 = vlaneseq
    %v1567 = vshrl.u32 %v1566, 7
    %v1568 = vsub.s32 %v1565, %v1567
    %v1569 = vrot.slane %v1555, %v1568
    %v1570 = vcombine.low %v1505, %v1521
    %v1571 = vcombine.high %v1505, %v1521
    %v1573 = vunpack.c.l.s4 1934713408
    %v1574 = vunpack.c.0.s8 %v1573
    %v1575 = vlaneseq
    %v1576 = vshrl.u32 %v1575, 7
    %v1577 = vsub.s32 %v1574, %v1576
    %v1578 = vrot.slane %v1570, %v1577
    %v1580 = vunpack.c.l.s4 1934713408
    %v1581 = vunpack.c.0.s8 %v1580
    %v1582 = vlaneseq
    %v1583 = vshrl.u32 %v1582, 7
    %v1584 = vsub.s32 %v1581, %v1583
    %v1585 = vrot.slane %v1571, %v1584
    %v1586 = vcombine.low %v1530, %v1562
    %v1587 = vcombine.high %v1530, %v1562
    %v1588 = vcombine.low %v1537, %v1569
    %v1589 = vcombine.high %v1537, %v1569
    %v1590 = vcombine.low %v1546, %v1578
    %v1591 = vcombine.high %v1546, %v1578
    %v1592 = vcombine.low %v1553, %v1585
    %v1593 = vcombine.high %v1553, %v1585
    %1596 = vrot.lane.b32.xlu0 %v410, 124
    %v1597 = vpop.permute.xlu0 %1596
    %1598 = vrot.lane.b32.xlu0 %v415, 124
    %v1599 = vpop.permute.xlu0 %1598
    %1602 = vrot.lane.b32.xlu0 %v410, 120
    %v1603 = vpop.permute.xlu0 %1602
    %1604 = vrot.lane.b32.xlu0 %v415, 120
    %v1605 = vpop.permute.xlu0 %1604
    %1608 = vrot.lane.b32.xlu0 %v410, 116
    %v1609 = vpop.permute.xlu0 %1608
    %1610 = vrot.lane.b32.xlu0 %v415, 116
    %v1611 = vpop.permute.xlu0 %1610
    %1614 = vrot.lane.b32.xlu0 %v410, 112
    %v1615 = vpop.permute.xlu0 %1614
    %1616 = vrot.lane.b32.xlu0 %v415, 112
    %v1617 = vpop.permute.xlu0 %1616
    %1620 = vrot.lane.b32.xlu0 %v410, 108
    %v1621 = vpop.permute.xlu0 %1620
    %1622 = vrot.lane.b32.xlu0 %v415, 108
    %v1623 = vpop.permute.xlu0 %1622
    %1626 = vrot.lane.b32.xlu0 %v410, 104
    %v1627 = vpop.permute.xlu0 %1626
    %1628 = vrot.lane.b32.xlu0 %v415, 104
    %v1629 = vpop.permute.xlu0 %1628
    %1632 = vrot.lane.b32.xlu0 %v410, 100
    %v1633 = vpop.permute.xlu0 %1632
    %1634 = vrot.lane.b32.xlu0 %v415, 100
    %v1635 = vpop.permute.xlu0 %1634
    %v1638 = vcombine.low %v410, %v1603
    %v1639 = vcombine.high %v410, %v1603
    %v1641 = vunpack.c.l.s4 1983009808
    %v1642 = vunpack.c.0.s8 %v1641
    %v1643 = vlaneseq
    %v1644 = vshrl.u32 %v1643, 7
    %v1645 = vsub.s32 %v1642, %v1644
    %v1646 = vrot.slane %v1638, %v1645
    %v1648 = vunpack.c.l.s4 1983009808
    %v1649 = vunpack.c.0.s8 %v1648
    %v1650 = vlaneseq
    %v1651 = vshrl.u32 %v1650, 7
    %v1652 = vsub.s32 %v1649, %v1651
    %v1653 = vrot.slane %v1639, %v1652
    %v1654 = vcombine.low %v1597, %v1609
    %v1655 = vcombine.high %v1597, %v1609
    %v1657 = vunpack.c.l.s4 1983009808
    %v1658 = vunpack.c.0.s8 %v1657
    %v1659 = vlaneseq
    %v1660 = vshrl.u32 %v1659, 7
    %v1661 = vsub.s32 %v1658, %v1660
    %v1662 = vrot.slane %v1654, %v1661
    %v1664 = vunpack.c.l.s4 1983009808
    %v1665 = vunpack.c.0.s8 %v1664
    %v1666 = vlaneseq
    %v1667 = vshrl.u32 %v1666, 7
    %v1668 = vsub.s32 %v1665, %v1667
    %v1669 = vrot.slane %v1655, %v1668
    %v1670 = vcombine.low %v1615, %v1627
    %v1671 = vcombine.high %v1615, %v1627
    %v1673 = vunpack.c.l.s4 1983009808
    %v1674 = vunpack.c.0.s8 %v1673
    %v1675 = vlaneseq
    %v1676 = vshrl.u32 %v1675, 7
    %v1677 = vsub.s32 %v1674, %v1676
    %v1678 = vrot.slane %v1670, %v1677
    %v1680 = vunpack.c.l.s4 1983009808
    %v1681 = vunpack.c.0.s8 %v1680
    %v1682 = vlaneseq
    %v1683 = vshrl.u32 %v1682, 7
    %v1684 = vsub.s32 %v1681, %v1683
    %v1685 = vrot.slane %v1671, %v1684
    %v1686 = vcombine.low %v1621, %v1633
    %v1687 = vcombine.high %v1621, %v1633
    %v1689 = vunpack.c.l.s4 1983009808
    %v1690 = vunpack.c.0.s8 %v1689
    %v1691 = vlaneseq
    %v1692 = vshrl.u32 %v1691, 7
    %v1693 = vsub.s32 %v1690, %v1692
    %v1694 = vrot.slane %v1686, %v1693
    %v1696 = vunpack.c.l.s4 1983009808
    %v1697 = vunpack.c.0.s8 %v1696
    %v1698 = vlaneseq
    %v1699 = vshrl.u32 %v1698, 7
    %v1700 = vsub.s32 %v1697, %v1699
    %v1701 = vrot.slane %v1687, %v1700
    %v1702 = vcombine.low %v1646, %v1662
    %v1703 = vcombine.high %v1646, %v1662
    %v1705 = vunpack.c.l.s4 1934713408
    %v1706 = vunpack.c.0.s8 %v1705
    %v1707 = vlaneseq
    %v1708 = vshrl.u32 %v1707, 7
    %v1709 = vsub.s32 %v1706, %v1708
    %v1710 = vrot.slane %v1702, %v1709
    %v1712 = vunpack.c.l.s4 1934713408
    %v1713 = vunpack.c.0.s8 %v1712
    %v1714 = vlaneseq
    %v1715 = vshrl.u32 %v1714, 7
    %v1716 = vsub.s32 %v1713, %v1715
    %v1717 = vrot.slane %v1703, %v1716
    %v1718 = vcombine.low %v1653, %v1669
    %v1719 = vcombine.high %v1653, %v1669
    %v1721 = vunpack.c.l.s4 1934713408
    %v1722 = vunpack.c.0.s8 %v1721
    %v1723 = vlaneseq
    %v1724 = vshrl.u32 %v1723, 7
    %v1725 = vsub.s32 %v1722, %v1724
    %v1726 = vrot.slane %v1718, %v1725
    %v1728 = vunpack.c.l.s4 1934713408
    %v1729 = vunpack.c.0.s8 %v1728
    %v1730 = vlaneseq
    %v1731 = vshrl.u32 %v1730, 7
    %v1732 = vsub.s32 %v1729, %v1731
    %v1733 = vrot.slane %v1719, %v1732
    %v1734 = vcombine.low %v1678, %v1694
    %v1735 = vcombine.high %v1678, %v1694
    %v1737 = vunpack.c.l.s4 1934713408
    %v1738 = vunpack.c.0.s8 %v1737
    %v1739 = vlaneseq
    %v1740 = vshrl.u32 %v1739, 7
    %v1741 = vsub.s32 %v1738, %v1740
    %v1742 = vrot.slane %v1734, %v1741
    %v1744 = vunpack.c.l.s4 1934713408
    %v1745 = vunpack.c.0.s8 %v1744
    %v1746 = vlaneseq
    %v1747 = vshrl.u32 %v1746, 7
    %v1748 = vsub.s32 %v1745, %v1747
    %v1749 = vrot.slane %v1735, %v1748
    %v1750 = vcombine.low %v1685, %v1701
    %v1751 = vcombine.high %v1685, %v1701
    %v1753 = vunpack.c.l.s4 1934713408
    %v1754 = vunpack.c.0.s8 %v1753
    %v1755 = vlaneseq
    %v1756 = vshrl.u32 %v1755, 7
    %v1757 = vsub.s32 %v1754, %v1756
    %v1758 = vrot.slane %v1750, %v1757
    %v1760 = vunpack.c.l.s4 1934713408
    %v1761 = vunpack.c.0.s8 %v1760
    %v1762 = vlaneseq
    %v1763 = vshrl.u32 %v1762, 7
    %v1764 = vsub.s32 %v1761, %v1763
    %v1765 = vrot.slane %v1751, %v1764
    %v1766 = vcombine.low %v1710, %v1742
    %v1767 = vcombine.high %v1710, %v1742
    %v1768 = vcombine.low %v1717, %v1749
    %v1769 = vcombine.high %v1717, %v1749
    %v1770 = vcombine.low %v1726, %v1758
    %v1771 = vcombine.high %v1726, %v1758
    %v1772 = vcombine.low %v1733, %v1765
    %v1773 = vcombine.high %v1733, %v1765
    %v1774 = vcombine.low %v415, %v1605
    %v1775 = vcombine.high %v415, %v1605
    %v1777 = vunpack.c.l.s4 1983009808
    %v1778 = vunpack.c.0.s8 %v1777
    %v1779 = vlaneseq
    %v1780 = vshrl.u32 %v1779, 7
    %v1781 = vsub.s32 %v1778, %v1780
    %v1782 = vrot.slane %v1774, %v1781
    %v1784 = vunpack.c.l.s4 1983009808
    %v1785 = vunpack.c.0.s8 %v1784
    %v1786 = vlaneseq
    %v1787 = vshrl.u32 %v1786, 7
    %v1788 = vsub.s32 %v1785, %v1787
    %v1789 = vrot.slane %v1775, %v1788
    %v1790 = vcombine.low %v1599, %v1611
    %v1791 = vcombine.high %v1599, %v1611
    %v1793 = vunpack.c.l.s4 1983009808
    %v1794 = vunpack.c.0.s8 %v1793
    %v1795 = vlaneseq
    %v1796 = vshrl.u32 %v1795, 7
    %v1797 = vsub.s32 %v1794, %v1796
    %v1798 = vrot.slane %v1790, %v1797
    %v1800 = vunpack.c.l.s4 1983009808
    %v1801 = vunpack.c.0.s8 %v1800
    %v1802 = vlaneseq
    %v1803 = vshrl.u32 %v1802, 7
    %v1804 = vsub.s32 %v1801, %v1803
    %v1805 = vrot.slane %v1791, %v1804
    %v1806 = vcombine.low %v1617, %v1629
    %v1807 = vcombine.high %v1617, %v1629
    %v1809 = vunpack.c.l.s4 1983009808
    %v1810 = vunpack.c.0.s8 %v1809
    %v1811 = vlaneseq
    %v1812 = vshrl.u32 %v1811, 7
    %v1813 = vsub.s32 %v1810, %v1812
    %v1814 = vrot.slane %v1806, %v1813
    %v1816 = vunpack.c.l.s4 1983009808
    %v1817 = vunpack.c.0.s8 %v1816
    %v1818 = vlaneseq
    %v1819 = vshrl.u32 %v1818, 7
    %v1820 = vsub.s32 %v1817, %v1819
    %v1821 = vrot.slane %v1807, %v1820
    %v1822 = vcombine.low %v1623, %v1635
    %v1823 = vcombine.high %v1623, %v1635
    %v1825 = vunpack.c.l.s4 1983009808
    %v1826 = vunpack.c.0.s8 %v1825
    %v1827 = vlaneseq
    %v1828 = vshrl.u32 %v1827, 7
    %v1829 = vsub.s32 %v1826, %v1828
    %v1830 = vrot.slane %v1822, %v1829
    %v1832 = vunpack.c.l.s4 1983009808
    %v1833 = vunpack.c.0.s8 %v1832
    %v1834 = vlaneseq
    %v1835 = vshrl.u32 %v1834, 7
    %v1836 = vsub.s32 %v1833, %v1835
    %v1837 = vrot.slane %v1823, %v1836
    %v1838 = vcombine.low %v1782, %v1798
    %v1839 = vcombine.high %v1782, %v1798
    %v1841 = vunpack.c.l.s4 1934713408
    %v1842 = vunpack.c.0.s8 %v1841
    %v1843 = vlaneseq
    %v1844 = vshrl.u32 %v1843, 7
    %v1845 = vsub.s32 %v1842, %v1844
    %v1846 = vrot.slane %v1838, %v1845
    %v1848 = vunpack.c.l.s4 1934713408
    %v1849 = vunpack.c.0.s8 %v1848
    %v1850 = vlaneseq
    %v1851 = vshrl.u32 %v1850, 7
    %v1852 = vsub.s32 %v1849, %v1851
    %v1853 = vrot.slane %v1839, %v1852
    %v1854 = vcombine.low %v1789, %v1805
    %v1855 = vcombine.high %v1789, %v1805
    %v1857 = vunpack.c.l.s4 1934713408
    %v1858 = vunpack.c.0.s8 %v1857
    %v1859 = vlaneseq
    %v1860 = vshrl.u32 %v1859, 7
    %v1861 = vsub.s32 %v1858, %v1860
    %v1862 = vrot.slane %v1854, %v1861
    %v1864 = vunpack.c.l.s4 1934713408
    %v1865 = vunpack.c.0.s8 %v1864
    %v1866 = vlaneseq
    %v1867 = vshrl.u32 %v1866, 7
    %v1868 = vsub.s32 %v1865, %v1867
    %v1869 = vrot.slane %v1855, %v1868
    %v1870 = vcombine.low %v1814, %v1830
    %v1871 = vcombine.high %v1814, %v1830
    %v1873 = vunpack.c.l.s4 1934713408
    %v1874 = vunpack.c.0.s8 %v1873
    %v1875 = vlaneseq
    %v1876 = vshrl.u32 %v1875, 7
    %v1877 = vsub.s32 %v1874, %v1876
    %v1878 = vrot.slane %v1870, %v1877
    %v1880 = vunpack.c.l.s4 1934713408
    %v1881 = vunpack.c.0.s8 %v1880
    %v1882 = vlaneseq
    %v1883 = vshrl.u32 %v1882, 7
    %v1884 = vsub.s32 %v1881, %v1883
    %v1885 = vrot.slane %v1871, %v1884
    %v1886 = vcombine.low %v1821, %v1837
    %v1887 = vcombine.high %v1821, %v1837
    %v1889 = vunpack.c.l.s4 1934713408
    %v1890 = vunpack.c.0.s8 %v1889
    %v1891 = vlaneseq
    %v1892 = vshrl.u32 %v1891, 7
    %v1893 = vsub.s32 %v1890, %v1892
    %v1894 = vrot.slane %v1886, %v1893
    %v1896 = vunpack.c.l.s4 1934713408
    %v1897 = vunpack.c.0.s8 %v1896
    %v1898 = vlaneseq
    %v1899 = vshrl.u32 %v1898, 7
    %v1900 = vsub.s32 %v1897, %v1899
    %v1901 = vrot.slane %v1887, %v1900
    %v1902 = vcombine.low %v1846, %v1878
    %v1903 = vcombine.high %v1846, %v1878
    %v1904 = vcombine.low %v1853, %v1885
    %v1905 = vcombine.high %v1853, %v1885
    %v1906 = vcombine.low %v1862, %v1894
    %v1907 = vcombine.high %v1862, %v1894
    %v1908 = vcombine.low %v1869, %v1901
    %v1909 = vcombine.high %v1869, %v1901
    %v1910 = vcombine.low %v1766, %v1768
    %v1911 = vcombine.high %v1766, %v1768
    %v1913 = vunpack.c.l.s4 1983009808
    %v1914 = vunpack.c.0.s8 %v1913
    %v1915 = vlaneseq
    %v1916 = vshrl.u32 %v1915, 7
    %v1917 = vsub.s32 %v1914, %v1916
    %v1918 = vrot.slane %v1910, %v1917
    %v1920 = vunpack.c.l.s4 1983009808
    %v1921 = vunpack.c.0.s8 %v1920
    %v1922 = vlaneseq
    %v1923 = vshrl.u32 %v1922, 7
    %v1924 = vsub.s32 %v1921, %v1923
    %v1925 = vrot.slane %v1911, %v1924
    %v1926 = vcombine.low %v1767, %v1769
    %v1927 = vcombine.high %v1767, %v1769
    %v1929 = vunpack.c.l.s4 1983009808
    %v1930 = vunpack.c.0.s8 %v1929
    %v1931 = vlaneseq
    %v1932 = vshrl.u32 %v1931, 7
    %v1933 = vsub.s32 %v1930, %v1932
    %v1934 = vrot.slane %v1926, %v1933
    %v1936 = vunpack.c.l.s4 1983009808
    %v1937 = vunpack.c.0.s8 %v1936
    %v1938 = vlaneseq
    %v1939 = vshrl.u32 %v1938, 7
    %v1940 = vsub.s32 %v1937, %v1939
    %v1941 = vrot.slane %v1927, %v1940
    %v1942 = vcombine.low %v1770, %v1772
    %v1943 = vcombine.high %v1770, %v1772
    %v1945 = vunpack.c.l.s4 1983009808
    %v1946 = vunpack.c.0.s8 %v1945
    %v1947 = vlaneseq
    %v1948 = vshrl.u32 %v1947, 7
    %v1949 = vsub.s32 %v1946, %v1948
    %v1950 = vrot.slane %v1942, %v1949
    %v1952 = vunpack.c.l.s4 1983009808
    %v1953 = vunpack.c.0.s8 %v1952
    %v1954 = vlaneseq
    %v1955 = vshrl.u32 %v1954, 7
    %v1956 = vsub.s32 %v1953, %v1955
    %v1957 = vrot.slane %v1943, %v1956
    %v1958 = vcombine.low %v1771, %v1773
    %v1959 = vcombine.high %v1771, %v1773
    %v1961 = vunpack.c.l.s4 1983009808
    %v1962 = vunpack.c.0.s8 %v1961
    %v1963 = vlaneseq
    %v1964 = vshrl.u32 %v1963, 7
    %v1965 = vsub.s32 %v1962, %v1964
    %v1966 = vrot.slane %v1958, %v1965
    %v1968 = vunpack.c.l.s4 1983009808
    %v1969 = vunpack.c.0.s8 %v1968
    %v1970 = vlaneseq
    %v1971 = vshrl.u32 %v1970, 7
    %v1972 = vsub.s32 %v1969, %v1971
    %v1973 = vrot.slane %v1959, %v1972
    %v1974 = vcombine.low %v1918, %v1934
    %v1975 = vcombine.high %v1918, %v1934
    %v1977 = vunpack.c.l.s4 1934713408
    %v1978 = vunpack.c.0.s8 %v1977
    %v1979 = vlaneseq
    %v1980 = vshrl.u32 %v1979, 7
    %v1981 = vsub.s32 %v1978, %v1980
    %v1982 = vrot.slane %v1974, %v1981
    %v1984 = vunpack.c.l.s4 1934713408
    %v1985 = vunpack.c.0.s8 %v1984
    %v1986 = vlaneseq
    %v1987 = vshrl.u32 %v1986, 7
    %v1988 = vsub.s32 %v1985, %v1987
    %v1989 = vrot.slane %v1975, %v1988
    %v1990 = vcombine.low %v1925, %v1941
    %v1991 = vcombine.high %v1925, %v1941
    %v1993 = vunpack.c.l.s4 1934713408
    %v1994 = vunpack.c.0.s8 %v1993
    %v1995 = vlaneseq
    %v1996 = vshrl.u32 %v1995, 7
    %v1997 = vsub.s32 %v1994, %v1996
    %v1998 = vrot.slane %v1990, %v1997
    %v2000 = vunpack.c.l.s4 1934713408
    %v2001 = vunpack.c.0.s8 %v2000
    %v2002 = vlaneseq
    %v2003 = vshrl.u32 %v2002, 7
    %v2004 = vsub.s32 %v2001, %v2003
    %v2005 = vrot.slane %v1991, %v2004
    %v2006 = vcombine.low %v1950, %v1966
    %v2007 = vcombine.high %v1950, %v1966
    %v2009 = vunpack.c.l.s4 1934713408
    %v2010 = vunpack.c.0.s8 %v2009
    %v2011 = vlaneseq
    %v2012 = vshrl.u32 %v2011, 7
    %v2013 = vsub.s32 %v2010, %v2012
    %v2014 = vrot.slane %v2006, %v2013
    %v2016 = vunpack.c.l.s4 1934713408
    %v2017 = vunpack.c.0.s8 %v2016
    %v2018 = vlaneseq
    %v2019 = vshrl.u32 %v2018, 7
    %v2020 = vsub.s32 %v2017, %v2019
    %v2021 = vrot.slane %v2007, %v2020
    %v2022 = vcombine.low %v1957, %v1973
    %v2023 = vcombine.high %v1957, %v1973
    %v2025 = vunpack.c.l.s4 1934713408
    %v2026 = vunpack.c.0.s8 %v2025
    %v2027 = vlaneseq
    %v2028 = vshrl.u32 %v2027, 7
    %v2029 = vsub.s32 %v2026, %v2028
    %v2030 = vrot.slane %v2022, %v2029
    %v2032 = vunpack.c.l.s4 1934713408
    %v2033 = vunpack.c.0.s8 %v2032
    %v2034 = vlaneseq
    %v2035 = vshrl.u32 %v2034, 7
    %v2036 = vsub.s32 %v2033, %v2035
    %v2037 = vrot.slane %v2023, %v2036
    %v2038 = vcombine.low %v1982, %v2014
    %v2039 = vcombine.high %v1982, %v2014
    %v2040 = vcombine.low %v1989, %v2021
    %v2041 = vcombine.high %v1989, %v2021
    %v2042 = vcombine.low %v1998, %v2030
    %v2043 = vcombine.high %v1998, %v2030
    %v2044 = vcombine.low %v2005, %v2037
    %v2045 = vcombine.high %v2005, %v2037
    %v2046 = vcombine.low %v1902, %v1904
    %v2047 = vcombine.high %v1902, %v1904
    %v2049 = vunpack.c.l.s4 1983009808
    %v2050 = vunpack.c.0.s8 %v2049
    %v2051 = vlaneseq
    %v2052 = vshrl.u32 %v2051, 7
    %v2053 = vsub.s32 %v2050, %v2052
    %v2054 = vrot.slane %v2046, %v2053
    %v2056 = vunpack.c.l.s4 1983009808
    %v2057 = vunpack.c.0.s8 %v2056
    %v2058 = vlaneseq
    %v2059 = vshrl.u32 %v2058, 7
    %v2060 = vsub.s32 %v2057, %v2059
    %v2061 = vrot.slane %v2047, %v2060
    %v2062 = vcombine.low %v1903, %v1905
    %v2063 = vcombine.high %v1903, %v1905
    %v2065 = vunpack.c.l.s4 1983009808
    %v2066 = vunpack.c.0.s8 %v2065
    %v2067 = vlaneseq
    %v2068 = vshrl.u32 %v2067, 7
    %v2069 = vsub.s32 %v2066, %v2068
    %v2070 = vrot.slane %v2062, %v2069
    %v2072 = vunpack.c.l.s4 1983009808
    %v2073 = vunpack.c.0.s8 %v2072
    %v2074 = vlaneseq
    %v2075 = vshrl.u32 %v2074, 7
    %v2076 = vsub.s32 %v2073, %v2075
    %v2077 = vrot.slane %v2063, %v2076
    %v2078 = vcombine.low %v1906, %v1908
    %v2079 = vcombine.high %v1906, %v1908
    %v2081 = vunpack.c.l.s4 1983009808
    %v2082 = vunpack.c.0.s8 %v2081
    %v2083 = vlaneseq
    %v2084 = vshrl.u32 %v2083, 7
    %v2085 = vsub.s32 %v2082, %v2084
    %v2086 = vrot.slane %v2078, %v2085
    %v2088 = vunpack.c.l.s4 1983009808
    %v2089 = vunpack.c.0.s8 %v2088
    %v2090 = vlaneseq
    %v2091 = vshrl.u32 %v2090, 7
    %v2092 = vsub.s32 %v2089, %v2091
    %v2093 = vrot.slane %v2079, %v2092
    %v2094 = vcombine.low %v1907, %v1909
    %v2095 = vcombine.high %v1907, %v1909
    %v2097 = vunpack.c.l.s4 1983009808
    %v2098 = vunpack.c.0.s8 %v2097
    %v2099 = vlaneseq
    %v2100 = vshrl.u32 %v2099, 7
    %v2101 = vsub.s32 %v2098, %v2100
    %v2102 = vrot.slane %v2094, %v2101
    %v2104 = vunpack.c.l.s4 1983009808
    %v2105 = vunpack.c.0.s8 %v2104
    %v2106 = vlaneseq
    %v2107 = vshrl.u32 %v2106, 7
    %v2108 = vsub.s32 %v2105, %v2107
    %v2109 = vrot.slane %v2095, %v2108
    %v2110 = vcombine.low %v2054, %v2070
    %v2111 = vcombine.high %v2054, %v2070
    %v2113 = vunpack.c.l.s4 1934713408
    %v2114 = vunpack.c.0.s8 %v2113
    %v2115 = vlaneseq
    %v2116 = vshrl.u32 %v2115, 7
    %v2117 = vsub.s32 %v2114, %v2116
    %v2118 = vrot.slane %v2110, %v2117
    %v2120 = vunpack.c.l.s4 1934713408
    %v2121 = vunpack.c.0.s8 %v2120
    %v2122 = vlaneseq
    %v2123 = vshrl.u32 %v2122, 7
    %v2124 = vsub.s32 %v2121, %v2123
    %v2125 = vrot.slane %v2111, %v2124
    %v2126 = vcombine.low %v2061, %v2077
    %v2127 = vcombine.high %v2061, %v2077
    %v2129 = vunpack.c.l.s4 1934713408
    %v2130 = vunpack.c.0.s8 %v2129
    %v2131 = vlaneseq
    %v2132 = vshrl.u32 %v2131, 7
    %v2133 = vsub.s32 %v2130, %v2132
    %v2134 = vrot.slane %v2126, %v2133
    %v2136 = vunpack.c.l.s4 1934713408
    %v2137 = vunpack.c.0.s8 %v2136
    %v2138 = vlaneseq
    %v2139 = vshrl.u32 %v2138, 7
    %v2140 = vsub.s32 %v2137, %v2139
    %v2141 = vrot.slane %v2127, %v2140
    %v2142 = vcombine.low %v2086, %v2102
    %v2143 = vcombine.high %v2086, %v2102
    %v2145 = vunpack.c.l.s4 1934713408
    %v2146 = vunpack.c.0.s8 %v2145
    %v2147 = vlaneseq
    %v2148 = vshrl.u32 %v2147, 7
    %v2149 = vsub.s32 %v2146, %v2148
    %v2150 = vrot.slane %v2142, %v2149
    %v2152 = vunpack.c.l.s4 1934713408
    %v2153 = vunpack.c.0.s8 %v2152
    %v2154 = vlaneseq
    %v2155 = vshrl.u32 %v2154, 7
    %v2156 = vsub.s32 %v2153, %v2155
    %v2157 = vrot.slane %v2143, %v2156
    %v2158 = vcombine.low %v2093, %v2109
    %v2159 = vcombine.high %v2093, %v2109
    %v2161 = vunpack.c.l.s4 1934713408
    %v2162 = vunpack.c.0.s8 %v2161
    %v2163 = vlaneseq
    %v2164 = vshrl.u32 %v2163, 7
    %v2165 = vsub.s32 %v2162, %v2164
    %v2166 = vrot.slane %v2158, %v2165
    %v2168 = vunpack.c.l.s4 1934713408
    %v2169 = vunpack.c.0.s8 %v2168
    %v2170 = vlaneseq
    %v2171 = vshrl.u32 %v2170, 7
    %v2172 = vsub.s32 %v2169, %v2171
    %v2173 = vrot.slane %v2159, %v2172
    %v2174 = vcombine.low %v2118, %v2150
    %v2175 = vcombine.high %v2118, %v2150
    %v2176 = vcombine.low %v2125, %v2157
    %v2177 = vcombine.high %v2125, %v2157
    %v2178 = vcombine.low %v2134, %v2166
    %v2179 = vcombine.high %v2134, %v2166
    %v2180 = vcombine.low %v2141, %v2173
    %v2181 = vcombine.high %v2141, %v2173
    %vm2182 = vcmask 31744
    %v2184 = vsel %vm2182, %v862, 0
    %v2187 = vsel %vm2182, %v1450, 0
    %2189 = vmatprep.subr.mxu0 0.0
    %2190 = vmatpush1.xpose.msra.mxu0 %v2187
    %2191 = vmatprep.subr.mxu0 0.0
    %2192 = vmatpush1.xpose.msra.mxu0 0.0
    %2193 = vmatprep.subr.mxu0 0.0
    %2194 = vmatpush1.xpose.msra.mxu0 0.0
    %2195 = vmatprep.subr.mxu0 0.0
    %2196 = vmatpush1.xpose.msra.mxu0 0.0
    %2197 = vmatprep.subr.mxu0 0.0
    %2198 = vmatpush1.xpose.msra.mxu0 0.0
    %2199 = vmatprep.subr.mxu0 0.0
    %2200 = vmatpush1.xpose.msra.mxu0 0.0
    %2201 = vmatprep.subr.mxu0 0.0
    %2202 = vmatpush1.xpose.msra.mxu0 0.0
    %2203 = vmatprep.subr.mxu0 0.0
    %2204 = vmatpush1.xpose.msra.mxu0 0.0
    %2205 = vmatprep.subr.mxu0 0.0
    %2206 = vmatpush1.xpose.msra.mxu0 0.0
    %2207 = vmatprep.subr.mxu0 0.0
    %2208 = vmatpush1.xpose.msra.mxu0 0.0
    %2209 = vmatprep.subr.mxu0 0.0
    %2210 = vmatpush1.xpose.msra.mxu0 0.0
    %2211 = vmatprep.subr.mxu0 0.0
    %2212 = vmatpush1.xpose.msra.mxu0 0.0
    %2213 = vmatprep.subr.mxu0 0.0
    %2214 = vmatpush1.xpose.msra.mxu0 0.0
    %2215 = vmatprep.subr.mxu0 0.0
    %2216 = vmatpush1.xpose.msra.mxu0 0.0
    %2217 = vmatprep.subr.mxu0 0.0
    %2218 = vmatpush1.xpose.msra.mxu0 0.0
    %2219 = vmatprep.subr.mxu0 0.0
    %2220 = vmatpush1.xpose.msra.mxu0 0.0
    %2221 = vmatprep.subr.mxu0 0.0
    %2222 = vmatpush1.xpose.msra.mxu0 0.0
    %2223 = vmatprep.subr.mxu0 0.0
    %2224 = vmatpush1.xpose.msra.mxu0 0.0
    %2225 = vmatprep.subr.mxu0 0.0
    %2226 = vmatpush1.xpose.msra.mxu0 0.0
    %2227 = vmatprep.subr.mxu0 0.0
    %2228 = vmatpush1.xpose.msra.mxu0 0.0
    %2229 = vmatprep.subr.mxu0 0.0
    %2230 = vmatpush1.xpose.msra.mxu0 0.0
    %2231 = vmatprep.subr.mxu0 0.0
    %2232 = vmatpush1.xpose.msra.mxu0 0.0
    %2233 = vmatprep.subr.mxu0 0.0
    %2234 = vmatpush1.xpose.msra.mxu0 0.0
    %2235 = vmatprep.subr.mxu0 0.0
    %2236 = vmatpush1.xpose.msra.mxu0 0.0
    %2237 = vmatprep.subr.mxu0 0.0
    %2238 = vmatpush1.xpose.msra.mxu0 0.0
    %2239 = vmatprep.subr.mxu0 0.0
    %2240 = vmatpush1.xpose.msra.mxu0 0.0
    %2241 = vmatprep.subr.mxu0 0.0
    %2242 = vmatpush1.xpose.msra.mxu0 0.0
    %2243 = vmatprep.subr.mxu0 0.0
    %2244 = vmatpush1.xpose.msra.mxu0 0.0
    %2245 = vmatprep.subr.mxu0 0.0
    %2246 = vmatpush1.xpose.msra.mxu0 0.0
    %2247 = vmatprep.subr.mxu0 0.0
    %2248 = vmatpush1.xpose.msra.mxu0 0.0
    %2249 = vmatprep.subr.mxu0 0.0
    %2250 = vmatpush1.xpose.msra.mxu0 0.0
    %2251 = vmatprep.subr.mxu0 0.0
    %2252 = vmatpush1.xpose.msra.mxu0 0.0
    %2253 = vmatprep.mubr.f32.mxu0 0.0
    %2254 = vmatmul.mubr.f32.gmra.mrb[0].mxu0 %v2184
    %v2255 = vpop.f32.mrb[0].mxu0
    %v2256 = vadd.f32 0.0, %v2255
    %v2257 = vpop.f32.mrb[0].mxu0
    %2258 = vdwg.mxu0
    %v2260 = vsel %vm2182, %v863, 0
    %v2263 = vsel %vm2182, %v1451, 0
    %2265 = vmatprep.subr.mxu0 0.0
    %2266 = vmatpush1.xpose.msra.mxu0 %v2263
    %2267 = vmatprep.subr.mxu0 0.0
    %2268 = vmatpush1.xpose.msra.mxu0 0.0
    %2269 = vmatprep.subr.mxu0 0.0
    %2270 = vmatpush1.xpose.msra.mxu0 0.0
    %2271 = vmatprep.subr.mxu0 0.0
    %2272 = vmatpush1.xpose.msra.mxu0 0.0
    %2273 = vmatprep.subr.mxu0 0.0
    %2274 = vmatpush1.xpose.msra.mxu0 0.0
    %2275 = vmatprep.subr.mxu0 0.0
    %2276 = vmatpush1.xpose.msra.mxu0 0.0
    %2277 = vmatprep.subr.mxu0 0.0
    %2278 = vmatpush1.xpose.msra.mxu0 0.0
    %2279 = vmatprep.subr.mxu0 0.0
    %2280 = vmatpush1.xpose.msra.mxu0 0.0
    %2281 = vmatprep.subr.mxu0 0.0
    %2282 = vmatpush1.xpose.msra.mxu0 0.0
    %2283 = vmatprep.subr.mxu0 0.0
    %2284 = vmatpush1.xpose.msra.mxu0 0.0
    %2285 = vmatprep.subr.mxu0 0.0
    %2286 = vmatpush1.xpose.msra.mxu0 0.0
    %2287 = vmatprep.subr.mxu0 0.0
    %2288 = vmatpush1.xpose.msra.mxu0 0.0
    %2289 = vmatprep.subr.mxu0 0.0
    %2290 = vmatpush1.xpose.msra.mxu0 0.0
    %2291 = vmatprep.subr.mxu0 0.0
    %2292 = vmatpush1.xpose.msra.mxu0 0.0
    %2293 = vmatprep.subr.mxu0 0.0
    %2294 = vmatpush1.xpose.msra.mxu0 0.0
    %2295 = vmatprep.subr.mxu0 0.0
    %2296 = vmatpush1.xpose.msra.mxu0 0.0
    %2297 = vmatprep.subr.mxu0 0.0
    %2298 = vmatpush1.xpose.msra.mxu0 0.0
    %2299 = vmatprep.subr.mxu0 0.0
    %2300 = vmatpush1.xpose.msra.mxu0 0.0
    %2301 = vmatprep.subr.mxu0 0.0
    %2302 = vmatpush1.xpose.msra.mxu0 0.0
    %2303 = vmatprep.subr.mxu0 0.0
    %2304 = vmatpush1.xpose.msra.mxu0 0.0
    %2305 = vmatprep.subr.mxu0 0.0
    %2306 = vmatpush1.xpose.msra.mxu0 0.0
    %2307 = vmatprep.subr.mxu0 0.0
    %2308 = vmatpush1.xpose.msra.mxu0 0.0
    %2309 = vmatprep.subr.mxu0 0.0
    %2310 = vmatpush1.xpose.msra.mxu0 0.0
    %2311 = vmatprep.subr.mxu0 0.0
    %2312 = vmatpush1.xpose.msra.mxu0 0.0
    %2313 = vmatprep.subr.mxu0 0.0
    %2314 = vmatpush1.xpose.msra.mxu0 0.0
    %2315 = vmatprep.subr.mxu0 0.0
    %2316 = vmatpush1.xpose.msra.mxu0 0.0
    %2317 = vmatprep.subr.mxu0 0.0
    %2318 = vmatpush1.xpose.msra.mxu0 0.0
    %2319 = vmatprep.subr.mxu0 0.0
    %2320 = vmatpush1.xpose.msra.mxu0 0.0
    %2321 = vmatprep.subr.mxu0 0.0
    %2322 = vmatpush1.xpose.msra.mxu0 0.0
    %2323 = vmatprep.subr.mxu0 0.0
    %2324 = vmatpush1.xpose.msra.mxu0 0.0
    %2325 = vmatprep.subr.mxu0 0.0
    %2326 = vmatpush1.xpose.msra.mxu0 0.0
    %2327 = vmatprep.subr.mxu0 0.0
    %2328 = vmatpush1.xpose.msra.mxu0 0.0
    %2329 = vmatprep.mubr.f32.mxu0 0.0
    %2330 = vmatmul.mubr.f32.gmra.mrb[0].mxu0 %v2260
    %v2331 = vpop.f32.mrb[0].mxu0
    %v2332 = vadd.f32 0.0, %v2331
    %v2333 = vpop.f32.mrb[0].mxu0
    %2334 = vdwg.mxu0
    %v2336 = vsel %vm2182, %v864, 0
    %v2339 = vsel %vm2182, %v1452, 0
    %2341 = vmatprep.subr.mxu0 0.0
    %2342 = vmatpush1.xpose.msra.mxu0 %v2339
    %2343 = vmatprep.subr.mxu0 0.0
    %2344 = vmatpush1.xpose.msra.mxu0 0.0
    %2345 = vmatprep.subr.mxu0 0.0
    %2346 = vmatpush1.xpose.msra.mxu0 0.0
    %2347 = vmatprep.subr.mxu0 0.0
    %2348 = vmatpush1.xpose.msra.mxu0 0.0
    %2349 = vmatprep.subr.mxu0 0.0
    %2350 = vmatpush1.xpose.msra.mxu0 0.0
    %2351 = vmatprep.subr.mxu0 0.0
    %2352 = vmatpush1.xpose.msra.mxu0 0.0
    %2353 = vmatprep.subr.mxu0 0.0
    %2354 = vmatpush1.xpose.msra.mxu0 0.0
    %2355 = vmatprep.subr.mxu0 0.0
    %2356 = vmatpush1.xpose.msra.mxu0 0.0
    %2357 = vmatprep.subr.mxu0 0.0
    %2358 = vmatpush1.xpose.msra.mxu0 0.0
    %2359 = vmatprep.subr.mxu0 0.0
    %2360 = vmatpush1.xpose.msra.mxu0 0.0
    %2361 = vmatprep.subr.mxu0 0.0
    %2362 = vmatpush1.xpose.msra.mxu0 0.0
    %2363 = vmatprep.subr.mxu0 0.0
    %2364 = vmatpush1.xpose.msra.mxu0 0.0
    %2365 = vmatprep.subr.mxu0 0.0
    %2366 = vmatpush1.xpose.msra.mxu0 0.0
    %2367 = vmatprep.subr.mxu0 0.0
    %2368 = vmatpush1.xpose.msra.mxu0 0.0
    %2369 = vmatprep.subr.mxu0 0.0
    %2370 = vmatpush1.xpose.msra.mxu0 0.0
    %2371 = vmatprep.subr.mxu0 0.0
    %2372 = vmatpush1.xpose.msra.mxu0 0.0
    %2373 = vmatprep.subr.mxu0 0.0
    %2374 = vmatpush1.xpose.msra.mxu0 0.0
    %2375 = vmatprep.subr.mxu0 0.0
    %2376 = vmatpush1.xpose.msra.mxu0 0.0
    %2377 = vmatprep.subr.mxu0 0.0
    %2378 = vmatpush1.xpose.msra.mxu0 0.0
    %2379 = vmatprep.subr.mxu0 0.0
    %2380 = vmatpush1.xpose.msra.mxu0 0.0
    %2381 = vmatprep.subr.mxu0 0.0
    %2382 = vmatpush1.xpose.msra.mxu0 0.0
    %2383 = vmatprep.subr.mxu0 0.0
    %2384 = vmatpush1.xpose.msra.mxu0 0.0
    %2385 = vmatprep.subr.mxu0 0.0
    %2386 = vmatpush1.xpose.msra.mxu0 0.0
    %2387 = vmatprep.subr.mxu0 0.0
    %2388 = vmatpush1.xpose.msra.mxu0 0.0
    %2389 = vmatprep.subr.mxu0 0.0
    %2390 = vmatpush1.xpose.msra.mxu0 0.0
    %2391 = vmatprep.subr.mxu0 0.0
    %2392 = vmatpush1.xpose.msra.mxu0 0.0
    %2393 = vmatprep.subr.mxu0 0.0
    %2394 = vmatpush1.xpose.msra.mxu0 0.0
    %2395 = vmatprep.subr.mxu0 0.0
    %2396 = vmatpush1.xpose.msra.mxu0 0.0
    %2397 = vmatprep.subr.mxu0 0.0
    %2398 = vmatpush1.xpose.msra.mxu0 0.0
    %2399 = vmatprep.subr.mxu0 0.0
    %2400 = vmatpush1.xpose.msra.mxu0 0.0
    %2401 = vmatprep.subr.mxu0 0.0
    %2402 = vmatpush1.xpose.msra.mxu0 0.0
    %2403 = vmatprep.subr.mxu0 0.0
    %2404 = vmatpush1.xpose.msra.mxu0 0.0
    %2405 = vmatprep.mubr.f32.mxu0 0.0
    %2406 = vmatmul.mubr.f32.gmra.mrb[0].mxu0 %v2336
    %v2407 = vpop.f32.mrb[0].mxu0
    %v2408 = vadd.f32 0.0, %v2407
    %v2409 = vpop.f32.mrb[0].mxu0
    %2410 = vdwg.mxu0
    %v2412 = vsel %vm2182, %v865, 0
    %v2415 = vsel %vm2182, %v1453, 0
    %2417 = vmatprep.subr.mxu0 0.0
    %2418 = vmatpush1.xpose.msra.mxu0 %v2415
    %2419 = vmatprep.subr.mxu0 0.0
    %2420 = vmatpush1.xpose.msra.mxu0 0.0
    %2421 = vmatprep.subr.mxu0 0.0
    %2422 = vmatpush1.xpose.msra.mxu0 0.0
    %2423 = vmatprep.subr.mxu0 0.0
    %2424 = vmatpush1.xpose.msra.mxu0 0.0
    %2425 = vmatprep.subr.mxu0 0.0
    %2426 = vmatpush1.xpose.msra.mxu0 0.0
    %2427 = vmatprep.subr.mxu0 0.0
    %2428 = vmatpush1.xpose.msra.mxu0 0.0
    %2429 = vmatprep.subr.mxu0 0.0
    %2430 = vmatpush1.xpose.msra.mxu0 0.0
    %2431 = vmatprep.subr.mxu0 0.0
    %2432 = vmatpush1.xpose.msra.mxu0 0.0
    %2433 = vmatprep.subr.mxu0 0.0
    %2434 = vmatpush1.xpose.msra.mxu0 0.0
    %2435 = vmatprep.subr.mxu0 0.0
    %2436 = vmatpush1.xpose.msra.mxu0 0.0
    %2437 = vmatprep.subr.mxu0 0.0
    %2438 = vmatpush1.xpose.msra.mxu0 0.0
    %2439 = vmatprep.subr.mxu0 0.0
    %2440 = vmatpush1.xpose.msra.mxu0 0.0
    %2441 = vmatprep.subr.mxu0 0.0
    %2442 = vmatpush1.xpose.msra.mxu0 0.0
    %2443 = vmatprep.subr.mxu0 0.0
    %2444 = vmatpush1.xpose.msra.mxu0 0.0
    %2445 = vmatprep.subr.mxu0 0.0
    %2446 = vmatpush1.xpose.msra.mxu0 0.0
    %2447 = vmatprep.subr.mxu0 0.0
    %2448 = vmatpush1.xpose.msra.mxu0 0.0
    %2449 = vmatprep.subr.mxu0 0.0
    %2450 = vmatpush1.xpose.msra.mxu0 0.0
    %2451 = vmatprep.subr.mxu0 0.0
    %2452 = vmatpush1.xpose.msra.mxu0 0.0
    %2453 = vmatprep.subr.mxu0 0.0
    %2454 = vmatpush1.xpose.msra.mxu0 0.0
    %2455 = vmatprep.subr.mxu0 0.0
    %2456 = vmatpush1.xpose.msra.mxu0 0.0
    %2457 = vmatprep.subr.mxu0 0.0
    %2458 = vmatpush1.xpose.msra.mxu0 0.0
    %2459 = vmatprep.subr.mxu0 0.0
    %2460 = vmatpush1.xpose.msra.mxu0 0.0
    %2461 = vmatprep.subr.mxu0 0.0
    %2462 = vmatpush1.xpose.msra.mxu0 0.0
    %2463 = vmatprep.subr.mxu0 0.0
    %2464 = vmatpush1.xpose.msra.mxu0 0.0
    %2465 = vmatprep.subr.mxu0 0.0
    %2466 = vmatpush1.xpose.msra.mxu0 0.0
    %2467 = vmatprep.subr.mxu0 0.0
    %2468 = vmatpush1.xpose.msra.mxu0 0.0
    %2469 = vmatprep.subr.mxu0 0.0
    %2470 = vmatpush1.xpose.msra.mxu0 0.0
    %2471 = vmatprep.subr.mxu0 0.0
    %2472 = vmatpush1.xpose.msra.mxu0 0.0
    %2473 = vmatprep.subr.mxu0 0.0
    %2474 = vmatpush1.xpose.msra.mxu0 0.0
    %2475 = vmatprep.subr.mxu0 0.0
    %2476 = vmatpush1.xpose.msra.mxu0 0.0
    %2477 = vmatprep.subr.mxu0 0.0
    %2478 = vmatpush1.xpose.msra.mxu0 0.0
    %2479 = vmatprep.subr.mxu0 0.0
    %2480 = vmatpush1.xpose.msra.mxu0 0.0
    %2481 = vmatprep.mubr.f32.mxu0 0.0
    %2482 = vmatmul.mubr.f32.gmra.mrb[0].mxu0 %v2412
    %v2483 = vpop.f32.mrb[0].mxu0
    %v2484 = vadd.f32 0.0, %v2483
    %v2485 = vpop.f32.mrb[0].mxu0
    %2486 = vdwg.mxu0
    %v2488 = vsel %vm2182, %v866, 0
    %v2491 = vsel %vm2182, %v1454, 0
    %2493 = vmatprep.subr.mxu0 0.0
    %2494 = vmatpush1.xpose.msra.mxu0 %v2491
    %2495 = vmatprep.subr.mxu0 0.0
    %2496 = vmatpush1.xpose.msra.mxu0 0.0
    %2497 = vmatprep.subr.mxu0 0.0
    %2498 = vmatpush1.xpose.msra.mxu0 0.0
    %2499 = vmatprep.subr.mxu0 0.0
    %2500 = vmatpush1.xpose.msra.mxu0 0.0
    %2501 = vmatprep.subr.mxu0 0.0
    %2502 = vmatpush1.xpose.msra.mxu0 0.0
    %2503 = vmatprep.subr.mxu0 0.0
    %2504 = vmatpush1.xpose.msra.mxu0 0.0
    %2505 = vmatprep.subr.mxu0 0.0
    %2506 = vmatpush1.xpose.msra.mxu0 0.0
    %2507 = vmatprep.subr.mxu0 0.0
    %2508 = vmatpush1.xpose.msra.mxu0 0.0
    %2509 = vmatprep.subr.mxu0 0.0
    %2510 = vmatpush1.xpose.msra.mxu0 0.0
    %2511 = vmatprep.subr.mxu0 0.0
    %2512 = vmatpush1.xpose.msra.mxu0 0.0
    %2513 = vmatprep.subr.mxu0 0.0
    %2514 = vmatpush1.xpose.msra.mxu0 0.0
    %2515 = vmatprep.subr.mxu0 0.0
    %2516 = vmatpush1.xpose.msra.mxu0 0.0
    %2517 = vmatprep.subr.mxu0 0.0
    %2518 = vmatpush1.xpose.msra.mxu0 0.0
    %2519 = vmatprep.subr.mxu0 0.0
    %2520 = vmatpush1.xpose.msra.mxu0 0.0
    %2521 = vmatprep.subr.mxu0 0.0
    %2522 = vmatpush1.xpose.msra.mxu0 0.0
    %2523 = vmatprep.subr.mxu0 0.0
    %2524 = vmatpush1.xpose.msra.mxu0 0.0
    %2525 = vmatprep.subr.mxu0 0.0
    %2526 = vmatpush1.xpose.msra.mxu0 0.0
    %2527 = vmatprep.subr.mxu0 0.0
    %2528 = vmatpush1.xpose.msra.mxu0 0.0
    %2529 = vmatprep.subr.mxu0 0.0
    %2530 = vmatpush1.xpose.msra.mxu0 0.0
    %2531 = vmatprep.subr.mxu0 0.0
    %2532 = vmatpush1.xpose.msra.mxu0 0.0
    %2533 = vmatprep.subr.mxu0 0.0
    %2534 = vmatpush1.xpose.msra.mxu0 0.0
    %2535 = vmatprep.subr.mxu0 0.0
    %2536 = vmatpush1.xpose.msra.mxu0 0.0
    %2537 = vmatprep.subr.mxu0 0.0
    %2538 = vmatpush1.xpose.msra.mxu0 0.0
    %2539 = vmatprep.subr.mxu0 0.0
    %2540 = vmatpush1.xpose.msra.mxu0 0.0
    %2541 = vmatprep.subr.mxu0 0.0
    %2542 = vmatpush1.xpose.msra.mxu0 0.0
    %2543 = vmatprep.subr.mxu0 0.0
    %2544 = vmatpush1.xpose.msra.mxu0 0.0
    %2545 = vmatprep.subr.mxu0 0.0
    %2546 = vmatpush1.xpose.msra.mxu0 0.0
    %2547 = vmatprep.subr.mxu0 0.0
    %2548 = vmatpush1.xpose.msra.mxu0 0.0
    %2549 = vmatprep.subr.mxu0 0.0
    %2550 = vmatpush1.xpose.msra.mxu0 0.0
    %2551 = vmatprep.subr.mxu0 0.0
    %2552 = vmatpush1.xpose.msra.mxu0 0.0
    %2553 = vmatprep.subr.mxu0 0.0
    %2554 = vmatpush1.xpose.msra.mxu0 0.0
    %2555 = vmatprep.subr.mxu0 0.0
    %2556 = vmatpush1.xpose.msra.mxu0 0.0
    %2557 = vmatprep.mubr.f32.mxu0 0.0
    %2558 = vmatmul.mubr.f32.gmra.mrb[0].mxu0 %v2488
    %v2559 = vpop.f32.mrb[0].mxu0
    %v2560 = vadd.f32 0.0, %v2559
    %v2561 = vpop.f32.mrb[0].mxu0
    %2562 = vdwg.mxu0
    %v2564 = vsel %vm2182, %v867, 0
    %v2567 = vsel %vm2182, %v1455, 0
    %2569 = vmatprep.subr.mxu0 0.0
    %2570 = vmatpush1.xpose.msra.mxu0 %v2567
    %2571 = vmatprep.subr.mxu0 0.0
    %2572 = vmatpush1.xpose.msra.mxu0 0.0
    %2573 = vmatprep.subr.mxu0 0.0
    %2574 = vmatpush1.xpose.msra.mxu0 0.0
    %2575 = vmatprep.subr.mxu0 0.0
    %2576 = vmatpush1.xpose.msra.mxu0 0.0
    %2577 = vmatprep.subr.mxu0 0.0
    %2578 = vmatpush1.xpose.msra.mxu0 0.0
    %2579 = vmatprep.subr.mxu0 0.0
    %2580 = vmatpush1.xpose.msra.mxu0 0.0
    %2581 = vmatprep.subr.mxu0 0.0
    %2582 = vmatpush1.xpose.msra.mxu0 0.0
    %2583 = vmatprep.subr.mxu0 0.0
    %2584 = vmatpush1.xpose.msra.mxu0 0.0
    %2585 = vmatprep.subr.mxu0 0.0
    %2586 = vmatpush1.xpose.msra.mxu0 0.0
    %2587 = vmatprep.subr.mxu0 0.0
    %2588 = vmatpush1.xpose.msra.mxu0 0.0
    %2589 = vmatprep.subr.mxu0 0.0
    %2590 = vmatpush1.xpose.msra.mxu0 0.0
    %2591 = vmatprep.subr.mxu0 0.0
    %2592 = vmatpush1.xpose.msra.mxu0 0.0
    %2593 = vmatprep.subr.mxu0 0.0
    %2594 = vmatpush1.xpose.msra.mxu0 0.0
    %2595 = vmatprep.subr.mxu0 0.0
    %2596 = vmatpush1.xpose.msra.mxu0 0.0
    %2597 = vmatprep.subr.mxu0 0.0
    %2598 = vmatpush1.xpose.msra.mxu0 0.0
    %2599 = vmatprep.subr.mxu0 0.0
    %2600 = vmatpush1.xpose.msra.mxu0 0.0
    %2601 = vmatprep.subr.mxu0 0.0
    %2602 = vmatpush1.xpose.msra.mxu0 0.0
    %2603 = vmatprep.subr.mxu0 0.0
    %2604 = vmatpush1.xpose.msra.mxu0 0.0
    %2605 = vmatprep.subr.mxu0 0.0
    %2606 = vmatpush1.xpose.msra.mxu0 0.0
    %2607 = vmatprep.subr.mxu0 0.0
    %2608 = vmatpush1.xpose.msra.mxu0 0.0
    %2609 = vmatprep.subr.mxu0 0.0
    %2610 = vmatpush1.xpose.msra.mxu0 0.0
    %2611 = vmatprep.subr.mxu0 0.0
    %2612 = vmatpush1.xpose.msra.mxu0 0.0
    %2613 = vmatprep.subr.mxu0 0.0
    %2614 = vmatpush1.xpose.msra.mxu0 0.0
    %2615 = vmatprep.subr.mxu0 0.0
    %2616 = vmatpush1.xpose.msra.mxu0 0.0
    %2617 = vmatprep.subr.mxu0 0.0
    %2618 = vmatpush1.xpose.msra.mxu0 0.0
    %2619 = vmatprep.subr.mxu0 0.0
    %2620 = vmatpush1.xpose.msra.mxu0 0.0
    %2621 = vmatprep.subr.mxu0 0.0
    %2622 = vmatpush1.xpose.msra.mxu0 0.0
    %2623 = vmatprep.subr.mxu0 0.0
    %2624 = vmatpush1.xpose.msra.mxu0 0.0
    %2625 = vmatprep.subr.mxu0 0.0
    %2626 = vmatpush1.xpose.msra.mxu0 0.0
    %2627 = vmatprep.subr.mxu0 0.0
    %2628 = vmatpush1.xpose.msra.mxu0 0.0
    %2629 = vmatprep.subr.mxu0 0.0
    %2630 = vmatpush1.xpose.msra.mxu0 0.0
    %2631 = vmatprep.subr.mxu0 0.0
    %2632 = vmatpush1.xpose.msra.mxu0 0.0
    %2633 = vmatprep.mubr.f32.mxu0 0.0
    %2634 = vmatmul.mubr.f32.gmra.mrb[0].mxu0 %v2564
    %v2635 = vpop.f32.mrb[0].mxu0
    %v2636 = vadd.f32 0.0, %v2635
    %v2637 = vpop.f32.mrb[0].mxu0
    %2638 = vdwg.mxu0
    %v2640 = vsel %vm2182, %v868, 0
    %v2643 = vsel %vm2182, %v1456, 0
    %2645 = vmatprep.subr.mxu0 0.0
    %2646 = vmatpush1.xpose.msra.mxu0 %v2643
    %2647 = vmatprep.subr.mxu0 0.0
    %2648 = vmatpush1.xpose.msra.mxu0 0.0
    %2649 = vmatprep.subr.mxu0 0.0
    %2650 = vmatpush1.xpose.msra.mxu0 0.0
    %2651 = vmatprep.subr.mxu0 0.0
    %2652 = vmatpush1.xpose.msra.mxu0 0.0
    %2653 = vmatprep.subr.mxu0 0.0
    %2654 = vmatpush1.xpose.msra.mxu0 0.0
    %2655 = vmatprep.subr.mxu0 0.0
    %2656 = vmatpush1.xpose.msra.mxu0 0.0
    %2657 = vmatprep.subr.mxu0 0.0
    %2658 = vmatpush1.xpose.msra.mxu0 0.0
    %2659 = vmatprep.subr.mxu0 0.0
    %2660 = vmatpush1.xpose.msra.mxu0 0.0
    %2661 = vmatprep.subr.mxu0 0.0
    %2662 = vmatpush1.xpose.msra.mxu0 0.0
    %2663 = vmatprep.subr.mxu0 0.0
    %2664 = vmatpush1.xpose.msra.mxu0 0.0
    %2665 = vmatprep.subr.mxu0 0.0
    %2666 = vmatpush1.xpose.msra.mxu0 0.0
    %2667 = vmatprep.subr.mxu0 0.0
    %2668 = vmatpush1.xpose.msra.mxu0 0.0
    %2669 = vmatprep.subr.mxu0 0.0
    %2670 = vmatpush1.xpose.msra.mxu0 0.0
    %2671 = vmatprep.subr.mxu0 0.0
    %2672 = vmatpush1.xpose.msra.mxu0 0.0
    %2673 = vmatprep.subr.mxu0 0.0
    %2674 = vmatpush1.xpose.msra.mxu0 0.0
    %2675 = vmatprep.subr.mxu0 0.0
    %2676 = vmatpush1.xpose.msra.mxu0 0.0
    %2677 = vmatprep.subr.mxu0 0.0
    %2678 = vmatpush1.xpose.msra.mxu0 0.0
    %2679 = vmatprep.subr.mxu0 0.0
    %2680 = vmatpush1.xpose.msra.mxu0 0.0
    %2681 = vmatprep.subr.mxu0 0.0
    %2682 = vmatpush1.xpose.msra.mxu0 0.0
    %2683 = vmatprep.subr.mxu0 0.0
    %2684 = vmatpush1.xpose.msra.mxu0 0.0
    %2685 = vmatprep.subr.mxu0 0.0
    %2686 = vmatpush1.xpose.msra.mxu0 0.0
    %2687 = vmatprep.subr.mxu0 0.0
    %2688 = vmatpush1.xpose.msra.mxu0 0.0
    %2689 = vmatprep.subr.mxu0 0.0
    %2690 = vmatpush1.xpose.msra.mxu0 0.0
    %2691 = vmatprep.subr.mxu0 0.0
    %2692 = vmatpush1.xpose.msra.mxu0 0.0
    %2693 = vmatprep.subr.mxu0 0.0
    %2694 = vmatpush1.xpose.msra.mxu0 0.0
    %2695 = vmatprep.subr.mxu0 0.0
    %2696 = vmatpush1.xpose.msra.mxu0 0.0
    %2697 = vmatprep.subr.mxu0 0.0
    %2698 = vmatpush1.xpose.msra.mxu0 0.0
    %2699 = vmatprep.subr.mxu0 0.0
    %2700 = vmatpush1.xpose.msra.mxu0 0.0
    %2701 = vmatprep.subr.mxu0 0.0
    %2702 = vmatpush1.xpose.msra.mxu0 0.0
    %2703 = vmatprep.subr.mxu0 0.0
    %2704 = vmatpush1.xpose.msra.mxu0 0.0
    %2705 = vmatprep.subr.mxu0 0.0
    %2706 = vmatpush1.xpose.msra.mxu0 0.0
    %2707 = vmatprep.subr.mxu0 0.0
    %2708 = vmatpush1.xpose.msra.mxu0 0.0
    %2709 = vmatprep.mubr.f32.mxu0 0.0
    %2710 = vmatmul.mubr.f32.gmra.mrb[0].mxu0 %v2640
    %v2711 = vpop.f32.mrb[0].mxu0
    %v2712 = vadd.f32 0.0, %v2711
    %v2713 = vpop.f32.mrb[0].mxu0
    %2714 = vdwg.mxu0
    %v2716 = vsel %vm2182, %v869, 0
    %v2719 = vsel %vm2182, %v1457, 0
    %2721 = vmatprep.subr.mxu0 0.0
    %2722 = vmatpush1.xpose.msra.mxu0 %v2719
    %2723 = vmatprep.subr.mxu0 0.0
    %2724 = vmatpush1.xpose.msra.mxu0 0.0
    %2725 = vmatprep.subr.mxu0 0.0
    %2726 = vmatpush1.xpose.msra.mxu0 0.0
    %2727 = vmatprep.subr.mxu0 0.0
    %2728 = vmatpush1.xpose.msra.mxu0 0.0
    %2729 = vmatprep.subr.mxu0 0.0
    %2730 = vmatpush1.xpose.msra.mxu0 0.0
    %2731 = vmatprep.subr.mxu0 0.0
    %2732 = vmatpush1.xpose.msra.mxu0 0.0
    %2733 = vmatprep.subr.mxu0 0.0
    %2734 = vmatpush1.xpose.msra.mxu0 0.0
    %2735 = vmatprep.subr.mxu0 0.0
    %2736 = vmatpush1.xpose.msra.mxu0 0.0
    %2737 = vmatprep.subr.mxu0 0.0
    %2738 = vmatpush1.xpose.msra.mxu0 0.0
    %2739 = vmatprep.subr.mxu0 0.0
    %2740 = vmatpush1.xpose.msra.mxu0 0.0
    %2741 = vmatprep.subr.mxu0 0.0
    %2742 = vmatpush1.xpose.msra.mxu0 0.0
    %2743 = vmatprep.subr.mxu0 0.0
    %2744 = vmatpush1.xpose.msra.mxu0 0.0
    %2745 = vmatprep.subr.mxu0 0.0
    %2746 = vmatpush1.xpose.msra.mxu0 0.0
    %2747 = vmatprep.subr.mxu0 0.0
    %2748 = vmatpush1.xpose.msra.mxu0 0.0
    %2749 = vmatprep.subr.mxu0 0.0
    %2750 = vmatpush1.xpose.msra.mxu0 0.0
    %2751 = vmatprep.subr.mxu0 0.0
    %2752 = vmatpush1.xpose.msra.mxu0 0.0
    %2753 = vmatprep.subr.mxu0 0.0
    %2754 = vmatpush1.xpose.msra.mxu0 0.0
    %2755 = vmatprep.subr.mxu0 0.0
    %2756 = vmatpush1.xpose.msra.mxu0 0.0
    %2757 = vmatprep.subr.mxu0 0.0
    %2758 = vmatpush1.xpose.msra.mxu0 0.0
    %2759 = vmatprep.subr.mxu0 0.0
    %2760 = vmatpush1.xpose.msra.mxu0 0.0
    %2761 = vmatprep.subr.mxu0 0.0
    %2762 = vmatpush1.xpose.msra.mxu0 0.0
    %2763 = vmatprep.subr.mxu0 0.0
    %2764 = vmatpush1.xpose.msra.mxu0 0.0
    %2765 = vmatprep.subr.mxu0 0.0
    %2766 = vmatpush1.xpose.msra.mxu0 0.0
    %2767 = vmatprep.subr.mxu0 0.0
    %2768 = vmatpush1.xpose.msra.mxu0 0.0
    %2769 = vmatprep.subr.mxu0 0.0
    %2770 = vmatpush1.xpose.msra.mxu0 0.0
    %2771 = vmatprep.subr.mxu0 0.0
    %2772 = vmatpush1.xpose.msra.mxu0 0.0
    %2773 = vmatprep.subr.mxu0 0.0
    %2774 = vmatpush1.xpose.msra.mxu0 0.0
    %2775 = vmatprep.subr.mxu0 0.0
    %2776 = vmatpush1.xpose.msra.mxu0 0.0
    %2777 = vmatprep.subr.mxu0 0.0
    %2778 = vmatpush1.xpose.msra.mxu0 0.0
    %2779 = vmatprep.subr.mxu0 0.0
    %2780 = vmatpush1.xpose.msra.mxu0 0.0
    %2781 = vmatprep.subr.mxu0 0.0
    %2782 = vmatpush1.xpose.msra.mxu0 0.0
    %2783 = vmatprep.subr.mxu0 0.0
    %2784 = vmatpush1.xpose.msra.mxu0 0.0
    %2785 = vmatprep.mubr.f32.mxu0 0.0
    %2786 = vmatmul.mubr.f32.gmra.mrb[0].mxu0 %v2716
    %v2787 = vpop.f32.mrb[0].mxu0
    %v2788 = vadd.f32 0.0, %v2787
    %v2789 = vpop.f32.mrb[0].mxu0
    %2790 = vdwg.mxu0
    %v2792 = vsel %vm2182, %v998, 0
    %v2795 = vsel %vm2182, %v1586, 0
    %2797 = vmatprep.subr.mxu0 0.0
    %2798 = vmatpush1.xpose.msra.mxu0 %v2795
    %2799 = vmatprep.subr.mxu0 0.0
    %2800 = vmatpush1.xpose.msra.mxu0 0.0
    %2801 = vmatprep.subr.mxu0 0.0
    %2802 = vmatpush1.xpose.msra.mxu0 0.0
    %2803 = vmatprep.subr.mxu0 0.0
    %2804 = vmatpush1.xpose.msra.mxu0 0.0
    %2805 = vmatprep.subr.mxu0 0.0
    %2806 = vmatpush1.xpose.msra.mxu0 0.0
    %2807 = vmatprep.subr.mxu0 0.0
    %2808 = vmatpush1.xpose.msra.mxu0 0.0
    %2809 = vmatprep.subr.mxu0 0.0
    %2810 = vmatpush1.xpose.msra.mxu0 0.0
    %2811 = vmatprep.subr.mxu0 0.0
    %2812 = vmatpush1.xpose.msra.mxu0 0.0
    %2813 = vmatprep.subr.mxu0 0.0
    %2814 = vmatpush1.xpose.msra.mxu0 0.0
    %2815 = vmatprep.subr.mxu0 0.0
    %2816 = vmatpush1.xpose.msra.mxu0 0.0
    %2817 = vmatprep.subr.mxu0 0.0
    %2818 = vmatpush1.xpose.msra.mxu0 0.0
    %2819 = vmatprep.subr.mxu0 0.0
    %2820 = vmatpush1.xpose.msra.mxu0 0.0
    %2821 = vmatprep.subr.mxu0 0.0
    %2822 = vmatpush1.xpose.msra.mxu0 0.0
    %2823 = vmatprep.subr.mxu0 0.0
    %2824 = vmatpush1.xpose.msra.mxu0 0.0
    %2825 = vmatprep.subr.mxu0 0.0
    %2826 = vmatpush1.xpose.msra.mxu0 0.0
    %2827 = vmatprep.subr.mxu0 0.0
    %2828 = vmatpush1.xpose.msra.mxu0 0.0
    %2829 = vmatprep.subr.mxu0 0.0
    %2830 = vmatpush1.xpose.msra.mxu0 0.0
    %2831 = vmatprep.subr.mxu0 0.0
    %2832 = vmatpush1.xpose.msra.mxu0 0.0
    %2833 = vmatprep.subr.mxu0 0.0
    %2834 = vmatpush1.xpose.msra.mxu0 0.0
    %2835 = vmatprep.subr.mxu0 0.0
    %2836 = vmatpush1.xpose.msra.mxu0 0.0
    %2837 = vmatprep.subr.mxu0 0.0
    %2838 = vmatpush1.xpose.msra.mxu0 0.0
    %2839 = vmatprep.subr.mxu0 0.0
    %2840 = vmatpush1.xpose.msra.mxu0 0.0
    %2841 = vmatprep.subr.mxu0 0.0
    %2842 = vmatpush1.xpose.msra.mxu0 0.0
    %2843 = vmatprep.subr.mxu0 0.0
    %2844 = vmatpush1.xpose.msra.mxu0 0.0
    %2845 = vmatprep.subr.mxu0 0.0
    %2846 = vmatpush1.xpose.msra.mxu0 0.0
    %2847 = vmatprep.subr.mxu0 0.0
    %2848 = vmatpush1.xpose.msra.mxu0 0.0
    %2849 = vmatprep.subr.mxu0 0.0
    %2850 = vmatpush1.xpose.msra.mxu0 0.0
    %2851 = vmatprep.subr.mxu0 0.0
    %2852 = vmatpush1.xpose.msra.mxu0 0.0
    %2853 = vmatprep.subr.mxu0 0.0
    %2854 = vmatpush1.xpose.msra.mxu0 0.0
    %2855 = vmatprep.subr.mxu0 0.0
    %2856 = vmatpush1.xpose.msra.mxu0 0.0
    %2857 = vmatprep.subr.mxu0 0.0
    %2858 = vmatpush1.xpose.msra.mxu0 0.0
    %2859 = vmatprep.subr.mxu0 0.0
    %2860 = vmatpush1.xpose.msra.mxu0 0.0
    %2861 = vmatprep.mubr.f32.mxu0 0.0
    %2862 = vmatmul.mubr.f32.gmra.mrb[0].mxu0 %v2792
    %v2863 = vpop.f32.mrb[0].mxu0
    %v2864 = vadd.f32 0.0, %v2863
    %v2865 = vpop.f32.mrb[0].mxu0
    %2866 = vdwg.mxu0
    %v2868 = vsel %vm2182, %v999, 0
    %v2871 = vsel %vm2182, %v1587, 0
    %2873 = vmatprep.subr.mxu0 0.0
    %2874 = vmatpush1.xpose.msra.mxu0 %v2871
    %2875 = vmatprep.subr.mxu0 0.0
    %2876 = vmatpush1.xpose.msra.mxu0 0.0
    %2877 = vmatprep.subr.mxu0 0.0
    %2878 = vmatpush1.xpose.msra.mxu0 0.0
    %2879 = vmatprep.subr.mxu0 0.0
    %2880 = vmatpush1.xpose.msra.mxu0 0.0
    %2881 = vmatprep.subr.mxu0 0.0
    %2882 = vmatpush1.xpose.msra.mxu0 0.0
    %2883 = vmatprep.subr.mxu0 0.0
    %2884 = vmatpush1.xpose.msra.mxu0 0.0
    %2885 = vmatprep.subr.mxu0 0.0
    %2886 = vmatpush1.xpose.msra.mxu0 0.0
    %2887 = vmatprep.subr.mxu0 0.0
    %2888 = vmatpush1.xpose.msra.mxu0 0.0
    %2889 = vmatprep.subr.mxu0 0.0
    %2890 = vmatpush1.xpose.msra.mxu0 0.0
    %2891 = vmatprep.subr.mxu0 0.0
    %2892 = vmatpush1.xpose.msra.mxu0 0.0
    %2893 = vmatprep.subr.mxu0 0.0
    %2894 = vmatpush1.xpose.msra.mxu0 0.0
    %2895 = vmatprep.subr.mxu0 0.0
    %2896 = vmatpush1.xpose.msra.mxu0 0.0
    %2897 = vmatprep.subr.mxu0 0.0
    %2898 = vmatpush1.xpose.msra.mxu0 0.0
    %2899 = vmatprep.subr.mxu0 0.0
    %2900 = vmatpush1.xpose.msra.mxu0 0.0
    %2901 = vmatprep.subr.mxu0 0.0
    %2902 = vmatpush1.xpose.msra.mxu0 0.0
    %2903 = vmatprep.subr.mxu0 0.0
    %2904 = vmatpush1.xpose.msra.mxu0 0.0
    %2905 = vmatprep.subr.mxu0 0.0
    %2906 = vmatpush1.xpose.msra.mxu0 0.0
    %2907 = vmatprep.subr.mxu0 0.0
    %2908 = vmatpush1.xpose.msra.mxu0 0.0
    %2909 = vmatprep.subr.mxu0 0.0
    %2910 = vmatpush1.xpose.msra.mxu0 0.0
    %2911 = vmatprep.subr.mxu0 0.0
    %2912 = vmatpush1.xpose.msra.mxu0 0.0
    %2913 = vmatprep.subr.mxu0 0.0
    %2914 = vmatpush1.xpose.msra.mxu0 0.0
    %2915 = vmatprep.subr.mxu0 0.0
    %2916 = vmatpush1.xpose.msra.mxu0 0.0
    %2917 = vmatprep.subr.mxu0 0.0
    %2918 = vmatpush1.xpose.msra.mxu0 0.0
    %2919 = vmatprep.subr.mxu0 0.0
    %2920 = vmatpush1.xpose.msra.mxu0 0.0
    %2921 = vmatprep.subr.mxu0 0.0
    %2922 = vmatpush1.xpose.msra.mxu0 0.0
    %2923 = vmatprep.subr.mxu0 0.0
    %2924 = vmatpush1.xpose.msra.mxu0 0.0
    %2925 = vmatprep.subr.mxu0 0.0
    %2926 = vmatpush1.xpose.msra.mxu0 0.0
    %2927 = vmatprep.subr.mxu0 0.0
    %2928 = vmatpush1.xpose.msra.mxu0 0.0
    %2929 = vmatprep.subr.mxu0 0.0
    %2930 = vmatpush1.xpose.msra.mxu0 0.0
    %2931 = vmatprep.subr.mxu0 0.0
    %2932 = vmatpush1.xpose.msra.mxu0 0.0
    %2933 = vmatprep.subr.mxu0 0.0
    %2934 = vmatpush1.xpose.msra.mxu0 0.0
    %2935 = vmatprep.subr.mxu0 0.0
    %2936 = vmatpush1.xpose.msra.mxu0 0.0
    %2937 = vmatprep.mubr.f32.mxu0 0.0
    %2938 = vmatmul.mubr.f32.gmra.mrb[0].mxu0 %v2868
    %v2939 = vpop.f32.mrb[0].mxu0
    %v2940 = vadd.f32 0.0, %v2939
    %v2941 = vpop.f32.mrb[0].mxu0
    %2942 = vdwg.mxu0
    %v2944 = vsel %vm2182, %v1000, 0
    %v2947 = vsel %vm2182, %v1588, 0
    %2949 = vmatprep.subr.mxu0 0.0
    %2950 = vmatpush1.xpose.msra.mxu0 %v2947
    %2951 = vmatprep.subr.mxu0 0.0
    %2952 = vmatpush1.xpose.msra.mxu0 0.0
    %2953 = vmatprep.subr.mxu0 0.0
    %2954 = vmatpush1.xpose.msra.mxu0 0.0
    %2955 = vmatprep.subr.mxu0 0.0
    %2956 = vmatpush1.xpose.msra.mxu0 0.0
    %2957 = vmatprep.subr.mxu0 0.0
    %2958 = vmatpush1.xpose.msra.mxu0 0.0
    %2959 = vmatprep.subr.mxu0 0.0
    %2960 = vmatpush1.xpose.msra.mxu0 0.0
    %2961 = vmatprep.subr.mxu0 0.0
    %2962 = vmatpush1.xpose.msra.mxu0 0.0
    %2963 = vmatprep.subr.mxu0 0.0
    %2964 = vmatpush1.xpose.msra.mxu0 0.0
    %2965 = vmatprep.subr.mxu0 0.0
    %2966 = vmatpush1.xpose.msra.mxu0 0.0
    %2967 = vmatprep.subr.mxu0 0.0
    %2968 = vmatpush1.xpose.msra.mxu0 0.0
    %2969 = vmatprep.subr.mxu0 0.0
    %2970 = vmatpush1.xpose.msra.mxu0 0.0
    %2971 = vmatprep.subr.mxu0 0.0
    %2972 = vmatpush1.xpose.msra.mxu0 0.0
    %2973 = vmatprep.subr.mxu0 0.0
    %2974 = vmatpush1.xpose.msra.mxu0 0.0
    %2975 = vmatprep.subr.mxu0 0.0
    %2976 = vmatpush1.xpose.msra.mxu0 0.0
    %2977 = vmatprep.subr.mxu0 0.0
    %2978 = vmatpush1.xpose.msra.mxu0 0.0
    %2979 = vmatprep.subr.mxu0 0.0
    %2980 = vmatpush1.xpose.msra.mxu0 0.0
    %2981 = vmatprep.subr.mxu0 0.0
    %2982 = vmatpush1.xpose.msra.mxu0 0.0
    %2983 = vmatprep.subr.mxu0 0.0
    %2984 = vmatpush1.xpose.msra.mxu0 0.0
    %2985 = vmatprep.subr.mxu0 0.0
    %2986 = vmatpush1.xpose.msra.mxu0 0.0
    %2987 = vmatprep.subr.mxu0 0.0
    %2988 = vmatpush1.xpose.msra.mxu0 0.0
    %2989 = vmatprep.subr.mxu0 0.0
    %2990 = vmatpush1.xpose.msra.mxu0 0.0
    %2991 = vmatprep.subr.mxu0 0.0
    %2992 = vmatpush1.xpose.msra.mxu0 0.0
    %2993 = vmatprep.subr.mxu0 0.0
    %2994 = vmatpush1.xpose.msra.mxu0 0.0
    %2995 = vmatprep.subr.mxu0 0.0
    %2996 = vmatpush1.xpose.msra.mxu0 0.0
    %2997 = vmatprep.subr.mxu0 0.0
    %2998 = vmatpush1.xpose.msra.mxu0 0.0
    %2999 = vmatprep.subr.mxu0 0.0
    %3000 = vmatpush1.xpose.msra.mxu0 0.0
    %3001 = vmatprep.subr.mxu0 0.0
    %3002 = vmatpush1.xpose.msra.mxu0 0.0
    %3003 = vmatprep.subr.mxu0 0.0
    %3004 = vmatpush1.xpose.msra.mxu0 0.0
    %3005 = vmatprep.subr.mxu0 0.0
    %3006 = vmatpush1.xpose.msra.mxu0 0.0
    %3007 = vmatprep.subr.mxu0 0.0
    %3008 = vmatpush1.xpose.msra.mxu0 0.0
    %3009 = vmatprep.subr.mxu0 0.0
    %3010 = vmatpush1.xpose.msra.mxu0 0.0
    %3011 = vmatprep.subr.mxu0 0.0
    %3012 = vmatpush1.xpose.msra.mxu0 0.0
    %3013 = vmatprep.mubr.f32.mxu0 0.0
    %3014 = vmatmul.mubr.f32.gmra.mrb[0].mxu0 %v2944
    %v3015 = vpop.f32.mrb[0].mxu0
    %v3016 = vadd.f32 0.0, %v3015
    %v3017 = vpop.f32.mrb[0].mxu0
    %3018 = vdwg.mxu0
    %v3020 = vsel %vm2182, %v1001, 0
    %v3023 = vsel %vm2182, %v1589, 0
    %3025 = vmatprep.subr.mxu0 0.0
    %3026 = vmatpush1.xpose.msra.mxu0 %v3023
    %3027 = vmatprep.subr.mxu0 0.0
    %3028 = vmatpush1.xpose.msra.mxu0 0.0
    %3029 = vmatprep.subr.mxu0 0.0
    %3030 = vmatpush1.xpose.msra.mxu0 0.0
    %3031 = vmatprep.subr.mxu0 0.0
    %3032 = vmatpush1.xpose.msra.mxu0 0.0
    %3033 = vmatprep.subr.mxu0 0.0
    %3034 = vmatpush1.xpose.msra.mxu0 0.0
    %3035 = vmatprep.subr.mxu0 0.0
    %3036 = vmatpush1.xpose.msra.mxu0 0.0
    %3037 = vmatprep.subr.mxu0 0.0
    %3038 = vmatpush1.xpose.msra.mxu0 0.0
    %3039 = vmatprep.subr.mxu0 0.0
    %3040 = vmatpush1.xpose.msra.mxu0 0.0
    %3041 = vmatprep.subr.mxu0 0.0
    %3042 = vmatpush1.xpose.msra.mxu0 0.0
    %3043 = vmatprep.subr.mxu0 0.0
    %3044 = vmatpush1.xpose.msra.mxu0 0.0
    %3045 = vmatprep.subr.mxu0 0.0
    %3046 = vmatpush1.xpose.msra.mxu0 0.0
    %3047 = vmatprep.subr.mxu0 0.0
    %3048 = vmatpush1.xpose.msra.mxu0 0.0
    %3049 = vmatprep.subr.mxu0 0.0
    %3050 = vmatpush1.xpose.msra.mxu0 0.0
    %3051 = vmatprep.subr.mxu0 0.0
    %3052 = vmatpush1.xpose.msra.mxu0 0.0
    %3053 = vmatprep.subr.mxu0 0.0
    %3054 = vmatpush1.xpose.msra.mxu0 0.0
    %3055 = vmatprep.subr.mxu0 0.0
    %3056 = vmatpush1.xpose.msra.mxu0 0.0
    %3057 = vmatprep.subr.mxu0 0.0
    %3058 = vmatpush1.xpose.msra.mxu0 0.0
    %3059 = vmatprep.subr.mxu0 0.0
    %3060 = vmatpush1.xpose.msra.mxu0 0.0
    %3061 = vmatprep.subr.mxu0 0.0
    %3062 = vmatpush1.xpose.msra.mxu0 0.0
    %3063 = vmatprep.subr.mxu0 0.0
    %3064 = vmatpush1.xpose.msra.mxu0 0.0
    %3065 = vmatprep.subr.mxu0 0.0
    %3066 = vmatpush1.xpose.msra.mxu0 0.0
    %3067 = vmatprep.subr.mxu0 0.0
    %3068 = vmatpush1.xpose.msra.mxu0 0.0
    %3069 = vmatprep.subr.mxu0 0.0
    %3070 = vmatpush1.xpose.msra.mxu0 0.0
    %3071 = vmatprep.subr.mxu0 0.0
    %3072 = vmatpush1.xpose.msra.mxu0 0.0
    %3073 = vmatprep.subr.mxu0 0.0
    %3074 = vmatpush1.xpose.msra.mxu0 0.0
    %3075 = vmatprep.subr.mxu0 0.0
    %3076 = vmatpush1.xpose.msra.mxu0 0.0
    %3077 = vmatprep.subr.mxu0 0.0
    %3078 = vmatpush1.xpose.msra.mxu0 0.0
    %3079 = vmatprep.subr.mxu0 0.0
    %3080 = vmatpush1.xpose.msra.mxu0 0.0
    %3081 = vmatprep.subr.mxu0 0.0
    %3082 = vmatpush1.xpose.msra.mxu0 0.0
    %3083 = vmatprep.subr.mxu0 0.0
    %3084 = vmatpush1.xpose.msra.mxu0 0.0
    %3085 = vmatprep.subr.mxu0 0.0
    %3086 = vmatpush1.xpose.msra.mxu0 0.0
    %3087 = vmatprep.subr.mxu0 0.0
    %3088 = vmatpush1.xpose.msra.mxu0 0.0
    %3089 = vmatprep.mubr.f32.mxu0 0.0
    %3090 = vmatmul.mubr.f32.gmra.mrb[0].mxu0 %v3020
    %v3091 = vpop.f32.mrb[0].mxu0
    %v3092 = vadd.f32 0.0, %v3091
    %v3093 = vpop.f32.mrb[0].mxu0
    %3094 = vdwg.mxu0
    %v3096 = vsel %vm2182, %v1002, 0
    %v3099 = vsel %vm2182, %v1590, 0
    %3101 = vmatprep.subr.mxu0 0.0
    %3102 = vmatpush1.xpose.msra.mxu0 %v3099
    %3103 = vmatprep.subr.mxu0 0.0
    %3104 = vmatpush1.xpose.msra.mxu0 0.0
    %3105 = vmatprep.subr.mxu0 0.0
    %3106 = vmatpush1.xpose.msra.mxu0 0.0
    %3107 = vmatprep.subr.mxu0 0.0
    %3108 = vmatpush1.xpose.msra.mxu0 0.0
    %3109 = vmatprep.subr.mxu0 0.0
    %3110 = vmatpush1.xpose.msra.mxu0 0.0
    %3111 = vmatprep.subr.mxu0 0.0
    %3112 = vmatpush1.xpose.msra.mxu0 0.0
    %3113 = vmatprep.subr.mxu0 0.0
    %3114 = vmatpush1.xpose.msra.mxu0 0.0
    %3115 = vmatprep.subr.mxu0 0.0
    %3116 = vmatpush1.xpose.msra.mxu0 0.0
    %3117 = vmatprep.subr.mxu0 0.0
    %3118 = vmatpush1.xpose.msra.mxu0 0.0
    %3119 = vmatprep.subr.mxu0 0.0
    %3120 = vmatpush1.xpose.msra.mxu0 0.0
    %3121 = vmatprep.subr.mxu0 0.0
    %3122 = vmatpush1.xpose.msra.mxu0 0.0
    %3123 = vmatprep.subr.mxu0 0.0
    %3124 = vmatpush1.xpose.msra.mxu0 0.0
    %3125 = vmatprep.subr.mxu0 0.0
    %3126 = vmatpush1.xpose.msra.mxu0 0.0
    %3127 = vmatprep.subr.mxu0 0.0
    %3128 = vmatpush1.xpose.msra.mxu0 0.0
    %3129 = vmatprep.subr.mxu0 0.0
    %3130 = vmatpush1.xpose.msra.mxu0 0.0
    %3131 = vmatprep.subr.mxu0 0.0
    %3132 = vmatpush1.xpose.msra.mxu0 0.0
    %3133 = vmatprep.subr.mxu0 0.0
    %3134 = vmatpush1.xpose.msra.mxu0 0.0
    %3135 = vmatprep.subr.mxu0 0.0
    %3136 = vmatpush1.xpose.msra.mxu0 0.0
    %3137 = vmatprep.subr.mxu0 0.0
    %3138 = vmatpush1.xpose.msra.mxu0 0.0
    %3139 = vmatprep.subr.mxu0 0.0
    %3140 = vmatpush1.xpose.msra.mxu0 0.0
    %3141 = vmatprep.subr.mxu0 0.0
    %3142 = vmatpush1.xpose.msra.mxu0 0.0
    %3143 = vmatprep.subr.mxu0 0.0
    %3144 = vmatpush1.xpose.msra.mxu0 0.0
    %3145 = vmatprep.subr.mxu0 0.0
    %3146 = vmatpush1.xpose.msra.mxu0 0.0
    %3147 = vmatprep.subr.mxu0 0.0
    %3148 = vmatpush1.xpose.msra.mxu0 0.0
    %3149 = vmatprep.subr.mxu0 0.0
    %3150 = vmatpush1.xpose.msra.mxu0 0.0
    %3151 = vmatprep.subr.mxu0 0.0
    %3152 = vmatpush1.xpose.msra.mxu0 0.0
    %3153 = vmatprep.subr.mxu0 0.0
    %3154 = vmatpush1.xpose.msra.mxu0 0.0
    %3155 = vmatprep.subr.mxu0 0.0
    %3156 = vmatpush1.xpose.msra.mxu0 0.0
    %3157 = vmatprep.subr.mxu0 0.0
    %3158 = vmatpush1.xpose.msra.mxu0 0.0
    %3159 = vmatprep.subr.mxu0 0.0
    %3160 = vmatpush1.xpose.msra.mxu0 0.0
    %3161 = vmatprep.subr.mxu0 0.0
    %3162 = vmatpush1.xpose.msra.mxu0 0.0
    %3163 = vmatprep.subr.mxu0 0.0
    %3164 = vmatpush1.xpose.msra.mxu0 0.0
    %3165 = vmatprep.mubr.f32.mxu0 0.0
    %3166 = vmatmul.mubr.f32.gmra.mrb[0].mxu0 %v3096
    %v3167 = vpop.f32.mrb[0].mxu0
    %v3168 = vadd.f32 0.0, %v3167
    %v3169 = vpop.f32.mrb[0].mxu0
    %3170 = vdwg.mxu0
    %v3172 = vsel %vm2182, %v1003, 0
    %v3175 = vsel %vm2182, %v1591, 0
    %3177 = vmatprep.subr.mxu0 0.0
    %3178 = vmatpush1.xpose.msra.mxu0 %v3175
    %3179 = vmatprep.subr.mxu0 0.0
    %3180 = vmatpush1.xpose.msra.mxu0 0.0
    %3181 = vmatprep.subr.mxu0 0.0
    %3182 = vmatpush1.xpose.msra.mxu0 0.0
    %3183 = vmatprep.subr.mxu0 0.0
    %3184 = vmatpush1.xpose.msra.mxu0 0.0
    %3185 = vmatprep.subr.mxu0 0.0
    %3186 = vmatpush1.xpose.msra.mxu0 0.0
    %3187 = vmatprep.subr.mxu0 0.0
    %3188 = vmatpush1.xpose.msra.mxu0 0.0
    %3189 = vmatprep.subr.mxu0 0.0
    %3190 = vmatpush1.xpose.msra.mxu0 0.0
    %3191 = vmatprep.subr.mxu0 0.0
    %3192 = vmatpush1.xpose.msra.mxu0 0.0
    %3193 = vmatprep.subr.mxu0 0.0
    %3194 = vmatpush1.xpose.msra.mxu0 0.0
    %3195 = vmatprep.subr.mxu0 0.0
    %3196 = vmatpush1.xpose.msra.mxu0 0.0
    %3197 = vmatprep.subr.mxu0 0.0
    %3198 = vmatpush1.xpose.msra.mxu0 0.0
    %3199 = vmatprep.subr.mxu0 0.0
    %3200 = vmatpush1.xpose.msra.mxu0 0.0
    %3201 = vmatprep.subr.mxu0 0.0
    %3202 = vmatpush1.xpose.msra.mxu0 0.0
    %3203 = vmatprep.subr.mxu0 0.0
    %3204 = vmatpush1.xpose.msra.mxu0 0.0
    %3205 = vmatprep.subr.mxu0 0.0
    %3206 = vmatpush1.xpose.msra.mxu0 0.0
    %3207 = vmatprep.subr.mxu0 0.0
    %3208 = vmatpush1.xpose.msra.mxu0 0.0
    %3209 = vmatprep.subr.mxu0 0.0
    %3210 = vmatpush1.xpose.msra.mxu0 0.0
    %3211 = vmatprep.subr.mxu0 0.0
    %3212 = vmatpush1.xpose.msra.mxu0 0.0
    %3213 = vmatprep.subr.mxu0 0.0
    %3214 = vmatpush1.xpose.msra.mxu0 0.0
    %3215 = vmatprep.subr.mxu0 0.0
    %3216 = vmatpush1.xpose.msra.mxu0 0.0
    %3217 = vmatprep.subr.mxu0 0.0
    %3218 = vmatpush1.xpose.msra.mxu0 0.0
    %3219 = vmatprep.subr.mxu0 0.0
    %3220 = vmatpush1.xpose.msra.mxu0 0.0
    %3221 = vmatprep.subr.mxu0 0.0
    %3222 = vmatpush1.xpose.msra.mxu0 0.0
    %3223 = vmatprep.subr.mxu0 0.0
    %3224 = vmatpush1.xpose.msra.mxu0 0.0
    %3225 = vmatprep.subr.mxu0 0.0
    %3226 = vmatpush1.xpose.msra.mxu0 0.0
    %3227 = vmatprep.subr.mxu0 0.0
    %3228 = vmatpush1.xpose.msra.mxu0 0.0
    %3229 = vmatprep.subr.mxu0 0.0
    %3230 = vmatpush1.xpose.msra.mxu0 0.0
    %3231 = vmatprep.subr.mxu0 0.0
    %3232 = vmatpush1.xpose.msra.mxu0 0.0
    %3233 = vmatprep.subr.mxu0 0.0
    %3234 = vmatpush1.xpose.msra.mxu0 0.0
    %3235 = vmatprep.subr.mxu0 0.0
    %3236 = vmatpush1.xpose.msra.mxu0 0.0
    %3237 = vmatprep.subr.mxu0 0.0
    %3238 = vmatpush1.xpose.msra.mxu0 0.0
    %3239 = vmatprep.subr.mxu0 0.0
    %3240 = vmatpush1.xpose.msra.mxu0 0.0
    %3241 = vmatprep.mubr.f32.mxu0 0.0
    %3242 = vmatmul.mubr.f32.gmra.mrb[0].mxu0 %v3172
    %v3243 = vpop.f32.mrb[0].mxu0
    %v3244 = vadd.f32 0.0, %v3243
    %v3245 = vpop.f32.mrb[0].mxu0
    %3246 = vdwg.mxu0
    %v3248 = vsel %vm2182, %v1004, 0
    %v3251 = vsel %vm2182, %v1592, 0
    %3253 = vmatprep.subr.mxu0 0.0
    %3254 = vmatpush1.xpose.msra.mxu0 %v3251
    %3255 = vmatprep.subr.mxu0 0.0
    %3256 = vmatpush1.xpose.msra.mxu0 0.0
    %3257 = vmatprep.subr.mxu0 0.0
    %3258 = vmatpush1.xpose.msra.mxu0 0.0
    %3259 = vmatprep.subr.mxu0 0.0
    %3260 = vmatpush1.xpose.msra.mxu0 0.0
    %3261 = vmatprep.subr.mxu0 0.0
    %3262 = vmatpush1.xpose.msra.mxu0 0.0
    %3263 = vmatprep.subr.mxu0 0.0
    %3264 = vmatpush1.xpose.msra.mxu0 0.0
    %3265 = vmatprep.subr.mxu0 0.0
    %3266 = vmatpush1.xpose.msra.mxu0 0.0
    %3267 = vmatprep.subr.mxu0 0.0
    %3268 = vmatpush1.xpose.msra.mxu0 0.0
    %3269 = vmatprep.subr.mxu0 0.0
    %3270 = vmatpush1.xpose.msra.mxu0 0.0
    %3271 = vmatprep.subr.mxu0 0.0
    %3272 = vmatpush1.xpose.msra.mxu0 0.0
    %3273 = vmatprep.subr.mxu0 0.0
    %3274 = vmatpush1.xpose.msra.mxu0 0.0
    %3275 = vmatprep.subr.mxu0 0.0
    %3276 = vmatpush1.xpose.msra.mxu0 0.0
    %3277 = vmatprep.subr.mxu0 0.0
    %3278 = vmatpush1.xpose.msra.mxu0 0.0
    %3279 = vmatprep.subr.mxu0 0.0
    %3280 = vmatpush1.xpose.msra.mxu0 0.0
    %3281 = vmatprep.subr.mxu0 0.0
    %3282 = vmatpush1.xpose.msra.mxu0 0.0
    %3283 = vmatprep.subr.mxu0 0.0
    %3284 = vmatpush1.xpose.msra.mxu0 0.0
    %3285 = vmatprep.subr.mxu0 0.0
    %3286 = vmatpush1.xpose.msra.mxu0 0.0
    %3287 = vmatprep.subr.mxu0 0.0
    %3288 = vmatpush1.xpose.msra.mxu0 0.0
    %3289 = vmatprep.subr.mxu0 0.0
    %3290 = vmatpush1.xpose.msra.mxu0 0.0
    %3291 = vmatprep.subr.mxu0 0.0
    %3292 = vmatpush1.xpose.msra.mxu0 0.0
    %3293 = vmatprep.subr.mxu0 0.0
    %3294 = vmatpush1.xpose.msra.mxu0 0.0
    %3295 = vmatprep.subr.mxu0 0.0
    %3296 = vmatpush1.xpose.msra.mxu0 0.0
    %3297 = vmatprep.subr.mxu0 0.0
    %3298 = vmatpush1.xpose.msra.mxu0 0.0
    %3299 = vmatprep.subr.mxu0 0.0
    %3300 = vmatpush1.xpose.msra.mxu0 0.0
    %3301 = vmatprep.subr.mxu0 0.0
    %3302 = vmatpush1.xpose.msra.mxu0 0.0
    %3303 = vmatprep.subr.mxu0 0.0
    %3304 = vmatpush1.xpose.msra.mxu0 0.0
    %3305 = vmatprep.subr.mxu0 0.0
    %3306 = vmatpush1.xpose.msra.mxu0 0.0
    %3307 = vmatprep.subr.mxu0 0.0
    %3308 = vmatpush1.xpose.msra.mxu0 0.0
    %3309 = vmatprep.subr.mxu0 0.0
    %3310 = vmatpush1.xpose.msra.mxu0 0.0
    %3311 = vmatprep.subr.mxu0 0.0
    %3312 = vmatpush1.xpose.msra.mxu0 0.0
    %3313 = vmatprep.subr.mxu0 0.0
    %3314 = vmatpush1.xpose.msra.mxu0 0.0
    %3315 = vmatprep.subr.mxu0 0.0
    %3316 = vmatpush1.xpose.msra.mxu0 0.0
    %3317 = vmatprep.mubr.f32.mxu0 0.0
    %3318 = vmatmul.mubr.f32.gmra.mrb[0].mxu0 %v3248
    %v3319 = vpop.f32.mrb[0].mxu0
    %v3320 = vadd.f32 0.0, %v3319
    %v3321 = vpop.f32.mrb[0].mxu0
    %3322 = vdwg.mxu0
    %v3324 = vsel %vm2182, %v1005, 0
    %v3327 = vsel %vm2182, %v1593, 0
    %3329 = vmatprep.subr.mxu0 0.0
    %3330 = vmatpush1.xpose.msra.mxu0 %v3327
    %3331 = vmatprep.subr.mxu0 0.0
    %3332 = vmatpush1.xpose.msra.mxu0 0.0
    %3333 = vmatprep.subr.mxu0 0.0
    %3334 = vmatpush1.xpose.msra.mxu0 0.0
    %3335 = vmatprep.subr.mxu0 0.0
    %3336 = vmatpush1.xpose.msra.mxu0 0.0
    %3337 = vmatprep.subr.mxu0 0.0
    %3338 = vmatpush1.xpose.msra.mxu0 0.0
    %3339 = vmatprep.subr.mxu0 0.0
    %3340 = vmatpush1.xpose.msra.mxu0 0.0
    %3341 = vmatprep.subr.mxu0 0.0
    %3342 = vmatpush1.xpose.msra.mxu0 0.0
    %3343 = vmatprep.subr.mxu0 0.0
    %3344 = vmatpush1.xpose.msra.mxu0 0.0
    %3345 = vmatprep.subr.mxu0 0.0
    %3346 = vmatpush1.xpose.msra.mxu0 0.0
    %3347 = vmatprep.subr.mxu0 0.0
    %3348 = vmatpush1.xpose.msra.mxu0 0.0
    %3349 = vmatprep.subr.mxu0 0.0
    %3350 = vmatpush1.xpose.msra.mxu0 0.0
    %3351 = vmatprep.subr.mxu0 0.0
    %3352 = vmatpush1.xpose.msra.mxu0 0.0
    %3353 = vmatprep.subr.mxu0 0.0
    %3354 = vmatpush1.xpose.msra.mxu0 0.0
    %3355 = vmatprep.subr.mxu0 0.0
    %3356 = vmatpush1.xpose.msra.mxu0 0.0
    %3357 = vmatprep.subr.mxu0 0.0
    %3358 = vmatpush1.xpose.msra.mxu0 0.0
    %3359 = vmatprep.subr.mxu0 0.0
    %3360 = vmatpush1.xpose.msra.mxu0 0.0
    %3361 = vmatprep.subr.mxu0 0.0
    %3362 = vmatpush1.xpose.msra.mxu0 0.0
    %3363 = vmatprep.subr.mxu0 0.0
    %3364 = vmatpush1.xpose.msra.mxu0 0.0
    %3365 = vmatprep.subr.mxu0 0.0
    %3366 = vmatpush1.xpose.msra.mxu0 0.0
    %3367 = vmatprep.subr.mxu0 0.0
    %3368 = vmatpush1.xpose.msra.mxu0 0.0
    %3369 = vmatprep.subr.mxu0 0.0
    %3370 = vmatpush1.xpose.msra.mxu0 0.0
    %3371 = vmatprep.subr.mxu0 0.0
    %3372 = vmatpush1.xpose.msra.mxu0 0.0
    %3373 = vmatprep.subr.mxu0 0.0
    %3374 = vmatpush1.xpose.msra.mxu0 0.0
    %3375 = vmatprep.subr.mxu0 0.0
    %3376 = vmatpush1.xpose.msra.mxu0 0.0
    %3377 = vmatprep.subr.mxu0 0.0
    %3378 = vmatpush1.xpose.msra.mxu0 0.0
    %3379 = vmatprep.subr.mxu0 0.0
    %3380 = vmatpush1.xpose.msra.mxu0 0.0
    %3381 = vmatprep.subr.mxu0 0.0
    %3382 = vmatpush1.xpose.msra.mxu0 0.0
    %3383 = vmatprep.subr.mxu0 0.0
    %3384 = vmatpush1.xpose.msra.mxu0 0.0
    %3385 = vmatprep.subr.mxu0 0.0
    %3386 = vmatpush1.xpose.msra.mxu0 0.0
    %3387 = vmatprep.subr.mxu0 0.0
    %3388 = vmatpush1.xpose.msra.mxu0 0.0
    %3389 = vmatprep.subr.mxu0 0.0
    %3390 = vmatpush1.xpose.msra.mxu0 0.0
    %3391 = vmatprep.subr.mxu0 0.0
    %3392 = vmatpush1.xpose.msra.mxu0 0.0
    %3393 = vmatprep.mubr.f32.mxu0 0.0
    %3394 = vmatmul.mubr.f32.gmra.mrb[0].mxu0 %v3324
    %v3395 = vpop.f32.mrb[0].mxu0
    %v3396 = vadd.f32 0.0, %v3395
    %v3397 = vpop.f32.mrb[0].mxu0
    %3398 = vdwg.mxu0
    %vm3399 = vcmask 64512
    %v3400 = vsel %vm3399, %v2256, -inf
    %3401 = vmax.xlane.f32.xlu0 %v3400
    %v3402 = vpop.xlane.xlu0 %3401
    %v3403 = vsel %vm3399, %v2332, -inf
    %3404 = vmax.xlane.f32.xlu0 %v3403
    %v3405 = vpop.xlane.xlu0 %3404
    %v3406 = vsel %vm3399, %v2408, -inf
    %3407 = vmax.xlane.f32.xlu0 %v3406
    %v3408 = vpop.xlane.xlu0 %3407
    %v3409 = vsel %vm3399, %v2484, -inf
    %3410 = vmax.xlane.f32.xlu0 %v3409
    %v3411 = vpop.xlane.xlu0 %3410
    %v3412 = vsel %vm3399, %v2560, -inf
    %3413 = vmax.xlane.f32.xlu0 %v3412
    %v3414 = vpop.xlane.xlu0 %3413
    %v3415 = vsel %vm3399, %v2636, -inf
    %3416 = vmax.xlane.f32.xlu0 %v3415
    %v3417 = vpop.xlane.xlu0 %3416
    %v3418 = vsel %vm3399, %v2712, -inf
    %3419 = vmax.xlane.f32.xlu0 %v3418
    %v3420 = vpop.xlane.xlu0 %3419
    %v3421 = vsel %vm3399, %v2788, -inf
    %3422 = vmax.xlane.f32.xlu0 %v3421
    %v3423 = vpop.xlane.xlu0 %3422
    %v3424 = vsel %vm3399, %v2864, -inf
    %3425 = vmax.xlane.f32.xlu0 %v3424
    %v3426 = vpop.xlane.xlu0 %3425
    %v3427 = vsel %vm3399, %v2940, -inf
    %3428 = vmax.xlane.f32.xlu0 %v3427
    %v3429 = vpop.xlane.xlu0 %3428
    %v3430 = vsel %vm3399, %v3016, -inf
    %3431 = vmax.xlane.f32.xlu0 %v3430
    %v3432 = vpop.xlane.xlu0 %3431
    %v3433 = vsel %vm3399, %v3092, -inf
    %3434 = vmax.xlane.f32.xlu0 %v3433
    %v3435 = vpop.xlane.xlu0 %3434
    %v3436 = vsel %vm3399, %v3168, -inf
    %3437 = vmax.xlane.f32.xlu0 %v3436
    %v3438 = vpop.xlane.xlu0 %3437
    %v3439 = vsel %vm3399, %v3244, -inf
    %3440 = vmax.xlane.f32.xlu0 %v3439
    %v3441 = vpop.xlane.xlu0 %3440
    %v3442 = vsel %vm3399, %v3320, -inf
    %3443 = vmax.xlane.f32.xlu0 %v3442
    %v3444 = vpop.xlane.xlu0 %3443
    %v3445 = vsel %vm3399, %v3396, -inf
    %3446 = vmax.xlane.f32.xlu0 %v3445
    %v3447 = vpop.xlane.xlu0 %3446
    %v3448 = vsub.f32 %v2256, %v3402
    %v3449 = vsub.f32 %v2332, %v3405
    %v3450 = vsub.f32 %v2408, %v3408
    %v3451 = vsub.f32 %v2484, %v3411
    %v3452 = vsub.f32 %v2560, %v3414
    %v3453 = vsub.f32 %v2636, %v3417
    %v3454 = vsub.f32 %v2712, %v3420
    %v3455 = vsub.f32 %v2788, %v3423
    %v3456 = vsub.f32 %v2864, %v3426
    %v3457 = vsub.f32 %v2940, %v3429
    %v3458 = vsub.f32 %v3016, %v3432
    %v3459 = vsub.f32 %v3092, %v3435
    %v3460 = vsub.f32 %v3168, %v3438
    %v3461 = vsub.f32 %v3244, %v3441
    %v3462 = vsub.f32 %v3320, %v3444
    %v3463 = vsub.f32 %v3396, %v3447
    %v3464 = vmul.f32 %v3448, 1.442695
    %v3465 = vpow.pop %v3464
    %v3466 = vmul.f32 %v3449, 1.442695
    %v3467 = vpow.pop %v3466
    %v3468 = vmul.f32 %v3450, 1.442695
    %v3469 = vpow.pop %v3468
    %v3470 = vmul.f32 %v3451, 1.442695
    %v3471 = vpow.pop %v3470
    %v3472 = vmul.f32 %v3452, 1.442695
    %v3473 = vpow.pop %v3472
    %v3474 = vmul.f32 %v3453, 1.442695
    %v3475 = vpow.pop %v3474
    %v3476 = vmul.f32 %v3454, 1.442695
    %v3477 = vpow.pop %v3476
    %v3478 = vmul.f32 %v3455, 1.442695
    %v3479 = vpow.pop %v3478
    %v3480 = vmul.f32 %v3456, 1.442695
    %v3481 = vpow.pop %v3480
    %v3482 = vmul.f32 %v3457, 1.442695
    %v3483 = vpow.pop %v3482
    %v3484 = vmul.f32 %v3458, 1.442695
    %v3485 = vpow.pop %v3484
    %v3486 = vmul.f32 %v3459, 1.442695
    %v3487 = vpow.pop %v3486
    %v3488 = vmul.f32 %v3460, 1.442695
    %v3489 = vpow.pop %v3488
    %v3490 = vmul.f32 %v3461, 1.442695
    %v3491 = vpow.pop %v3490
    %v3492 = vmul.f32 %v3462, 1.442695
    %v3493 = vpow.pop %v3492
    %v3494 = vmul.f32 %v3463, 1.442695
    %v3495 = vpow.pop %v3494
    %v3496 = vsel %vm3399, %v3465, 0.0
    %3497 = vadd.xlane.f32.xlu0 %v3496
    %v3498 = vpop.xlane.xlu0 %3497
    %v3499 = vsel %vm3399, %v3467, 0.0
    %3500 = vadd.xlane.f32.xlu0 %v3499
    %v3501 = vpop.xlane.xlu0 %3500
    %v3502 = vsel %vm3399, %v3469, 0.0
    %3503 = vadd.xlane.f32.xlu0 %v3502
    %v3504 = vpop.xlane.xlu0 %3503
    %v3505 = vsel %vm3399, %v3471, 0.0
    %3506 = vadd.xlane.f32.xlu0 %v3505
    %v3507 = vpop.xlane.xlu0 %3506
    %v3508 = vsel %vm3399, %v3473, 0.0
    %3509 = vadd.xlane.f32.xlu0 %v3508
    %v3510 = vpop.xlane.xlu0 %3509
    %v3511 = vsel %vm3399, %v3475, 0.0
    %3512 = vadd.xlane.f32.xlu0 %v3511
    %v3513 = vpop.xlane.xlu0 %3512
    %v3514 = vsel %vm3399, %v3477, 0.0
    %3515 = vadd.xlane.f32.xlu0 %v3514
    %v3516 = vpop.xlane.xlu0 %3515
    %v3517 = vsel %vm3399, %v3479, 0.0
    %3518 = vadd.xlane.f32.xlu0 %v3517
    %v3519 = vpop.xlane.xlu0 %3518
    %v3520 = vsel %vm3399, %v3481, 0.0
    %3521 = vadd.xlane.f32.xlu0 %v3520
    %v3522 = vpop.xlane.xlu0 %3521
    %v3523 = vsel %vm3399, %v3483, 0.0
    %3524 = vadd.xlane.f32.xlu0 %v3523
    %v3525 = vpop.xlane.xlu0 %3524
    %v3526 = vsel %vm3399, %v3485, 0.0
    %3527 = vadd.xlane.f32.xlu0 %v3526
    %v3528 = vpop.xlane.xlu0 %3527
    %v3529 = vsel %vm3399, %v3487, 0.0
    %3530 = vadd.xlane.f32.xlu0 %v3529
    %v3531 = vpop.xlane.xlu0 %3530
    %v3532 = vsel %vm3399, %v3489, 0.0
    %3533 = vadd.xlane.f32.xlu0 %v3532
    %v3534 = vpop.xlane.xlu0 %3533
    %v3535 = vsel %vm3399, %v3491, 0.0
    %3536 = vadd.xlane.f32.xlu0 %v3535
    %v3537 = vpop.xlane.xlu0 %3536
    %v3538 = vsel %vm3399, %v3493, 0.0
    %3539 = vadd.xlane.f32.xlu0 %v3538
    %v3540 = vpop.xlane.xlu0 %3539
    %v3541 = vsel %vm3399, %v3495, 0.0
    %3542 = vadd.xlane.f32.xlu0 %v3541
    %v3543 = vpop.xlane.xlu0 %3542
    %v3544 = vrcp.pop %v3498
    %v3545 = vrcp.pop %v3501
    %v3546 = vrcp.pop %v3504
    %v3547 = vrcp.pop %v3507
    %v3548 = vrcp.pop %v3510
    %v3549 = vrcp.pop %v3513
    %v3550 = vrcp.pop %v3516
    %v3551 = vrcp.pop %v3519
    %v3552 = vrcp.pop %v3522
    %v3553 = vrcp.pop %v3525
    %v3554 = vrcp.pop %v3528
    %v3555 = vrcp.pop %v3531
    %v3556 = vrcp.pop %v3534
    %v3557 = vrcp.pop %v3537
    %v3558 = vrcp.pop %v3540
    %v3559 = vrcp.pop %v3543
    %v3560 = vmul.f32 %v3465, %v3544
    %v3561 = vmul.f32 %v3467, %v3545
    %v3562 = vmul.f32 %v3469, %v3546
    %v3563 = vmul.f32 %v3471, %v3547
    %v3564 = vmul.f32 %v3473, %v3548
    %v3565 = vmul.f32 %v3475, %v3549
    %v3566 = vmul.f32 %v3477, %v3550
    %v3567 = vmul.f32 %v3479, %v3551
    %v3568 = vmul.f32 %v3481, %v3552
    %v3569 = vmul.f32 %v3483, %v3553
    %v3570 = vmul.f32 %v3485, %v3554
    %v3571 = vmul.f32 %v3487, %v3555
    %v3572 = vmul.f32 %v3489, %v3556
    %v3573 = vmul.f32 %v3491, %v3557
    %v3574 = vmul.f32 %v3493, %v3558
    %v3575 = vmul.f32 %v3495, %v3559
    %3576 = vst.msk [vmem:[#allocation15] sm:$0xff] %vm3399, %v3560
    %3577 = vst.msk [vmem:[#allocation15 + $0x8] sm:$0xff] %vm3399, %v3561
    %3578 = vst.msk [vmem:[#allocation15 + $0x10] sm:$0xff] %vm3399, %v3562
    %3579 = vst.msk [vmem:[#allocation15 + $0x18] sm:$0xff] %vm3399, %v3563
    %3580 = vst.msk [vmem:[#allocation15 + $0x20] sm:$0xff] %vm3399, %v3564
    %3581 = vst.msk [vmem:[#allocation15 + $0x28] sm:$0xff] %vm3399, %v3565
    %3582 = vst.msk [vmem:[#allocation15 + $0x30] sm:$0xff] %vm3399, %v3566
    %3583 = vst.msk [vmem:[#allocation15 + $0x38] sm:$0xff] %vm3399, %v3567
    %3584 = vst.msk [vmem:[#allocation15 + $0x40] sm:$0xff] %vm3399, %v3568
    %3585 = vst.msk [vmem:[#allocation15 + $0x48] sm:$0xff] %vm3399, %v3569
    %3586 = vst.msk [vmem:[#allocation15 + $0x50] sm:$0xff] %vm3399, %v3570
    %3587 = vst.msk [vmem:[#allocation15 + $0x58] sm:$0xff] %vm3399, %v3571
    %3588 = vst.msk [vmem:[#allocation15 + $0x60] sm:$0xff] %vm3399, %v3572
    %3589 = vst.msk [vmem:[#allocation15 + $0x68] sm:$0xff] %vm3399, %v3573
    %3590 = vst.msk [vmem:[#allocation15 + $0x70] sm:$0xff] %vm3399, %v3574
    %3591 = vst.msk [vmem:[#allocation15 + $0x78] sm:$0xff] %vm3399, %v3575
    %v3593 = vsel %vm3399, %v3560, 0
    %3595 = vmatprep.subr.mxu0 0.0
    %3596 = vmatpush1.msra.mxu0 %v2038
    %3597 = vmatprep.subr.mxu0 0.0
    %3598 = vmatpush1.msra.mxu0 0.0
    %3599 = vmatprep.subr.mxu0 0.0
    %3600 = vmatpush1.msra.mxu0 0.0
    %3601 = vmatprep.subr.mxu0 0.0
    %3602 = vmatpush1.msra.mxu0 0.0
    %3603 = vmatprep.subr.mxu0 0.0
    %3604 = vmatpush1.msra.mxu0 0.0
    %3605 = vmatprep.subr.mxu0 0.0
    %3606 = vmatpush1.msra.mxu0 0.0
    %3607 = vmatprep.subr.mxu0 0.0
    %3608 = vmatpush1.msra.mxu0 0.0
    %3609 = vmatprep.subr.mxu0 0.0
    %3610 = vmatpush1.msra.mxu0 0.0
    %3611 = vmatprep.subr.mxu0 0.0
    %3612 = vmatpush1.msra.mxu0 0.0
    %3613 = vmatprep.subr.mxu0 0.0
    %3614 = vmatpush1.msra.mxu0 0.0
    %3615 = vmatprep.subr.mxu0 0.0
    %3616 = vmatpush1.msra.mxu0 0.0
    %3617 = vmatprep.subr.mxu0 0.0
    %3618 = vmatpush1.msra.mxu0 0.0
    %3619 = vmatprep.subr.mxu0 0.0
    %3620 = vmatpush1.msra.mxu0 0.0
    %3621 = vmatprep.subr.mxu0 0.0
    %3622 = vmatpush1.msra.mxu0 0.0
    %3623 = vmatprep.subr.mxu0 0.0
    %3624 = vmatpush1.msra.mxu0 0.0
    %3625 = vmatprep.subr.mxu0 0.0
    %3626 = vmatpush1.msra.mxu0 0.0
    %3627 = vmatprep.subr.mxu0 0.0
    %3628 = vmatpush1.msra.mxu0 0.0
    %3629 = vmatprep.subr.mxu0 0.0
    %3630 = vmatpush1.msra.mxu0 0.0
    %3631 = vmatprep.subr.mxu0 0.0
    %3632 = vmatpush1.msra.mxu0 0.0
    %3633 = vmatprep.subr.mxu0 0.0
    %3634 = vmatpush1.msra.mxu0 0.0
    %3635 = vmatprep.subr.mxu0 0.0
    %3636 = vmatpush1.msra.mxu0 0.0
    %3637 = vmatprep.subr.mxu0 0.0
    %3638 = vmatpush1.msra.mxu0 0.0
    %3639 = vmatprep.subr.mxu0 0.0
    %3640 = vmatpush1.msra.mxu0 0.0
    %3641 = vmatprep.subr.mxu0 0.0
    %3642 = vmatpush1.msra.mxu0 0.0
    %3643 = vmatprep.subr.mxu0 0.0
    %3644 = vmatpush1.msra.mxu0 0.0
    %3645 = vmatprep.subr.mxu0 0.0
    %3646 = vmatpush1.msra.mxu0 0.0
    %3647 = vmatprep.subr.mxu0 0.0
    %3648 = vmatpush1.msra.mxu0 0.0
    %3649 = vmatprep.subr.mxu0 0.0
    %3650 = vmatpush1.msra.mxu0 0.0
    %3651 = vmatprep.subr.mxu0 0.0
    %3652 = vmatpush1.msra.mxu0 0.0
    %3653 = vmatprep.subr.mxu0 0.0
    %3654 = vmatpush1.msra.mxu0 0.0
    %3655 = vmatprep.subr.mxu0 0.0
    %3656 = vmatpush1.msra.mxu0 0.0
    %3657 = vmatprep.subr.mxu0 0.0
    %3658 = vmatpush1.msra.mxu0 0.0
    %3659 = vmatprep.mubr.f32.mxu0 0.0
    %3660 = vmatmul.mubr.f32.gmra.mrb[0].mxu0 %v3593
    %v3661 = vpop.f32.mrb[0].mxu0
    %v3662 = vadd.f32 0.0, %v3661
    %v3663 = vpop.f32.mrb[0].mxu0
    %3664 = vdwg.mxu0
    %v3666 = vsel %vm3399, %v3561, 0
    %3668 = vmatprep.subr.mxu0 0.0
    %3669 = vmatpush1.msra.mxu0 %v2039
    %3670 = vmatprep.subr.mxu0 0.0
    %3671 = vmatpush1.msra.mxu0 0.0
    %3672 = vmatprep.subr.mxu0 0.0
    %3673 = vmatpush1.msra.mxu0 0.0
    %3674 = vmatprep.subr.mxu0 0.0
    %3675 = vmatpush1.msra.mxu0 0.0
    %3676 = vmatprep.subr.mxu0 0.0
    %3677 = vmatpush1.msra.mxu0 0.0
    %3678 = vmatprep.subr.mxu0 0.0
    %3679 = vmatpush1.msra.mxu0 0.0
    %3680 = vmatprep.subr.mxu0 0.0
    %3681 = vmatpush1.msra.mxu0 0.0
    %3682 = vmatprep.subr.mxu0 0.0
    %3683 = vmatpush1.msra.mxu0 0.0
    %3684 = vmatprep.subr.mxu0 0.0
    %3685 = vmatpush1.msra.mxu0 0.0
    %3686 = vmatprep.subr.mxu0 0.0
    %3687 = vmatpush1.msra.mxu0 0.0
    %3688 = vmatprep.subr.mxu0 0.0
    %3689 = vmatpush1.msra.mxu0 0.0
    %3690 = vmatprep.subr.mxu0 0.0
    %3691 = vmatpush1.msra.mxu0 0.0
    %3692 = vmatprep.subr.mxu0 0.0
    %3693 = vmatpush1.msra.mxu0 0.0
    %3694 = vmatprep.subr.mxu0 0.0
    %3695 = vmatpush1.msra.mxu0 0.0
    %3696 = vmatprep.subr.mxu0 0.0
    %3697 = vmatpush1.msra.mxu0 0.0
    %3698 = vmatprep.subr.mxu0 0.0
    %3699 = vmatpush1.msra.mxu0 0.0
    %3700 = vmatprep.subr.mxu0 0.0
    %3701 = vmatpush1.msra.mxu0 0.0
    %3702 = vmatprep.subr.mxu0 0.0
    %3703 = vmatpush1.msra.mxu0 0.0
    %3704 = vmatprep.subr.mxu0 0.0
    %3705 = vmatpush1.msra.mxu0 0.0
    %3706 = vmatprep.subr.mxu0 0.0
    %3707 = vmatpush1.msra.mxu0 0.0
    %3708 = vmatprep.subr.mxu0 0.0
    %3709 = vmatpush1.msra.mxu0 0.0
    %3710 = vmatprep.subr.mxu0 0.0
    %3711 = vmatpush1.msra.mxu0 0.0
    %3712 = vmatprep.subr.mxu0 0.0
    %3713 = vmatpush1.msra.mxu0 0.0
    %3714 = vmatprep.subr.mxu0 0.0
    %3715 = vmatpush1.msra.mxu0 0.0
    %3716 = vmatprep.subr.mxu0 0.0
    %3717 = vmatpush1.msra.mxu0 0.0
    %3718 = vmatprep.subr.mxu0 0.0
    %3719 = vmatpush1.msra.mxu0 0.0
    %3720 = vmatprep.subr.mxu0 0.0
    %3721 = vmatpush1.msra.mxu0 0.0
    %3722 = vmatprep.subr.mxu0 0.0
    %3723 = vmatpush1.msra.mxu0 0.0
    %3724 = vmatprep.subr.mxu0 0.0
    %3725 = vmatpush1.msra.mxu0 0.0
    %3726 = vmatprep.subr.mxu0 0.0
    %3727 = vmatpush1.msra.mxu0 0.0
    %3728 = vmatprep.subr.mxu0 0.0
    %3729 = vmatpush1.msra.mxu0 0.0
    %3730 = vmatprep.subr.mxu0 0.0
    %3731 = vmatpush1.msra.mxu0 0.0
    %3732 = vmatprep.mubr.f32.mxu0 0.0
    %3733 = vmatmul.mubr.f32.gmra.mrb[0].mxu0 %v3666
    %v3734 = vpop.f32.mrb[0].mxu0
    %v3735 = vadd.f32 0.0, %v3734
    %v3736 = vpop.f32.mrb[0].mxu0
    %3737 = vdwg.mxu0
    %v3739 = vsel %vm3399, %v3562, 0
    %3741 = vmatprep.subr.mxu0 0.0
    %3742 = vmatpush1.msra.mxu0 %v2040
    %3743 = vmatprep.subr.mxu0 0.0
    %3744 = vmatpush1.msra.mxu0 0.0
    %3745 = vmatprep.subr.mxu0 0.0
    %3746 = vmatpush1.msra.mxu0 0.0
    %3747 = vmatprep.subr.mxu0 0.0
    %3748 = vmatpush1.msra.mxu0 0.0
    %3749 = vmatprep.subr.mxu0 0.0
    %3750 = vmatpush1.msra.mxu0 0.0
    %3751 = vmatprep.subr.mxu0 0.0
    %3752 = vmatpush1.msra.mxu0 0.0
    %3753 = vmatprep.subr.mxu0 0.0
    %3754 = vmatpush1.msra.mxu0 0.0
    %3755 = vmatprep.subr.mxu0 0.0
    %3756 = vmatpush1.msra.mxu0 0.0
    %3757 = vmatprep.subr.mxu0 0.0
    %3758 = vmatpush1.msra.mxu0 0.0
    %3759 = vmatprep.subr.mxu0 0.0
    %3760 = vmatpush1.msra.mxu0 0.0
    %3761 = vmatprep.subr.mxu0 0.0
    %3762 = vmatpush1.msra.mxu0 0.0
    %3763 = vmatprep.subr.mxu0 0.0
    %3764 = vmatpush1.msra.mxu0 0.0
    %3765 = vmatprep.subr.mxu0 0.0
    %3766 = vmatpush1.msra.mxu0 0.0
    %3767 = vmatprep.subr.mxu0 0.0
    %3768 = vmatpush1.msra.mxu0 0.0
    %3769 = vmatprep.subr.mxu0 0.0
    %3770 = vmatpush1.msra.mxu0 0.0
    %3771 = vmatprep.subr.mxu0 0.0
    %3772 = vmatpush1.msra.mxu0 0.0
    %3773 = vmatprep.subr.mxu0 0.0
    %3774 = vmatpush1.msra.mxu0 0.0
    %3775 = vmatprep.subr.mxu0 0.0
    %3776 = vmatpush1.msra.mxu0 0.0
    %3777 = vmatprep.subr.mxu0 0.0
    %3778 = vmatpush1.msra.mxu0 0.0
    %3779 = vmatprep.subr.mxu0 0.0
    %3780 = vmatpush1.msra.mxu0 0.0
    %3781 = vmatprep.subr.mxu0 0.0
    %3782 = vmatpush1.msra.mxu0 0.0
    %3783 = vmatprep.subr.mxu0 0.0
    %3784 = vmatpush1.msra.mxu0 0.0
    %3785 = vmatprep.subr.mxu0 0.0
    %3786 = vmatpush1.msra.mxu0 0.0
    %3787 = vmatprep.subr.mxu0 0.0
    %3788 = vmatpush1.msra.mxu0 0.0
    %3789 = vmatprep.subr.mxu0 0.0
    %3790 = vmatpush1.msra.mxu0 0.0
    %3791 = vmatprep.subr.mxu0 0.0
    %3792 = vmatpush1.msra.mxu0 0.0
    %3793 = vmatprep.subr.mxu0 0.0
    %3794 = vmatpush1.msra.mxu0 0.0
    %3795 = vmatprep.subr.mxu0 0.0
    %3796 = vmatpush1.msra.mxu0 0.0
    %3797 = vmatprep.subr.mxu0 0.0
    %3798 = vmatpush1.msra.mxu0 0.0
    %3799 = vmatprep.subr.mxu0 0.0
    %3800 = vmatpush1.msra.mxu0 0.0
    %3801 = vmatprep.subr.mxu0 0.0
    %3802 = vmatpush1.msra.mxu0 0.0
    %3803 = vmatprep.subr.mxu0 0.0
    %3804 = vmatpush1.msra.mxu0 0.0
    %3805 = vmatprep.mubr.f32.mxu0 0.0
    %3806 = vmatmul.mubr.f32.gmra.mrb[0].mxu0 %v3739
    %v3807 = vpop.f32.mrb[0].mxu0
    %v3808 = vadd.f32 0.0, %v3807
    %v3809 = vpop.f32.mrb[0].mxu0
    %3810 = vdwg.mxu0
    %v3812 = vsel %vm3399, %v3563, 0
    %3814 = vmatprep.subr.mxu0 0.0
    %3815 = vmatpush1.msra.mxu0 %v2041
    %3816 = vmatprep.subr.mxu0 0.0
    %3817 = vmatpush1.msra.mxu0 0.0
    %3818 = vmatprep.subr.mxu0 0.0
    %3819 = vmatpush1.msra.mxu0 0.0
    %3820 = vmatprep.subr.mxu0 0.0
    %3821 = vmatpush1.msra.mxu0 0.0
    %3822 = vmatprep.subr.mxu0 0.0
    %3823 = vmatpush1.msra.mxu0 0.0
    %3824 = vmatprep.subr.mxu0 0.0
    %3825 = vmatpush1.msra.mxu0 0.0
    %3826 = vmatprep.subr.mxu0 0.0
    %3827 = vmatpush1.msra.mxu0 0.0
    %3828 = vmatprep.subr.mxu0 0.0
    %3829 = vmatpush1.msra.mxu0 0.0
    %3830 = vmatprep.subr.mxu0 0.0
    %3831 = vmatpush1.msra.mxu0 0.0
    %3832 = vmatprep.subr.mxu0 0.0
    %3833 = vmatpush1.msra.mxu0 0.0
    %3834 = vmatprep.subr.mxu0 0.0
    %3835 = vmatpush1.msra.mxu0 0.0
    %3836 = vmatprep.subr.mxu0 0.0
    %3837 = vmatpush1.msra.mxu0 0.0
    %3838 = vmatprep.subr.mxu0 0.0
    %3839 = vmatpush1.msra.mxu0 0.0
    %3840 = vmatprep.subr.mxu0 0.0
    %3841 = vmatpush1.msra.mxu0 0.0
    %3842 = vmatprep.subr.mxu0 0.0
    %3843 = vmatpush1.msra.mxu0 0.0
    %3844 = vmatprep.subr.mxu0 0.0
    %3845 = vmatpush1.msra.mxu0 0.0
    %3846 = vmatprep.subr.mxu0 0.0
    %3847 = vmatpush1.msra.mxu0 0.0
    %3848 = vmatprep.subr.mxu0 0.0
    %3849 = vmatpush1.msra.mxu0 0.0
    %3850 = vmatprep.subr.mxu0 0.0
    %3851 = vmatpush1.msra.mxu0 0.0
    %3852 = vmatprep.subr.mxu0 0.0
    %3853 = vmatpush1.msra.mxu0 0.0
    %3854 = vmatprep.subr.mxu0 0.0
    %3855 = vmatpush1.msra.mxu0 0.0
    %3856 = vmatprep.subr.mxu0 0.0
    %3857 = vmatpush1.msra.mxu0 0.0
    %3858 = vmatprep.subr.mxu0 0.0
    %3859 = vmatpush1.msra.mxu0 0.0
    %3860 = vmatprep.subr.mxu0 0.0
    %3861 = vmatpush1.msra.mxu0 0.0
    %3862 = vmatprep.subr.mxu0 0.0
    %3863 = vmatpush1.msra.mxu0 0.0
    %3864 = vmatprep.subr.mxu0 0.0
    %3865 = vmatpush1.msra.mxu0 0.0
    %3866 = vmatprep.subr.mxu0 0.0
    %3867 = vmatpush1.msra.mxu0 0.0
    %3868 = vmatprep.subr.mxu0 0.0
    %3869 = vmatpush1.msra.mxu0 0.0
    %3870 = vmatprep.subr.mxu0 0.0
    %3871 = vmatpush1.msra.mxu0 0.0
    %3872 = vmatprep.subr.mxu0 0.0
    %3873 = vmatpush1.msra.mxu0 0.0
    %3874 = vmatprep.subr.mxu0 0.0
    %3875 = vmatpush1.msra.mxu0 0.0
    %3876 = vmatprep.subr.mxu0 0.0
    %3877 = vmatpush1.msra.mxu0 0.0
    %3878 = vmatprep.mubr.f32.mxu0 0.0
    %3879 = vmatmul.mubr.f32.gmra.mrb[0].mxu0 %v3812
    %v3880 = vpop.f32.mrb[0].mxu0
    %v3881 = vadd.f32 0.0, %v3880
    %v3882 = vpop.f32.mrb[0].mxu0
    %3883 = vdwg.mxu0
    %v3885 = vsel %vm3399, %v3564, 0
    %3887 = vmatprep.subr.mxu0 0.0
    %3888 = vmatpush1.msra.mxu0 %v2042
    %3889 = vmatprep.subr.mxu0 0.0
    %3890 = vmatpush1.msra.mxu0 0.0
    %3891 = vmatprep.subr.mxu0 0.0
    %3892 = vmatpush1.msra.mxu0 0.0
    %3893 = vmatprep.subr.mxu0 0.0
    %3894 = vmatpush1.msra.mxu0 0.0
    %3895 = vmatprep.subr.mxu0 0.0
    %3896 = vmatpush1.msra.mxu0 0.0
    %3897 = vmatprep.subr.mxu0 0.0
    %3898 = vmatpush1.msra.mxu0 0.0
    %3899 = vmatprep.subr.mxu0 0.0
    %3900 = vmatpush1.msra.mxu0 0.0
    %3901 = vmatprep.subr.mxu0 0.0
    %3902 = vmatpush1.msra.mxu0 0.0
    %3903 = vmatprep.subr.mxu0 0.0
    %3904 = vmatpush1.msra.mxu0 0.0
    %3905 = vmatprep.subr.mxu0 0.0
    %3906 = vmatpush1.msra.mxu0 0.0
    %3907 = vmatprep.subr.mxu0 0.0
    %3908 = vmatpush1.msra.mxu0 0.0
    %3909 = vmatprep.subr.mxu0 0.0
    %3910 = vmatpush1.msra.mxu0 0.0
    %3911 = vmatprep.subr.mxu0 0.0
    %3912 = vmatpush1.msra.mxu0 0.0
    %3913 = vmatprep.subr.mxu0 0.0
    %3914 = vmatpush1.msra.mxu0 0.0
    %3915 = vmatprep.subr.mxu0 0.0
    %3916 = vmatpush1.msra.mxu0 0.0
    %3917 = vmatprep.subr.mxu0 0.0
    %3918 = vmatpush1.msra.mxu0 0.0
    %3919 = vmatprep.subr.mxu0 0.0
    %3920 = vmatpush1.msra.mxu0 0.0
    %3921 = vmatprep.subr.mxu0 0.0
    %3922 = vmatpush1.msra.mxu0 0.0
    %3923 = vmatprep.subr.mxu0 0.0
    %3924 = vmatpush1.msra.mxu0 0.0
    %3925 = vmatprep.subr.mxu0 0.0
    %3926 = vmatpush1.msra.mxu0 0.0
    %3927 = vmatprep.subr.mxu0 0.0
    %3928 = vmatpush1.msra.mxu0 0.0
    %3929 = vmatprep.subr.mxu0 0.0
    %3930 = vmatpush1.msra.mxu0 0.0
    %3931 = vmatprep.subr.mxu0 0.0
    %3932 = vmatpush1.msra.mxu0 0.0
    %3933 = vmatprep.subr.mxu0 0.0
    %3934 = vmatpush1.msra.mxu0 0.0
    %3935 = vmatprep.subr.mxu0 0.0
    %3936 = vmatpush1.msra.mxu0 0.0
    %3937 = vmatprep.subr.mxu0 0.0
    %3938 = vmatpush1.msra.mxu0 0.0
    %3939 = vmatprep.subr.mxu0 0.0
    %3940 = vmatpush1.msra.mxu0 0.0
    %3941 = vmatprep.subr.mxu0 0.0
    %3942 = vmatpush1.msra.mxu0 0.0
    %3943 = vmatprep.subr.mxu0 0.0
    %3944 = vmatpush1.msra.mxu0 0.0
    %3945 = vmatprep.subr.mxu0 0.0
    %3946 = vmatpush1.msra.mxu0 0.0
    %3947 = vmatprep.subr.mxu0 0.0
    %3948 = vmatpush1.msra.mxu0 0.0
    %3949 = vmatprep.subr.mxu0 0.0
    %3950 = vmatpush1.msra.mxu0 0.0
    %3951 = vmatprep.mubr.f32.mxu0 0.0
    %3952 = vmatmul.mubr.f32.gmra.mrb[0].mxu0 %v3885
    %v3953 = vpop.f32.mrb[0].mxu0
    %v3954 = vadd.f32 0.0, %v3953
    %v3955 = vpop.f32.mrb[0].mxu0
    %3956 = vdwg.mxu0
    %v3958 = vsel %vm3399, %v3565, 0
    %3960 = vmatprep.subr.mxu0 0.0
    %3961 = vmatpush1.msra.mxu0 %v2043
    %3962 = vmatprep.subr.mxu0 0.0
    %3963 = vmatpush1.msra.mxu0 0.0
    %3964 = vmatprep.subr.mxu0 0.0
    %3965 = vmatpush1.msra.mxu0 0.0
    %3966 = vmatprep.subr.mxu0 0.0
    %3967 = vmatpush1.msra.mxu0 0.0
    %3968 = vmatprep.subr.mxu0 0.0
    %3969 = vmatpush1.msra.mxu0 0.0
    %3970 = vmatprep.subr.mxu0 0.0
    %3971 = vmatpush1.msra.mxu0 0.0
    %3972 = vmatprep.subr.mxu0 0.0
    %3973 = vmatpush1.msra.mxu0 0.0
    %3974 = vmatprep.subr.mxu0 0.0
    %3975 = vmatpush1.msra.mxu0 0.0
    %3976 = vmatprep.subr.mxu0 0.0
    %3977 = vmatpush1.msra.mxu0 0.0
    %3978 = vmatprep.subr.mxu0 0.0
    %3979 = vmatpush1.msra.mxu0 0.0
    %3980 = vmatprep.subr.mxu0 0.0
    %3981 = vmatpush1.msra.mxu0 0.0
    %3982 = vmatprep.subr.mxu0 0.0
    %3983 = vmatpush1.msra.mxu0 0.0
    %3984 = vmatprep.subr.mxu0 0.0
    %3985 = vmatpush1.msra.mxu0 0.0
    %3986 = vmatprep.subr.mxu0 0.0
    %3987 = vmatpush1.msra.mxu0 0.0
    %3988 = vmatprep.subr.mxu0 0.0
    %3989 = vmatpush1.msra.mxu0 0.0
    %3990 = vmatprep.subr.mxu0 0.0
    %3991 = vmatpush1.msra.mxu0 0.0
    %3992 = vmatprep.subr.mxu0 0.0
    %3993 = vmatpush1.msra.mxu0 0.0
    %3994 = vmatprep.subr.mxu0 0.0
    %3995 = vmatpush1.msra.mxu0 0.0
    %3996 = vmatprep.subr.mxu0 0.0
    %3997 = vmatpush1.msra.mxu0 0.0
    %3998 = vmatprep.subr.mxu0 0.0
    %3999 = vmatpush1.msra.mxu0 0.0
    %4000 = vmatprep.subr.mxu0 0.0
    %4001 = vmatpush1.msra.mxu0 0.0
    %4002 = vmatprep.subr.mxu0 0.0
    %4003 = vmatpush1.msra.mxu0 0.0
    %4004 = vmatprep.subr.mxu0 0.0
    %4005 = vmatpush1.msra.mxu0 0.0
    %4006 = vmatprep.subr.mxu0 0.0
    %4007 = vmatpush1.msra.mxu0 0.0
    %4008 = vmatprep.subr.mxu0 0.0
    %4009 = vmatpush1.msra.mxu0 0.0
    %4010 = vmatprep.subr.mxu0 0.0
    %4011 = vmatpush1.msra.mxu0 0.0
    %4012 = vmatprep.subr.mxu0 0.0
    %4013 = vmatpush1.msra.mxu0 0.0
    %4014 = vmatprep.subr.mxu0 0.0
    %4015 = vmatpush1.msra.mxu0 0.0
    %4016 = vmatprep.subr.mxu0 0.0
    %4017 = vmatpush1.msra.mxu0 0.0
    %4018 = vmatprep.subr.mxu0 0.0
    %4019 = vmatpush1.msra.mxu0 0.0
    %4020 = vmatprep.subr.mxu0 0.0
    %4021 = vmatpush1.msra.mxu0 0.0
    %4022 = vmatprep.subr.mxu0 0.0
    %4023 = vmatpush1.msra.mxu0 0.0
    %4024 = vmatprep.mubr.f32.mxu0 0.0
    %4025 = vmatmul.mubr.f32.gmra.mrb[0].mxu0 %v3958
    %v4026 = vpop.f32.mrb[0].mxu0
    %v4027 = vadd.f32 0.0, %v4026
    %v4028 = vpop.f32.mrb[0].mxu0
    %4029 = vdwg.mxu0
    %v4031 = vsel %vm3399, %v3566, 0
    %4033 = vmatprep.subr.mxu0 0.0
    %4034 = vmatpush1.msra.mxu0 %v2044
    %4035 = vmatprep.subr.mxu0 0.0
    %4036 = vmatpush1.msra.mxu0 0.0
    %4037 = vmatprep.subr.mxu0 0.0
    %4038 = vmatpush1.msra.mxu0 0.0
    %4039 = vmatprep.subr.mxu0 0.0
    %4040 = vmatpush1.msra.mxu0 0.0
    %4041 = vmatprep.subr.mxu0 0.0
    %4042 = vmatpush1.msra.mxu0 0.0
    %4043 = vmatprep.subr.mxu0 0.0
    %4044 = vmatpush1.msra.mxu0 0.0
    %4045 = vmatprep.subr.mxu0 0.0
    %4046 = vmatpush1.msra.mxu0 0.0
    %4047 = vmatprep.subr.mxu0 0.0
    %4048 = vmatpush1.msra.mxu0 0.0
    %4049 = vmatprep.subr.mxu0 0.0
    %4050 = vmatpush1.msra.mxu0 0.0
    %4051 = vmatprep.subr.mxu0 0.0
    %4052 = vmatpush1.msra.mxu0 0.0
    %4053 = vmatprep.subr.mxu0 0.0
    %4054 = vmatpush1.msra.mxu0 0.0
    %4055 = vmatprep.subr.mxu0 0.0
    %4056 = vmatpush1.msra.mxu0 0.0
    %4057 = vmatprep.subr.mxu0 0.0
    %4058 = vmatpush1.msra.mxu0 0.0
    %4059 = vmatprep.subr.mxu0 0.0
    %4060 = vmatpush1.msra.mxu0 0.0
    %4061 = vmatprep.subr.mxu0 0.0
    %4062 = vmatpush1.msra.mxu0 0.0
    %4063 = vmatprep.subr.mxu0 0.0
    %4064 = vmatpush1.msra.mxu0 0.0
    %4065 = vmatprep.subr.mxu0 0.0
    %4066 = vmatpush1.msra.mxu0 0.0
    %4067 = vmatprep.subr.mxu0 0.0
    %4068 = vmatpush1.msra.mxu0 0.0
    %4069 = vmatprep.subr.mxu0 0.0
    %4070 = vmatpush1.msra.mxu0 0.0
    %4071 = vmatprep.subr.mxu0 0.0
    %4072 = vmatpush1.msra.mxu0 0.0
    %4073 = vmatprep.subr.mxu0 0.0
    %4074 = vmatpush1.msra.mxu0 0.0
    %4075 = vmatprep.subr.mxu0 0.0
    %4076 = vmatpush1.msra.mxu0 0.0
    %4077 = vmatprep.subr.mxu0 0.0
    %4078 = vmatpush1.msra.mxu0 0.0
    %4079 = vmatprep.subr.mxu0 0.0
    %4080 = vmatpush1.msra.mxu0 0.0
    %4081 = vmatprep.subr.mxu0 0.0
    %4082 = vmatpush1.msra.mxu0 0.0
    %4083 = vmatprep.subr.mxu0 0.0
    %4084 = vmatpush1.msra.mxu0 0.0
    %4085 = vmatprep.subr.mxu0 0.0
    %4086 = vmatpush1.msra.mxu0 0.0
    %4087 = vmatprep.subr.mxu0 0.0
    %4088 = vmatpush1.msra.mxu0 0.0
    %4089 = vmatprep.subr.mxu0 0.0
    %4090 = vmatpush1.msra.mxu0 0.0
    %4091 = vmatprep.subr.mxu0 0.0
    %4092 = vmatpush1.msra.mxu0 0.0
    %4093 = vmatprep.subr.mxu0 0.0
    %4094 = vmatpush1.msra.mxu0 0.0
    %4095 = vmatprep.subr.mxu0 0.0
    %4096 = vmatpush1.msra.mxu0 0.0
    %4097 = vmatprep.mubr.f32.mxu0 0.0
    %4098 = vmatmul.mubr.f32.gmra.mrb[0].mxu0 %v4031
    %v4099 = vpop.f32.mrb[0].mxu0
    %v4100 = vadd.f32 0.0, %v4099
    %v4101 = vpop.f32.mrb[0].mxu0
    %4102 = vdwg.mxu0
    %v4104 = vsel %vm3399, %v3567, 0
    %4106 = vmatprep.subr.mxu0 0.0
    %4107 = vmatpush1.msra.mxu0 %v2045
    %4108 = vmatprep.subr.mxu0 0.0
    %4109 = vmatpush1.msra.mxu0 0.0
    %4110 = vmatprep.subr.mxu0 0.0
    %4111 = vmatpush1.msra.mxu0 0.0
    %4112 = vmatprep.subr.mxu0 0.0
    %4113 = vmatpush1.msra.mxu0 0.0
    %4114 = vmatprep.subr.mxu0 0.0
    %4115 = vmatpush1.msra.mxu0 0.0
    %4116 = vmatprep.subr.mxu0 0.0
    %4117 = vmatpush1.msra.mxu0 0.0
    %4118 = vmatprep.subr.mxu0 0.0
    %4119 = vmatpush1.msra.mxu0 0.0
    %4120 = vmatprep.subr.mxu0 0.0
    %4121 = vmatpush1.msra.mxu0 0.0
    %4122 = vmatprep.subr.mxu0 0.0
    %4123 = vmatpush1.msra.mxu0 0.0
    %4124 = vmatprep.subr.mxu0 0.0
    %4125 = vmatpush1.msra.mxu0 0.0
    %4126 = vmatprep.subr.mxu0 0.0
    %4127 = vmatpush1.msra.mxu0 0.0
    %4128 = vmatprep.subr.mxu0 0.0
    %4129 = vmatpush1.msra.mxu0 0.0
    %4130 = vmatprep.subr.mxu0 0.0
    %4131 = vmatpush1.msra.mxu0 0.0
    %4132 = vmatprep.subr.mxu0 0.0
    %4133 = vmatpush1.msra.mxu0 0.0
    %4134 = vmatprep.subr.mxu0 0.0
    %4135 = vmatpush1.msra.mxu0 0.0
    %4136 = vmatprep.subr.mxu0 0.0
    %4137 = vmatpush1.msra.mxu0 0.0
    %4138 = vmatprep.subr.mxu0 0.0
    %4139 = vmatpush1.msra.mxu0 0.0
    %4140 = vmatprep.subr.mxu0 0.0
    %4141 = vmatpush1.msra.mxu0 0.0
    %4142 = vmatprep.subr.mxu0 0.0
    %4143 = vmatpush1.msra.mxu0 0.0
    %4144 = vmatprep.subr.mxu0 0.0
    %4145 = vmatpush1.msra.mxu0 0.0
    %4146 = vmatprep.subr.mxu0 0.0
    %4147 = vmatpush1.msra.mxu0 0.0
    %4148 = vmatprep.subr.mxu0 0.0
    %4149 = vmatpush1.msra.mxu0 0.0
    %4150 = vmatprep.subr.mxu0 0.0
    %4151 = vmatpush1.msra.mxu0 0.0
    %4152 = vmatprep.subr.mxu0 0.0
    %4153 = vmatpush1.msra.mxu0 0.0
    %4154 = vmatprep.subr.mxu0 0.0
    %4155 = vmatpush1.msra.mxu0 0.0
    %4156 = vmatprep.subr.mxu0 0.0
    %4157 = vmatpush1.msra.mxu0 0.0
    %4158 = vmatprep.subr.mxu0 0.0
    %4159 = vmatpush1.msra.mxu0 0.0
    %4160 = vmatprep.subr.mxu0 0.0
    %4161 = vmatpush1.msra.mxu0 0.0
    %4162 = vmatprep.subr.mxu0 0.0
    %4163 = vmatpush1.msra.mxu0 0.0
    %4164 = vmatprep.subr.mxu0 0.0
    %4165 = vmatpush1.msra.mxu0 0.0
    %4166 = vmatprep.subr.mxu0 0.0
    %4167 = vmatpush1.msra.mxu0 0.0
    %4168 = vmatprep.subr.mxu0 0.0
    %4169 = vmatpush1.msra.mxu0 0.0
    %4170 = vmatprep.mubr.f32.mxu0 0.0
    %4171 = vmatmul.mubr.f32.gmra.mrb[0].mxu0 %v4104
    %v4172 = vpop.f32.mrb[0].mxu0
    %v4173 = vadd.f32 0.0, %v4172
    %v4174 = vpop.f32.mrb[0].mxu0
    %4175 = vdwg.mxu0
    %v4177 = vsel %vm3399, %v3568, 0
    %4179 = vmatprep.subr.mxu0 0.0
    %4180 = vmatpush1.msra.mxu0 %v2174
    %4181 = vmatprep.subr.mxu0 0.0
    %4182 = vmatpush1.msra.mxu0 0.0
    %4183 = vmatprep.subr.mxu0 0.0
    %4184 = vmatpush1.msra.mxu0 0.0
    %4185 = vmatprep.subr.mxu0 0.0
    %4186 = vmatpush1.msra.mxu0 0.0
    %4187 = vmatprep.subr.mxu0 0.0
    %4188 = vmatpush1.msra.mxu0 0.0
    %4189 = vmatprep.subr.mxu0 0.0
    %4190 = vmatpush1.msra.mxu0 0.0
    %4191 = vmatprep.subr.mxu0 0.0
    %4192 = vmatpush1.msra.mxu0 0.0
    %4193 = vmatprep.subr.mxu0 0.0
    %4194 = vmatpush1.msra.mxu0 0.0
    %4195 = vmatprep.subr.mxu0 0.0
    %4196 = vmatpush1.msra.mxu0 0.0
    %4197 = vmatprep.subr.mxu0 0.0
    %4198 = vmatpush1.msra.mxu0 0.0
    %4199 = vmatprep.subr.mxu0 0.0
    %4200 = vmatpush1.msra.mxu0 0.0
    %4201 = vmatprep.subr.mxu0 0.0
    %4202 = vmatpush1.msra.mxu0 0.0
    %4203 = vmatprep.subr.mxu0 0.0
    %4204 = vmatpush1.msra.mxu0 0.0
    %4205 = vmatprep.subr.mxu0 0.0
    %4206 = vmatpush1.msra.mxu0 0.0
    %4207 = vmatprep.subr.mxu0 0.0
    %4208 = vmatpush1.msra.mxu0 0.0
    %4209 = vmatprep.subr.mxu0 0.0
    %4210 = vmatpush1.msra.mxu0 0.0
    %4211 = vmatprep.subr.mxu0 0.0
    %4212 = vmatpush1.msra.mxu0 0.0
    %4213 = vmatprep.subr.mxu0 0.0
    %4214 = vmatpush1.msra.mxu0 0.0
    %4215 = vmatprep.subr.mxu0 0.0
    %4216 = vmatpush1.msra.mxu0 0.0
    %4217 = vmatprep.subr.mxu0 0.0
    %4218 = vmatpush1.msra.mxu0 0.0
    %4219 = vmatprep.subr.mxu0 0.0
    %4220 = vmatpush1.msra.mxu0 0.0
    %4221 = vmatprep.subr.mxu0 0.0
    %4222 = vmatpush1.msra.mxu0 0.0
    %4223 = vmatprep.subr.mxu0 0.0
    %4224 = vmatpush1.msra.mxu0 0.0
    %4225 = vmatprep.subr.mxu0 0.0
    %4226 = vmatpush1.msra.mxu0 0.0
    %4227 = vmatprep.subr.mxu0 0.0
    %4228 = vmatpush1.msra.mxu0 0.0
    %4229 = vmatprep.subr.mxu0 0.0
    %4230 = vmatpush1.msra.mxu0 0.0
    %4231 = vmatprep.subr.mxu0 0.0
    %4232 = vmatpush1.msra.mxu0 0.0
    %4233 = vmatprep.subr.mxu0 0.0
    %4234 = vmatpush1.msra.mxu0 0.0
    %4235 = vmatprep.subr.mxu0 0.0
    %4236 = vmatpush1.msra.mxu0 0.0
    %4237 = vmatprep.subr.mxu0 0.0
    %4238 = vmatpush1.msra.mxu0 0.0
    %4239 = vmatprep.subr.mxu0 0.0
    %4240 = vmatpush1.msra.mxu0 0.0
    %4241 = vmatprep.subr.mxu0 0.0
    %4242 = vmatpush1.msra.mxu0 0.0
    %4243 = vmatprep.mubr.f32.mxu0 0.0
    %4244 = vmatmul.mubr.f32.gmra.mrb[0].mxu0 %v4177
    %v4245 = vpop.f32.mrb[0].mxu0
    %v4246 = vadd.f32 0.0, %v4245
    %v4247 = vpop.f32.mrb[0].mxu0
    %4248 = vdwg.mxu0
    %v4250 = vsel %vm3399, %v3569, 0
    %4252 = vmatprep.subr.mxu0 0.0
    %4253 = vmatpush1.msra.mxu0 %v2175
    %4254 = vmatprep.subr.mxu0 0.0
    %4255 = vmatpush1.msra.mxu0 0.0
    %4256 = vmatprep.subr.mxu0 0.0
    %4257 = vmatpush1.msra.mxu0 0.0
    %4258 = vmatprep.subr.mxu0 0.0
    %4259 = vmatpush1.msra.mxu0 0.0
    %4260 = vmatprep.subr.mxu0 0.0
    %4261 = vmatpush1.msra.mxu0 0.0
    %4262 = vmatprep.subr.mxu0 0.0
    %4263 = vmatpush1.msra.mxu0 0.0
    %4264 = vmatprep.subr.mxu0 0.0
    %4265 = vmatpush1.msra.mxu0 0.0
    %4266 = vmatprep.subr.mxu0 0.0
    %4267 = vmatpush1.msra.mxu0 0.0
    %4268 = vmatprep.subr.mxu0 0.0
    %4269 = vmatpush1.msra.mxu0 0.0
    %4270 = vmatprep.subr.mxu0 0.0
    %4271 = vmatpush1.msra.mxu0 0.0
    %4272 = vmatprep.subr.mxu0 0.0
    %4273 = vmatpush1.msra.mxu0 0.0
    %4274 = vmatprep.subr.mxu0 0.0
    %4275 = vmatpush1.msra.mxu0 0.0
    %4276 = vmatprep.subr.mxu0 0.0
    %4277 = vmatpush1.msra.mxu0 0.0
    %4278 = vmatprep.subr.mxu0 0.0
    %4279 = vmatpush1.msra.mxu0 0.0
    %4280 = vmatprep.subr.mxu0 0.0
    %4281 = vmatpush1.msra.mxu0 0.0
    %4282 = vmatprep.subr.mxu0 0.0
    %4283 = vmatpush1.msra.mxu0 0.0
    %4284 = vmatprep.subr.mxu0 0.0
    %4285 = vmatpush1.msra.mxu0 0.0
    %4286 = vmatprep.subr.mxu0 0.0
    %4287 = vmatpush1.msra.mxu0 0.0
    %4288 = vmatprep.subr.mxu0 0.0
    %4289 = vmatpush1.msra.mxu0 0.0
    %4290 = vmatprep.subr.mxu0 0.0
    %4291 = vmatpush1.msra.mxu0 0.0
    %4292 = vmatprep.subr.mxu0 0.0
    %4293 = vmatpush1.msra.mxu0 0.0
    %4294 = vmatprep.subr.mxu0 0.0
    %4295 = vmatpush1.msra.mxu0 0.0
    %4296 = vmatprep.subr.mxu0 0.0
    %4297 = vmatpush1.msra.mxu0 0.0
    %4298 = vmatprep.subr.mxu0 0.0
    %4299 = vmatpush1.msra.mxu0 0.0
    %4300 = vmatprep.subr.mxu0 0.0
    %4301 = vmatpush1.msra.mxu0 0.0
    %4302 = vmatprep.subr.mxu0 0.0
    %4303 = vmatpush1.msra.mxu0 0.0
    %4304 = vmatprep.subr.mxu0 0.0
    %4305 = vmatpush1.msra.mxu0 0.0
    %4306 = vmatprep.subr.mxu0 0.0
    %4307 = vmatpush1.msra.mxu0 0.0
    %4308 = vmatprep.subr.mxu0 0.0
    %4309 = vmatpush1.msra.mxu0 0.0
    %4310 = vmatprep.subr.mxu0 0.0
    %4311 = vmatpush1.msra.mxu0 0.0
    %4312 = vmatprep.subr.mxu0 0.0
    %4313 = vmatpush1.msra.mxu0 0.0
    %4314 = vmatprep.subr.mxu0 0.0
    %4315 = vmatpush1.msra.mxu0 0.0
    %4316 = vmatprep.mubr.f32.mxu0 0.0
    %4317 = vmatmul.mubr.f32.gmra.mrb[0].mxu0 %v4250
    %v4318 = vpop.f32.mrb[0].mxu0
    %v4319 = vadd.f32 0.0, %v4318
    %v4320 = vpop.f32.mrb[0].mxu0
    %4321 = vdwg.mxu0
    %v4323 = vsel %vm3399, %v3570, 0
    %4325 = vmatprep.subr.mxu0 0.0
    %4326 = vmatpush1.msra.mxu0 %v2176
    %4327 = vmatprep.subr.mxu0 0.0
    %4328 = vmatpush1.msra.mxu0 0.0
    %4329 = vmatprep.subr.mxu0 0.0
    %4330 = vmatpush1.msra.mxu0 0.0
    %4331 = vmatprep.subr.mxu0 0.0
    %4332 = vmatpush1.msra.mxu0 0.0
    %4333 = vmatprep.subr.mxu0 0.0
    %4334 = vmatpush1.msra.mxu0 0.0
    %4335 = vmatprep.subr.mxu0 0.0
    %4336 = vmatpush1.msra.mxu0 0.0
    %4337 = vmatprep.subr.mxu0 0.0
    %4338 = vmatpush1.msra.mxu0 0.0
    %4339 = vmatprep.subr.mxu0 0.0
    %4340 = vmatpush1.msra.mxu0 0.0
    %4341 = vmatprep.subr.mxu0 0.0
    %4342 = vmatpush1.msra.mxu0 0.0
    %4343 = vmatprep.subr.mxu0 0.0
    %4344 = vmatpush1.msra.mxu0 0.0
    %4345 = vmatprep.subr.mxu0 0.0
    %4346 = vmatpush1.msra.mxu0 0.0
    %4347 = vmatprep.subr.mxu0 0.0
    %4348 = vmatpush1.msra.mxu0 0.0
    %4349 = vmatprep.subr.mxu0 0.0
    %4350 = vmatpush1.msra.mxu0 0.0
    %4351 = vmatprep.subr.mxu0 0.0
    %4352 = vmatpush1.msra.mxu0 0.0
    %4353 = vmatprep.subr.mxu0 0.0
    %4354 = vmatpush1.msra.mxu0 0.0
    %4355 = vmatprep.subr.mxu0 0.0
    %4356 = vmatpush1.msra.mxu0 0.0
    %4357 = vmatprep.subr.mxu0 0.0
    %4358 = vmatpush1.msra.mxu0 0.0
    %4359 = vmatprep.subr.mxu0 0.0
    %4360 = vmatpush1.msra.mxu0 0.0
    %4361 = vmatprep.subr.mxu0 0.0
    %4362 = vmatpush1.msra.mxu0 0.0
    %4363 = vmatprep.subr.mxu0 0.0
    %4364 = vmatpush1.msra.mxu0 0.0
    %4365 = vmatprep.subr.mxu0 0.0
    %4366 = vmatpush1.msra.mxu0 0.0
    %4367 = vmatprep.subr.mxu0 0.0
    %4368 = vmatpush1.msra.mxu0 0.0
    %4369 = vmatprep.subr.mxu0 0.0
    %4370 = vmatpush1.msra.mxu0 0.0
    %4371 = vmatprep.subr.mxu0 0.0
    %4372 = vmatpush1.msra.mxu0 0.0
    %4373 = vmatprep.subr.mxu0 0.0
    %4374 = vmatpush1.msra.mxu0 0.0
    %4375 = vmatprep.subr.mxu0 0.0
    %4376 = vmatpush1.msra.mxu0 0.0
    %4377 = vmatprep.subr.mxu0 0.0
    %4378 = vmatpush1.msra.mxu0 0.0
    %4379 = vmatprep.subr.mxu0 0.0
    %4380 = vmatpush1.msra.mxu0 0.0
    %4381 = vmatprep.subr.mxu0 0.0
    %4382 = vmatpush1.msra.mxu0 0.0
    %4383 = vmatprep.subr.mxu0 0.0
    %4384 = vmatpush1.msra.mxu0 0.0
    %4385 = vmatprep.subr.mxu0 0.0
    %4386 = vmatpush1.msra.mxu0 0.0
    %4387 = vmatprep.subr.mxu0 0.0
    %4388 = vmatpush1.msra.mxu0 0.0
    %4389 = vmatprep.mubr.f32.mxu0 0.0
    %4390 = vmatmul.mubr.f32.gmra.mrb[0].mxu0 %v4323
    %v4391 = vpop.f32.mrb[0].mxu0
    %v4392 = vadd.f32 0.0, %v4391
    %v4393 = vpop.f32.mrb[0].mxu0
    %4394 = vdwg.mxu0
    %v4396 = vsel %vm3399, %v3571, 0
    %4398 = vmatprep.subr.mxu0 0.0
    %4399 = vmatpush1.msra.mxu0 %v2177
    %4400 = vmatprep.subr.mxu0 0.0
    %4401 = vmatpush1.msra.mxu0 0.0
    %4402 = vmatprep.subr.mxu0 0.0
    %4403 = vmatpush1.msra.mxu0 0.0
    %4404 = vmatprep.subr.mxu0 0.0
    %4405 = vmatpush1.msra.mxu0 0.0
    %4406 = vmatprep.subr.mxu0 0.0
    %4407 = vmatpush1.msra.mxu0 0.0
    %4408 = vmatprep.subr.mxu0 0.0
    %4409 = vmatpush1.msra.mxu0 0.0
    %4410 = vmatprep.subr.mxu0 0.0
    %4411 = vmatpush1.msra.mxu0 0.0
    %4412 = vmatprep.subr.mxu0 0.0
    %4413 = vmatpush1.msra.mxu0 0.0
    %4414 = vmatprep.subr.mxu0 0.0
    %4415 = vmatpush1.msra.mxu0 0.0
    %4416 = vmatprep.subr.mxu0 0.0
    %4417 = vmatpush1.msra.mxu0 0.0
    %4418 = vmatprep.subr.mxu0 0.0
    %4419 = vmatpush1.msra.mxu0 0.0
    %4420 = vmatprep.subr.mxu0 0.0
    %4421 = vmatpush1.msra.mxu0 0.0
    %4422 = vmatprep.subr.mxu0 0.0
    %4423 = vmatpush1.msra.mxu0 0.0
    %4424 = vmatprep.subr.mxu0 0.0
    %4425 = vmatpush1.msra.mxu0 0.0
    %4426 = vmatprep.subr.mxu0 0.0
    %4427 = vmatpush1.msra.mxu0 0.0
    %4428 = vmatprep.subr.mxu0 0.0
    %4429 = vmatpush1.msra.mxu0 0.0
    %4430 = vmatprep.subr.mxu0 0.0
    %4431 = vmatpush1.msra.mxu0 0.0
    %4432 = vmatprep.subr.mxu0 0.0
    %4433 = vmatpush1.msra.mxu0 0.0
    %4434 = vmatprep.subr.mxu0 0.0
    %4435 = vmatpush1.msra.mxu0 0.0
    %4436 = vmatprep.subr.mxu0 0.0
    %4437 = vmatpush1.msra.mxu0 0.0
    %4438 = vmatprep.subr.mxu0 0.0
    %4439 = vmatpush1.msra.mxu0 0.0
    %4440 = vmatprep.subr.mxu0 0.0
    %4441 = vmatpush1.msra.mxu0 0.0
    %4442 = vmatprep.subr.mxu0 0.0
    %4443 = vmatpush1.msra.mxu0 0.0
    %4444 = vmatprep.subr.mxu0 0.0
    %4445 = vmatpush1.msra.mxu0 0.0
    %4446 = vmatprep.subr.mxu0 0.0
    %4447 = vmatpush1.msra.mxu0 0.0
    %4448 = vmatprep.subr.mxu0 0.0
    %4449 = vmatpush1.msra.mxu0 0.0
    %4450 = vmatprep.subr.mxu0 0.0
    %4451 = vmatpush1.msra.mxu0 0.0
    %4452 = vmatprep.subr.mxu0 0.0
    %4453 = vmatpush1.msra.mxu0 0.0
    %4454 = vmatprep.subr.mxu0 0.0
    %4455 = vmatpush1.msra.mxu0 0.0
    %4456 = vmatprep.subr.mxu0 0.0
    %4457 = vmatpush1.msra.mxu0 0.0
    %4458 = vmatprep.subr.mxu0 0.0
    %4459 = vmatpush1.msra.mxu0 0.0
    %4460 = vmatprep.subr.mxu0 0.0
    %4461 = vmatpush1.msra.mxu0 0.0
    %4462 = vmatprep.mubr.f32.mxu0 0.0
    %4463 = vmatmul.mubr.f32.gmra.mrb[0].mxu0 %v4396
    %v4464 = vpop.f32.mrb[0].mxu0
    %v4465 = vadd.f32 0.0, %v4464
    %v4466 = vpop.f32.mrb[0].mxu0
    %4467 = vdwg.mxu0
    %v4469 = vsel %vm3399, %v3572, 0
    %4471 = vmatprep.subr.mxu0 0.0
    %4472 = vmatpush1.msra.mxu0 %v2178
    %4473 = vmatprep.subr.mxu0 0.0
    %4474 = vmatpush1.msra.mxu0 0.0
    %4475 = vmatprep.subr.mxu0 0.0
    %4476 = vmatpush1.msra.mxu0 0.0
    %4477 = vmatprep.subr.mxu0 0.0
    %4478 = vmatpush1.msra.mxu0 0.0
    %4479 = vmatprep.subr.mxu0 0.0
    %4480 = vmatpush1.msra.mxu0 0.0
    %4481 = vmatprep.subr.mxu0 0.0
    %4482 = vmatpush1.msra.mxu0 0.0
    %4483 = vmatprep.subr.mxu0 0.0
    %4484 = vmatpush1.msra.mxu0 0.0
    %4485 = vmatprep.subr.mxu0 0.0
    %4486 = vmatpush1.msra.mxu0 0.0
    %4487 = vmatprep.subr.mxu0 0.0
    %4488 = vmatpush1.msra.mxu0 0.0
    %4489 = vmatprep.subr.mxu0 0.0
    %4490 = vmatpush1.msra.mxu0 0.0
    %4491 = vmatprep.subr.mxu0 0.0
    %4492 = vmatpush1.msra.mxu0 0.0
    %4493 = vmatprep.subr.mxu0 0.0
    %4494 = vmatpush1.msra.mxu0 0.0
    %4495 = vmatprep.subr.mxu0 0.0
    %4496 = vmatpush1.msra.mxu0 0.0
    %4497 = vmatprep.subr.mxu0 0.0
    %4498 = vmatpush1.msra.mxu0 0.0
    %4499 = vmatprep.subr.mxu0 0.0
    %4500 = vmatpush1.msra.mxu0 0.0
    %4501 = vmatprep.subr.mxu0 0.0
    %4502 = vmatpush1.msra.mxu0 0.0
    %4503 = vmatprep.subr.mxu0 0.0
    %4504 = vmatpush1.msra.mxu0 0.0
    %4505 = vmatprep.subr.mxu0 0.0
    %4506 = vmatpush1.msra.mxu0 0.0
    %4507 = vmatprep.subr.mxu0 0.0
    %4508 = vmatpush1.msra.mxu0 0.0
    %4509 = vmatprep.subr.mxu0 0.0
    %4510 = vmatpush1.msra.mxu0 0.0
    %4511 = vmatprep.subr.mxu0 0.0
    %4512 = vmatpush1.msra.mxu0 0.0
    %4513 = vmatprep.subr.mxu0 0.0
    %4514 = vmatpush1.msra.mxu0 0.0
    %4515 = vmatprep.subr.mxu0 0.0
    %4516 = vmatpush1.msra.mxu0 0.0
    %4517 = vmatprep.subr.mxu0 0.0
    %4518 = vmatpush1.msra.mxu0 0.0
    %4519 = vmatprep.subr.mxu0 0.0
    %4520 = vmatpush1.msra.mxu0 0.0
    %4521 = vmatprep.subr.mxu0 0.0
    %4522 = vmatpush1.msra.mxu0 0.0
    %4523 = vmatprep.subr.mxu0 0.0
    %4524 = vmatpush1.msra.mxu0 0.0
    %4525 = vmatprep.subr.mxu0 0.0
    %4526 = vmatpush1.msra.mxu0 0.0
    %4527 = vmatprep.subr.mxu0 0.0
    %4528 = vmatpush1.msra.mxu0 0.0
    %4529 = vmatprep.subr.mxu0 0.0
    %4530 = vmatpush1.msra.mxu0 0.0
    %4531 = vmatprep.subr.mxu0 0.0
    %4532 = vmatpush1.msra.mxu0 0.0
    %4533 = vmatprep.subr.mxu0 0.0
    %4534 = vmatpush1.msra.mxu0 0.0
    %4535 = vmatprep.mubr.f32.mxu0 0.0
    %4536 = vmatmul.mubr.f32.gmra.mrb[0].mxu0 %v4469
    %v4537 = vpop.f32.mrb[0].mxu0
    %v4538 = vadd.f32 0.0, %v4537
    %v4539 = vpop.f32.mrb[0].mxu0
    %4540 = vdwg.mxu0
    %v4542 = vsel %vm3399, %v3573, 0
    %4544 = vmatprep.subr.mxu0 0.0
    %4545 = vmatpush1.msra.mxu0 %v2179
    %4546 = vmatprep.subr.mxu0 0.0
    %4547 = vmatpush1.msra.mxu0 0.0
    %4548 = vmatprep.subr.mxu0 0.0
    %4549 = vmatpush1.msra.mxu0 0.0
    %4550 = vmatprep.subr.mxu0 0.0
    %4551 = vmatpush1.msra.mxu0 0.0
    %4552 = vmatprep.subr.mxu0 0.0
    %4553 = vmatpush1.msra.mxu0 0.0
    %4554 = vmatprep.subr.mxu0 0.0
    %4555 = vmatpush1.msra.mxu0 0.0
    %4556 = vmatprep.subr.mxu0 0.0
    %4557 = vmatpush1.msra.mxu0 0.0
    %4558 = vmatprep.subr.mxu0 0.0
    %4559 = vmatpush1.msra.mxu0 0.0
    %4560 = vmatprep.subr.mxu0 0.0
    %4561 = vmatpush1.msra.mxu0 0.0
    %4562 = vmatprep.subr.mxu0 0.0
    %4563 = vmatpush1.msra.mxu0 0.0
    %4564 = vmatprep.subr.mxu0 0.0
    %4565 = vmatpush1.msra.mxu0 0.0
    %4566 = vmatprep.subr.mxu0 0.0
    %4567 = vmatpush1.msra.mxu0 0.0
    %4568 = vmatprep.subr.mxu0 0.0
    %4569 = vmatpush1.msra.mxu0 0.0
    %4570 = vmatprep.subr.mxu0 0.0
    %4571 = vmatpush1.msra.mxu0 0.0
    %4572 = vmatprep.subr.mxu0 0.0
    %4573 = vmatpush1.msra.mxu0 0.0
    %4574 = vmatprep.subr.mxu0 0.0
    %4575 = vmatpush1.msra.mxu0 0.0
    %4576 = vmatprep.subr.mxu0 0.0
    %4577 = vmatpush1.msra.mxu0 0.0
    %4578 = vmatprep.subr.mxu0 0.0
    %4579 = vmatpush1.msra.mxu0 0.0
    %4580 = vmatprep.subr.mxu0 0.0
    %4581 = vmatpush1.msra.mxu0 0.0
    %4582 = vmatprep.subr.mxu0 0.0
    %4583 = vmatpush1.msra.mxu0 0.0
    %4584 = vmatprep.subr.mxu0 0.0
    %4585 = vmatpush1.msra.mxu0 0.0
    %4586 = vmatprep.subr.mxu0 0.0
    %4587 = vmatpush1.msra.mxu0 0.0
    %4588 = vmatprep.subr.mxu0 0.0
    %4589 = vmatpush1.msra.mxu0 0.0
    %4590 = vmatprep.subr.mxu0 0.0
    %4591 = vmatpush1.msra.mxu0 0.0
    %4592 = vmatprep.subr.mxu0 0.0
    %4593 = vmatpush1.msra.mxu0 0.0
    %4594 = vmatprep.subr.mxu0 0.0
    %4595 = vmatpush1.msra.mxu0 0.0
    %4596 = vmatprep.subr.mxu0 0.0
    %4597 = vmatpush1.msra.mxu0 0.0
    %4598 = vmatprep.subr.mxu0 0.0
    %4599 = vmatpush1.msra.mxu0 0.0
    %4600 = vmatprep.subr.mxu0 0.0
    %4601 = vmatpush1.msra.mxu0 0.0
    %4602 = vmatprep.subr.mxu0 0.0
    %4603 = vmatpush1.msra.mxu0 0.0
    %4604 = vmatprep.subr.mxu0 0.0
    %4605 = vmatpush1.msra.mxu0 0.0
    %4606 = vmatprep.subr.mxu0 0.0
    %4607 = vmatpush1.msra.mxu0 0.0
    %4608 = vmatprep.mubr.f32.mxu0 0.0
    %4609 = vmatmul.mubr.f32.gmra.mrb[0].mxu0 %v4542
    %v4610 = vpop.f32.mrb[0].mxu0
    %v4611 = vadd.f32 0.0, %v4610
    %v4612 = vpop.f32.mrb[0].mxu0
    %4613 = vdwg.mxu0
    %v4615 = vsel %vm3399, %v3574, 0
    %4617 = vmatprep.subr.mxu0 0.0
    %4618 = vmatpush1.msra.mxu0 %v2180
    %4619 = vmatprep.subr.mxu0 0.0
    %4620 = vmatpush1.msra.mxu0 0.0
    %4621 = vmatprep.subr.mxu0 0.0
    %4622 = vmatpush1.msra.mxu0 0.0
    %4623 = vmatprep.subr.mxu0 0.0
    %4624 = vmatpush1.msra.mxu0 0.0
    %4625 = vmatprep.subr.mxu0 0.0
    %4626 = vmatpush1.msra.mxu0 0.0
    %4627 = vmatprep.subr.mxu0 0.0
    %4628 = vmatpush1.msra.mxu0 0.0
    %4629 = vmatprep.subr.mxu0 0.0
    %4630 = vmatpush1.msra.mxu0 0.0
    %4631 = vmatprep.subr.mxu0 0.0
    %4632 = vmatpush1.msra.mxu0 0.0
    %4633 = vmatprep.subr.mxu0 0.0
    %4634 = vmatpush1.msra.mxu0 0.0
    %4635 = vmatprep.subr.mxu0 0.0
    %4636 = vmatpush1.msra.mxu0 0.0
    %4637 = vmatprep.subr.mxu0 0.0
    %4638 = vmatpush1.msra.mxu0 0.0
    %4639 = vmatprep.subr.mxu0 0.0
    %4640 = vmatpush1.msra.mxu0 0.0
    %4641 = vmatprep.subr.mxu0 0.0
    %4642 = vmatpush1.msra.mxu0 0.0
    %4643 = vmatprep.subr.mxu0 0.0
    %4644 = vmatpush1.msra.mxu0 0.0
    %4645 = vmatprep.subr.mxu0 0.0
    %4646 = vmatpush1.msra.mxu0 0.0
    %4647 = vmatprep.subr.mxu0 0.0
    %4648 = vmatpush1.msra.mxu0 0.0
    %4649 = vmatprep.subr.mxu0 0.0
    %4650 = vmatpush1.msra.mxu0 0.0
    %4651 = vmatprep.subr.mxu0 0.0
    %4652 = vmatpush1.msra.mxu0 0.0
    %4653 = vmatprep.subr.mxu0 0.0
    %4654 = vmatpush1.msra.mxu0 0.0
    %4655 = vmatprep.subr.mxu0 0.0
    %4656 = vmatpush1.msra.mxu0 0.0
    %4657 = vmatprep.subr.mxu0 0.0
    %4658 = vmatpush1.msra.mxu0 0.0
    %4659 = vmatprep.subr.mxu0 0.0
    %4660 = vmatpush1.msra.mxu0 0.0
    %4661 = vmatprep.subr.mxu0 0.0
    %4662 = vmatpush1.msra.mxu0 0.0
    %4663 = vmatprep.subr.mxu0 0.0
    %4664 = vmatpush1.msra.mxu0 0.0
    %4665 = vmatprep.subr.mxu0 0.0
    %4666 = vmatpush1.msra.mxu0 0.0
    %4667 = vmatprep.subr.mxu0 0.0
    %4668 = vmatpush1.msra.mxu0 0.0
    %4669 = vmatprep.subr.mxu0 0.0
    %4670 = vmatpush1.msra.mxu0 0.0
    %4671 = vmatprep.subr.mxu0 0.0
    %4672 = vmatpush1.msra.mxu0 0.0
    %4673 = vmatprep.subr.mxu0 0.0
    %4674 = vmatpush1.msra.mxu0 0.0
    %4675 = vmatprep.subr.mxu0 0.0
    %4676 = vmatpush1.msra.mxu0 0.0
    %4677 = vmatprep.subr.mxu0 0.0
    %4678 = vmatpush1.msra.mxu0 0.0
    %4679 = vmatprep.subr.mxu0 0.0
    %4680 = vmatpush1.msra.mxu0 0.0
    %4681 = vmatprep.mubr.f32.mxu0 0.0
    %4682 = vmatmul.mubr.f32.gmra.mrb[0].mxu0 %v4615
    %v4683 = vpop.f32.mrb[0].mxu0
    %v4684 = vadd.f32 0.0, %v4683
    %v4685 = vpop.f32.mrb[0].mxu0
    %4686 = vdwg.mxu0
    %v4688 = vsel %vm3399, %v3575, 0
    %4690 = vmatprep.subr.mxu0 0.0
    %4691 = vmatpush1.msra.mxu0 %v2181
    %4692 = vmatprep.subr.mxu0 0.0
    %4693 = vmatpush1.msra.mxu0 0.0
    %4694 = vmatprep.subr.mxu0 0.0
    %4695 = vmatpush1.msra.mxu0 0.0
    %4696 = vmatprep.subr.mxu0 0.0
    %4697 = vmatpush1.msra.mxu0 0.0
    %4698 = vmatprep.subr.mxu0 0.0
    %4699 = vmatpush1.msra.mxu0 0.0
    %4700 = vmatprep.subr.mxu0 0.0
    %4701 = vmatpush1.msra.mxu0 0.0
    %4702 = vmatprep.subr.mxu0 0.0
    %4703 = vmatpush1.msra.mxu0 0.0
    %4704 = vmatprep.subr.mxu0 0.0
    %4705 = vmatpush1.msra.mxu0 0.0
    %4706 = vmatprep.subr.mxu0 0.0
    %4707 = vmatpush1.msra.mxu0 0.0
    %4708 = vmatprep.subr.mxu0 0.0
    %4709 = vmatpush1.msra.mxu0 0.0
    %4710 = vmatprep.subr.mxu0 0.0
    %4711 = vmatpush1.msra.mxu0 0.0
    %4712 = vmatprep.subr.mxu0 0.0
    %4713 = vmatpush1.msra.mxu0 0.0
    %4714 = vmatprep.subr.mxu0 0.0
    %4715 = vmatpush1.msra.mxu0 0.0
    %4716 = vmatprep.subr.mxu0 0.0
    %4717 = vmatpush1.msra.mxu0 0.0
    %4718 = vmatprep.subr.mxu0 0.0
    %4719 = vmatpush1.msra.mxu0 0.0
    %4720 = vmatprep.subr.mxu0 0.0
    %4721 = vmatpush1.msra.mxu0 0.0
    %4722 = vmatprep.subr.mxu0 0.0
    %4723 = vmatpush1.msra.mxu0 0.0
    %4724 = vmatprep.subr.mxu0 0.0
    %4725 = vmatpush1.msra.mxu0 0.0
    %4726 = vmatprep.subr.mxu0 0.0
    %4727 = vmatpush1.msra.mxu0 0.0
    %4728 = vmatprep.subr.mxu0 0.0
    %4729 = vmatpush1.msra.mxu0 0.0
    %4730 = vmatprep.subr.mxu0 0.0
    %4731 = vmatpush1.msra.mxu0 0.0
    %4732 = vmatprep.subr.mxu0 0.0
    %4733 = vmatpush1.msra.mxu0 0.0
    %4734 = vmatprep.subr.mxu0 0.0
    %4735 = vmatpush1.msra.mxu0 0.0
    %4736 = vmatprep.subr.mxu0 0.0
    %4737 = vmatpush1.msra.mxu0 0.0
    %4738 = vmatprep.subr.mxu0 0.0
    %4739 = vmatpush1.msra.mxu0 0.0
    %4740 = vmatprep.subr.mxu0 0.0
    %4741 = vmatpush1.msra.mxu0 0.0
    %4742 = vmatprep.subr.mxu0 0.0
    %4743 = vmatpush1.msra.mxu0 0.0
    %4744 = vmatprep.subr.mxu0 0.0
    %4745 = vmatpush1.msra.mxu0 0.0
    %4746 = vmatprep.subr.mxu0 0.0
    %4747 = vmatpush1.msra.mxu0 0.0
    %4748 = vmatprep.subr.mxu0 0.0
    %4749 = vmatpush1.msra.mxu0 0.0
    %4750 = vmatprep.subr.mxu0 0.0
    %4751 = vmatpush1.msra.mxu0 0.0
    %4752 = vmatprep.subr.mxu0 0.0
    %4753 = vmatpush1.msra.mxu0 0.0
    %4754 = vmatprep.mubr.f32.mxu0 0.0
    %4755 = vmatmul.mubr.f32.gmra.mrb[0].mxu0 %v4688
    %v4756 = vpop.f32.mrb[0].mxu0
    %v4757 = vadd.f32 0.0, %v4756
    %v4758 = vpop.f32.mrb[0].mxu0
    %4759 = vdwg.mxu0
    %v4760 = vcombine.low %v3662, %v3808
    %v4761 = vcombine.high %v3662, %v3808
    %v4763 = vunpack.c.l.s4 1983009808
    %v4764 = vunpack.c.0.s8 %v4763
    %v4765 = vlaneseq
    %v4766 = vshrl.u32 %v4765, 7
    %v4767 = vsub.s32 %v4764, %v4766
    %v4768 = vrot.slane %v4760, %v4767
    %v4770 = vunpack.c.l.s4 1983009808
    %v4771 = vunpack.c.0.s8 %v4770
    %v4772 = vlaneseq
    %v4773 = vshrl.u32 %v4772, 7
    %v4774 = vsub.s32 %v4771, %v4773
    %v4775 = vrot.slane %v4761, %v4774
    %v4776 = vcombine.low %v3735, %v3881
    %v4777 = vcombine.high %v3735, %v3881
    %v4779 = vunpack.c.l.s4 1983009808
    %v4780 = vunpack.c.0.s8 %v4779
    %v4781 = vlaneseq
    %v4782 = vshrl.u32 %v4781, 7
    %v4783 = vsub.s32 %v4780, %v4782
    %v4784 = vrot.slane %v4776, %v4783
    %v4786 = vunpack.c.l.s4 1983009808
    %v4787 = vunpack.c.0.s8 %v4786
    %v4788 = vlaneseq
    %v4789 = vshrl.u32 %v4788, 7
    %v4790 = vsub.s32 %v4787, %v4789
    %v4791 = vrot.slane %v4777, %v4790
    %v4792 = vcombine.low %v3954, %v4100
    %v4793 = vcombine.high %v3954, %v4100
    %v4795 = vunpack.c.l.s4 1983009808
    %v4796 = vunpack.c.0.s8 %v4795
    %v4797 = vlaneseq
    %v4798 = vshrl.u32 %v4797, 7
    %v4799 = vsub.s32 %v4796, %v4798
    %v4800 = vrot.slane %v4792, %v4799
    %v4802 = vunpack.c.l.s4 1983009808
    %v4803 = vunpack.c.0.s8 %v4802
    %v4804 = vlaneseq
    %v4805 = vshrl.u32 %v4804, 7
    %v4806 = vsub.s32 %v4803, %v4805
    %v4807 = vrot.slane %v4793, %v4806
    %v4808 = vcombine.low %v4027, %v4173
    %v4809 = vcombine.high %v4027, %v4173
    %v4811 = vunpack.c.l.s4 1983009808
    %v4812 = vunpack.c.0.s8 %v4811
    %v4813 = vlaneseq
    %v4814 = vshrl.u32 %v4813, 7
    %v4815 = vsub.s32 %v4812, %v4814
    %v4816 = vrot.slane %v4808, %v4815
    %v4818 = vunpack.c.l.s4 1983009808
    %v4819 = vunpack.c.0.s8 %v4818
    %v4820 = vlaneseq
    %v4821 = vshrl.u32 %v4820, 7
    %v4822 = vsub.s32 %v4819, %v4821
    %v4823 = vrot.slane %v4809, %v4822
    %v4824 = vcombine.low %v4768, %v4784
    %v4825 = vcombine.high %v4768, %v4784
    %v4827 = vunpack.c.l.s4 1934713408
    %v4828 = vunpack.c.0.s8 %v4827
    %v4829 = vlaneseq
    %v4830 = vshrl.u32 %v4829, 7
    %v4831 = vsub.s32 %v4828, %v4830
    %v4832 = vrot.slane %v4824, %v4831
    %v4834 = vunpack.c.l.s4 1934713408
    %v4835 = vunpack.c.0.s8 %v4834
    %v4836 = vlaneseq
    %v4837 = vshrl.u32 %v4836, 7
    %v4838 = vsub.s32 %v4835, %v4837
    %v4839 = vrot.slane %v4825, %v4838
    %v4840 = vcombine.low %v4775, %v4791
    %v4841 = vcombine.high %v4775, %v4791
    %v4843 = vunpack.c.l.s4 1934713408
    %v4844 = vunpack.c.0.s8 %v4843
    %v4845 = vlaneseq
    %v4846 = vshrl.u32 %v4845, 7
    %v4847 = vsub.s32 %v4844, %v4846
    %v4848 = vrot.slane %v4840, %v4847
    %v4850 = vunpack.c.l.s4 1934713408
    %v4851 = vunpack.c.0.s8 %v4850
    %v4852 = vlaneseq
    %v4853 = vshrl.u32 %v4852, 7
    %v4854 = vsub.s32 %v4851, %v4853
    %v4855 = vrot.slane %v4841, %v4854
    %v4856 = vcombine.low %v4800, %v4816
    %v4857 = vcombine.high %v4800, %v4816
    %v4859 = vunpack.c.l.s4 1934713408
    %v4860 = vunpack.c.0.s8 %v4859
    %v4861 = vlaneseq
    %v4862 = vshrl.u32 %v4861, 7
    %v4863 = vsub.s32 %v4860, %v4862
    %v4864 = vrot.slane %v4856, %v4863
    %v4866 = vunpack.c.l.s4 1934713408
    %v4867 = vunpack.c.0.s8 %v4866
    %v4868 = vlaneseq
    %v4869 = vshrl.u32 %v4868, 7
    %v4870 = vsub.s32 %v4867, %v4869
    %v4871 = vrot.slane %v4857, %v4870
    %v4872 = vcombine.low %v4807, %v4823
    %v4873 = vcombine.high %v4807, %v4823
    %v4875 = vunpack.c.l.s4 1934713408
    %v4876 = vunpack.c.0.s8 %v4875
    %v4877 = vlaneseq
    %v4878 = vshrl.u32 %v4877, 7
    %v4879 = vsub.s32 %v4876, %v4878
    %v4880 = vrot.slane %v4872, %v4879
    %v4882 = vunpack.c.l.s4 1934713408
    %v4883 = vunpack.c.0.s8 %v4882
    %v4884 = vlaneseq
    %v4885 = vshrl.u32 %v4884, 7
    %v4886 = vsub.s32 %v4883, %v4885
    %v4887 = vrot.slane %v4873, %v4886
    %v4888 = vcombine.low %v4832, %v4864
    %v4889 = vcombine.high %v4832, %v4864
    %v4890 = vcombine.low %v4839, %v4871
    %v4891 = vcombine.high %v4839, %v4871
    %v4892 = vcombine.low %v4848, %v4880
    %v4893 = vcombine.high %v4848, %v4880
    %v4894 = vcombine.low %v4855, %v4887
    %v4895 = vcombine.high %v4855, %v4887
    %v4896 = vcombine.low %v4246, %v4392
    %v4897 = vcombine.high %v4246, %v4392
    %v4899 = vunpack.c.l.s4 1983009808
    %v4900 = vunpack.c.0.s8 %v4899
    %v4901 = vlaneseq
    %v4902 = vshrl.u32 %v4901, 7
    %v4903 = vsub.s32 %v4900, %v4902
    %v4904 = vrot.slane %v4896, %v4903
    %v4906 = vunpack.c.l.s4 1983009808
    %v4907 = vunpack.c.0.s8 %v4906
    %v4908 = vlaneseq
    %v4909 = vshrl.u32 %v4908, 7
    %v4910 = vsub.s32 %v4907, %v4909
    %v4911 = vrot.slane %v4897, %v4910
    %v4912 = vcombine.low %v4319, %v4465
    %v4913 = vcombine.high %v4319, %v4465
    %v4915 = vunpack.c.l.s4 1983009808
    %v4916 = vunpack.c.0.s8 %v4915
    %v4917 = vlaneseq
    %v4918 = vshrl.u32 %v4917, 7
    %v4919 = vsub.s32 %v4916, %v4918
    %v4920 = vrot.slane %v4912, %v4919
    %v4922 = vunpack.c.l.s4 1983009808
    %v4923 = vunpack.c.0.s8 %v4922
    %v4924 = vlaneseq
    %v4925 = vshrl.u32 %v4924, 7
    %v4926 = vsub.s32 %v4923, %v4925
    %v4927 = vrot.slane %v4913, %v4926
    %v4928 = vcombine.low %v4538, %v4684
    %v4929 = vcombine.high %v4538, %v4684
    %v4931 = vunpack.c.l.s4 1983009808
    %v4932 = vunpack.c.0.s8 %v4931
    %v4933 = vlaneseq
    %v4934 = vshrl.u32 %v4933, 7
    %v4935 = vsub.s32 %v4932, %v4934
    %v4936 = vrot.slane %v4928, %v4935
    %v4938 = vunpack.c.l.s4 1983009808
    %v4939 = vunpack.c.0.s8 %v4938
    %v4940 = vlaneseq
    %v4941 = vshrl.u32 %v4940, 7
    %v4942 = vsub.s32 %v4939, %v4941
    %v4943 = vrot.slane %v4929, %v4942
    %v4944 = vcombine.low %v4611, %v4757
    %v4945 = vcombine.high %v4611, %v4757
    %v4947 = vunpack.c.l.s4 1983009808
    %v4948 = vunpack.c.0.s8 %v4947
    %v4949 = vlaneseq
    %v4950 = vshrl.u32 %v4949, 7
    %v4951 = vsub.s32 %v4948, %v4950
    %v4952 = vrot.slane %v4944, %v4951
    %v4954 = vunpack.c.l.s4 1983009808
    %v4955 = vunpack.c.0.s8 %v4954
    %v4956 = vlaneseq
    %v4957 = vshrl.u32 %v4956, 7
    %v4958 = vsub.s32 %v4955, %v4957
    %v4959 = vrot.slane %v4945, %v4958
    %v4960 = vcombine.low %v4904, %v4920
    %v4961 = vcombine.high %v4904, %v4920
    %v4963 = vunpack.c.l.s4 1934713408
    %v4964 = vunpack.c.0.s8 %v4963
    %v4965 = vlaneseq
    %v4966 = vshrl.u32 %v4965, 7
    %v4967 = vsub.s32 %v4964, %v4966
    %v4968 = vrot.slane %v4960, %v4967
    %v4970 = vunpack.c.l.s4 1934713408
    %v4971 = vunpack.c.0.s8 %v4970
    %v4972 = vlaneseq
    %v4973 = vshrl.u32 %v4972, 7
    %v4974 = vsub.s32 %v4971, %v4973
    %v4975 = vrot.slane %v4961, %v4974
    %v4976 = vcombine.low %v4911, %v4927
    %v4977 = vcombine.high %v4911, %v4927
    %v4979 = vunpack.c.l.s4 1934713408
    %v4980 = vunpack.c.0.s8 %v4979
    %v4981 = vlaneseq
    %v4982 = vshrl.u32 %v4981, 7
    %v4983 = vsub.s32 %v4980, %v4982
    %v4984 = vrot.slane %v4976, %v4983
    %v4986 = vunpack.c.l.s4 1934713408
    %v4987 = vunpack.c.0.s8 %v4986
    %v4988 = vlaneseq
    %v4989 = vshrl.u32 %v4988, 7
    %v4990 = vsub.s32 %v4987, %v4989
    %v4991 = vrot.slane %v4977, %v4990
    %v4992 = vcombine.low %v4936, %v4952
    %v4993 = vcombine.high %v4936, %v4952
    %v4995 = vunpack.c.l.s4 1934713408
    %v4996 = vunpack.c.0.s8 %v4995
    %v4997 = vlaneseq
    %v4998 = vshrl.u32 %v4997, 7
    %v4999 = vsub.s32 %v4996, %v4998
    %v5000 = vrot.slane %v4992, %v4999
    %v5002 = vunpack.c.l.s4 1934713408
    %v5003 = vunpack.c.0.s8 %v5002
    %v5004 = vlaneseq
    %v5005 = vshrl.u32 %v5004, 7
    %v5006 = vsub.s32 %v5003, %v5005
    %v5007 = vrot.slane %v4993, %v5006
    %v5008 = vcombine.low %v4943, %v4959
    %v5009 = vcombine.high %v4943, %v4959
    %v5011 = vunpack.c.l.s4 1934713408
    %v5012 = vunpack.c.0.s8 %v5011
    %v5013 = vlaneseq
    %v5014 = vshrl.u32 %v5013, 7
    %v5015 = vsub.s32 %v5012, %v5014
    %v5016 = vrot.slane %v5008, %v5015
    %v5018 = vunpack.c.l.s4 1934713408
    %v5019 = vunpack.c.0.s8 %v5018
    %v5020 = vlaneseq
    %v5021 = vshrl.u32 %v5020, 7
    %v5022 = vsub.s32 %v5019, %v5021
    %v5023 = vrot.slane %v5009, %v5022
    %v5024 = vcombine.low %v4968, %v5000
    %v5025 = vcombine.high %v4968, %v5000
    %v5026 = vcombine.low %v4975, %v5007
    %v5027 = vcombine.high %v4975, %v5007
    %v5028 = vcombine.low %v4984, %v5016
    %v5029 = vcombine.high %v4984, %v5016
    %v5030 = vcombine.low %v4991, %v5023
    %v5031 = vcombine.high %v4991, %v5023
    %v5032 = vcombine.low %v4888, %v4890
    %v5033 = vcombine.high %v4888, %v4890
    %v5035 = vunpack.c.l.s4 1983009808
    %v5036 = vunpack.c.0.s8 %v5035
    %v5037 = vlaneseq
    %v5038 = vshrl.u32 %v5037, 7
    %v5039 = vsub.s32 %v5036, %v5038
    %v5040 = vrot.slane %v5032, %v5039
    %v5042 = vunpack.c.l.s4 1983009808
    %v5043 = vunpack.c.0.s8 %v5042
    %v5044 = vlaneseq
    %v5045 = vshrl.u32 %v5044, 7
    %v5046 = vsub.s32 %v5043, %v5045
    %v5047 = vrot.slane %v5033, %v5046
    %v5048 = vcombine.low %v4889, %v4891
    %v5049 = vcombine.high %v4889, %v4891
    %v5051 = vunpack.c.l.s4 1983009808
    %v5052 = vunpack.c.0.s8 %v5051
    %v5053 = vlaneseq
    %v5054 = vshrl.u32 %v5053, 7
    %v5055 = vsub.s32 %v5052, %v5054
    %v5056 = vrot.slane %v5048, %v5055
    %v5058 = vunpack.c.l.s4 1983009808
    %v5059 = vunpack.c.0.s8 %v5058
    %v5060 = vlaneseq
    %v5061 = vshrl.u32 %v5060, 7
    %v5062 = vsub.s32 %v5059, %v5061
    %v5063 = vrot.slane %v5049, %v5062
    %v5064 = vcombine.low %v4892, %v4894
    %v5065 = vcombine.high %v4892, %v4894
    %v5067 = vunpack.c.l.s4 1983009808
    %v5068 = vunpack.c.0.s8 %v5067
    %v5069 = vlaneseq
    %v5070 = vshrl.u32 %v5069, 7
    %v5071 = vsub.s32 %v5068, %v5070
    %v5072 = vrot.slane %v5064, %v5071
    %v5074 = vunpack.c.l.s4 1983009808
    %v5075 = vunpack.c.0.s8 %v5074
    %v5076 = vlaneseq
    %v5077 = vshrl.u32 %v5076, 7
    %v5078 = vsub.s32 %v5075, %v5077
    %v5079 = vrot.slane %v5065, %v5078
    %v5080 = vcombine.low %v4893, %v4895
    %v5081 = vcombine.high %v4893, %v4895
    %v5083 = vunpack.c.l.s4 1983009808
    %v5084 = vunpack.c.0.s8 %v5083
    %v5085 = vlaneseq
    %v5086 = vshrl.u32 %v5085, 7
    %v5087 = vsub.s32 %v5084, %v5086
    %v5088 = vrot.slane %v5080, %v5087
    %v5090 = vunpack.c.l.s4 1983009808
    %v5091 = vunpack.c.0.s8 %v5090
    %v5092 = vlaneseq
    %v5093 = vshrl.u32 %v5092, 7
    %v5094 = vsub.s32 %v5091, %v5093
    %v5095 = vrot.slane %v5081, %v5094
    %v5096 = vcombine.low %v5040, %v5056
    %v5097 = vcombine.high %v5040, %v5056
    %v5099 = vunpack.c.l.s4 1934713408
    %v5100 = vunpack.c.0.s8 %v5099
    %v5101 = vlaneseq
    %v5102 = vshrl.u32 %v5101, 7
    %v5103 = vsub.s32 %v5100, %v5102
    %v5104 = vrot.slane %v5096, %v5103
    %v5106 = vunpack.c.l.s4 1934713408
    %v5107 = vunpack.c.0.s8 %v5106
    %v5108 = vlaneseq
    %v5109 = vshrl.u32 %v5108, 7
    %v5110 = vsub.s32 %v5107, %v5109
    %v5111 = vrot.slane %v5097, %v5110
    %v5112 = vcombine.low %v5047, %v5063
    %v5113 = vcombine.high %v5047, %v5063
    %v5115 = vunpack.c.l.s4 1934713408
    %v5116 = vunpack.c.0.s8 %v5115
    %v5117 = vlaneseq
    %v5118 = vshrl.u32 %v5117, 7
    %v5119 = vsub.s32 %v5116, %v5118
    %v5120 = vrot.slane %v5112, %v5119
    %v5122 = vunpack.c.l.s4 1934713408
    %v5123 = vunpack.c.0.s8 %v5122
    %v5124 = vlaneseq
    %v5125 = vshrl.u32 %v5124, 7
    %v5126 = vsub.s32 %v5123, %v5125
    %v5127 = vrot.slane %v5113, %v5126
    %v5128 = vcombine.low %v5072, %v5088
    %v5129 = vcombine.high %v5072, %v5088
    %v5131 = vunpack.c.l.s4 1934713408
    %v5132 = vunpack.c.0.s8 %v5131
    %v5133 = vlaneseq
    %v5134 = vshrl.u32 %v5133, 7
    %v5135 = vsub.s32 %v5132, %v5134
    %v5136 = vrot.slane %v5128, %v5135
    %v5138 = vunpack.c.l.s4 1934713408
    %v5139 = vunpack.c.0.s8 %v5138
    %v5140 = vlaneseq
    %v5141 = vshrl.u32 %v5140, 7
    %v5142 = vsub.s32 %v5139, %v5141
    %v5143 = vrot.slane %v5129, %v5142
    %v5144 = vcombine.low %v5079, %v5095
    %v5145 = vcombine.high %v5079, %v5095
    %v5147 = vunpack.c.l.s4 1934713408
    %v5148 = vunpack.c.0.s8 %v5147
    %v5149 = vlaneseq
    %v5150 = vshrl.u32 %v5149, 7
    %v5151 = vsub.s32 %v5148, %v5150
    %v5152 = vrot.slane %v5144, %v5151
    %v5154 = vunpack.c.l.s4 1934713408
    %v5155 = vunpack.c.0.s8 %v5154
    %v5156 = vlaneseq
    %v5157 = vshrl.u32 %v5156, 7
    %v5158 = vsub.s32 %v5155, %v5157
    %v5159 = vrot.slane %v5145, %v5158
    %v5160 = vcombine.low %v5104, %v5136
    %v5161 = vcombine.high %v5104, %v5136
    %v5162 = vcombine.low %v5111, %v5143
    %v5163 = vcombine.high %v5111, %v5143
    %v5164 = vcombine.low %v5120, %v5152
    %v5165 = vcombine.high %v5120, %v5152
    %v5166 = vcombine.low %v5127, %v5159
    %v5167 = vcombine.high %v5127, %v5159
    %v5168 = vcombine.low %v5024, %v5026
    %v5169 = vcombine.high %v5024, %v5026
    %v5171 = vunpack.c.l.s4 1983009808
    %v5172 = vunpack.c.0.s8 %v5171
    %v5173 = vlaneseq
    %v5174 = vshrl.u32 %v5173, 7
    %v5175 = vsub.s32 %v5172, %v5174
    %v5176 = vrot.slane %v5168, %v5175
    %v5178 = vunpack.c.l.s4 1983009808
    %v5179 = vunpack.c.0.s8 %v5178
    %v5180 = vlaneseq
    %v5181 = vshrl.u32 %v5180, 7
    %v5182 = vsub.s32 %v5179, %v5181
    %v5183 = vrot.slane %v5169, %v5182
    %v5184 = vcombine.low %v5025, %v5027
    %v5185 = vcombine.high %v5025, %v5027
    %v5187 = vunpack.c.l.s4 1983009808
    %v5188 = vunpack.c.0.s8 %v5187
    %v5189 = vlaneseq
    %v5190 = vshrl.u32 %v5189, 7
    %v5191 = vsub.s32 %v5188, %v5190
    %v5192 = vrot.slane %v5184, %v5191
    %v5194 = vunpack.c.l.s4 1983009808
    %v5195 = vunpack.c.0.s8 %v5194
    %v5196 = vlaneseq
    %v5197 = vshrl.u32 %v5196, 7
    %v5198 = vsub.s32 %v5195, %v5197
    %v5199 = vrot.slane %v5185, %v5198
    %v5200 = vcombine.low %v5028, %v5030
    %v5201 = vcombine.high %v5028, %v5030
    %v5203 = vunpack.c.l.s4 1983009808
    %v5204 = vunpack.c.0.s8 %v5203
    %v5205 = vlaneseq
    %v5206 = vshrl.u32 %v5205, 7
    %v5207 = vsub.s32 %v5204, %v5206
    %v5208 = vrot.slane %v5200, %v5207
    %v5210 = vunpack.c.l.s4 1983009808
    %v5211 = vunpack.c.0.s8 %v5210
    %v5212 = vlaneseq
    %v5213 = vshrl.u32 %v5212, 7
    %v5214 = vsub.s32 %v5211, %v5213
    %v5215 = vrot.slane %v5201, %v5214
    %v5216 = vcombine.low %v5029, %v5031
    %v5217 = vcombine.high %v5029, %v5031
    %v5219 = vunpack.c.l.s4 1983009808
    %v5220 = vunpack.c.0.s8 %v5219
    %v5221 = vlaneseq
    %v5222 = vshrl.u32 %v5221, 7
    %v5223 = vsub.s32 %v5220, %v5222
    %v5224 = vrot.slane %v5216, %v5223
    %v5226 = vunpack.c.l.s4 1983009808
    %v5227 = vunpack.c.0.s8 %v5226
    %v5228 = vlaneseq
    %v5229 = vshrl.u32 %v5228, 7
    %v5230 = vsub.s32 %v5227, %v5229
    %v5231 = vrot.slane %v5217, %v5230
    %v5232 = vcombine.low %v5176, %v5192
    %v5233 = vcombine.high %v5176, %v5192
    %v5235 = vunpack.c.l.s4 1934713408
    %v5236 = vunpack.c.0.s8 %v5235
    %v5237 = vlaneseq
    %v5238 = vshrl.u32 %v5237, 7
    %v5239 = vsub.s32 %v5236, %v5238
    %v5240 = vrot.slane %v5232, %v5239
    %v5242 = vunpack.c.l.s4 1934713408
    %v5243 = vunpack.c.0.s8 %v5242
    %v5244 = vlaneseq
    %v5245 = vshrl.u32 %v5244, 7
    %v5246 = vsub.s32 %v5243, %v5245
    %v5247 = vrot.slane %v5233, %v5246
    %v5248 = vcombine.low %v5183, %v5199
    %v5249 = vcombine.high %v5183, %v5199
    %v5251 = vunpack.c.l.s4 1934713408
    %v5252 = vunpack.c.0.s8 %v5251
    %v5253 = vlaneseq
    %v5254 = vshrl.u32 %v5253, 7
    %v5255 = vsub.s32 %v5252, %v5254
    %v5256 = vrot.slane %v5248, %v5255
    %v5258 = vunpack.c.l.s4 1934713408
    %v5259 = vunpack.c.0.s8 %v5258
    %v5260 = vlaneseq
    %v5261 = vshrl.u32 %v5260, 7
    %v5262 = vsub.s32 %v5259, %v5261
    %v5263 = vrot.slane %v5249, %v5262
    %v5264 = vcombine.low %v5208, %v5224
    %v5265 = vcombine.high %v5208, %v5224
    %v5267 = vunpack.c.l.s4 1934713408
    %v5268 = vunpack.c.0.s8 %v5267
    %v5269 = vlaneseq
    %v5270 = vshrl.u32 %v5269, 7
    %v5271 = vsub.s32 %v5268, %v5270
    %v5272 = vrot.slane %v5264, %v5271
    %v5274 = vunpack.c.l.s4 1934713408
    %v5275 = vunpack.c.0.s8 %v5274
    %v5276 = vlaneseq
    %v5277 = vshrl.u32 %v5276, 7
    %v5278 = vsub.s32 %v5275, %v5277
    %v5279 = vrot.slane %v5265, %v5278
    %v5280 = vcombine.low %v5215, %v5231
    %v5281 = vcombine.high %v5215, %v5231
    %v5283 = vunpack.c.l.s4 1934713408
    %v5284 = vunpack.c.0.s8 %v5283
    %v5285 = vlaneseq
    %v5286 = vshrl.u32 %v5285, 7
    %v5287 = vsub.s32 %v5284, %v5286
    %v5288 = vrot.slane %v5280, %v5287
    %v5290 = vunpack.c.l.s4 1934713408
    %v5291 = vunpack.c.0.s8 %v5290
    %v5292 = vlaneseq
    %v5293 = vshrl.u32 %v5292, 7
    %v5294 = vsub.s32 %v5291, %v5293
    %v5295 = vrot.slane %v5281, %v5294
    %v5296 = vcombine.low %v5240, %v5272
    %v5297 = vcombine.high %v5240, %v5272
    %v5298 = vcombine.low %v5247, %v5279
    %v5299 = vcombine.high %v5247, %v5279
    %v5300 = vcombine.low %v5256, %v5288
    %v5301 = vcombine.high %v5256, %v5288
    %v5302 = vcombine.low %v5263, %v5295
    %v5303 = vcombine.high %v5263, %v5295
    %5306 = vrot.lane.b32.xlu0 %v5161, 4
    %v5307 = vpop.permute.xlu0 %5306
    %5308 = vrot.lane.b32.xlu0 %v5297, 4
    %v5309 = vpop.permute.xlu0 %5308
    %5314 = vrot.lane.b32.xlu0 %v5162, 8
    %v5315 = vpop.permute.xlu0 %5314
    %5316 = vrot.lane.b32.xlu0 %v5298, 8
    %v5317 = vpop.permute.xlu0 %5316
    %5322 = vrot.lane.b32.xlu0 %v5163, 12
    %v5323 = vpop.permute.xlu0 %5322
    %5324 = vrot.lane.b32.xlu0 %v5299, 12
    %v5325 = vpop.permute.xlu0 %5324
    %5330 = vrot.lane.b32.xlu0 %v5164, 16
    %v5331 = vpop.permute.xlu0 %5330
    %5332 = vrot.lane.b32.xlu0 %v5300, 16
    %v5333 = vpop.permute.xlu0 %5332
    %5338 = vrot.lane.b32.xlu0 %v5165, 20
    %v5339 = vpop.permute.xlu0 %5338
    %5340 = vrot.lane.b32.xlu0 %v5301, 20
    %v5341 = vpop.permute.xlu0 %5340
    %5346 = vrot.lane.b32.xlu0 %v5166, 24
    %v5347 = vpop.permute.xlu0 %5346
    %5348 = vrot.lane.b32.xlu0 %v5302, 24
    %v5349 = vpop.permute.xlu0 %5348
    %5354 = vrot.lane.b32.xlu0 %v5167, 28
    %v5355 = vpop.permute.xlu0 %5354
    %5356 = vrot.lane.b32.xlu0 %v5303, 28
    %v5357 = vpop.permute.xlu0 %5356
    %v5360 = vsel %vm2182, %v5160, %v5307
    %v5361 = vsel %vm2182, %v5296, %v5309
    %v5362 = vsel %vm3399, %v5360, %v5315
    %v5363 = vsel %vm3399, %v5361, %v5317
    %vm5364 = vcmask 97280
    %v5365 = vsel %vm5364, %v5362, %v5323
    %v5366 = vsel %vm5364, %v5363, %v5325
    %vm5367 = vcmask 130048
    %v5368 = vsel %vm5367, %v5365, %v5331
    %v5369 = vsel %vm5367, %v5366, %v5333
    %vm5370 = vcmask 162816
    %v5371 = vsel %vm5370, %v5368, %v5339
    %v5372 = vsel %vm5370, %v5369, %v5341
    %vm5373 = vcmask 195584
    %v5374 = vsel %vm5373, %v5371, %v5347
    %v5375 = vsel %vm5373, %v5372, %v5349
    %vm5376 = vcmask 228352
    %v5377 = vsel %vm5376, %v5374, %v5355
    %v5378 = vsel %vm5376, %v5375, %v5357
    %v5379 = vld [vmem:[%s9] sm:$0xff]
    %v5380 = vld [vmem:[%s9 + $0x8] sm:$0xff]
    %v5381 = vld [vmem:[%s9 + $0x10] sm:$0xff]
    %v5382 = vld [vmem:[%s9 + $0x18] sm:$0xff]
    %v5383 = vld [vmem:[%s10] sm:$0x1]
    %v5385 = vlaneseq
    %v5386 = vshrl.u32 %v5385, 7
    %v5387 = vsub.s32 0, %v5386
    %v5388 = vrot.slane %v5383, %v5387
    %v5391 = vsel %vm152, %v5377, 0
    %v5394 = vsel %vm152, %v5378, 0
    %5396 = vmatprep.subr.mxu0 0.0
    %5397 = vmatpush1.msra.mxu0 %v5379
    %5398 = vmatprep.subr.mxu0 0.0
    %5399 = vmatpush1.msra.mxu0 %v5380
    %5400 = vmatprep.subr.mxu0 0.0
    %5401 = vmatpush1.msra.mxu0 %v5381
    %5402 = vmatprep.subr.mxu0 0.0
    %5403 = vmatpush1.msra.mxu0 %v5382
    %5404 = vmatprep.subr.mxu0 0.0
    %5405 = vmatpush1.msra.mxu0 0.0
    %5406 = vmatprep.subr.mxu0 0.0
    %5407 = vmatpush1.msra.mxu0 0.0
    %5408 = vmatprep.subr.mxu0 0.0
    %5409 = vmatpush1.msra.mxu0 0.0
    %5410 = vmatprep.subr.mxu0 0.0
    %5411 = vmatpush1.msra.mxu0 0.0
    %5412 = vmatprep.subr.mxu0 0.0
    %5413 = vmatpush1.msra.mxu0 0.0
    %5414 = vmatprep.subr.mxu0 0.0
    %5415 = vmatpush1.msra.mxu0 0.0
    %5416 = vmatprep.subr.mxu0 0.0
    %5417 = vmatpush1.msra.mxu0 0.0
    %5418 = vmatprep.subr.mxu0 0.0
    %5419 = vmatpush1.msra.mxu0 0.0
    %5420 = vmatprep.subr.mxu0 0.0
    %5421 = vmatpush1.msra.mxu0 0.0
    %5422 = vmatprep.subr.mxu0 0.0
    %5423 = vmatpush1.msra.mxu0 0.0
    %5424 = vmatprep.subr.mxu0 0.0
    %5425 = vmatpush1.msra.mxu0 0.0
    %5426 = vmatprep.subr.mxu0 0.0
    %5427 = vmatpush1.msra.mxu0 0.0
    %5428 = vmatprep.subr.mxu0 0.0
    %5429 = vmatpush1.msra.mxu0 0.0
    %5430 = vmatprep.subr.mxu0 0.0
    %5431 = vmatpush1.msra.mxu0 0.0
    %5432 = vmatprep.subr.mxu0 0.0
    %5433 = vmatpush1.msra.mxu0 0.0
    %5434 = vmatprep.subr.mxu0 0.0
    %5435 = vmatpush1.msra.mxu0 0.0
    %5436 = vmatprep.subr.mxu0 0.0
    %5437 = vmatpush1.msra.mxu0 0.0
    %5438 = vmatprep.subr.mxu0 0.0
    %5439 = vmatpush1.msra.mxu0 0.0
    %5440 = vmatprep.subr.mxu0 0.0
    %5441 = vmatpush1.msra.mxu0 0.0
    %5442 = vmatprep.subr.mxu0 0.0
    %5443 = vmatpush1.msra.mxu0 0.0
    %5444 = vmatprep.subr.mxu0 0.0
    %5445 = vmatpush1.msra.mxu0 0.0
    %5446 = vmatprep.subr.mxu0 0.0
    %5447 = vmatpush1.msra.mxu0 0.0
    %5448 = vmatprep.subr.mxu0 0.0
    %5449 = vmatpush1.msra.mxu0 0.0
    %5450 = vmatprep.subr.mxu0 0.0
    %5451 = vmatpush1.msra.mxu0 0.0
    %5452 = vmatprep.subr.mxu0 0.0
    %5453 = vmatpush1.msra.mxu0 0.0
    %5454 = vmatprep.subr.mxu0 0.0
    %5455 = vmatpush1.msra.mxu0 0.0
    %5456 = vmatprep.subr.mxu0 0.0
    %5457 = vmatpush1.msra.mxu0 0.0
    %5458 = vmatprep.subr.mxu0 0.0
    %5459 = vmatpush1.msra.mxu0 0.0
    %5460 = vmatprep.mubr.f32.mxu0 0.0
    %5461 = vmatmul.mubr.f32.gmra.mrb[0].mxu0 %v5391
    %v5462 = vpop.f32.mrb[0].mxu0
    %v5463 = vadd.f32 %v5388, %v5462
    %v5464 = vpop.f32.mrb[0].mxu0
    %5465 = vmatprep.mubr.f32.mxu0 0.0
    %5466 = vmatmul.mubr.f32.gmra.mrb[0].mxu0 %v5394
    %v5467 = vpop.f32.mrb[0].mxu0
    %v5468 = vadd.f32 %v5388, %v5467
    %v5469 = vpop.f32.mrb[0].mxu0
    %5470 = vdwg.mxu0
    %5471 = vst.msk [vmem:[#allocation14] sm:$0xff] %vm152, %v5463
    %5472 = vst.msk [vmem:[#allocation14 + $0x8] sm:$0xff] %vm152, %v5468
    // Predicated region
    $region74: #{tpu_custom_call.1} parent=1 // pred_check
      _
    $region75: #{tpu_custom_call.1} parent=1 // pred_check_branch
      %5474 = sbr.rel (0) target = $region77
    $region76: #{tpu_custom_call.1} parent=1 // pred_region
      %s5476 = ssub.s32 256, 256
      %5477 = vsyncadd [#allocation4], %s5476
      %s5478 = sshll.u32 [#allocation14], 4
      %s5479 = int_to_ptr.vmem [resolvable:$true] %s5478
      %5484 = dma.vmem_to_hbm [thread:$0]  %s5479, 256, %s11, [#allocation4], 128, 128, 8
    $region77: #{tpu_custom_call.1} parent=1 // pred_fallthru
      _
    // Predicated region
    $region78: #{tpu_custom_call.1} parent=1 // pred_check
      _
    $region79: #{tpu_custom_call.1} parent=1 // pred_check_branch
      %5486 = sbr.rel (0) target = $region81
    $region80: #{tpu_custom_call.1} parent=1 // pred_region
      %s5488 = ssub.s32 2048, 2048
      %5489 = vsyncadd [#allocation16], %s5488
      %s5490 = sshll.u32 [#allocation15], 4
      %s5491 = int_to_ptr.vmem [resolvable:$true] %s5490
      %5496 = dma.vmem_to_hbm [thread:$0]  %s5491, 2048, %s12, [#allocation16], 128, 128, 8
    $region81: #{tpu_custom_call.1} parent=1 // pred_fallthru
      _
    // Predicated region
    $region82: #{tpu_custom_call.1} parent=1 // pred_check
      _
    $region83: #{tpu_custom_call.1} parent=1 // pred_check_branch
      %5498 = sbr.rel (0) target = $region85
    $region84: #{tpu_custom_call.1} parent=1 // pred_region
      %5499 = dma.done [#allocation4], 256
    $region85: #{tpu_custom_call.1} parent=1 // pred_fallthru
      _
    // Predicated region
    $region86: #{tpu_custom_call.1} parent=1 // pred_check
      _
    $region87: #{tpu_custom_call.1} parent=1 // pred_check_branch
      %5501 = sbr.rel (0) target = $region89
    $region88: #{tpu_custom_call.1} parent=1 // pred_region
      %5502 = dma.done [#allocation16], 2048
    $region89: #{tpu_custom_call.1} parent=1 // pred_fallthru
      _
    %5503 = vsyncpa [#allocation3], 1
    %5504 = vsyncpa [#allocation6], 1
    %5505 = vsyncpa [#allocation9], 1
    %5506 = vsyncpa [#allocation12], 1
    %5507 = vsyncpa [#allocation4], 1
    %5508 = vsyncpa [#allocation16], 1

</llo_original>
